<compile_context>
chip_gen: v7x
topology: tpu7x:2x2x1
jax: 0.10.0
libtpu: 0.0.40
codegen_flags: <defaults>
</compile_context>

<pallas_src>
import math

import jax
import jax.numpy as jnp
from jax.experimental import pallas as pl
from jax.experimental.pallas import tpu as pltpu

_VMEM = pl.BlockSpec(memory_space=pltpu.MemorySpace.VMEM)


def _round_up(n, m):
    return ((n + m - 1) // m) * m


def _elu(h):
    # ELU(alpha=1) in f32 (VPU select + EUP exp); exp arg clamped so the unselected branch is finite.
    return jnp.where(h > 0, h, jnp.exp(jnp.minimum(h, 0.0)) - 1.0)


def _bdot(a, b):
    # MXU matmul: bf16 operands, f32 accumulation.
    return jnp.dot(a.astype(jnp.bfloat16), b.astype(jnp.bfloat16),
                   preferred_element_type=jnp.float32)


# --------------------------- BatchNorm (tiled, 2-pass) ---------------------------

def batch_norm(x, gamma, beta, *, row_tile=1024):
    """Training-mode BatchNorm1d (batch stats, eps=1e-5), row-tiled & pipelined."""
    n, f = x.shape
    tm = n if n <= row_tile else row_tile
    grid = (pl.cdiv(n, tm),)

    def stats_kernel(x_ref, s_ref, q_ref):
        i = pl.program_id(0)

        @pl.when(i == 0)
        def _():
            s_ref[...] = jnp.zeros_like(s_ref)
            q_ref[...] = jnp.zeros_like(q_ref)

        xv = x_ref[...]
        rows = jax.lax.broadcasted_iota(jnp.int32, xv.shape, 0) + i * tm
        xm = jnp.where(rows < n, xv, 0.0)          # mask any padded last row-tile
        s_ref[...] += jnp.sum(xm, axis=0, keepdims=True)
        q_ref[...] += jnp.sum(xm * xm, axis=0, keepdims=True)

    s, q = pl.pallas_call(
        stats_kernel,
        out_shape=(jax.ShapeDtypeStruct((1, f), jnp.float32),
                   jax.ShapeDtypeStruct((1, f), jnp.float32)),
        grid=grid,
        in_specs=[pl.BlockSpec((tm, f), lambda i: (i, 0))],
        out_specs=(pl.BlockSpec((1, f), lambda i: (0, 0)),
                   pl.BlockSpec((1, f), lambda i: (0, 0))),
        compiler_params=pltpu.CompilerParams(dimension_semantics=("arbitrary",)),
    )(x)

    def norm_kernel(x_ref, s_ref, q_ref, g_ref, b_ref, o_ref):
        inv_n = 1.0 / n
        mean = s_ref[...] * inv_n
        var = jnp.maximum(q_ref[...] * inv_n - mean * mean, 0.0)   # clamp: no rsqrt NaN
        scale = g_ref[...] * jax.lax.rsqrt(var + 1e-5)
        o_ref[...] = (x_ref[...] - mean) * scale + b_ref[...]

    rep = pl.BlockSpec((1, f), lambda i: (0, 0))
    return pl.pallas_call(
        norm_kernel,
        out_shape=jax.ShapeDtypeStruct((n, f), jnp.float32),
        grid=grid,
        in_specs=[pl.BlockSpec((tm, f), lambda i: (i, 0)), rep, rep, rep, rep],
        out_specs=pl.BlockSpec((tm, f), lambda i: (i, 0)),
        compiler_params=pltpu.CompilerParams(dimension_semantics=("parallel",)),
    )(x, s, q, gamma, beta)


# ----------------------------- fused MetaLayer kernel ----------------------------

def _meta_kernel(e_ref, r_ref, c_ref, s_ref, x_ref, u_ref, bmat_ref,
                 inv_col_ref, inv_b_ref,
                 w_src_ref, w_dst_ref, w_e_ref, e_b1_ref, e_w2_ref, e_b2_ref,
                 n1_wx_ref, n1_we_ref, n1_b1_ref, n1_w2_ref, n1_b2_ref,
                 n2_wx_ref, n2_wa_ref, n2_b1_ref, n2_w2_ref, n2_b2_ref,
                 g_wu_ref, g_wx_ref, g_b1_ref, g_w2_ref, g_b2_ref,
                 x_out_ref, e_out_ref, u_out_ref,
                 agg_ref):
    i = pl.program_id(0)

    @pl.when(i == 0)
    def _():
        agg_ref[...] = jnp.zeros_like(agg_ref)

    x = x_ref[...]                                   # [N, nf] f32, resident across the grid

    # ---- gather x_src / x_dst for this edge tile via one-hot matmuls (MXU) ----
    xr = _bdot(r_ref[...], x)                        # [tE, nf]  x[row]
    xc = _bdot(c_ref[...], x)                        # [tE, nf]  x[col]

    # ---- EdgeModel: e' = Lin2(ELU(x_src@W1a + x_dst@W1b + e@W1c + b1)) ----
    h = (_bdot(xr, w_src_ref[...]) + _bdot(xc, w_dst_ref[...])
         + _bdot(e_ref[...], w_e_ref[...]) + e_b1_ref[...])
    e_new = _bdot(_elu(h), e_w2_ref[...]) + e_b2_ref[...]        # [tE, e_out] f32
    e_out_ref[...] = e_new.astype(e_out_ref.dtype)               # bf16 inter-layer edge state

    # ---- NodeModel mlp1 (per edge) ----
    h = _bdot(xr, n1_wx_ref[...]) + _bdot(e_new, n1_we_ref[...]) + n1_b1_ref[...]
    hn = _bdot(_elu(h), n1_w2_ref[...]) + n1_b2_ref[...]          # [tE, 64]

    # ---- partial scatter-sum into resident accumulator: agg += S_tile @ hn (MXU) ----
    agg_ref[...] += _bdot(s_ref[...], hn)

    # ---- node / global phase on the final grid step ----
    @pl.when(i == pl.num_programs(0) - 1)
    def _():
        agg = agg_ref[...] * inv_col_ref[...]        # scatter_mean = sum * 1/count (precomputed)

        # NodeModel mlp2: x' = Lin2(ELU(x@U1x + agg@U1a + b1))
        h = _bdot(x, n2_wx_ref[...]) + _bdot(agg, n2_wa_ref[...]) + n2_b1_ref[...]
        x_new = _bdot(_elu(h), n2_w2_ref[...]) + n2_b2_ref[...]
        x_out_ref[...] = x_new

        # GlobalModel: gx = scatter_mean(x', batch) as one matmul; u' = Lin2(ELU([u|gx]@G1 + b1))
        gx = _bdot(bmat_ref[...], x_new) * inv_b_ref[...]
        h = _bdot(u_ref[...], g_wu_ref[...]) + _bdot(gx, g_wx_ref[...]) + g_b1_ref[...]
        u_out_ref[...] = _bdot(_elu(h), g_w2_ref[...]) + g_b2_ref[...]


_META_W_NAMES = ("w_src", "w_dst", "w_e", "e_b1", "e_w2", "e_b2",
                 "n1_wx", "n1_we", "n1_b1", "n1_w2", "n1_b2",
                 "n2_wx", "n2_wa", "n2_b1", "n2_w2", "n2_b2",
                 "g_wu", "g_wx", "g_b1", "g_w2", "g_b2")


def _zero_map(i):
    return (0, 0)


def meta_layer(p, e, R, C, S, x, u, bmat, inv_col, inv_b, *, edge_tile):
    e_pad, fe = e.shape
    n_nodes, nf = x.shape
    n_graphs = u.shape[0]
    e_out = p["e_w2"].shape[1]
    node_out = p["n2_w2"].shape[1]
    g_out = p["g_w2"].shape[1]
    te = edge_tile
    grid = (e_pad // te,)

    weights = [p[k] for k in _META_W_NAMES]
    args = [e, R, C, S, x, u, bmat, inv_col, inv_b] + weights

    in_specs = [
        pl.BlockSpec((te, fe), lambda i: (i, 0)),         # e        (tiled over edges)
        pl.BlockSpec((te, n_nodes), lambda i: (i, 0)),    # R        (tiled over edges)
        pl.BlockSpec((te, n_nodes), lambda i: (i, 0)),    # C        (tiled over edges)
        pl.BlockSpec((n_nodes, te), lambda i: (0, i)),    # S        (tiled over edges)
    ] + [pl.BlockSpec(a.shape, _zero_map) for a in args[4:]]   # x, u, B, counts, weights resident

    out_shape = (jax.ShapeDtypeStruct((n_nodes, node_out), jnp.float32),
                 jax.ShapeDtypeStruct((e_pad, e_out), jnp.bfloat16),
                 jax.ShapeDtypeStruct((n_graphs, g_out), jnp.float32))
    out_specs = (pl.BlockSpec((n_nodes, node_out), _zero_map),
                 pl.BlockSpec((te, e_out), lambda i: (i, 0)),
                 pl.BlockSpec((n_graphs, g_out), _zero_map))

    flops = 2 * (e_pad * n_nodes * (2 * nf + 64)
                 + e_pad * (2 * nf * 32 + fe * 32 + 32 * e_out
                            + nf * 64 + e_out * 64 + 64 * 64)
                 + n_nodes * (nf * 64 + 64 * 64 + 64 * node_out)
                 + n_graphs * (n_nodes * node_out + u.shape[1] * 64 + node_out * 64 + 64 * g_out))
    trans = e_pad * (32 + 64) + n_nodes * 64 + n_graphs * 64
    nbytes = int(sum(int(a.size) * a.dtype.itemsize for a in args)
                 + 4 * n_nodes * node_out + 2 * e_pad * e_out + 4 * n_graphs * g_out)

    return pl.pallas_call(
        _meta_kernel,
        out_shape=out_shape,
        grid=grid,
        in_specs=in_specs,
        out_specs=out_specs,
        scratch_shapes=[pltpu.VMEM((n_nodes, 64), jnp.float32)],
        compiler_params=pltpu.CompilerParams(
            dimension_semantics=("arbitrary",),
            vmem_limit_bytes=48 * 1024 * 1024),
        cost_estimate=pl.CostEstimate(flops=int(flops), transcendentals=int(trans),
                                      bytes_accessed=nbytes),
    )(*args)


# ------------------------------------ head ---------------------------------------

def head_mlp(u, head):
    w1, b1, w2, b2 = head

    def kernel(u_ref, w1_ref, b1_ref, w2_ref, b2_ref, o_ref):
        h = _elu(_bdot(u_ref[...], w1_ref[...]) + b1_ref[...])
        o_ref[...] = _bdot(h, w2_ref[...]) + b2_ref[...]

    return pl.pallas_call(
        kernel,
        out_shape=jax.ShapeDtypeStruct((u.shape[0], w2.shape[1]), jnp.float32),
        in_specs=[_VMEM] * 5,
        out_specs=_VMEM,
    )(u, w1, b1, w2, b2)


# --------------------------- parameter construction ------------------------------

def init_linear(key, din, dout):
    # NOTE: uniform(+-1/sqrt(fan_in)) for both W and b (PyTorch default W is kaiming_uniform;
    # distributions differ but the forward-pass structure is identical).
    kw, kb = jax.random.split(key)
    bound = 1.0 / math.sqrt(din)
    w = jax.random.uniform(kw, (din, dout), jnp.float32, -bound, bound)
    b = jax.random.uniform(kb, (1, dout), jnp.float32, -bound, bound)
    return w, b


def init_meta(key, nf, fe, e_out, node_out, g_u, g_out):
    ks = jax.random.split(key, 8)
    bf = jnp.bfloat16
    ew1, eb1 = init_linear(ks[0], 2 * nf + fe, 32)      # EdgeModel Lin1
    ew2, eb2 = init_linear(ks[1], 32, e_out)            # EdgeModel Lin2
    nw1, nb1 = init_linear(ks[2], nf + e_out, 64)       # NodeModel mlp1 Lin1
    nw2, nb2 = init_linear(ks[3], 64, 64)               # NodeModel mlp1 Lin2
    mw1, mb1 = init_linear(ks[4], nf + 64, 64)          # NodeModel mlp2 Lin1
    mw2, mb2 = init_linear(ks[5], 64, node_out)         # NodeModel mlp2 Lin2
    gw1, gb1 = init_linear(ks[6], g_u + node_out, 64)   # GlobalModel Lin1
    gw2, gb2 = init_linear(ks[7], 64, g_out)            # GlobalModel Lin2
    if g_u > 0:
        g_wu = gw1[:g_u]
    else:
        # Layer 1: u is None in the reference -> feed zeros(G,32) with a zero weight block.
        g_wu = jnp.zeros((32, 64), jnp.float32)
    return dict(
        w_src=ew1[:nf].astype(bf), w_dst=ew1[nf:2 * nf].astype(bf), w_e=ew1[2 * nf:].astype(bf),
        e_b1=eb1, e_w2=ew2.astype(bf), e_b2=eb2,
        n1_wx=nw1[:nf].astype(bf), n1_we=nw1[nf:].astype(bf), n1_b1=nb1,
        n1_w2=nw2.astype(bf), n1_b2=nb2,
        n2_wx=mw1[:nf].astype(bf), n2_wa=mw1[nf:].astype(bf), n2_b1=mb1,
        n2_w2=mw2.astype(bf), n2_b2=mb2,
        g_wu=g_wu.astype(bf), g_wx=gw1[g_u:].astype(bf), g_b1=gb1,
        g_w2=gw2.astype(bf), g_b2=gb2,
    )


def init_net(key, num_node_features, num_edge_features, out_channels):
    ks = jax.random.split(key, 10)
    metas = [
        #            nf,                 fe,               e_out, node_out, g_u, g_out
        init_meta(ks[0], num_node_features, num_edge_features, 256, 32, 0, 32),
        init_meta(ks[1], 32, 256, 256, 32, 32, 32),
        init_meta(ks[2], 32, 256, 256, 32, 32, 32),
        init_meta(ks[3], 32, 256, 256, 32, 32, 32),
        init_meta(ks[4], 32, 256, 256, 32, 32, 32),
        init_meta(ks[5], 32, 256, 256, 32, 32, 32),
        init_meta(ks[6], 32, 256, 32, 32, 32, 64),
    ]
    hw1, hb1 = init_linear(ks[7], 64, 256)
    hw2, hb2 = init_linear(ks[8], 256, out_channels)
    return dict(
        node_bn=(jnp.ones((1, num_node_features), jnp.float32),
                 jnp.zeros((1, num_node_features), jnp.float32)),
        edge_bn=(jnp.ones((1, num_edge_features), jnp.float32),
                 jnp.zeros((1, num_edge_features), jnp.float32)),
        metas=metas,
        head=(hw1.astype(jnp.bfloat16), hb1, hw2.astype(jnp.bfloat16), hb2),
    )


# --------------------------------- forward ---------------------------------------

def net_forward(params, x, edge_index, e, batch, num_graphs):
    row = edge_index[0].astype(jnp.int32)
    col = edge_index[1].astype(jnp.int32)
    n_nodes = x.shape[0]
    n_edges = e.shape[0]
    batch = batch.astype(jnp.int32)

    # ---- fixed-topology structures, built ONCE and reused by all 7 layers ----
    te = min(512, _round_up(n_edges, 128))            # edge tile (multiple of 128 lanes for S)
    e_pad = _round_up(n_edges, te)
    pad = e_pad - n_edges
    row_p = jnp.concatenate([row, jnp.full((pad,), -1, jnp.int32)])
    col_p = jnp.concatenate([col, jnp.full((pad,), -1, jnp.int32)])
    node_ids = jnp.arange(n_nodes, dtype=jnp.int32)
    R = (row_p[:, None] == node_ids[None, :]).astype(jnp.bfloat16)   # [E_pad,N] gather x[row]
    C = (col_p[:, None] == node_ids[None, :]).astype(jnp.bfloat16)   # [E_pad,N] gather x[col]
    S = (node_ids[:, None] == col_p[None, :]).astype(jnp.bfloat16)   # [N,E_pad] scatter by col
    Bm = (jnp.arange(num_graphs, dtype=jnp.int32)[:, None]
          == batch[None, :]).astype(jnp.bfloat16)                    # [G,N] graph pooling

    cnt_col = jnp.zeros((n_nodes,), jnp.float32).at[col].add(1.0)
    inv_col = (1.0 / jnp.maximum(cnt_col, 1.0)).reshape(n_nodes, 1)
    cnt_b = jnp.zeros((num_graphs,), jnp.float32).at[batch].add(1.0)
    inv_b = (1.0 / jnp.maximum(cnt_b, 1.0)).reshape(num_graphs, 1)

    x = batch_norm(x, *params["node_bn"])
    e = batch_norm(e, *params["edge_bn"])
    e = jnp.pad(e, ((0, pad), (0, 0)))                # padded edges contribute nothing (S cols = 0)

    u = jnp.zeros((num_graphs, 32), jnp.float32)      # layer-1 "u is None" -> zero contribution
    for p in params["metas"]:
        x, e, u = meta_layer(p, e, R, C, S, x, u, Bm, inv_col, inv_b, edge_tile=te)

    return head_mlp(u, params["head"])                # lin2(ELU(lin1(u)))


# ----------------------------------- main -----------------------------------------

if __name__ == "__main__":
    num_node_features = 16
    num_edge_features = 8
    out_channels = 10
    n_nodes = 12
    n_edges = 24
    num_graphs = 2

    key = jax.random.PRNGKey(0)
    k_param, k_x, k_e, k_ei = jax.random.split(key, 4)

    params = init_net(k_param, num_node_features, num_edge_features, out_channels)

    x = jax.random.normal(k_x, (n_nodes, num_node_features), jnp.float32)
    e = jax.random.normal(k_e, (n_edges, num_edge_features), jnp.float32)
    edge_index = jax.random.randint(k_ei, (2, n_edges), 0, n_nodes, jnp.int32)
    batch = jnp.concatenate([
        jnp.zeros((n_nodes // 2,), jnp.int32),
        jnp.ones((n_nodes - n_nodes // 2,), jnp.int32),
    ])

    fwd = jax.jit(net_forward, static_argnums=(5,))
    out = jax.block_until_ready(fwd(params, x, edge_index, e, batch, num_graphs))
    assert out.shape == (num_graphs, out_channels)
    assert bool(jnp.all(jnp.isfinite(out)))
    print("KERNEL_OK")
</pallas_src>

<mosaic_0001>
module attributes {stable_mosaic.version = 11 : i64} {
  func.func @norm_kernel(%arg0: i32, %arg1: memref<24x8xf32, #tpu.memory_space<vmem>>, %arg2: memref<1x8xf32, #tpu.memory_space<vmem>>, %arg3: memref<1x8xf32, #tpu.memory_space<vmem>>, %arg4: memref<1x8xf32, #tpu.memory_space<vmem>>, %arg5: memref<1x8xf32, #tpu.memory_space<vmem>>, %arg6: memref<24x8xf32, #tpu.memory_space<vmem>>) attributes {dimension_semantics = [#tpu.dimension_semantics<parallel>], iteration_bounds = array<i64: 1>, scalar_prefetch = 0 : i64, scratch_operands = 0 : i64, tpu.core_type = #tpu.core_type<tc>, window_params = [{transform_indices = @transform_0, window_bounds = array<i64: 24, 8>}, {pipeline_mode = #tpu.pipeline_mode<synchronous>, transform_indices = @transform_1, window_bounds = array<i64: 1, 8>}, {pipeline_mode = #tpu.pipeline_mode<synchronous>, transform_indices = @transform_2, window_bounds = array<i64: 1, 8>}, {pipeline_mode = #tpu.pipeline_mode<synchronous>, transform_indices = @transform_3, window_bounds = array<i64: 1, 8>}, {pipeline_mode = #tpu.pipeline_mode<synchronous>, transform_indices = @transform_4, window_bounds = array<i64: 1, 8>}, {transform_indices = @transform_5, window_bounds = array<i64: 24, 8>}]} {
    %c0 = arith.constant 0 : index
    %c0_0 = arith.constant 0 : index
    %0 = vector.load %arg2[%c0, %c0_0] : memref<1x8xf32, #tpu.memory_space<vmem>>, vector<1x8xf32>
    %cst = arith.constant 0.0416666679 : f32
    %1 = vector.broadcast %cst : f32 to vector<1x8xf32>
    %2 = arith.mulf %0, %1 : vector<1x8xf32>
    %c0_1 = arith.constant 0 : index
    %c0_2 = arith.constant 0 : index
    %3 = vector.load %arg3[%c0_1, %c0_2] : memref<1x8xf32, #tpu.memory_space<vmem>>, vector<1x8xf32>
    %cst_3 = arith.constant 0.0416666679 : f32
    %4 = vector.broadcast %cst_3 : f32 to vector<1x8xf32>
    %5 = arith.mulf %3, %4 : vector<1x8xf32>
    %6 = arith.mulf %2, %2 : vector<1x8xf32>
    %7 = arith.subf %5, %6 : vector<1x8xf32>
    %cst_4 = arith.constant 0.000000e+00 : f32
    %8 = vector.broadcast %cst_4 : f32 to vector<1x8xf32>
    %9 = arith.maximumf %7, %8 : vector<1x8xf32>
    %c0_5 = arith.constant 0 : index
    %c0_6 = arith.constant 0 : index
    %10 = vector.load %arg4[%c0_5, %c0_6] : memref<1x8xf32, #tpu.memory_space<vmem>>, vector<1x8xf32>
    %cst_7 = arith.constant 9.99999974E-6 : f32
    %11 = vector.broadcast %cst_7 : f32 to vector<1x8xf32>
    %12 = arith.addf %9, %11 : vector<1x8xf32>
    %13 = math.rsqrt %12 : vector<1x8xf32>
    %14 = arith.mulf %10, %13 : vector<1x8xf32>
    %c0_8 = arith.constant 0 : index
    %c0_9 = arith.constant 0 : index
    %15 = vector.load %arg1[%c0_8, %c0_9] : memref<24x8xf32, #tpu.memory_space<vmem>>, vector<24x8xf32>
    %16 = vector.broadcast %2 : vector<1x8xf32> to vector<24x8xf32>
    %17 = arith.subf %15, %16 : vector<24x8xf32>
    %18 = vector.broadcast %14 : vector<1x8xf32> to vector<24x8xf32>
    %19 = arith.mulf %17, %18 : vector<24x8xf32>
    %c0_10 = arith.constant 0 : index
    %c0_11 = arith.constant 0 : index
    %20 = vector.load %arg5[%c0_10, %c0_11] : memref<1x8xf32, #tpu.memory_space<vmem>>, vector<1x8xf32>
    %21 = vector.broadcast %20 : vector<1x8xf32> to vector<24x8xf32>
    %22 = arith.addf %19, %21 : vector<24x8xf32>
    %c0_12 = arith.constant 0 : index
    %c0_13 = arith.constant 0 : index
    %23 = vector.load %arg6[%c0_12, %c0_13] : memref<24x8xf32, #tpu.memory_space<vmem>>, vector<24x8xf32>
    tpu.vector_store %arg6[%c0_12, %c0_13], %22 {strides = array<i32>} : memref<24x8xf32, #tpu.memory_space<vmem>>, vector<24x8xf32>,
    return
  }
  func.func @transform_0(%arg0: i32) -> (i32, i32) {
    %c0_i32 = arith.constant 0 : i32
    %c0_i32_0 = arith.constant 0 : i32
    return %arg0, %c0_i32 : i32, i32
  }
  func.func @transform_1(%arg0: i32) -> (i32, i32) {
    %c0_i32 = arith.constant 0 : i32
    %c0_i32_0 = arith.constant 0 : i32
    %c0_i32_1 = arith.constant 0 : i32
    return %c0_i32, %c0_i32_0 : i32, i32
  }
  func.func @transform_2(%arg0: i32) -> (i32, i32) {
    %c0_i32 = arith.constant 0 : i32
    %c0_i32_0 = arith.constant 0 : i32
    %c0_i32_1 = arith.constant 0 : i32
    return %c0_i32, %c0_i32_0 : i32, i32
  }
  func.func @transform_3(%arg0: i32) -> (i32, i32) {
    %c0_i32 = arith.constant 0 : i32
    %c0_i32_0 = arith.constant 0 : i32
    %c0_i32_1 = arith.constant 0 : i32
    return %c0_i32, %c0_i32_0 : i32, i32
  }
  func.func @transform_4(%arg0: i32) -> (i32, i32) {
    %c0_i32 = arith.constant 0 : i32
    %c0_i32_0 = arith.constant 0 : i32
    %c0_i32_1 = arith.constant 0 : i32
    return %c0_i32, %c0_i32_0 : i32, i32
  }
  func.func @transform_5(%arg0: i32) -> (i32, i32) {
    %c0_i32 = arith.constant 0 : i32
    %c0_i32_0 = arith.constant 0 : i32
    return %arg0, %c0_i32 : i32, i32
  }
}

module attributes {stable_mosaic.version = 11 : i64} {
  func.func @stats_kernel(%arg0: i32, %arg1: memref<24x8xf32, #tpu.memory_space<vmem>>, %arg2: memref<1x8xf32, #tpu.memory_space<vmem>>, %arg3: memref<1x8xf32, #tpu.memory_space<vmem>>) attributes {dimension_semantics = [#tpu.dimension_semantics<arbitrary>], iteration_bounds = array<i64: 1>, scalar_prefetch = 0 : i64, scratch_operands = 0 : i64, tpu.core_type = #tpu.core_type<tc>, window_params = [{transform_indices = @transform_0, window_bounds = array<i64: 24, 8>}, {pipeline_mode = #tpu.pipeline_mode<synchronous>, transform_indices = @transform_1, window_bounds = array<i64: 1, 8>}, {pipeline_mode = #tpu.pipeline_mode<synchronous>, transform_indices = @transform_2, window_bounds = array<i64: 1, 8>}]} {
    %c0_i32 = arith.constant 0 : i32
    %0 = arith.cmpi eq, %arg0, %c0_i32 : i32
    %1 = arith.extui %0 : i1 to i32
    %c0_i32_0 = arith.constant 0 : i32
    %2 = arith.cmpi ne, %1, %c0_i32_0 : i32
    scf.if %2 {
      %cst_13 = arith.constant 0.000000e+00 : f32
      %23 = vector.broadcast %cst_13 : f32 to vector<1x8xf32>
      %c0_14 = arith.constant 0 : index
      %c0_15 = arith.constant 0 : index
      %24 = vector.load %arg2[%c0_14, %c0_15] : memref<1x8xf32, #tpu.memory_space<vmem>>, vector<1x8xf32>
      tpu.vector_store %arg2[%c0_14, %c0_15], %23 {strides = array<i32>} : memref<1x8xf32, #tpu.memory_space<vmem>>, vector<1x8xf32>,
      %cst_16 = arith.constant 0.000000e+00 : f32
      %25 = vector.broadcast %cst_16 : f32 to vector<1x8xf32>
      %c0_17 = arith.constant 0 : index
      %c0_18 = arith.constant 0 : index
      %26 = vector.load %arg3[%c0_17, %c0_18] : memref<1x8xf32, #tpu.memory_space<vmem>>, vector<1x8xf32>
      tpu.vector_store %arg3[%c0_17, %c0_18], %25 {strides = array<i32>} : memref<1x8xf32, #tpu.memory_space<vmem>>, vector<1x8xf32>,
    } else {
    }
    %c0 = arith.constant 0 : index
    %c0_1 = arith.constant 0 : index
    %3 = vector.load %arg1[%c0, %c0_1] : memref<24x8xf32, #tpu.memory_space<vmem>>, vector<24x8xf32>
    %4 = tpu.iota {dimensions = array<i32: 0>} : vector<24x8xi32>
    %c24_i32 = arith.constant 24 : i32
    %5 = arith.muli %arg0, %c24_i32 : i32
    %6 = vector.broadcast %5 : i32 to vector<24x8xi32>
    %7 = arith.addi %4, %6 : vector<24x8xi32>
    %c24_i32_2 = arith.constant 24 : i32
    %8 = vector.broadcast %c24_i32_2 : i32 to vector<24x8xi32>
    %9 = arith.cmpi slt, %7, %8 : vector<24x8xi32>
    %cst = arith.constant 0.000000e+00 : f32
    %10 = vector.broadcast %cst : f32 to vector<24x8xf32>
    %11 = arith.select %9, %3, %10 : vector<24x8xi1>, vector<24x8xf32>
    %c0_3 = arith.constant 0 : index
    %c0_4 = arith.constant 0 : index
    %12 = vector.load %arg2[%c0_3, %c0_4] : memref<1x8xf32, #tpu.memory_space<vmem>>, vector<1x8xf32>
    %cst_5 = arith.constant dense<0.000000e+00> : vector<8xf32>
    %13 = vector.multi_reduction <add>, %11, %cst_5 [0] : vector<24x8xf32> to vector<8xf32>
    %14 = vector.shape_cast %13 : vector<8xf32> to vector<1x8xf32>
    %15 = arith.addf %12, %14 : vector<1x8xf32>
    %c0_6 = arith.constant 0 : index
    %c0_7 = arith.constant 0 : index
    %16 = vector.load %arg2[%c0_6, %c0_7] : memref<1x8xf32, #tpu.memory_space<vmem>>, vector<1x8xf32>
    tpu.vector_store %arg2[%c0_6, %c0_7], %15 {strides = array<i32>} : memref<1x8xf32, #tpu.memory_space<vmem>>, vector<1x8xf32>,
    %c0_8 = arith.constant 0 : index
    %c0_9 = arith.constant 0 : index
    %17 = vector.load %arg3[%c0_8, %c0_9] : memref<1x8xf32, #tpu.memory_space<vmem>>, vector<1x8xf32>
    %18 = arith.mulf %11, %11 : vector<24x8xf32>
    %cst_10 = arith.constant dense<0.000000e+00> : vector<8xf32>
    %19 = vector.multi_reduction <add>, %18, %cst_10 [0] : vector<24x8xf32> to vector<8xf32>
    %20 = vector.shape_cast %19 : vector<8xf32> to vector<1x8xf32>
    %21 = arith.addf %17, %20 : vector<1x8xf32>
    %c0_11 = arith.constant 0 : index
    %c0_12 = arith.constant 0 : index
    %22 = vector.load %arg3[%c0_11, %c0_12] : memref<1x8xf32, #tpu.memory_space<vmem>>, vector<1x8xf32>
    tpu.vector_store %arg3[%c0_11, %c0_12], %21 {strides = array<i32>} : memref<1x8xf32, #tpu.memory_space<vmem>>, vector<1x8xf32>,
    return
  }
  func.func @transform_0(%arg0: i32) -> (i32, i32) {
    %c0_i32 = arith.constant 0 : i32
    %c0_i32_0 = arith.constant 0 : i32
    return %arg0, %c0_i32 : i32, i32
  }
  func.func @transform_1(%arg0: i32) -> (i32, i32) {
    %c0_i32 = arith.constant 0 : i32
    %c0_i32_0 = arith.constant 0 : i32
    %c0_i32_1 = arith.constant 0 : i32
    return %c0_i32, %c0_i32_0 : i32, i32
  }
  func.func @transform_2(%arg0: i32) -> (i32, i32) {
    %c0_i32 = arith.constant 0 : i32
    %c0_i32_0 = arith.constant 0 : i32
    %c0_i32_1 = arith.constant 0 : i32
    return %c0_i32, %c0_i32_0 : i32, i32
  }
}

module attributes {stable_mosaic.version = 11 : i64} {
  func.func @stats_kernel(%arg0: i32, %arg1: memref<12x16xf32, #tpu.memory_space<vmem>>, %arg2: memref<1x16xf32, #tpu.memory_space<vmem>>, %arg3: memref<1x16xf32, #tpu.memory_space<vmem>>) attributes {dimension_semantics = [#tpu.dimension_semantics<arbitrary>], iteration_bounds = array<i64: 1>, scalar_prefetch = 0 : i64, scratch_operands = 0 : i64, tpu.core_type = #tpu.core_type<tc>, window_params = [{transform_indices = @transform_0, window_bounds = array<i64: 12, 16>}, {pipeline_mode = #tpu.pipeline_mode<synchronous>, transform_indices = @transform_1, window_bounds = array<i64: 1, 16>}, {pipeline_mode = #tpu.pipeline_mode<synchronous>, transform_indices = @transform_2, window_bounds = array<i64: 1, 16>}]} {
    %c0_i32 = arith.constant 0 : i32
    %0 = arith.cmpi eq, %arg0, %c0_i32 : i32
    %1 = arith.extui %0 : i1 to i32
    %c0_i32_0 = arith.constant 0 : i32
    %2 = arith.cmpi ne, %1, %c0_i32_0 : i32
    scf.if %2 {
      %cst_13 = arith.constant 0.000000e+00 : f32
      %23 = vector.broadcast %cst_13 : f32 to vector<1x16xf32>
      %c0_14 = arith.constant 0 : index
      %c0_15 = arith.constant 0 : index
      %24 = vector.load %arg2[%c0_14, %c0_15] : memref<1x16xf32, #tpu.memory_space<vmem>>, vector<1x16xf32>
      tpu.vector_store %arg2[%c0_14, %c0_15], %23 {strides = array<i32>} : memref<1x16xf32, #tpu.memory_space<vmem>>, vector<1x16xf32>,
      %cst_16 = arith.constant 0.000000e+00 : f32
      %25 = vector.broadcast %cst_16 : f32 to vector<1x16xf32>
      %c0_17 = arith.constant 0 : index
      %c0_18 = arith.constant 0 : index
      %26 = vector.load %arg3[%c0_17, %c0_18] : memref<1x16xf32, #tpu.memory_space<vmem>>, vector<1x16xf32>
      tpu.vector_store %arg3[%c0_17, %c0_18], %25 {strides = array<i32>} : memref<1x16xf32, #tpu.memory_space<vmem>>, vector<1x16xf32>,
    } else {
    }
    %c0 = arith.constant 0 : index
    %c0_1 = arith.constant 0 : index
    %3 = vector.load %arg1[%c0, %c0_1] : memref<12x16xf32, #tpu.memory_space<vmem>>, vector<12x16xf32>
    %4 = tpu.iota {dimensions = array<i32: 0>} : vector<12x16xi32>
    %c12_i32 = arith.constant 12 : i32
    %5 = arith.muli %arg0, %c12_i32 : i32
    %6 = vector.broadcast %5 : i32 to vector<12x16xi32>
    %7 = arith.addi %4, %6 : vector<12x16xi32>
    %c12_i32_2 = arith.constant 12 : i32
    %8 = vector.broadcast %c12_i32_2 : i32 to vector<12x16xi32>
    %9 = arith.cmpi slt, %7, %8 : vector<12x16xi32>
    %cst = arith.constant 0.000000e+00 : f32
    %10 = vector.broadcast %cst : f32 to vector<12x16xf32>
    %11 = arith.select %9, %3, %10 : vector<12x16xi1>, vector<12x16xf32>
    %c0_3 = arith.constant 0 : index
    %c0_4 = arith.constant 0 : index
    %12 = vector.load %arg2[%c0_3, %c0_4] : memref<1x16xf32, #tpu.memory_space<vmem>>, vector<1x16xf32>
    %cst_5 = arith.constant dense<0.000000e+00> : vector<16xf32>
    %13 = vector.multi_reduction <add>, %11, %cst_5 [0] : vector<12x16xf32> to vector<16xf32>
    %14 = vector.shape_cast %13 : vector<16xf32> to vector<1x16xf32>
    %15 = arith.addf %12, %14 : vector<1x16xf32>
    %c0_6 = arith.constant 0 : index
    %c0_7 = arith.constant 0 : index
    %16 = vector.load %arg2[%c0_6, %c0_7] : memref<1x16xf32, #tpu.memory_space<vmem>>, vector<1x16xf32>
    tpu.vector_store %arg2[%c0_6, %c0_7], %15 {strides = array<i32>} : memref<1x16xf32, #tpu.memory_space<vmem>>, vector<1x16xf32>,
    %c0_8 = arith.constant 0 : index
    %c0_9 = arith.constant 0 : index
    %17 = vector.load %arg3[%c0_8, %c0_9] : memref<1x16xf32, #tpu.memory_space<vmem>>, vector<1x16xf32>
    %18 = arith.mulf %11, %11 : vector<12x16xf32>
    %cst_10 = arith.constant dense<0.000000e+00> : vector<16xf32>
    %19 = vector.multi_reduction <add>, %18, %cst_10 [0] : vector<12x16xf32> to vector<16xf32>
    %20 = vector.shape_cast %19 : vector<16xf32> to vector<1x16xf32>
    %21 = arith.addf %17, %20 : vector<1x16xf32>
    %c0_11 = arith.constant 0 : index
    %c0_12 = arith.constant 0 : index
    %22 = vector.load %arg3[%c0_11, %c0_12] : memref<1x16xf32, #tpu.memory_space<vmem>>, vector<1x16xf32>
    tpu.vector_store %arg3[%c0_11, %c0_12], %21 {strides = array<i32>} : memref<1x16xf32, #tpu.memory_space<vmem>>, vector<1x16xf32>,
    return
  }
  func.func @transform_0(%arg0: i32) -> (i32, i32) {
    %c0_i32 = arith.constant 0 : i32
    %c0_i32_0 = arith.constant 0 : i32
    return %arg0, %c0_i32 : i32, i32
  }
  func.func @transform_1(%arg0: i32) -> (i32, i32) {
    %c0_i32 = arith.constant 0 : i32
    %c0_i32_0 = arith.constant 0 : i32
    %c0_i32_1 = arith.constant 0 : i32
    return %c0_i32, %c0_i32_0 : i32, i32
  }
  func.func @transform_2(%arg0: i32) -> (i32, i32) {
    %c0_i32 = arith.constant 0 : i32
    %c0_i32_0 = arith.constant 0 : i32
    %c0_i32_1 = arith.constant 0 : i32
    return %c0_i32, %c0_i32_0 : i32, i32
  }
}

module attributes {stable_mosaic.version = 11 : i64} {
  func.func @norm_kernel(%arg0: i32, %arg1: memref<12x16xf32, #tpu.memory_space<vmem>>, %arg2: memref<1x16xf32, #tpu.memory_space<vmem>>, %arg3: memref<1x16xf32, #tpu.memory_space<vmem>>, %arg4: memref<1x16xf32, #tpu.memory_space<vmem>>, %arg5: memref<1x16xf32, #tpu.memory_space<vmem>>, %arg6: memref<12x16xf32, #tpu.memory_space<vmem>>) attributes {dimension_semantics = [#tpu.dimension_semantics<parallel>], iteration_bounds = array<i64: 1>, scalar_prefetch = 0 : i64, scratch_operands = 0 : i64, tpu.core_type = #tpu.core_type<tc>, window_params = [{transform_indices = @transform_0, window_bounds = array<i64: 12, 16>}, {pipeline_mode = #tpu.pipeline_mode<synchronous>, transform_indices = @transform_1, window_bounds = array<i64: 1, 16>}, {pipeline_mode = #tpu.pipeline_mode<synchronous>, transform_indices = @transform_2, window_bounds = array<i64: 1, 16>}, {pipeline_mode = #tpu.pipeline_mode<synchronous>, transform_indices = @transform_3, window_bounds = array<i64: 1, 16>}, {pipeline_mode = #tpu.pipeline_mode<synchronous>, transform_indices = @transform_4, window_bounds = array<i64: 1, 16>}, {transform_indices = @transform_5, window_bounds = array<i64: 12, 16>}]} {
    %c0 = arith.constant 0 : index
    %c0_0 = arith.constant 0 : index
    %0 = vector.load %arg2[%c0, %c0_0] : memref<1x16xf32, #tpu.memory_space<vmem>>, vector<1x16xf32>
    %cst = arith.constant 0.0833333358 : f32
    %1 = vector.broadcast %cst : f32 to vector<1x16xf32>
    %2 = arith.mulf %0, %1 : vector<1x16xf32>
    %c0_1 = arith.constant 0 : index
    %c0_2 = arith.constant 0 : index
    %3 = vector.load %arg3[%c0_1, %c0_2] : memref<1x16xf32, #tpu.memory_space<vmem>>, vector<1x16xf32>
    %cst_3 = arith.constant 0.0833333358 : f32
    %4 = vector.broadcast %cst_3 : f32 to vector<1x16xf32>
    %5 = arith.mulf %3, %4 : vector<1x16xf32>
    %6 = arith.mulf %2, %2 : vector<1x16xf32>
    %7 = arith.subf %5, %6 : vector<1x16xf32>
    %cst_4 = arith.constant 0.000000e+00 : f32
    %8 = vector.broadcast %cst_4 : f32 to vector<1x16xf32>
    %9 = arith.maximumf %7, %8 : vector<1x16xf32>
    %c0_5 = arith.constant 0 : index
    %c0_6 = arith.constant 0 : index
    %10 = vector.load %arg4[%c0_5, %c0_6] : memref<1x16xf32, #tpu.memory_space<vmem>>, vector<1x16xf32>
    %cst_7 = arith.constant 9.99999974E-6 : f32
    %11 = vector.broadcast %cst_7 : f32 to vector<1x16xf32>
    %12 = arith.addf %9, %11 : vector<1x16xf32>
    %13 = math.rsqrt %12 : vector<1x16xf32>
    %14 = arith.mulf %10, %13 : vector<1x16xf32>
    %c0_8 = arith.constant 0 : index
    %c0_9 = arith.constant 0 : index
    %15 = vector.load %arg1[%c0_8, %c0_9] : memref<12x16xf32, #tpu.memory_space<vmem>>, vector<12x16xf32>
    %16 = vector.broadcast %2 : vector<1x16xf32> to vector<12x16xf32>
    %17 = arith.subf %15, %16 : vector<12x16xf32>
    %18 = vector.broadcast %14 : vector<1x16xf32> to vector<12x16xf32>
    %19 = arith.mulf %17, %18 : vector<12x16xf32>
    %c0_10 = arith.constant 0 : index
    %c0_11 = arith.constant 0 : index
    %20 = vector.load %arg5[%c0_10, %c0_11] : memref<1x16xf32, #tpu.memory_space<vmem>>, vector<1x16xf32>
    %21 = vector.broadcast %20 : vector<1x16xf32> to vector<12x16xf32>
    %22 = arith.addf %19, %21 : vector<12x16xf32>
    %c0_12 = arith.constant 0 : index
    %c0_13 = arith.constant 0 : index
    %23 = vector.load %arg6[%c0_12, %c0_13] : memref<12x16xf32, #tpu.memory_space<vmem>>, vector<12x16xf32>
    tpu.vector_store %arg6[%c0_12, %c0_13], %22 {strides = array<i32>} : memref<12x16xf32, #tpu.memory_space<vmem>>, vector<12x16xf32>,
    return
  }
  func.func @transform_0(%arg0: i32) -> (i32, i32) {
    %c0_i32 = arith.constant 0 : i32
    %c0_i32_0 = arith.constant 0 : i32
    return %arg0, %c0_i32 : i32, i32
  }
  func.func @transform_1(%arg0: i32) -> (i32, i32) {
    %c0_i32 = arith.constant 0 : i32
    %c0_i32_0 = arith.constant 0 : i32
    %c0_i32_1 = arith.constant 0 : i32
    return %c0_i32, %c0_i32_0 : i32, i32
  }
  func.func @transform_2(%arg0: i32) -> (i32, i32) {
    %c0_i32 = arith.constant 0 : i32
    %c0_i32_0 = arith.constant 0 : i32
    %c0_i32_1 = arith.constant 0 : i32
    return %c0_i32, %c0_i32_0 : i32, i32
  }
  func.func @transform_3(%arg0: i32) -> (i32, i32) {
    %c0_i32 = arith.constant 0 : i32
    %c0_i32_0 = arith.constant 0 : i32
    %c0_i32_1 = arith.constant 0 : i32
    return %c0_i32, %c0_i32_0 : i32, i32
  }
  func.func @transform_4(%arg0: i32) -> (i32, i32) {
    %c0_i32 = arith.constant 0 : i32
    %c0_i32_0 = arith.constant 0 : i32
    %c0_i32_1 = arith.constant 0 : i32
    return %c0_i32, %c0_i32_0 : i32, i32
  }
  func.func @transform_5(%arg0: i32) -> (i32, i32) {
    %c0_i32 = arith.constant 0 : i32
    %c0_i32_0 = arith.constant 0 : i32
    return %arg0, %c0_i32 : i32, i32
  }
}

module attributes {stable_mosaic.version = 11 : i64} {
  func.func @_meta_kernel(%arg0: i32, %arg1: memref<128x8xf32, #tpu.memory_space<vmem>>, %arg2: memref<128x12xbf16, #tpu.memory_space<vmem>>, %arg3: memref<128x12xbf16, #tpu.memory_space<vmem>>, %arg4: memref<12x128xbf16, #tpu.memory_space<vmem>>, %arg5: memref<12x16xf32, #tpu.memory_space<vmem>>, %arg6: memref<2x32xf32, #tpu.memory_space<vmem>>, %arg7: memref<2x12xbf16, #tpu.memory_space<vmem>>, %arg8: memref<12x1xf32, #tpu.memory_space<vmem>>, %arg9: memref<2x1xf32, #tpu.memory_space<vmem>>, %arg10: memref<16x32xbf16, #tpu.memory_space<vmem>>, %arg11: memref<16x32xbf16, #tpu.memory_space<vmem>>, %arg12: memref<8x32xbf16, #tpu.memory_space<vmem>>, %arg13: memref<1x32xf32, #tpu.memory_space<vmem>>, %arg14: memref<32x256xbf16, #tpu.memory_space<vmem>>, %arg15: memref<1x256xf32, #tpu.memory_space<vmem>>, %arg16: memref<16x64xbf16, #tpu.memory_space<vmem>>, %arg17: memref<256x64xbf16, #tpu.memory_space<vmem>>, %arg18: memref<1x64xf32, #tpu.memory_space<vmem>>, %arg19: memref<64x64xbf16, #tpu.memory_space<vmem>>, %arg20: memref<1x64xf32, #tpu.memory_space<vmem>>, %arg21: memref<16x64xbf16, #tpu.memory_space<vmem>>, %arg22: memref<64x64xbf16, #tpu.memory_space<vmem>>, %arg23: memref<1x64xf32, #tpu.memory_space<vmem>>, %arg24: memref<64x32xbf16, #tpu.memory_space<vmem>>, %arg25: memref<1x32xf32, #tpu.memory_space<vmem>>, %arg26: memref<32x64xbf16, #tpu.memory_space<vmem>>, %arg27: memref<32x64xbf16, #tpu.memory_space<vmem>>, %arg28: memref<1x64xf32, #tpu.memory_space<vmem>>, %arg29: memref<64x32xbf16, #tpu.memory_space<vmem>>, %arg30: memref<1x32xf32, #tpu.memory_space<vmem>>, %arg31: memref<12x32xf32, #tpu.memory_space<vmem>>, %arg32: memref<128x256xbf16, #tpu.memory_space<vmem>>, %arg33: memref<2x32xf32, #tpu.memory_space<vmem>>, %arg34: memref<12x64xf32, #tpu.memory_space<vmem>>) attributes {dimension_semantics = [#tpu.dimension_semantics<arbitrary>], iteration_bounds = array<i64: 1>, scalar_prefetch = 0 : i64, scratch_operands = 1 : i64, tpu.core_type = #tpu.core_type<tc>, window_params = [{transform_indices = @transform_0, window_bounds = array<i64: 128, 8>}, {transform_indices = @transform_1, window_bounds = array<i64: 128, 12>}, {transform_indices = @transform_2, window_bounds = array<i64: 128, 12>}, {transform_indices = @transform_3, window_bounds = array<i64: 12, 128>}, {pipeline_mode = #tpu.pipeline_mode<synchronous>, transform_indices = @transform_4, window_bounds = array<i64: 12, 16>}, {pipeline_mode = #tpu.pipeline_mode<synchronous>, transform_indices = @transform_5, window_bounds = array<i64: 2, 32>}, {pipeline_mode = #tpu.pipeline_mode<synchronous>, transform_indices = @transform_6, window_bounds = array<i64: 2, 12>}, {pipeline_mode = #tpu.pipeline_mode<synchronous>, transform_indices = @transform_7, window_bounds = array<i64: 12, 1>}, {pipeline_mode = #tpu.pipeline_mode<synchronous>, transform_indices = @transform_8, window_bounds = array<i64: 2, 1>}, {pipeline_mode = #tpu.pipeline_mode<synchronous>, transform_indices = @transform_9, window_bounds = array<i64: 16, 32>}, {pipeline_mode = #tpu.pipeline_mode<synchronous>, transform_indices = @transform_10, window_bounds = array<i64: 16, 32>}, {pipeline_mode = #tpu.pipeline_mode<synchronous>, transform_indices = @transform_11, window_bounds = array<i64: 8, 32>}, {pipeline_mode = #tpu.pipeline_mode<synchronous>, transform_indices = @transform_12, window_bounds = array<i64: 1, 32>}, {pipeline_mode = #tpu.pipeline_mode<synchronous>, transform_indices = @transform_13, window_bounds = array<i64: 32, 256>}, {pipeline_mode = #tpu.pipeline_mode<synchronous>, transform_indices = @transform_14, window_bounds = array<i64: 1, 256>}, {pipeline_mode = #tpu.pipeline_mode<synchronous>, transform_indices = @transform_15, window_bounds = array<i64: 16, 64>}, {pipeline_mode = #tpu.pipeline_mode<synchronous>, transform_indices = @transform_16, window_bounds = array<i64: 256, 64>}, {pipeline_mode = #tpu.pipeline_mode<synchronous>, transform_indices = @transform_17, window_bounds = array<i64: 1, 64>}, {pipeline_mode = #tpu.pipeline_mode<synchronous>, transform_indices = @transform_18, window_bounds = array<i64: 64, 64>}, {pipeline_mode = #tpu.pipeline_mode<synchronous>, transform_indices = @transform_19, window_bounds = array<i64: 1, 64>}, {pipeline_mode = #tpu.pipeline_mode<synchronous>, transform_indices = @transform_20, window_bounds = array<i64: 16, 64>}, {pipeline_mode = #tpu.pipeline_mode<synchronous>, transform_indices = @transform_21, window_bounds = array<i64: 64, 64>}, {pipeline_mode = #tpu.pipeline_mode<synchronous>, transform_indices = @transform_22, window_bounds = array<i64: 1, 64>}, {pipeline_mode = #tpu.pipeline_mode<synchronous>, transform_indices = @transform_23, window_bounds = array<i64: 64, 32>}, {pipeline_mode = #tpu.pipeline_mode<synchronous>, transform_indices = @transform_24, window_bounds = array<i64: 1, 32>}, {pipeline_mode = #tpu.pipeline_mode<synchronous>, transform_indices = @transform_25, window_bounds = array<i64: 32, 64>}, {pipeline_mode = #tpu.pipeline_mode<synchronous>, transform_indices = @transform_26, window_bounds = array<i64: 32, 64>}, {pipeline_mode = #tpu.pipeline_mode<synchronous>, transform_indices = @transform_27, window_bounds = array<i64: 1, 64>}, {pipeline_mode = #tpu.pipeline_mode<synchronous>, transform_indices = @transform_28, window_bounds = array<i64: 64, 32>}, {pipeline_mode = #tpu.pipeline_mode<synchronous>, transform_indices = @transform_29, window_bounds = array<i64: 1, 32>}, {pipeline_mode = #tpu.pipeline_mode<synchronous>, transform_indices = @transform_30, window_bounds = array<i64: 12, 32>}, {transform_indices = @transform_31, window_bounds = array<i64: 128, 256>}, {pipeline_mode = #tpu.pipeline_mode<synchronous>, transform_indices = @transform_32, window_bounds = array<i64: 2, 32>}]} {
    %c0_i32 = arith.constant 0 : i32
    %0 = arith.cmpi eq, %arg0, %c0_i32 : i32
    %1 = arith.extui %0 : i1 to i32
    %c0_i32_0 = arith.constant 0 : i32
    %2 = arith.cmpi ne, %1, %c0_i32_0 : i32
    scf.if %2 {
      %cst_55 = arith.constant 0.000000e+00 : f32
      %74 = vector.broadcast %cst_55 : f32 to vector<12x64xf32>
      %c0_56 = arith.constant 0 : index
      %c0_57 = arith.constant 0 : index
      %75 = vector.load %arg34[%c0_56, %c0_57] : memref<12x64xf32, #tpu.memory_space<vmem>>, vector<12x64xf32>
      tpu.vector_store %arg34[%c0_56, %c0_57], %74 {strides = array<i32>} : memref<12x64xf32, #tpu.memory_space<vmem>>, vector<12x64xf32>,
    } else {
    }
    %c0 = arith.constant 0 : index
    %c0_1 = arith.constant 0 : index
    %3 = vector.load %arg5[%c0, %c0_1] : memref<12x16xf32, #tpu.memory_space<vmem>>, vector<12x16xf32>
    %c0_2 = arith.constant 0 : index
    %c0_3 = arith.constant 0 : index
    %4 = vector.load %arg2[%c0_2, %c0_3] : memref<128x12xbf16, #tpu.memory_space<vmem>>, vector<128x12xbf16>
    %5 = arith.truncf %3 : vector<12x16xf32> to vector<12x16xbf16>
    %cst = arith.constant dense<0.000000e+00> : vector<128x16xf32>
    %6 = tpu.matmul %4, %5, %cst {dimension_numbers = #tpu.dot_dimension_numbers<[1], [0], [0], [1], [0, 0, 1, 1], [], []>} : vector<128x12xbf16>, vector<12x16xbf16>, vector<128x16xf32> -> vector<128x16xf32>
    %c0_4 = arith.constant 0 : index
    %c0_5 = arith.constant 0 : index
    %7 = vector.load %arg3[%c0_4, %c0_5] : memref<128x12xbf16, #tpu.memory_space<vmem>>, vector<128x12xbf16>
    %8 = arith.truncf %3 : vector<12x16xf32> to vector<12x16xbf16>
    %cst_6 = arith.constant dense<0.000000e+00> : vector<128x16xf32>
    %9 = tpu.matmul %7, %8, %cst_6 {dimension_numbers = #tpu.dot_dimension_numbers<[1], [0], [0], [1], [0, 0, 1, 1], [], []>} : vector<128x12xbf16>, vector<12x16xbf16>, vector<128x16xf32> -> vector<128x16xf32>
    %c0_7 = arith.constant 0 : index
    %c0_8 = arith.constant 0 : index
    %10 = vector.load %arg10[%c0_7, %c0_8] : memref<16x32xbf16, #tpu.memory_space<vmem>>, vector<16x32xbf16>
    %11 = arith.truncf %6 : vector<128x16xf32> to vector<128x16xbf16>
    %cst_9 = arith.constant dense<0.000000e+00> : vector<128x32xf32>
    %12 = tpu.matmul %11, %10, %cst_9 {dimension_numbers = #tpu.dot_dimension_numbers<[1], [0], [0], [1], [0, 0, 1, 1], [], []>} : vector<128x16xbf16>, vector<16x32xbf16>, vector<128x32xf32> -> vector<128x32xf32>
    %c0_10 = arith.constant 0 : index
    %c0_11 = arith.constant 0 : index
    %13 = vector.load %arg11[%c0_10, %c0_11] : memref<16x32xbf16, #tpu.memory_space<vmem>>, vector<16x32xbf16>
    %14 = arith.truncf %9 : vector<128x16xf32> to vector<128x16xbf16>
    %cst_12 = arith.constant dense<0.000000e+00> : vector<128x32xf32>
    %15 = tpu.matmul %14, %13, %cst_12 {dimension_numbers = #tpu.dot_dimension_numbers<[1], [0], [0], [1], [0, 0, 1, 1], [], []>} : vector<128x16xbf16>, vector<16x32xbf16>, vector<128x32xf32> -> vector<128x32xf32>
    %16 = arith.addf %12, %15 : vector<128x32xf32>
    %c0_13 = arith.constant 0 : index
    %c0_14 = arith.constant 0 : index
    %17 = vector.load %arg1[%c0_13, %c0_14] : memref<128x8xf32, #tpu.memory_space<vmem>>, vector<128x8xf32>
    %c0_15 = arith.constant 0 : index
    %c0_16 = arith.constant 0 : index
    %18 = vector.load %arg12[%c0_15, %c0_16] : memref<8x32xbf16, #tpu.memory_space<vmem>>, vector<8x32xbf16>
    %19 = arith.truncf %17 : vector<128x8xf32> to vector<128x8xbf16>
    %cst_17 = arith.constant dense<0.000000e+00> : vector<128x32xf32>
    %20 = tpu.matmul %19, %18, %cst_17 {dimension_numbers = #tpu.dot_dimension_numbers<[1], [0], [0], [1], [0, 0, 1, 1], [], []>} : vector<128x8xbf16>, vector<8x32xbf16>, vector<128x32xf32> -> vector<128x32xf32>
    %21 = arith.addf %16, %20 : vector<128x32xf32>
    %c0_18 = arith.constant 0 : index
    %c0_19 = arith.constant 0 : index
    %22 = vector.load %arg13[%c0_18, %c0_19] : memref<1x32xf32, #tpu.memory_space<vmem>>, vector<1x32xf32>
    %23 = vector.broadcast %22 : vector<1x32xf32> to vector<128x32xf32>
    %24 = arith.addf %21, %23 : vector<128x32xf32>
    %cst_20 = arith.constant 0.000000e+00 : f32
    %25 = vector.broadcast %cst_20 : f32 to vector<128x32xf32>
    %26 = arith.cmpf ogt, %24, %25 : vector<128x32xf32>
    %cst_21 = arith.constant 0.000000e+00 : f32
    %27 = vector.broadcast %cst_21 : f32 to vector<128x32xf32>
    %28 = arith.minimumf %24, %27 : vector<128x32xf32>
    %29 = math.exp %28 : vector<128x32xf32>
    %cst_22 = arith.constant 1.000000e+00 : f32
    %30 = vector.broadcast %cst_22 : f32 to vector<128x32xf32>
    %31 = arith.subf %29, %30 : vector<128x32xf32>
    %32 = arith.select %26, %24, %31 : vector<128x32xi1>, vector<128x32xf32>
    %c0_23 = arith.constant 0 : index
    %c0_24 = arith.constant 0 : index
    %33 = vector.load %arg14[%c0_23, %c0_24] : memref<32x256xbf16, #tpu.memory_space<vmem>>, vector<32x256xbf16>
    %34 = arith.truncf %32 : vector<128x32xf32> to vector<128x32xbf16>
    %cst_25 = arith.constant dense<0.000000e+00> : vector<128x256xf32>
    %35 = tpu.matmul %34, %33, %cst_25 {dimension_numbers = #tpu.dot_dimension_numbers<[1], [0], [0], [1], [0, 0, 1, 1], [], []>} : vector<128x32xbf16>, vector<32x256xbf16>, vector<128x256xf32> -> vector<128x256xf32>
    %c0_26 = arith.constant 0 : index
    %c0_27 = arith.constant 0 : index
    %36 = vector.load %arg15[%c0_26, %c0_27] : memref<1x256xf32, #tpu.memory_space<vmem>>, vector<1x256xf32>
    %37 = vector.broadcast %36 : vector<1x256xf32> to vector<128x256xf32>
    %38 = arith.addf %35, %37 : vector<128x256xf32>
    %39 = arith.truncf %38 : vector<128x256xf32> to vector<128x256xbf16>
    %c0_28 = arith.constant 0 : index
    %c0_29 = arith.constant 0 : index
    %40 = vector.load %arg32[%c0_28, %c0_29] : memref<128x256xbf16, #tpu.memory_space<vmem>>, vector<128x256xbf16>
    tpu.vector_store %arg32[%c0_28, %c0_29], %39 {strides = array<i32>} : memref<128x256xbf16, #tpu.memory_space<vmem>>, vector<128x256xbf16>,
    %c0_30 = arith.constant 0 : index
    %c0_31 = arith.constant 0 : index
    %41 = vector.load %arg16[%c0_30, %c0_31] : memref<16x64xbf16, #tpu.memory_space<vmem>>, vector<16x64xbf16>
    %42 = arith.truncf %6 : vector<128x16xf32> to vector<128x16xbf16>
    %cst_32 = arith.constant dense<0.000000e+00> : vector<128x64xf32>
    %43 = tpu.matmul %42, %41, %cst_32 {dimension_numbers = #tpu.dot_dimension_numbers<[1], [0], [0], [1], [0, 0, 1, 1], [], []>} : vector<128x16xbf16>, vector<16x64xbf16>, vector<128x64xf32> -> vector<128x64xf32>
    %c0_33 = arith.constant 0 : index
    %c0_34 = arith.constant 0 : index
    %44 = vector.load %arg17[%c0_33, %c0_34] : memref<256x64xbf16, #tpu.memory_space<vmem>>, vector<256x64xbf16>
    %45 = arith.truncf %38 : vector<128x256xf32> to vector<128x256xbf16>
    %cst_35 = arith.constant dense<0.000000e+00> : vector<128x64xf32>
    %46 = tpu.matmul %45, %44, %cst_35 {dimension_numbers = #tpu.dot_dimension_numbers<[1], [0], [0], [1], [0, 0, 1, 1], [], []>} : vector<128x256xbf16>, vector<256x64xbf16>, vector<128x64xf32> -> vector<128x64xf32>
    %47 = arith.addf %43, %46 : vector<128x64xf32>
    %c0_36 = arith.constant 0 : index
    %c0_37 = arith.constant 0 : index
    %48 = vector.load %arg18[%c0_36, %c0_37] : memref<1x64xf32, #tpu.memory_space<vmem>>, vector<1x64xf32>
    %49 = vector.broadcast %48 : vector<1x64xf32> to vector<128x64xf32>
    %50 = arith.addf %47, %49 : vector<128x64xf32>
    %cst_38 = arith.constant 0.000000e+00 : f32
    %51 = vector.broadcast %cst_38 : f32 to vector<128x64xf32>
    %52 = arith.cmpf ogt, %50, %51 : vector<128x64xf32>
    %cst_39 = arith.constant 0.000000e+00 : f32
    %53 = vector.broadcast %cst_39 : f32 to vector<128x64xf32>
    %54 = arith.minimumf %50, %53 : vector<128x64xf32>
    %55 = math.exp %54 : vector<128x64xf32>
    %cst_40 = arith.constant 1.000000e+00 : f32
    %56 = vector.broadcast %cst_40 : f32 to vector<128x64xf32>
    %57 = arith.subf %55, %56 : vector<128x64xf32>
    %58 = arith.select %52, %50, %57 : vector<128x64xi1>, vector<128x64xf32>
    %c0_41 = arith.constant 0 : index
    %c0_42 = arith.constant 0 : index
    %59 = vector.load %arg19[%c0_41, %c0_42] : memref<64x64xbf16, #tpu.memory_space<vmem>>, vector<64x64xbf16>
    %60 = arith.truncf %58 : vector<128x64xf32> to vector<128x64xbf16>
    %cst_43 = arith.constant dense<0.000000e+00> : vector<128x64xf32>
    %61 = tpu.matmul %60, %59, %cst_43 {dimension_numbers = #tpu.dot_dimension_numbers<[1], [0], [0], [1], [0, 0, 1, 1], [], []>} : vector<128x64xbf16>, vector<64x64xbf16>, vector<128x64xf32> -> vector<128x64xf32>
    %c0_44 = arith.constant 0 : index
    %c0_45 = arith.constant 0 : index
    %62 = vector.load %arg20[%c0_44, %c0_45] : memref<1x64xf32, #tpu.memory_space<vmem>>, vector<1x64xf32>
    %63 = vector.broadcast %62 : vector<1x64xf32> to vector<128x64xf32>
    %64 = arith.addf %61, %63 : vector<128x64xf32>
    %c0_46 = arith.constant 0 : index
    %c0_47 = arith.constant 0 : index
    %65 = vector.load %arg34[%c0_46, %c0_47] : memref<12x64xf32, #tpu.memory_space<vmem>>, vector<12x64xf32>
    %c0_48 = arith.constant 0 : index
    %c0_49 = arith.constant 0 : index
    %66 = vector.load %arg4[%c0_48, %c0_49] : memref<12x128xbf16, #tpu.memory_space<vmem>>, vector<12x128xbf16>
    %67 = arith.truncf %64 : vector<128x64xf32> to vector<128x64xbf16>
    %cst_50 = arith.constant dense<0.000000e+00> : vector<12x64xf32>
    %68 = tpu.matmul %66, %67, %cst_50 {dimension_numbers = #tpu.dot_dimension_numbers<[1], [0], [0], [1], [0, 0, 1, 1], [], []>} : vector<12x128xbf16>, vector<128x64xbf16>, vector<12x64xf32> -> vector<12x64xf32>
    %69 = arith.addf %65, %68 : vector<12x64xf32>
    %c0_51 = arith.constant 0 : index
    %c0_52 = arith.constant 0 : index
    %70 = vector.load %arg34[%c0_51, %c0_52] : memref<12x64xf32, #tpu.memory_space<vmem>>, vector<12x64xf32>
    tpu.vector_store %arg34[%c0_51, %c0_52], %69 {strides = array<i32>} : memref<12x64xf32, #tpu.memory_space<vmem>>, vector<12x64xf32>,
    %c0_i32_53 = arith.constant 0 : i32
    %71 = arith.cmpi eq, %arg0, %c0_i32_53 : i32
    %72 = arith.extui %71 : i1 to i32
    %c0_i32_54 = arith.constant 0 : i32
    %73 = arith.cmpi ne, %72, %c0_i32_54 : i32
    scf.if %73 {
      %c0_55 = arith.constant 0 : index
      %c0_56 = arith.constant 0 : index
      %74 = vector.load %arg34[%c0_55, %c0_56] : memref<12x64xf32, #tpu.memory_space<vmem>>, vector<12x64xf32>
      %c0_57 = arith.constant 0 : index
      %c0_58 = arith.constant 0 : index
      %75 = vector.load %arg8[%c0_57, %c0_58] : memref<12x1xf32, #tpu.memory_space<vmem>>, vector<12x1xf32>
      %76 = vector.broadcast %75 : vector<12x1xf32> to vector<12x64xf32>
      %77 = arith.mulf %74, %76 : vector<12x64xf32>
      %c0_59 = arith.constant 0 : index
      %c0_60 = arith.constant 0 : index
      %78 = vector.load %arg21[%c0_59, %c0_60] : memref<16x64xbf16, #tpu.memory_space<vmem>>, vector<16x64xbf16>
      %79 = arith.truncf %3 : vector<12x16xf32> to vector<12x16xbf16>
      %cst_61 = arith.constant dense<0.000000e+00> : vector<12x64xf32>
      %80 = tpu.matmul %79, %78, %cst_61 {dimension_numbers = #tpu.dot_dimension_numbers<[1], [0], [0], [1], [0, 0, 1, 1], [], []>} : vector<12x16xbf16>, vector<16x64xbf16>, vector<12x64xf32> -> vector<12x64xf32>
      %c0_62 = arith.constant 0 : index
      %c0_63 = arith.constant 0 : index
      %81 = vector.load %arg22[%c0_62, %c0_63] : memref<64x64xbf16, #tpu.memory_space<vmem>>, vector<64x64xbf16>
      %82 = arith.truncf %77 : vector<12x64xf32> to vector<12x64xbf16>
      %cst_64 = arith.constant dense<0.000000e+00> : vector<12x64xf32>
      %83 = tpu.matmul %82, %81, %cst_64 {dimension_numbers = #tpu.dot_dimension_numbers<[1], [0], [0], [1], [0, 0, 1, 1], [], []>} : vector<12x64xbf16>, vector<64x64xbf16>, vector<12x64xf32> -> vector<12x64xf32>
      %84 = arith.addf %80, %83 : vector<12x64xf32>
      %c0_65 = arith.constant 0 : index
      %c0_66 = arith.constant 0 : index
      %85 = vector.load %arg23[%c0_65, %c0_66] : memref<1x64xf32, #tpu.memory_space<vmem>>, vector<1x64xf32>
      %86 = vector.broadcast %85 : vector<1x64xf32> to vector<12x64xf32>
      %87 = arith.addf %84, %86 : vector<12x64xf32>
      %cst_67 = arith.constant 0.000000e+00 : f32
      %88 = vector.broadcast %cst_67 : f32 to vector<12x64xf32>
      %89 = arith.cmpf ogt, %87, %88 : vector<12x64xf32>
      %cst_68 = arith.constant 0.000000e+00 : f32
      %90 = vector.broadcast %cst_68 : f32 to vector<12x64xf32>
      %91 = arith.minimumf %87, %90 : vector<12x64xf32>
      %92 = math.exp %91 : vector<12x64xf32>
      %cst_69 = arith.constant 1.000000e+00 : f32
      %93 = vector.broadcast %cst_69 : f32 to vector<12x64xf32>
      %94 = arith.subf %92, %93 : vector<12x64xf32>
      %95 = arith.select %89, %87, %94 : vector<12x64xi1>, vector<12x64xf32>
      %c0_70 = arith.constant 0 : index
      %c0_71 = arith.constant 0 : index
      %96 = vector.load %arg24[%c0_70, %c0_71] : memref<64x32xbf16, #tpu.memory_space<vmem>>, vector<64x32xbf16>
      %97 = arith.truncf %95 : vector<12x64xf32> to vector<12x64xbf16>
      %cst_72 = arith.constant dense<0.000000e+00> : vector<12x32xf32>
      %98 = tpu.matmul %97, %96, %cst_72 {dimension_numbers = #tpu.dot_dimension_numbers<[1], [0], [0], [1], [0, 0, 1, 1], [], []>} : vector<12x64xbf16>, vector<64x32xbf16>, vector<12x32xf32> -> vector<12x32xf32>
      %c0_73 = arith.constant 0 : index
      %c0_74 = arith.constant 0 : index
      %99 = vector.load %arg25[%c0_73, %c0_74] : memref<1x32xf32, #tpu.memory_space<vmem>>, vector<1x32xf32>
      %100 = vector.broadcast %99 : vector<1x32xf32> to vector<12x32xf32>
      %101 = arith.addf %98, %100 : vector<12x32xf32>
      %c0_75 = arith.constant 0 : index
      %c0_76 = arith.constant 0 : index
      %102 = vector.load %arg31[%c0_75, %c0_76] : memref<12x32xf32, #tpu.memory_space<vmem>>, vector<12x32xf32>
      tpu.vector_store %arg31[%c0_75, %c0_76], %101 {strides = array<i32>} : memref<12x32xf32, #tpu.memory_space<vmem>>, vector<12x32xf32>,
      %c0_77 = arith.constant 0 : index
      %c0_78 = arith.constant 0 : index
      %103 = vector.load %arg7[%c0_77, %c0_78] : memref<2x12xbf16, #tpu.memory_space<vmem>>, vector<2x12xbf16>
      %104 = arith.truncf %101 : vector<12x32xf32> to vector<12x32xbf16>
      %cst_79 = arith.constant dense<0.000000e+00> : vector<2x32xf32>
      %105 = tpu.matmul %103, %104, %cst_79 {dimension_numbers = #tpu.dot_dimension_numbers<[1], [0], [0], [1], [0, 0, 1, 1], [], []>} : vector<2x12xbf16>, vector<12x32xbf16>, vector<2x32xf32> -> vector<2x32xf32>
      %c0_80 = arith.constant 0 : index
      %c0_81 = arith.constant 0 : index
      %106 = vector.load %arg9[%c0_80, %c0_81] : memref<2x1xf32, #tpu.memory_space<vmem>>, vector<2x1xf32>
      %107 = vector.broadcast %106 : vector<2x1xf32> to vector<2x32xf32>
      %108 = arith.mulf %105, %107 : vector<2x32xf32>
      %c0_82 = arith.constant 0 : index
      %c0_83 = arith.constant 0 : index
      %109 = vector.load %arg6[%c0_82, %c0_83] : memref<2x32xf32, #tpu.memory_space<vmem>>, vector<2x32xf32>
      %c0_84 = arith.constant 0 : index
      %c0_85 = arith.constant 0 : index
      %110 = vector.load %arg26[%c0_84, %c0_85] : memref<32x64xbf16, #tpu.memory_space<vmem>>, vector<32x64xbf16>
      %111 = arith.truncf %109 : vector<2x32xf32> to vector<2x32xbf16>
      %cst_86 = arith.constant dense<0.000000e+00> : vector<2x64xf32>
      %112 = tpu.matmul %111, %110, %cst_86 {dimension_numbers = #tpu.dot_dimension_numbers<[1], [0], [0], [1], [0, 0, 1, 1], [], []>} : vector<2x32xbf16>, vector<32x64xbf16>, vector<2x64xf32> -> vector<2x64xf32>
      %c0_87 = arith.constant 0 : index
      %c0_88 = arith.constant 0 : index
      %113 = vector.load %arg27[%c0_87, %c0_88] : memref<32x64xbf16, #tpu.memory_space<vmem>>, vector<32x64xbf16>
      %114 = arith.truncf %108 : vector<2x32xf32> to vector<2x32xbf16>
      %cst_89 = arith.constant dense<0.000000e+00> : vector<2x64xf32>
      %115 = tpu.matmul %114, %113, %cst_89 {dimension_numbers = #tpu.dot_dimension_numbers<[1], [0], [0], [1], [0, 0, 1, 1], [], []>} : vector<2x32xbf16>, vector<32x64xbf16>, vector<2x64xf32> -> vector<2x64xf32>
      %116 = arith.addf %112, %115 : vector<2x64xf32>
      %c0_90 = arith.constant 0 : index
      %c0_91 = arith.constant 0 : index
      %117 = vector.load %arg28[%c0_90, %c0_91] : memref<1x64xf32, #tpu.memory_space<vmem>>, vector<1x64xf32>
      %118 = vector.broadcast %117 : vector<1x64xf32> to vector<2x64xf32>
      %119 = arith.addf %116, %118 : vector<2x64xf32>
      %cst_92 = arith.constant 0.000000e+00 : f32
      %120 = vector.broadcast %cst_92 : f32 to vector<2x64xf32>
      %121 = arith.cmpf ogt, %119, %120 : vector<2x64xf32>
      %cst_93 = arith.constant 0.000000e+00 : f32
      %122 = vector.broadcast %cst_93 : f32 to vector<2x64xf32>
      %123 = arith.minimumf %119, %122 : vector<2x64xf32>
      %124 = math.exp %123 : vector<2x64xf32>
      %cst_94 = arith.constant 1.000000e+00 : f32
      %125 = vector.broadcast %cst_94 : f32 to vector<2x64xf32>
      %126 = arith.subf %124, %125 : vector<2x64xf32>
      %127 = arith.select %121, %119, %126 : vector<2x64xi1>, vector<2x64xf32>
      %c0_95 = arith.constant 0 : index
      %c0_96 = arith.constant 0 : index
      %128 = vector.load %arg29[%c0_95, %c0_96] : memref<64x32xbf16, #tpu.memory_space<vmem>>, vector<64x32xbf16>
      %129 = arith.truncf %127 : vector<2x64xf32> to vector<2x64xbf16>
      %cst_97 = arith.constant dense<0.000000e+00> : vector<2x32xf32>
      %130 = tpu.matmul %129, %128, %cst_97 {dimension_numbers = #tpu.dot_dimension_numbers<[1], [0], [0], [1], [0, 0, 1, 1], [], []>} : vector<2x64xbf16>, vector<64x32xbf16>, vector<2x32xf32> -> vector<2x32xf32>
      %c0_98 = arith.constant 0 : index
      %c0_99 = arith.constant 0 : index
      %131 = vector.load %arg30[%c0_98, %c0_99] : memref<1x32xf32, #tpu.memory_space<vmem>>, vector<1x32xf32>
      %132 = vector.broadcast %131 : vector<1x32xf32> to vector<2x32xf32>
      %133 = arith.addf %130, %132 : vector<2x32xf32>
      %c0_100 = arith.constant 0 : index
      %c0_101 = arith.constant 0 : index
      %134 = vector.load %arg33[%c0_100, %c0_101] : memref<2x32xf32, #tpu.memory_space<vmem>>, vector<2x32xf32>
      tpu.vector_store %arg33[%c0_100, %c0_101], %133 {strides = array<i32>} : memref<2x32xf32, #tpu.memory_space<vmem>>, vector<2x32xf32>,
    } else {
    }
    return
  }
  func.func @transform_0(%arg0: i32) -> (i32, i32) {
    %c0_i32 = arith.constant 0 : i32
    %c0_i32_0 = arith.constant 0 : i32
    return %arg0, %c0_i32 : i32, i32
  }
  func.func @transform_1(%arg0: i32) -> (i32, i32) {
    %c0_i32 = arith.constant 0 : i32
    %c0_i32_0 = arith.constant 0 : i32
    return %arg0, %c0_i32 : i32, i32
  }
  func.func @transform_2(%arg0: i32) -> (i32, i32) {
    %c0_i32 = arith.constant 0 : i32
    %c0_i32_0 = arith.constant 0 : i32
    return %arg0, %c0_i32 : i32, i32
  }
  func.func @transform_3(%arg0: i32) -> (i32, i32) {
    %c0_i32 = arith.constant 0 : i32
    %c0_i32_0 = arith.constant 0 : i32
    return %c0_i32, %arg0 : i32, i32
  }
  func.func @transform_4(%arg0: i32) -> (i32, i32) {
    %c0_i32 = arith.constant 0 : i32
    %c0_i32_0 = arith.constant 0 : i32
    %c0_i32_1 = arith.constant 0 : i32
    return %c0_i32, %c0_i32_0 : i32, i32
  }
  func.func @transform_5(%arg0: i32) -> (i32, i32) {
    %c0_i32 = arith.constant 0 : i32
    %c0_i32_0 = arith.constant 0 : i32
    %c0_i32_1 = arith.constant 0 : i32
    return %c0_i32, %c0_i32_0 : i32, i32
  }
  func.func @transform_6(%arg0: i32) -> (i32, i32) {
    %c0_i32 = arith.constant 0 : i32
    %c0_i32_0 = arith.constant 0 : i32
    %c0_i32_1 = arith.constant 0 : i32
    return %c0_i32, %c0_i32_0 : i32, i32
  }
  func.func @transform_7(%arg0: i32) -> (i32, i32) {
    %c0_i32 = arith.constant 0 : i32
    %c0_i32_0 = arith.constant 0 : i32
    %c0_i32_1 = arith.constant 0 : i32
    return %c0_i32, %c0_i32_0 : i32, i32
  }
  func.func @transform_8(%arg0: i32) -> (i32, i32) {
    %c0_i32 = arith.constant 0 : i32
    %c0_i32_0 = arith.constant 0 : i32
    %c0_i32_1 = arith.constant 0 : i32
    return %c0_i32, %c0_i32_0 : i32, i32
  }
  func.func @transform_9(%arg0: i32) -> (i32, i32) {
    %c0_i32 = arith.constant 0 : i32
    %c0_i32_0 = arith.constant 0 : i32
    %c0_i32_1 = arith.constant 0 : i32
    return %c0_i32, %c0_i32_0 : i32, i32
  }
  func.func @transform_10(%arg0: i32) -> (i32, i32) {
    %c0_i32 = arith.constant 0 : i32
    %c0_i32_0 = arith.constant 0 : i32
    %c0_i32_1 = arith.constant 0 : i32
    return %c0_i32, %c0_i32_0 : i32, i32
  }
  func.func @transform_11(%arg0: i32) -> (i32, i32) {
    %c0_i32 = arith.constant 0 : i32
    %c0_i32_0 = arith.constant 0 : i32
    %c0_i32_1 = arith.constant 0 : i32
    return %c0_i32, %c0_i32_0 : i32, i32
  }
  func.func @transform_12(%arg0: i32) -> (i32, i32) {
    %c0_i32 = arith.constant 0 : i32
    %c0_i32_0 = arith.constant 0 : i32
    %c0_i32_1 = arith.constant 0 : i32
    return %c0_i32, %c0_i32_0 : i32, i32
  }
  func.func @transform_13(%arg0: i32) -> (i32, i32) {
    %c0_i32 = arith.constant 0 : i32
    %c0_i32_0 = arith.constant 0 : i32
    %c0_i32_1 = arith.constant 0 : i32
    return %c0_i32, %c0_i32_0 : i32, i32
  }
  func.func @transform_14(%arg0: i32) -> (i32, i32) {
    %c0_i32 = arith.constant 0 : i32
    %c0_i32_0 = arith.constant 0 : i32
    %c0_i32_1 = arith.constant 0 : i32
    return %c0_i32, %c0_i32_0 : i32, i32
  }
  func.func @transform_15(%arg0: i32) -> (i32, i32) {
    %c0_i32 = arith.constant 0 : i32
    %c0_i32_0 = arith.constant 0 : i32
    %c0_i32_1 = arith.constant 0 : i32
    return %c0_i32, %c0_i32_0 : i32, i32
  }
  func.func @transform_16(%arg0: i32) -> (i32, i32) {
    %c0_i32 = arith.constant 0 : i32
    %c0_i32_0 = arith.constant 0 : i32
    %c0_i32_1 = arith.constant 0 : i32
    return %c0_i32, %c0_i32_0 : i32, i32
  }
  func.func @transform_17(%arg0: i32) -> (i32, i32) {
    %c0_i32 = arith.constant 0 : i32
    %c0_i32_0 = arith.constant 0 : i32
    %c0_i32_1 = arith.constant 0 : i32
    return %c0_i32, %c0_i32_0 : i32, i32
  }
  func.func @transform_18(%arg0: i32) -> (i32, i32) {
    %c0_i32 = arith.constant 0 : i32
    %c0_i32_0 = arith.constant 0 : i32
    %c0_i32_1 = arith.constant 0 : i32
    return %c0_i32, %c0_i32_0 : i32, i32
  }
  func.func @transform_19(%arg0: i32) -> (i32, i32) {
    %c0_i32 = arith.constant 0 : i32
    %c0_i32_0 = arith.constant 0 : i32
    %c0_i32_1 = arith.constant 0 : i32
    return %c0_i32, %c0_i32_0 : i32, i32
  }
  func.func @transform_20(%arg0: i32) -> (i32, i32) {
    %c0_i32 = arith.constant 0 : i32
    %c0_i32_0 = arith.constant 0 : i32
    %c0_i32_1 = arith.constant 0 : i32
    return %c0_i32, %c0_i32_0 : i32, i32
  }
  func.func @transform_21(%arg0: i32) -> (i32, i32) {
    %c0_i32 = arith.constant 0 : i32
    %c0_i32_0 = arith.constant 0 : i32
    %c0_i32_1 = arith.constant 0 : i32
    return %c0_i32, %c0_i32_0 : i32, i32
  }
  func.func @transform_22(%arg0: i32) -> (i32, i32) {
    %c0_i32 = arith.constant 0 : i32
    %c0_i32_0 = arith.constant 0 : i32
    %c0_i32_1 = arith.constant 0 : i32
    return %c0_i32, %c0_i32_0 : i32, i32
  }
  func.func @transform_23(%arg0: i32) -> (i32, i32) {
    %c0_i32 = arith.constant 0 : i32
    %c0_i32_0 = arith.constant 0 : i32
    %c0_i32_1 = arith.constant 0 : i32
    return %c0_i32, %c0_i32_0 : i32, i32
  }
  func.func @transform_24(%arg0: i32) -> (i32, i32) {
    %c0_i32 = arith.constant 0 : i32
    %c0_i32_0 = arith.constant 0 : i32
    %c0_i32_1 = arith.constant 0 : i32
    return %c0_i32, %c0_i32_0 : i32, i32
  }
  func.func @transform_25(%arg0: i32) -> (i32, i32) {
    %c0_i32 = arith.constant 0 : i32
    %c0_i32_0 = arith.constant 0 : i32
    %c0_i32_1 = arith.constant 0 : i32
    return %c0_i32, %c0_i32_0 : i32, i32
  }
  func.func @transform_26(%arg0: i32) -> (i32, i32) {
    %c0_i32 = arith.constant 0 : i32
    %c0_i32_0 = arith.constant 0 : i32
    %c0_i32_1 = arith.constant 0 : i32
    return %c0_i32, %c0_i32_0 : i32, i32
  }
  func.func @transform_27(%arg0: i32) -> (i32, i32) {
    %c0_i32 = arith.constant 0 : i32
    %c0_i32_0 = arith.constant 0 : i32
    %c0_i32_1 = arith.constant 0 : i32
    return %c0_i32, %c0_i32_0 : i32, i32
  }
  func.func @transform_28(%arg0: i32) -> (i32, i32) {
    %c0_i32 = arith.constant 0 : i32
    %c0_i32_0 = arith.constant 0 : i32
    %c0_i32_1 = arith.constant 0 : i32
    return %c0_i32, %c0_i32_0 : i32, i32
  }
  func.func @transform_29(%arg0: i32) -> (i32, i32) {
    %c0_i32 = arith.constant 0 : i32
    %c0_i32_0 = arith.constant 0 : i32
    %c0_i32_1 = arith.constant 0 : i32
    return %c0_i32, %c0_i32_0 : i32, i32
  }
  func.func @transform_30(%arg0: i32) -> (i32, i32) {
    %c0_i32 = arith.constant 0 : i32
    %c0_i32_0 = arith.constant 0 : i32
    %c0_i32_1 = arith.constant 0 : i32
    return %c0_i32, %c0_i32_0 : i32, i32
  }
  func.func @transform_31(%arg0: i32) -> (i32, i32) {
    %c0_i32 = arith.constant 0 : i32
    %c0_i32_0 = arith.constant 0 : i32
    return %arg0, %c0_i32 : i32, i32
  }
  func.func @transform_32(%arg0: i32) -> (i32, i32) {
    %c0_i32 = arith.constant 0 : i32
    %c0_i32_0 = arith.constant 0 : i32
    %c0_i32_1 = arith.constant 0 : i32
    return %c0_i32, %c0_i32_0 : i32, i32
  }
}

module attributes {stable_mosaic.version = 11 : i64} {
  func.func @_meta_kernel(%arg0: i32, %arg1: memref<128x256xbf16, #tpu.memory_space<vmem>>, %arg2: memref<128x12xbf16, #tpu.memory_space<vmem>>, %arg3: memref<128x12xbf16, #tpu.memory_space<vmem>>, %arg4: memref<12x128xbf16, #tpu.memory_space<vmem>>, %arg5: memref<12x32xf32, #tpu.memory_space<vmem>>, %arg6: memref<2x32xf32, #tpu.memory_space<vmem>>, %arg7: memref<2x12xbf16, #tpu.memory_space<vmem>>, %arg8: memref<12x1xf32, #tpu.memory_space<vmem>>, %arg9: memref<2x1xf32, #tpu.memory_space<vmem>>, %arg10: memref<32x32xbf16, #tpu.memory_space<vmem>>, %arg11: memref<32x32xbf16, #tpu.memory_space<vmem>>, %arg12: memref<256x32xbf16, #tpu.memory_space<vmem>>, %arg13: memref<1x32xf32, #tpu.memory_space<vmem>>, %arg14: memref<32x256xbf16, #tpu.memory_space<vmem>>, %arg15: memref<1x256xf32, #tpu.memory_space<vmem>>, %arg16: memref<32x64xbf16, #tpu.memory_space<vmem>>, %arg17: memref<256x64xbf16, #tpu.memory_space<vmem>>, %arg18: memref<1x64xf32, #tpu.memory_space<vmem>>, %arg19: memref<64x64xbf16, #tpu.memory_space<vmem>>, %arg20: memref<1x64xf32, #tpu.memory_space<vmem>>, %arg21: memref<32x64xbf16, #tpu.memory_space<vmem>>, %arg22: memref<64x64xbf16, #tpu.memory_space<vmem>>, %arg23: memref<1x64xf32, #tpu.memory_space<vmem>>, %arg24: memref<64x32xbf16, #tpu.memory_space<vmem>>, %arg25: memref<1x32xf32, #tpu.memory_space<vmem>>, %arg26: memref<32x64xbf16, #tpu.memory_space<vmem>>, %arg27: memref<32x64xbf16, #tpu.memory_space<vmem>>, %arg28: memref<1x64xf32, #tpu.memory_space<vmem>>, %arg29: memref<64x32xbf16, #tpu.memory_space<vmem>>, %arg30: memref<1x32xf32, #tpu.memory_space<vmem>>, %arg31: memref<12x32xf32, #tpu.memory_space<vmem>>, %arg32: memref<128x256xbf16, #tpu.memory_space<vmem>>, %arg33: memref<2x32xf32, #tpu.memory_space<vmem>>, %arg34: memref<12x64xf32, #tpu.memory_space<vmem>>) attributes {dimension_semantics = [#tpu.dimension_semantics<arbitrary>], iteration_bounds = array<i64: 1>, scalar_prefetch = 0 : i64, scratch_operands = 1 : i64, tpu.core_type = #tpu.core_type<tc>, window_params = [{transform_indices = @transform_0, window_bounds = array<i64: 128, 256>}, {transform_indices = @transform_1, window_bounds = array<i64: 128, 12>}, {transform_indices = @transform_2, window_bounds = array<i64: 128, 12>}, {transform_indices = @transform_3, window_bounds = array<i64: 12, 128>}, {pipeline_mode = #tpu.pipeline_mode<synchronous>, transform_indices = @transform_4, window_bounds = array<i64: 12, 32>}, {pipeline_mode = #tpu.pipeline_mode<synchronous>, transform_indices = @transform_5, window_bounds = array<i64: 2, 32>}, {pipeline_mode = #tpu.pipeline_mode<synchronous>, transform_indices = @transform_6, window_bounds = array<i64: 2, 12>}, {pipeline_mode = #tpu.pipeline_mode<synchronous>, transform_indices = @transform_7, window_bounds = array<i64: 12, 1>}, {pipeline_mode = #tpu.pipeline_mode<synchronous>, transform_indices = @transform_8, window_bounds = array<i64: 2, 1>}, {pipeline_mode = #tpu.pipeline_mode<synchronous>, transform_indices = @transform_9, window_bounds = array<i64: 32, 32>}, {pipeline_mode = #tpu.pipeline_mode<synchronous>, transform_indices = @transform_10, window_bounds = array<i64: 32, 32>}, {pipeline_mode = #tpu.pipeline_mode<synchronous>, transform_indices = @transform_11, window_bounds = array<i64: 256, 32>}, {pipeline_mode = #tpu.pipeline_mode<synchronous>, transform_indices = @transform_12, window_bounds = array<i64: 1, 32>}, {pipeline_mode = #tpu.pipeline_mode<synchronous>, transform_indices = @transform_13, window_bounds = array<i64: 32, 256>}, {pipeline_mode = #tpu.pipeline_mode<synchronous>, transform_indices = @transform_14, window_bounds = array<i64: 1, 256>}, {pipeline_mode = #tpu.pipeline_mode<synchronous>, transform_indices = @transform_15, window_bounds = array<i64: 32, 64>}, {pipeline_mode = #tpu.pipeline_mode<synchronous>, transform_indices = @transform_16, window_bounds = array<i64: 256, 64>}, {pipeline_mode = #tpu.pipeline_mode<synchronous>, transform_indices = @transform_17, window_bounds = array<i64: 1, 64>}, {pipeline_mode = #tpu.pipeline_mode<synchronous>, transform_indices = @transform_18, window_bounds = array<i64: 64, 64>}, {pipeline_mode = #tpu.pipeline_mode<synchronous>, transform_indices = @transform_19, window_bounds = array<i64: 1, 64>}, {pipeline_mode = #tpu.pipeline_mode<synchronous>, transform_indices = @transform_20, window_bounds = array<i64: 32, 64>}, {pipeline_mode = #tpu.pipeline_mode<synchronous>, transform_indices = @transform_21, window_bounds = array<i64: 64, 64>}, {pipeline_mode = #tpu.pipeline_mode<synchronous>, transform_indices = @transform_22, window_bounds = array<i64: 1, 64>}, {pipeline_mode = #tpu.pipeline_mode<synchronous>, transform_indices = @transform_23, window_bounds = array<i64: 64, 32>}, {pipeline_mode = #tpu.pipeline_mode<synchronous>, transform_indices = @transform_24, window_bounds = array<i64: 1, 32>}, {pipeline_mode = #tpu.pipeline_mode<synchronous>, transform_indices = @transform_25, window_bounds = array<i64: 32, 64>}, {pipeline_mode = #tpu.pipeline_mode<synchronous>, transform_indices = @transform_26, window_bounds = array<i64: 32, 64>}, {pipeline_mode = #tpu.pipeline_mode<synchronous>, transform_indices = @transform_27, window_bounds = array<i64: 1, 64>}, {pipeline_mode = #tpu.pipeline_mode<synchronous>, transform_indices = @transform_28, window_bounds = array<i64: 64, 32>}, {pipeline_mode = #tpu.pipeline_mode<synchronous>, transform_indices = @transform_29, window_bounds = array<i64: 1, 32>}, {pipeline_mode = #tpu.pipeline_mode<synchronous>, transform_indices = @transform_30, window_bounds = array<i64: 12, 32>}, {transform_indices = @transform_31, window_bounds = array<i64: 128, 256>}, {pipeline_mode = #tpu.pipeline_mode<synchronous>, transform_indices = @transform_32, window_bounds = array<i64: 2, 32>}]} {
    %c0_i32 = arith.constant 0 : i32
    %0 = arith.cmpi eq, %arg0, %c0_i32 : i32
    %1 = arith.extui %0 : i1 to i32
    %c0_i32_0 = arith.constant 0 : i32
    %2 = arith.cmpi ne, %1, %c0_i32_0 : i32
    scf.if %2 {
      %cst_55 = arith.constant 0.000000e+00 : f32
      %73 = vector.broadcast %cst_55 : f32 to vector<12x64xf32>
      %c0_56 = arith.constant 0 : index
      %c0_57 = arith.constant 0 : index
      %74 = vector.load %arg34[%c0_56, %c0_57] : memref<12x64xf32, #tpu.memory_space<vmem>>, vector<12x64xf32>
      tpu.vector_store %arg34[%c0_56, %c0_57], %73 {strides = array<i32>} : memref<12x64xf32, #tpu.memory_space<vmem>>, vector<12x64xf32>,
    } else {
    }
    %c0 = arith.constant 0 : index
    %c0_1 = arith.constant 0 : index
    %3 = vector.load %arg5[%c0, %c0_1] : memref<12x32xf32, #tpu.memory_space<vmem>>, vector<12x32xf32>
    %c0_2 = arith.constant 0 : index
    %c0_3 = arith.constant 0 : index
    %4 = vector.load %arg2[%c0_2, %c0_3] : memref<128x12xbf16, #tpu.memory_space<vmem>>, vector<128x12xbf16>
    %5 = arith.truncf %3 : vector<12x32xf32> to vector<12x32xbf16>
    %cst = arith.constant dense<0.000000e+00> : vector<128x32xf32>
    %6 = tpu.matmul %4, %5, %cst {dimension_numbers = #tpu.dot_dimension_numbers<[1], [0], [0], [1], [0, 0, 1, 1], [], []>} : vector<128x12xbf16>, vector<12x32xbf16>, vector<128x32xf32> -> vector<128x32xf32>
    %c0_4 = arith.constant 0 : index
    %c0_5 = arith.constant 0 : index
    %7 = vector.load %arg3[%c0_4, %c0_5] : memref<128x12xbf16, #tpu.memory_space<vmem>>, vector<128x12xbf16>
    %8 = arith.truncf %3 : vector<12x32xf32> to vector<12x32xbf16>
    %cst_6 = arith.constant dense<0.000000e+00> : vector<128x32xf32>
    %9 = tpu.matmul %7, %8, %cst_6 {dimension_numbers = #tpu.dot_dimension_numbers<[1], [0], [0], [1], [0, 0, 1, 1], [], []>} : vector<128x12xbf16>, vector<12x32xbf16>, vector<128x32xf32> -> vector<128x32xf32>
    %c0_7 = arith.constant 0 : index
    %c0_8 = arith.constant 0 : index
    %10 = vector.load %arg10[%c0_7, %c0_8] : memref<32x32xbf16, #tpu.memory_space<vmem>>, vector<32x32xbf16>
    %11 = arith.truncf %6 : vector<128x32xf32> to vector<128x32xbf16>
    %cst_9 = arith.constant dense<0.000000e+00> : vector<128x32xf32>
    %12 = tpu.matmul %11, %10, %cst_9 {dimension_numbers = #tpu.dot_dimension_numbers<[1], [0], [0], [1], [0, 0, 1, 1], [], []>} : vector<128x32xbf16>, vector<32x32xbf16>, vector<128x32xf32> -> vector<128x32xf32>
    %c0_10 = arith.constant 0 : index
    %c0_11 = arith.constant 0 : index
    %13 = vector.load %arg11[%c0_10, %c0_11] : memref<32x32xbf16, #tpu.memory_space<vmem>>, vector<32x32xbf16>
    %14 = arith.truncf %9 : vector<128x32xf32> to vector<128x32xbf16>
    %cst_12 = arith.constant dense<0.000000e+00> : vector<128x32xf32>
    %15 = tpu.matmul %14, %13, %cst_12 {dimension_numbers = #tpu.dot_dimension_numbers<[1], [0], [0], [1], [0, 0, 1, 1], [], []>} : vector<128x32xbf16>, vector<32x32xbf16>, vector<128x32xf32> -> vector<128x32xf32>
    %16 = arith.addf %12, %15 : vector<128x32xf32>
    %c0_13 = arith.constant 0 : index
    %c0_14 = arith.constant 0 : index
    %17 = vector.load %arg1[%c0_13, %c0_14] : memref<128x256xbf16, #tpu.memory_space<vmem>>, vector<128x256xbf16>
    %c0_15 = arith.constant 0 : index
    %c0_16 = arith.constant 0 : index
    %18 = vector.load %arg12[%c0_15, %c0_16] : memref<256x32xbf16, #tpu.memory_space<vmem>>, vector<256x32xbf16>
    %cst_17 = arith.constant dense<0.000000e+00> : vector<128x32xf32>
    %19 = tpu.matmul %17, %18, %cst_17 {dimension_numbers = #tpu.dot_dimension_numbers<[1], [0], [0], [1], [0, 0, 1, 1], [], []>} : vector<128x256xbf16>, vector<256x32xbf16>, vector<128x32xf32> -> vector<128x32xf32>
    %20 = arith.addf %16, %19 : vector<128x32xf32>
    %c0_18 = arith.constant 0 : index
    %c0_19 = arith.constant 0 : index
    %21 = vector.load %arg13[%c0_18, %c0_19] : memref<1x32xf32, #tpu.memory_space<vmem>>, vector<1x32xf32>
    %22 = vector.broadcast %21 : vector<1x32xf32> to vector<128x32xf32>
    %23 = arith.addf %20, %22 : vector<128x32xf32>
    %cst_20 = arith.constant 0.000000e+00 : f32
    %24 = vector.broadcast %cst_20 : f32 to vector<128x32xf32>
    %25 = arith.cmpf ogt, %23, %24 : vector<128x32xf32>
    %cst_21 = arith.constant 0.000000e+00 : f32
    %26 = vector.broadcast %cst_21 : f32 to vector<128x32xf32>
    %27 = arith.minimumf %23, %26 : vector<128x32xf32>
    %28 = math.exp %27 : vector<128x32xf32>
    %cst_22 = arith.constant 1.000000e+00 : f32
    %29 = vector.broadcast %cst_22 : f32 to vector<128x32xf32>
    %30 = arith.subf %28, %29 : vector<128x32xf32>
    %31 = arith.select %25, %23, %30 : vector<128x32xi1>, vector<128x32xf32>
    %c0_23 = arith.constant 0 : index
    %c0_24 = arith.constant 0 : index
    %32 = vector.load %arg14[%c0_23, %c0_24] : memref<32x256xbf16, #tpu.memory_space<vmem>>, vector<32x256xbf16>
    %33 = arith.truncf %31 : vector<128x32xf32> to vector<128x32xbf16>
    %cst_25 = arith.constant dense<0.000000e+00> : vector<128x256xf32>
    %34 = tpu.matmul %33, %32, %cst_25 {dimension_numbers = #tpu.dot_dimension_numbers<[1], [0], [0], [1], [0, 0, 1, 1], [], []>} : vector<128x32xbf16>, vector<32x256xbf16>, vector<128x256xf32> -> vector<128x256xf32>
    %c0_26 = arith.constant 0 : index
    %c0_27 = arith.constant 0 : index
    %35 = vector.load %arg15[%c0_26, %c0_27] : memref<1x256xf32, #tpu.memory_space<vmem>>, vector<1x256xf32>
    %36 = vector.broadcast %35 : vector<1x256xf32> to vector<128x256xf32>
    %37 = arith.addf %34, %36 : vector<128x256xf32>
    %38 = arith.truncf %37 : vector<128x256xf32> to vector<128x256xbf16>
    %c0_28 = arith.constant 0 : index
    %c0_29 = arith.constant 0 : index
    %39 = vector.load %arg32[%c0_28, %c0_29] : memref<128x256xbf16, #tpu.memory_space<vmem>>, vector<128x256xbf16>
    tpu.vector_store %arg32[%c0_28, %c0_29], %38 {strides = array<i32>} : memref<128x256xbf16, #tpu.memory_space<vmem>>, vector<128x256xbf16>,
    %c0_30 = arith.constant 0 : index
    %c0_31 = arith.constant 0 : index
    %40 = vector.load %arg16[%c0_30, %c0_31] : memref<32x64xbf16, #tpu.memory_space<vmem>>, vector<32x64xbf16>
    %41 = arith.truncf %6 : vector<128x32xf32> to vector<128x32xbf16>
    %cst_32 = arith.constant dense<0.000000e+00> : vector<128x64xf32>
    %42 = tpu.matmul %41, %40, %cst_32 {dimension_numbers = #tpu.dot_dimension_numbers<[1], [0], [0], [1], [0, 0, 1, 1], [], []>} : vector<128x32xbf16>, vector<32x64xbf16>, vector<128x64xf32> -> vector<128x64xf32>
    %c0_33 = arith.constant 0 : index
    %c0_34 = arith.constant 0 : index
    %43 = vector.load %arg17[%c0_33, %c0_34] : memref<256x64xbf16, #tpu.memory_space<vmem>>, vector<256x64xbf16>
    %44 = arith.truncf %37 : vector<128x256xf32> to vector<128x256xbf16>
    %cst_35 = arith.constant dense<0.000000e+00> : vector<128x64xf32>
    %45 = tpu.matmul %44, %43, %cst_35 {dimension_numbers = #tpu.dot_dimension_numbers<[1], [0], [0], [1], [0, 0, 1, 1], [], []>} : vector<128x256xbf16>, vector<256x64xbf16>, vector<128x64xf32> -> vector<128x64xf32>
    %46 = arith.addf %42, %45 : vector<128x64xf32>
    %c0_36 = arith.constant 0 : index
    %c0_37 = arith.constant 0 : index
    %47 = vector.load %arg18[%c0_36, %c0_37] : memref<1x64xf32, #tpu.memory_space<vmem>>, vector<1x64xf32>
    %48 = vector.broadcast %47 : vector<1x64xf32> to vector<128x64xf32>
    %49 = arith.addf %46, %48 : vector<128x64xf32>
    %cst_38 = arith.constant 0.000000e+00 : f32
    %50 = vector.broadcast %cst_38 : f32 to vector<128x64xf32>
    %51 = arith.cmpf ogt, %49, %50 : vector<128x64xf32>
    %cst_39 = arith.constant 0.000000e+00 : f32
    %52 = vector.broadcast %cst_39 : f32 to vector<128x64xf32>
    %53 = arith.minimumf %49, %52 : vector<128x64xf32>
    %54 = math.exp %53 : vector<128x64xf32>
    %cst_40 = arith.constant 1.000000e+00 : f32
    %55 = vector.broadcast %cst_40 : f32 to vector<128x64xf32>
    %56 = arith.subf %54, %55 : vector<128x64xf32>
    %57 = arith.select %51, %49, %56 : vector<128x64xi1>, vector<128x64xf32>
    %c0_41 = arith.constant 0 : index
    %c0_42 = arith.constant 0 : index
    %58 = vector.load %arg19[%c0_41, %c0_42] : memref<64x64xbf16, #tpu.memory_space<vmem>>, vector<64x64xbf16>
    %59 = arith.truncf %57 : vector<128x64xf32> to vector<128x64xbf16>
    %cst_43 = arith.constant dense<0.000000e+00> : vector<128x64xf32>
    %60 = tpu.matmul %59, %58, %cst_43 {dimension_numbers = #tpu.dot_dimension_numbers<[1], [0], [0], [1], [0, 0, 1, 1], [], []>} : vector<128x64xbf16>, vector<64x64xbf16>, vector<128x64xf32> -> vector<128x64xf32>
    %c0_44 = arith.constant 0 : index
    %c0_45 = arith.constant 0 : index
    %61 = vector.load %arg20[%c0_44, %c0_45] : memref<1x64xf32, #tpu.memory_space<vmem>>, vector<1x64xf32>
    %62 = vector.broadcast %61 : vector<1x64xf32> to vector<128x64xf32>
    %63 = arith.addf %60, %62 : vector<128x64xf32>
    %c0_46 = arith.constant 0 : index
    %c0_47 = arith.constant 0 : index
    %64 = vector.load %arg34[%c0_46, %c0_47] : memref<12x64xf32, #tpu.memory_space<vmem>>, vector<12x64xf32>
    %c0_48 = arith.constant 0 : index
    %c0_49 = arith.constant 0 : index
    %65 = vector.load %arg4[%c0_48, %c0_49] : memref<12x128xbf16, #tpu.memory_space<vmem>>, vector<12x128xbf16>
    %66 = arith.truncf %63 : vector<128x64xf32> to vector<128x64xbf16>
    %cst_50 = arith.constant dense<0.000000e+00> : vector<12x64xf32>
    %67 = tpu.matmul %65, %66, %cst_50 {dimension_numbers = #tpu.dot_dimension_numbers<[1], [0], [0], [1], [0, 0, 1, 1], [], []>} : vector<12x128xbf16>, vector<128x64xbf16>, vector<12x64xf32> -> vector<12x64xf32>
    %68 = arith.addf %64, %67 : vector<12x64xf32>
    %c0_51 = arith.constant 0 : index
    %c0_52 = arith.constant 0 : index
    %69 = vector.load %arg34[%c0_51, %c0_52] : memref<12x64xf32, #tpu.memory_space<vmem>>, vector<12x64xf32>
    tpu.vector_store %arg34[%c0_51, %c0_52], %68 {strides = array<i32>} : memref<12x64xf32, #tpu.memory_space<vmem>>, vector<12x64xf32>,
    %c0_i32_53 = arith.constant 0 : i32
    %70 = arith.cmpi eq, %arg0, %c0_i32_53 : i32
    %71 = arith.extui %70 : i1 to i32
    %c0_i32_54 = arith.constant 0 : i32
    %72 = arith.cmpi ne, %71, %c0_i32_54 : i32
    scf.if %72 {
      %c0_55 = arith.constant 0 : index
      %c0_56 = arith.constant 0 : index
      %73 = vector.load %arg34[%c0_55, %c0_56] : memref<12x64xf32, #tpu.memory_space<vmem>>, vector<12x64xf32>
      %c0_57 = arith.constant 0 : index
      %c0_58 = arith.constant 0 : index
      %74 = vector.load %arg8[%c0_57, %c0_58] : memref<12x1xf32, #tpu.memory_space<vmem>>, vector<12x1xf32>
      %75 = vector.broadcast %74 : vector<12x1xf32> to vector<12x64xf32>
      %76 = arith.mulf %73, %75 : vector<12x64xf32>
      %c0_59 = arith.constant 0 : index
      %c0_60 = arith.constant 0 : index
      %77 = vector.load %arg21[%c0_59, %c0_60] : memref<32x64xbf16, #tpu.memory_space<vmem>>, vector<32x64xbf16>
      %78 = arith.truncf %3 : vector<12x32xf32> to vector<12x32xbf16>
      %cst_61 = arith.constant dense<0.000000e+00> : vector<12x64xf32>
      %79 = tpu.matmul %78, %77, %cst_61 {dimension_numbers = #tpu.dot_dimension_numbers<[1], [0], [0], [1], [0, 0, 1, 1], [], []>} : vector<12x32xbf16>, vector<32x64xbf16>, vector<12x64xf32> -> vector<12x64xf32>
      %c0_62 = arith.constant 0 : index
      %c0_63 = arith.constant 0 : index
      %80 = vector.load %arg22[%c0_62, %c0_63] : memref<64x64xbf16, #tpu.memory_space<vmem>>, vector<64x64xbf16>
      %81 = arith.truncf %76 : vector<12x64xf32> to vector<12x64xbf16>
      %cst_64 = arith.constant dense<0.000000e+00> : vector<12x64xf32>
      %82 = tpu.matmul %81, %80, %cst_64 {dimension_numbers = #tpu.dot_dimension_numbers<[1], [0], [0], [1], [0, 0, 1, 1], [], []>} : vector<12x64xbf16>, vector<64x64xbf16>, vector<12x64xf32> -> vector<12x64xf32>
      %83 = arith.addf %79, %82 : vector<12x64xf32>
      %c0_65 = arith.constant 0 : index
      %c0_66 = arith.constant 0 : index
      %84 = vector.load %arg23[%c0_65, %c0_66] : memref<1x64xf32, #tpu.memory_space<vmem>>, vector<1x64xf32>
      %85 = vector.broadcast %84 : vector<1x64xf32> to vector<12x64xf32>
      %86 = arith.addf %83, %85 : vector<12x64xf32>
      %cst_67 = arith.constant 0.000000e+00 : f32
      %87 = vector.broadcast %cst_67 : f32 to vector<12x64xf32>
      %88 = arith.cmpf ogt, %86, %87 : vector<12x64xf32>
      %cst_68 = arith.constant 0.000000e+00 : f32
      %89 = vector.broadcast %cst_68 : f32 to vector<12x64xf32>
      %90 = arith.minimumf %86, %89 : vector<12x64xf32>
      %91 = math.exp %90 : vector<12x64xf32>
      %cst_69 = arith.constant 1.000000e+00 : f32
      %92 = vector.broadcast %cst_69 : f32 to vector<12x64xf32>
      %93 = arith.subf %91, %92 : vector<12x64xf32>
      %94 = arith.select %88, %86, %93 : vector<12x64xi1>, vector<12x64xf32>
      %c0_70 = arith.constant 0 : index
      %c0_71 = arith.constant 0 : index
      %95 = vector.load %arg24[%c0_70, %c0_71] : memref<64x32xbf16, #tpu.memory_space<vmem>>, vector<64x32xbf16>
      %96 = arith.truncf %94 : vector<12x64xf32> to vector<12x64xbf16>
      %cst_72 = arith.constant dense<0.000000e+00> : vector<12x32xf32>
      %97 = tpu.matmul %96, %95, %cst_72 {dimension_numbers = #tpu.dot_dimension_numbers<[1], [0], [0], [1], [0, 0, 1, 1], [], []>} : vector<12x64xbf16>, vector<64x32xbf16>, vector<12x32xf32> -> vector<12x32xf32>
      %c0_73 = arith.constant 0 : index
      %c0_74 = arith.constant 0 : index
      %98 = vector.load %arg25[%c0_73, %c0_74] : memref<1x32xf32, #tpu.memory_space<vmem>>, vector<1x32xf32>
      %99 = vector.broadcast %98 : vector<1x32xf32> to vector<12x32xf32>
      %100 = arith.addf %97, %99 : vector<12x32xf32>
      %c0_75 = arith.constant 0 : index
      %c0_76 = arith.constant 0 : index
      %101 = vector.load %arg31[%c0_75, %c0_76] : memref<12x32xf32, #tpu.memory_space<vmem>>, vector<12x32xf32>
      tpu.vector_store %arg31[%c0_75, %c0_76], %100 {strides = array<i32>} : memref<12x32xf32, #tpu.memory_space<vmem>>, vector<12x32xf32>,
      %c0_77 = arith.constant 0 : index
      %c0_78 = arith.constant 0 : index
      %102 = vector.load %arg7[%c0_77, %c0_78] : memref<2x12xbf16, #tpu.memory_space<vmem>>, vector<2x12xbf16>
      %103 = arith.truncf %100 : vector<12x32xf32> to vector<12x32xbf16>
      %cst_79 = arith.constant dense<0.000000e+00> : vector<2x32xf32>
      %104 = tpu.matmul %102, %103, %cst_79 {dimension_numbers = #tpu.dot_dimension_numbers<[1], [0], [0], [1], [0, 0, 1, 1], [], []>} : vector<2x12xbf16>, vector<12x32xbf16>, vector<2x32xf32> -> vector<2x32xf32>
      %c0_80 = arith.constant 0 : index
      %c0_81 = arith.constant 0 : index
      %105 = vector.load %arg9[%c0_80, %c0_81] : memref<2x1xf32, #tpu.memory_space<vmem>>, vector<2x1xf32>
      %106 = vector.broadcast %105 : vector<2x1xf32> to vector<2x32xf32>
      %107 = arith.mulf %104, %106 : vector<2x32xf32>
      %c0_82 = arith.constant 0 : index
      %c0_83 = arith.constant 0 : index
      %108 = vector.load %arg6[%c0_82, %c0_83] : memref<2x32xf32, #tpu.memory_space<vmem>>, vector<2x32xf32>
      %c0_84 = arith.constant 0 : index
      %c0_85 = arith.constant 0 : index
      %109 = vector.load %arg26[%c0_84, %c0_85] : memref<32x64xbf16, #tpu.memory_space<vmem>>, vector<32x64xbf16>
      %110 = arith.truncf %108 : vector<2x32xf32> to vector<2x32xbf16>
      %cst_86 = arith.constant dense<0.000000e+00> : vector<2x64xf32>
      %111 = tpu.matmul %110, %109, %cst_86 {dimension_numbers = #tpu.dot_dimension_numbers<[1], [0], [0], [1], [0, 0, 1, 1], [], []>} : vector<2x32xbf16>, vector<32x64xbf16>, vector<2x64xf32> -> vector<2x64xf32>
      %c0_87 = arith.constant 0 : index
      %c0_88 = arith.constant 0 : index
      %112 = vector.load %arg27[%c0_87, %c0_88] : memref<32x64xbf16, #tpu.memory_space<vmem>>, vector<32x64xbf16>
      %113 = arith.truncf %107 : vector<2x32xf32> to vector<2x32xbf16>
      %cst_89 = arith.constant dense<0.000000e+00> : vector<2x64xf32>
      %114 = tpu.matmul %113, %112, %cst_89 {dimension_numbers = #tpu.dot_dimension_numbers<[1], [0], [0], [1], [0, 0, 1, 1], [], []>} : vector<2x32xbf16>, vector<32x64xbf16>, vector<2x64xf32> -> vector<2x64xf32>
      %115 = arith.addf %111, %114 : vector<2x64xf32>
      %c0_90 = arith.constant 0 : index
      %c0_91 = arith.constant 0 : index
      %116 = vector.load %arg28[%c0_90, %c0_91] : memref<1x64xf32, #tpu.memory_space<vmem>>, vector<1x64xf32>
      %117 = vector.broadcast %116 : vector<1x64xf32> to vector<2x64xf32>
      %118 = arith.addf %115, %117 : vector<2x64xf32>
      %cst_92 = arith.constant 0.000000e+00 : f32
      %119 = vector.broadcast %cst_92 : f32 to vector<2x64xf32>
      %120 = arith.cmpf ogt, %118, %119 : vector<2x64xf32>
      %cst_93 = arith.constant 0.000000e+00 : f32
      %121 = vector.broadcast %cst_93 : f32 to vector<2x64xf32>
      %122 = arith.minimumf %118, %121 : vector<2x64xf32>
      %123 = math.exp %122 : vector<2x64xf32>
      %cst_94 = arith.constant 1.000000e+00 : f32
      %124 = vector.broadcast %cst_94 : f32 to vector<2x64xf32>
      %125 = arith.subf %123, %124 : vector<2x64xf32>
      %126 = arith.select %120, %118, %125 : vector<2x64xi1>, vector<2x64xf32>
      %c0_95 = arith.constant 0 : index
      %c0_96 = arith.constant 0 : index
      %127 = vector.load %arg29[%c0_95, %c0_96] : memref<64x32xbf16, #tpu.memory_space<vmem>>, vector<64x32xbf16>
      %128 = arith.truncf %126 : vector<2x64xf32> to vector<2x64xbf16>
      %cst_97 = arith.constant dense<0.000000e+00> : vector<2x32xf32>
      %129 = tpu.matmul %128, %127, %cst_97 {dimension_numbers = #tpu.dot_dimension_numbers<[1], [0], [0], [1], [0, 0, 1, 1], [], []>} : vector<2x64xbf16>, vector<64x32xbf16>, vector<2x32xf32> -> vector<2x32xf32>
      %c0_98 = arith.constant 0 : index
      %c0_99 = arith.constant 0 : index
      %130 = vector.load %arg30[%c0_98, %c0_99] : memref<1x32xf32, #tpu.memory_space<vmem>>, vector<1x32xf32>
      %131 = vector.broadcast %130 : vector<1x32xf32> to vector<2x32xf32>
      %132 = arith.addf %129, %131 : vector<2x32xf32>
      %c0_100 = arith.constant 0 : index
      %c0_101 = arith.constant 0 : index
      %133 = vector.load %arg33[%c0_100, %c0_101] : memref<2x32xf32, #tpu.memory_space<vmem>>, vector<2x32xf32>
      tpu.vector_store %arg33[%c0_100, %c0_101], %132 {strides = array<i32>} : memref<2x32xf32, #tpu.memory_space<vmem>>, vector<2x32xf32>,
    } else {
    }
    return
  }
  func.func @transform_0(%arg0: i32) -> (i32, i32) {
    %c0_i32 = arith.constant 0 : i32
    %c0_i32_0 = arith.constant 0 : i32
    return %arg0, %c0_i32 : i32, i32
  }
  func.func @transform_1(%arg0: i32) -> (i32, i32) {
    %c0_i32 = arith.constant 0 : i32
    %c0_i32_0 = arith.constant 0 : i32
    return %arg0, %c0_i32 : i32, i32
  }
  func.func @transform_2(%arg0: i32) -> (i32, i32) {
    %c0_i32 = arith.constant 0 : i32
    %c0_i32_0 = arith.constant 0 : i32
    return %arg0, %c0_i32 : i32, i32
  }
  func.func @transform_3(%arg0: i32) -> (i32, i32) {
    %c0_i32 = arith.constant 0 : i32
    %c0_i32_0 = arith.constant 0 : i32
    return %c0_i32, %arg0 : i32, i32
  }
  func.func @transform_4(%arg0: i32) -> (i32, i32) {
    %c0_i32 = arith.constant 0 : i32
    %c0_i32_0 = arith.constant 0 : i32
    %c0_i32_1 = arith.constant 0 : i32
    return %c0_i32, %c0_i32_0 : i32, i32
  }
  func.func @transform_5(%arg0: i32) -> (i32, i32) {
    %c0_i32 = arith.constant 0 : i32
    %c0_i32_0 = arith.constant 0 : i32
    %c0_i32_1 = arith.constant 0 : i32
    return %c0_i32, %c0_i32_0 : i32, i32
  }
  func.func @transform_6(%arg0: i32) -> (i32, i32) {
    %c0_i32 = arith.constant 0 : i32
    %c0_i32_0 = arith.constant 0 : i32
    %c0_i32_1 = arith.constant 0 : i32
    return %c0_i32, %c0_i32_0 : i32, i32
  }
  func.func @transform_7(%arg0: i32) -> (i32, i32) {
    %c0_i32 = arith.constant 0 : i32
    %c0_i32_0 = arith.constant 0 : i32
    %c0_i32_1 = arith.constant 0 : i32
    return %c0_i32, %c0_i32_0 : i32, i32
  }
  func.func @transform_8(%arg0: i32) -> (i32, i32) {
    %c0_i32 = arith.constant 0 : i32
    %c0_i32_0 = arith.constant 0 : i32
    %c0_i32_1 = arith.constant 0 : i32
    return %c0_i32, %c0_i32_0 : i32, i32
  }
  func.func @transform_9(%arg0: i32) -> (i32, i32) {
    %c0_i32 = arith.constant 0 : i32
    %c0_i32_0 = arith.constant 0 : i32
    %c0_i32_1 = arith.constant 0 : i32
    return %c0_i32, %c0_i32_0 : i32, i32
  }
  func.func @transform_10(%arg0: i32) -> (i32, i32) {
    %c0_i32 = arith.constant 0 : i32
    %c0_i32_0 = arith.constant 0 : i32
    %c0_i32_1 = arith.constant 0 : i32
    return %c0_i32, %c0_i32_0 : i32, i32
  }
  func.func @transform_11(%arg0: i32) -> (i32, i32) {
    %c0_i32 = arith.constant 0 : i32
    %c0_i32_0 = arith.constant 0 : i32
    %c0_i32_1 = arith.constant 0 : i32
    return %c0_i32, %c0_i32_0 : i32, i32
  }
  func.func @transform_12(%arg0: i32) -> (i32, i32) {
    %c0_i32 = arith.constant 0 : i32
    %c0_i32_0 = arith.constant 0 : i32
    %c0_i32_1 = arith.constant 0 : i32
    return %c0_i32, %c0_i32_0 : i32, i32
  }
  func.func @transform_13(%arg0: i32) -> (i32, i32) {
    %c0_i32 = arith.constant 0 : i32
    %c0_i32_0 = arith.constant 0 : i32
    %c0_i32_1 = arith.constant 0 : i32
    return %c0_i32, %c0_i32_0 : i32, i32
  }
  func.func @transform_14(%arg0: i32) -> (i32, i32) {
    %c0_i32 = arith.constant 0 : i32
    %c0_i32_0 = arith.constant 0 : i32
    %c0_i32_1 = arith.constant 0 : i32
    return %c0_i32, %c0_i32_0 : i32, i32
  }
  func.func @transform_15(%arg0: i32) -> (i32, i32) {
    %c0_i32 = arith.constant 0 : i32
    %c0_i32_0 = arith.constant 0 : i32
    %c0_i32_1 = arith.constant 0 : i32
    return %c0_i32, %c0_i32_0 : i32, i32
  }
  func.func @transform_16(%arg0: i32) -> (i32, i32) {
    %c0_i32 = arith.constant 0 : i32
    %c0_i32_0 = arith.constant 0 : i32
    %c0_i32_1 = arith.constant 0 : i32
    return %c0_i32, %c0_i32_0 : i32, i32
  }
  func.func @transform_17(%arg0: i32) -> (i32, i32) {
    %c0_i32 = arith.constant 0 : i32
    %c0_i32_0 = arith.constant 0 : i32
    %c0_i32_1 = arith.constant 0 : i32
    return %c0_i32, %c0_i32_0 : i32, i32
  }
  func.func @transform_18(%arg0: i32) -> (i32, i32) {
    %c0_i32 = arith.constant 0 : i32
    %c0_i32_0 = arith.constant 0 : i32
    %c0_i32_1 = arith.constant 0 : i32
    return %c0_i32, %c0_i32_0 : i32, i32
  }
  func.func @transform_19(%arg0: i32) -> (i32, i32) {
    %c0_i32 = arith.constant 0 : i32
    %c0_i32_0 = arith.constant 0 : i32
    %c0_i32_1 = arith.constant 0 : i32
    return %c0_i32, %c0_i32_0 : i32, i32
  }
  func.func @transform_20(%arg0: i32) -> (i32, i32) {
    %c0_i32 = arith.constant 0 : i32
    %c0_i32_0 = arith.constant 0 : i32
    %c0_i32_1 = arith.constant 0 : i32
    return %c0_i32, %c0_i32_0 : i32, i32
  }
  func.func @transform_21(%arg0: i32) -> (i32, i32) {
    %c0_i32 = arith.constant 0 : i32
    %c0_i32_0 = arith.constant 0 : i32
    %c0_i32_1 = arith.constant 0 : i32
    return %c0_i32, %c0_i32_0 : i32, i32
  }
  func.func @transform_22(%arg0: i32) -> (i32, i32) {
    %c0_i32 = arith.constant 0 : i32
    %c0_i32_0 = arith.constant 0 : i32
    %c0_i32_1 = arith.constant 0 : i32
    return %c0_i32, %c0_i32_0 : i32, i32
  }
  func.func @transform_23(%arg0: i32) -> (i32, i32) {
    %c0_i32 = arith.constant 0 : i32
    %c0_i32_0 = arith.constant 0 : i32
    %c0_i32_1 = arith.constant 0 : i32
    return %c0_i32, %c0_i32_0 : i32, i32
  }
  func.func @transform_24(%arg0: i32) -> (i32, i32) {
    %c0_i32 = arith.constant 0 : i32
    %c0_i32_0 = arith.constant 0 : i32
    %c0_i32_1 = arith.constant 0 : i32
    return %c0_i32, %c0_i32_0 : i32, i32
  }
  func.func @transform_25(%arg0: i32) -> (i32, i32) {
    %c0_i32 = arith.constant 0 : i32
    %c0_i32_0 = arith.constant 0 : i32
    %c0_i32_1 = arith.constant 0 : i32
    return %c0_i32, %c0_i32_0 : i32, i32
  }
  func.func @transform_26(%arg0: i32) -> (i32, i32) {
    %c0_i32 = arith.constant 0 : i32
    %c0_i32_0 = arith.constant 0 : i32
    %c0_i32_1 = arith.constant 0 : i32
    return %c0_i32, %c0_i32_0 : i32, i32
  }
  func.func @transform_27(%arg0: i32) -> (i32, i32) {
    %c0_i32 = arith.constant 0 : i32
    %c0_i32_0 = arith.constant 0 : i32
    %c0_i32_1 = arith.constant 0 : i32
    return %c0_i32, %c0_i32_0 : i32, i32
  }
  func.func @transform_28(%arg0: i32) -> (i32, i32) {
    %c0_i32 = arith.constant 0 : i32
    %c0_i32_0 = arith.constant 0 : i32
    %c0_i32_1 = arith.constant 0 : i32
    return %c0_i32, %c0_i32_0 : i32, i32
  }
  func.func @transform_29(%arg0: i32) -> (i32, i32) {
    %c0_i32 = arith.constant 0 : i32
    %c0_i32_0 = arith.constant 0 : i32
    %c0_i32_1 = arith.constant 0 : i32
    return %c0_i32, %c0_i32_0 : i32, i32
  }
  func.func @transform_30(%arg0: i32) -> (i32, i32) {
    %c0_i32 = arith.constant 0 : i32
    %c0_i32_0 = arith.constant 0 : i32
    %c0_i32_1 = arith.constant 0 : i32
    return %c0_i32, %c0_i32_0 : i32, i32
  }
  func.func @transform_31(%arg0: i32) -> (i32, i32) {
    %c0_i32 = arith.constant 0 : i32
    %c0_i32_0 = arith.constant 0 : i32
    return %arg0, %c0_i32 : i32, i32
  }
  func.func @transform_32(%arg0: i32) -> (i32, i32) {
    %c0_i32 = arith.constant 0 : i32
    %c0_i32_0 = arith.constant 0 : i32
    %c0_i32_1 = arith.constant 0 : i32
    return %c0_i32, %c0_i32_0 : i32, i32
  }
}

module attributes {stable_mosaic.version = 11 : i64} {
  func.func @_meta_kernel(%arg0: i32, %arg1: memref<128x256xbf16, #tpu.memory_space<vmem>>, %arg2: memref<128x12xbf16, #tpu.memory_space<vmem>>, %arg3: memref<128x12xbf16, #tpu.memory_space<vmem>>, %arg4: memref<12x128xbf16, #tpu.memory_space<vmem>>, %arg5: memref<12x32xf32, #tpu.memory_space<vmem>>, %arg6: memref<2x32xf32, #tpu.memory_space<vmem>>, %arg7: memref<2x12xbf16, #tpu.memory_space<vmem>>, %arg8: memref<12x1xf32, #tpu.memory_space<vmem>>, %arg9: memref<2x1xf32, #tpu.memory_space<vmem>>, %arg10: memref<32x32xbf16, #tpu.memory_space<vmem>>, %arg11: memref<32x32xbf16, #tpu.memory_space<vmem>>, %arg12: memref<256x32xbf16, #tpu.memory_space<vmem>>, %arg13: memref<1x32xf32, #tpu.memory_space<vmem>>, %arg14: memref<32x32xbf16, #tpu.memory_space<vmem>>, %arg15: memref<1x32xf32, #tpu.memory_space<vmem>>, %arg16: memref<32x64xbf16, #tpu.memory_space<vmem>>, %arg17: memref<32x64xbf16, #tpu.memory_space<vmem>>, %arg18: memref<1x64xf32, #tpu.memory_space<vmem>>, %arg19: memref<64x64xbf16, #tpu.memory_space<vmem>>, %arg20: memref<1x64xf32, #tpu.memory_space<vmem>>, %arg21: memref<32x64xbf16, #tpu.memory_space<vmem>>, %arg22: memref<64x64xbf16, #tpu.memory_space<vmem>>, %arg23: memref<1x64xf32, #tpu.memory_space<vmem>>, %arg24: memref<64x32xbf16, #tpu.memory_space<vmem>>, %arg25: memref<1x32xf32, #tpu.memory_space<vmem>>, %arg26: memref<32x64xbf16, #tpu.memory_space<vmem>>, %arg27: memref<32x64xbf16, #tpu.memory_space<vmem>>, %arg28: memref<1x64xf32, #tpu.memory_space<vmem>>, %arg29: memref<64x64xbf16, #tpu.memory_space<vmem>>, %arg30: memref<1x64xf32, #tpu.memory_space<vmem>>, %arg31: memref<12x32xf32, #tpu.memory_space<vmem>>, %arg32: memref<128x32xbf16, #tpu.memory_space<vmem>>, %arg33: memref<2x64xf32, #tpu.memory_space<vmem>>, %arg34: memref<12x64xf32, #tpu.memory_space<vmem>>) attributes {dimension_semantics = [#tpu.dimension_semantics<arbitrary>], iteration_bounds = array<i64: 1>, scalar_prefetch = 0 : i64, scratch_operands = 1 : i64, tpu.core_type = #tpu.core_type<tc>, window_params = [{transform_indices = @transform_0, window_bounds = array<i64: 128, 256>}, {transform_indices = @transform_1, window_bounds = array<i64: 128, 12>}, {transform_indices = @transform_2, window_bounds = array<i64: 128, 12>}, {transform_indices = @transform_3, window_bounds = array<i64: 12, 128>}, {pipeline_mode = #tpu.pipeline_mode<synchronous>, transform_indices = @transform_4, window_bounds = array<i64: 12, 32>}, {pipeline_mode = #tpu.pipeline_mode<synchronous>, transform_indices = @transform_5, window_bounds = array<i64: 2, 32>}, {pipeline_mode = #tpu.pipeline_mode<synchronous>, transform_indices = @transform_6, window_bounds = array<i64: 2, 12>}, {pipeline_mode = #tpu.pipeline_mode<synchronous>, transform_indices = @transform_7, window_bounds = array<i64: 12, 1>}, {pipeline_mode = #tpu.pipeline_mode<synchronous>, transform_indices = @transform_8, window_bounds = array<i64: 2, 1>}, {pipeline_mode = #tpu.pipeline_mode<synchronous>, transform_indices = @transform_9, window_bounds = array<i64: 32, 32>}, {pipeline_mode = #tpu.pipeline_mode<synchronous>, transform_indices = @transform_10, window_bounds = array<i64: 32, 32>}, {pipeline_mode = #tpu.pipeline_mode<synchronous>, transform_indices = @transform_11, window_bounds = array<i64: 256, 32>}, {pipeline_mode = #tpu.pipeline_mode<synchronous>, transform_indices = @transform_12, window_bounds = array<i64: 1, 32>}, {pipeline_mode = #tpu.pipeline_mode<synchronous>, transform_indices = @transform_13, window_bounds = array<i64: 32, 32>}, {pipeline_mode = #tpu.pipeline_mode<synchronous>, transform_indices = @transform_14, window_bounds = array<i64: 1, 32>}, {pipeline_mode = #tpu.pipeline_mode<synchronous>, transform_indices = @transform_15, window_bounds = array<i64: 32, 64>}, {pipeline_mode = #tpu.pipeline_mode<synchronous>, transform_indices = @transform_16, window_bounds = array<i64: 32, 64>}, {pipeline_mode = #tpu.pipeline_mode<synchronous>, transform_indices = @transform_17, window_bounds = array<i64: 1, 64>}, {pipeline_mode = #tpu.pipeline_mode<synchronous>, transform_indices = @transform_18, window_bounds = array<i64: 64, 64>}, {pipeline_mode = #tpu.pipeline_mode<synchronous>, transform_indices = @transform_19, window_bounds = array<i64: 1, 64>}, {pipeline_mode = #tpu.pipeline_mode<synchronous>, transform_indices = @transform_20, window_bounds = array<i64: 32, 64>}, {pipeline_mode = #tpu.pipeline_mode<synchronous>, transform_indices = @transform_21, window_bounds = array<i64: 64, 64>}, {pipeline_mode = #tpu.pipeline_mode<synchronous>, transform_indices = @transform_22, window_bounds = array<i64: 1, 64>}, {pipeline_mode = #tpu.pipeline_mode<synchronous>, transform_indices = @transform_23, window_bounds = array<i64: 64, 32>}, {pipeline_mode = #tpu.pipeline_mode<synchronous>, transform_indices = @transform_24, window_bounds = array<i64: 1, 32>}, {pipeline_mode = #tpu.pipeline_mode<synchronous>, transform_indices = @transform_25, window_bounds = array<i64: 32, 64>}, {pipeline_mode = #tpu.pipeline_mode<synchronous>, transform_indices = @transform_26, window_bounds = array<i64: 32, 64>}, {pipeline_mode = #tpu.pipeline_mode<synchronous>, transform_indices = @transform_27, window_bounds = array<i64: 1, 64>}, {pipeline_mode = #tpu.pipeline_mode<synchronous>, transform_indices = @transform_28, window_bounds = array<i64: 64, 64>}, {pipeline_mode = #tpu.pipeline_mode<synchronous>, transform_indices = @transform_29, window_bounds = array<i64: 1, 64>}, {pipeline_mode = #tpu.pipeline_mode<synchronous>, transform_indices = @transform_30, window_bounds = array<i64: 12, 32>}, {transform_indices = @transform_31, window_bounds = array<i64: 128, 32>}, {pipeline_mode = #tpu.pipeline_mode<synchronous>, transform_indices = @transform_32, window_bounds = array<i64: 2, 64>}]} {
    %c0_i32 = arith.constant 0 : i32
    %0 = arith.cmpi eq, %arg0, %c0_i32 : i32
    %1 = arith.extui %0 : i1 to i32
    %c0_i32_0 = arith.constant 0 : i32
    %2 = arith.cmpi ne, %1, %c0_i32_0 : i32
    scf.if %2 {
      %cst_55 = arith.constant 0.000000e+00 : f32
      %73 = vector.broadcast %cst_55 : f32 to vector<12x64xf32>
      %c0_56 = arith.constant 0 : index
      %c0_57 = arith.constant 0 : index
      %74 = vector.load %arg34[%c0_56, %c0_57] : memref<12x64xf32, #tpu.memory_space<vmem>>, vector<12x64xf32>
      tpu.vector_store %arg34[%c0_56, %c0_57], %73 {strides = array<i32>} : memref<12x64xf32, #tpu.memory_space<vmem>>, vector<12x64xf32>,
    } else {
    }
    %c0 = arith.constant 0 : index
    %c0_1 = arith.constant 0 : index
    %3 = vector.load %arg5[%c0, %c0_1] : memref<12x32xf32, #tpu.memory_space<vmem>>, vector<12x32xf32>
    %c0_2 = arith.constant 0 : index
    %c0_3 = arith.constant 0 : index
    %4 = vector.load %arg2[%c0_2, %c0_3] : memref<128x12xbf16, #tpu.memory_space<vmem>>, vector<128x12xbf16>
    %5 = arith.truncf %3 : vector<12x32xf32> to vector<12x32xbf16>
    %cst = arith.constant dense<0.000000e+00> : vector<128x32xf32>
    %6 = tpu.matmul %4, %5, %cst {dimension_numbers = #tpu.dot_dimension_numbers<[1], [0], [0], [1], [0, 0, 1, 1], [], []>} : vector<128x12xbf16>, vector<12x32xbf16>, vector<128x32xf32> -> vector<128x32xf32>
    %c0_4 = arith.constant 0 : index
    %c0_5 = arith.constant 0 : index
    %7 = vector.load %arg3[%c0_4, %c0_5] : memref<128x12xbf16, #tpu.memory_space<vmem>>, vector<128x12xbf16>
    %8 = arith.truncf %3 : vector<12x32xf32> to vector<12x32xbf16>
    %cst_6 = arith.constant dense<0.000000e+00> : vector<128x32xf32>
    %9 = tpu.matmul %7, %8, %cst_6 {dimension_numbers = #tpu.dot_dimension_numbers<[1], [0], [0], [1], [0, 0, 1, 1], [], []>} : vector<128x12xbf16>, vector<12x32xbf16>, vector<128x32xf32> -> vector<128x32xf32>
    %c0_7 = arith.constant 0 : index
    %c0_8 = arith.constant 0 : index
    %10 = vector.load %arg10[%c0_7, %c0_8] : memref<32x32xbf16, #tpu.memory_space<vmem>>, vector<32x32xbf16>
    %11 = arith.truncf %6 : vector<128x32xf32> to vector<128x32xbf16>
    %cst_9 = arith.constant dense<0.000000e+00> : vector<128x32xf32>
    %12 = tpu.matmul %11, %10, %cst_9 {dimension_numbers = #tpu.dot_dimension_numbers<[1], [0], [0], [1], [0, 0, 1, 1], [], []>} : vector<128x32xbf16>, vector<32x32xbf16>, vector<128x32xf32> -> vector<128x32xf32>
    %c0_10 = arith.constant 0 : index
    %c0_11 = arith.constant 0 : index
    %13 = vector.load %arg11[%c0_10, %c0_11] : memref<32x32xbf16, #tpu.memory_space<vmem>>, vector<32x32xbf16>
    %14 = arith.truncf %9 : vector<128x32xf32> to vector<128x32xbf16>
    %cst_12 = arith.constant dense<0.000000e+00> : vector<128x32xf32>
    %15 = tpu.matmul %14, %13, %cst_12 {dimension_numbers = #tpu.dot_dimension_numbers<[1], [0], [0], [1], [0, 0, 1, 1], [], []>} : vector<128x32xbf16>, vector<32x32xbf16>, vector<128x32xf32> -> vector<128x32xf32>
    %16 = arith.addf %12, %15 : vector<128x32xf32>
    %c0_13 = arith.constant 0 : index
    %c0_14 = arith.constant 0 : index
    %17 = vector.load %arg1[%c0_13, %c0_14] : memref<128x256xbf16, #tpu.memory_space<vmem>>, vector<128x256xbf16>
    %c0_15 = arith.constant 0 : index
    %c0_16 = arith.constant 0 : index
    %18 = vector.load %arg12[%c0_15, %c0_16] : memref<256x32xbf16, #tpu.memory_space<vmem>>, vector<256x32xbf16>
    %cst_17 = arith.constant dense<0.000000e+00> : vector<128x32xf32>
    %19 = tpu.matmul %17, %18, %cst_17 {dimension_numbers = #tpu.dot_dimension_numbers<[1], [0], [0], [1], [0, 0, 1, 1], [], []>} : vector<128x256xbf16>, vector<256x32xbf16>, vector<128x32xf32> -> vector<128x32xf32>
    %20 = arith.addf %16, %19 : vector<128x32xf32>
    %c0_18 = arith.constant 0 : index
    %c0_19 = arith.constant 0 : index
    %21 = vector.load %arg13[%c0_18, %c0_19] : memref<1x32xf32, #tpu.memory_space<vmem>>, vector<1x32xf32>
    %22 = vector.broadcast %21 : vector<1x32xf32> to vector<128x32xf32>
    %23 = arith.addf %20, %22 : vector<128x32xf32>
    %cst_20 = arith.constant 0.000000e+00 : f32
    %24 = vector.broadcast %cst_20 : f32 to vector<128x32xf32>
    %25 = arith.cmpf ogt, %23, %24 : vector<128x32xf32>
    %cst_21 = arith.constant 0.000000e+00 : f32
    %26 = vector.broadcast %cst_21 : f32 to vector<128x32xf32>
    %27 = arith.minimumf %23, %26 : vector<128x32xf32>
    %28 = math.exp %27 : vector<128x32xf32>
    %cst_22 = arith.constant 1.000000e+00 : f32
    %29 = vector.broadcast %cst_22 : f32 to vector<128x32xf32>
    %30 = arith.subf %28, %29 : vector<128x32xf32>
    %31 = arith.select %25, %23, %30 : vector<128x32xi1>, vector<128x32xf32>
    %c0_23 = arith.constant 0 : index
    %c0_24 = arith.constant 0 : index
    %32 = vector.load %arg14[%c0_23, %c0_24] : memref<32x32xbf16, #tpu.memory_space<vmem>>, vector<32x32xbf16>
    %33 = arith.truncf %31 : vector<128x32xf32> to vector<128x32xbf16>
    %cst_25 = arith.constant dense<0.000000e+00> : vector<128x32xf32>
    %34 = tpu.matmul %33, %32, %cst_25 {dimension_numbers = #tpu.dot_dimension_numbers<[1], [0], [0], [1], [0, 0, 1, 1], [], []>} : vector<128x32xbf16>, vector<32x32xbf16>, vector<128x32xf32> -> vector<128x32xf32>
    %c0_26 = arith.constant 0 : index
    %c0_27 = arith.constant 0 : index
    %35 = vector.load %arg15[%c0_26, %c0_27] : memref<1x32xf32, #tpu.memory_space<vmem>>, vector<1x32xf32>
    %36 = vector.broadcast %35 : vector<1x32xf32> to vector<128x32xf32>
    %37 = arith.addf %34, %36 : vector<128x32xf32>
    %38 = arith.truncf %37 : vector<128x32xf32> to vector<128x32xbf16>
    %c0_28 = arith.constant 0 : index
    %c0_29 = arith.constant 0 : index
    %39 = vector.load %arg32[%c0_28, %c0_29] : memref<128x32xbf16, #tpu.memory_space<vmem>>, vector<128x32xbf16>
    tpu.vector_store %arg32[%c0_28, %c0_29], %38 {strides = array<i32>} : memref<128x32xbf16, #tpu.memory_space<vmem>>, vector<128x32xbf16>,
    %c0_30 = arith.constant 0 : index
    %c0_31 = arith.constant 0 : index
    %40 = vector.load %arg16[%c0_30, %c0_31] : memref<32x64xbf16, #tpu.memory_space<vmem>>, vector<32x64xbf16>
    %41 = arith.truncf %6 : vector<128x32xf32> to vector<128x32xbf16>
    %cst_32 = arith.constant dense<0.000000e+00> : vector<128x64xf32>
    %42 = tpu.matmul %41, %40, %cst_32 {dimension_numbers = #tpu.dot_dimension_numbers<[1], [0], [0], [1], [0, 0, 1, 1], [], []>} : vector<128x32xbf16>, vector<32x64xbf16>, vector<128x64xf32> -> vector<128x64xf32>
    %c0_33 = arith.constant 0 : index
    %c0_34 = arith.constant 0 : index
    %43 = vector.load %arg17[%c0_33, %c0_34] : memref<32x64xbf16, #tpu.memory_space<vmem>>, vector<32x64xbf16>
    %44 = arith.truncf %37 : vector<128x32xf32> to vector<128x32xbf16>
    %cst_35 = arith.constant dense<0.000000e+00> : vector<128x64xf32>
    %45 = tpu.matmul %44, %43, %cst_35 {dimension_numbers = #tpu.dot_dimension_numbers<[1], [0], [0], [1], [0, 0, 1, 1], [], []>} : vector<128x32xbf16>, vector<32x64xbf16>, vector<128x64xf32> -> vector<128x64xf32>
    %46 = arith.addf %42, %45 : vector<128x64xf32>
    %c0_36 = arith.constant 0 : index
    %c0_37 = arith.constant 0 : index
    %47 = vector.load %arg18[%c0_36, %c0_37] : memref<1x64xf32, #tpu.memory_space<vmem>>, vector<1x64xf32>
    %48 = vector.broadcast %47 : vector<1x64xf32> to vector<128x64xf32>
    %49 = arith.addf %46, %48 : vector<128x64xf32>
    %cst_38 = arith.constant 0.000000e+00 : f32
    %50 = vector.broadcast %cst_38 : f32 to vector<128x64xf32>
    %51 = arith.cmpf ogt, %49, %50 : vector<128x64xf32>
    %cst_39 = arith.constant 0.000000e+00 : f32
    %52 = vector.broadcast %cst_39 : f32 to vector<128x64xf32>
    %53 = arith.minimumf %49, %52 : vector<128x64xf32>
    %54 = math.exp %53 : vector<128x64xf32>
    %cst_40 = arith.constant 1.000000e+00 : f32
    %55 = vector.broadcast %cst_40 : f32 to vector<128x64xf32>
    %56 = arith.subf %54, %55 : vector<128x64xf32>
    %57 = arith.select %51, %49, %56 : vector<128x64xi1>, vector<128x64xf32>
    %c0_41 = arith.constant 0 : index
    %c0_42 = arith.constant 0 : index
    %58 = vector.load %arg19[%c0_41, %c0_42] : memref<64x64xbf16, #tpu.memory_space<vmem>>, vector<64x64xbf16>
    %59 = arith.truncf %57 : vector<128x64xf32> to vector<128x64xbf16>
    %cst_43 = arith.constant dense<0.000000e+00> : vector<128x64xf32>
    %60 = tpu.matmul %59, %58, %cst_43 {dimension_numbers = #tpu.dot_dimension_numbers<[1], [0], [0], [1], [0, 0, 1, 1], [], []>} : vector<128x64xbf16>, vector<64x64xbf16>, vector<128x64xf32> -> vector<128x64xf32>
    %c0_44 = arith.constant 0 : index
    %c0_45 = arith.constant 0 : index
    %61 = vector.load %arg20[%c0_44, %c0_45] : memref<1x64xf32, #tpu.memory_space<vmem>>, vector<1x64xf32>
    %62 = vector.broadcast %61 : vector<1x64xf32> to vector<128x64xf32>
    %63 = arith.addf %60, %62 : vector<128x64xf32>
    %c0_46 = arith.constant 0 : index
    %c0_47 = arith.constant 0 : index
    %64 = vector.load %arg34[%c0_46, %c0_47] : memref<12x64xf32, #tpu.memory_space<vmem>>, vector<12x64xf32>
    %c0_48 = arith.constant 0 : index
    %c0_49 = arith.constant 0 : index
    %65 = vector.load %arg4[%c0_48, %c0_49] : memref<12x128xbf16, #tpu.memory_space<vmem>>, vector<12x128xbf16>
    %66 = arith.truncf %63 : vector<128x64xf32> to vector<128x64xbf16>
    %cst_50 = arith.constant dense<0.000000e+00> : vector<12x64xf32>
    %67 = tpu.matmul %65, %66, %cst_50 {dimension_numbers = #tpu.dot_dimension_numbers<[1], [0], [0], [1], [0, 0, 1, 1], [], []>} : vector<12x128xbf16>, vector<128x64xbf16>, vector<12x64xf32> -> vector<12x64xf32>
    %68 = arith.addf %64, %67 : vector<12x64xf32>
    %c0_51 = arith.constant 0 : index
    %c0_52 = arith.constant 0 : index
    %69 = vector.load %arg34[%c0_51, %c0_52] : memref<12x64xf32, #tpu.memory_space<vmem>>, vector<12x64xf32>
    tpu.vector_store %arg34[%c0_51, %c0_52], %68 {strides = array<i32>} : memref<12x64xf32, #tpu.memory_space<vmem>>, vector<12x64xf32>,
    %c0_i32_53 = arith.constant 0 : i32
    %70 = arith.cmpi eq, %arg0, %c0_i32_53 : i32
    %71 = arith.extui %70 : i1 to i32
    %c0_i32_54 = arith.constant 0 : i32
    %72 = arith.cmpi ne, %71, %c0_i32_54 : i32
    scf.if %72 {
      %c0_55 = arith.constant 0 : index
      %c0_56 = arith.constant 0 : index
      %73 = vector.load %arg34[%c0_55, %c0_56] : memref<12x64xf32, #tpu.memory_space<vmem>>, vector<12x64xf32>
      %c0_57 = arith.constant 0 : index
      %c0_58 = arith.constant 0 : index
      %74 = vector.load %arg8[%c0_57, %c0_58] : memref<12x1xf32, #tpu.memory_space<vmem>>, vector<12x1xf32>
      %75 = vector.broadcast %74 : vector<12x1xf32> to vector<12x64xf32>
      %76 = arith.mulf %73, %75 : vector<12x64xf32>
      %c0_59 = arith.constant 0 : index
      %c0_60 = arith.constant 0 : index
      %77 = vector.load %arg21[%c0_59, %c0_60] : memref<32x64xbf16, #tpu.memory_space<vmem>>, vector<32x64xbf16>
      %78 = arith.truncf %3 : vector<12x32xf32> to vector<12x32xbf16>
      %cst_61 = arith.constant dense<0.000000e+00> : vector<12x64xf32>
      %79 = tpu.matmul %78, %77, %cst_61 {dimension_numbers = #tpu.dot_dimension_numbers<[1], [0], [0], [1], [0, 0, 1, 1], [], []>} : vector<12x32xbf16>, vector<32x64xbf16>, vector<12x64xf32> -> vector<12x64xf32>
      %c0_62 = arith.constant 0 : index
      %c0_63 = arith.constant 0 : index
      %80 = vector.load %arg22[%c0_62, %c0_63] : memref<64x64xbf16, #tpu.memory_space<vmem>>, vector<64x64xbf16>
      %81 = arith.truncf %76 : vector<12x64xf32> to vector<12x64xbf16>
      %cst_64 = arith.constant dense<0.000000e+00> : vector<12x64xf32>
      %82 = tpu.matmul %81, %80, %cst_64 {dimension_numbers = #tpu.dot_dimension_numbers<[1], [0], [0], [1], [0, 0, 1, 1], [], []>} : vector<12x64xbf16>, vector<64x64xbf16>, vector<12x64xf32> -> vector<12x64xf32>
      %83 = arith.addf %79, %82 : vector<12x64xf32>
      %c0_65 = arith.constant 0 : index
      %c0_66 = arith.constant 0 : index
      %84 = vector.load %arg23[%c0_65, %c0_66] : memref<1x64xf32, #tpu.memory_space<vmem>>, vector<1x64xf32>
      %85 = vector.broadcast %84 : vector<1x64xf32> to vector<12x64xf32>
      %86 = arith.addf %83, %85 : vector<12x64xf32>
      %cst_67 = arith.constant 0.000000e+00 : f32
      %87 = vector.broadcast %cst_67 : f32 to vector<12x64xf32>
      %88 = arith.cmpf ogt, %86, %87 : vector<12x64xf32>
      %cst_68 = arith.constant 0.000000e+00 : f32
      %89 = vector.broadcast %cst_68 : f32 to vector<12x64xf32>
      %90 = arith.minimumf %86, %89 : vector<12x64xf32>
      %91 = math.exp %90 : vector<12x64xf32>
      %cst_69 = arith.constant 1.000000e+00 : f32
      %92 = vector.broadcast %cst_69 : f32 to vector<12x64xf32>
      %93 = arith.subf %91, %92 : vector<12x64xf32>
      %94 = arith.select %88, %86, %93 : vector<12x64xi1>, vector<12x64xf32>
      %c0_70 = arith.constant 0 : index
      %c0_71 = arith.constant 0 : index
      %95 = vector.load %arg24[%c0_70, %c0_71] : memref<64x32xbf16, #tpu.memory_space<vmem>>, vector<64x32xbf16>
      %96 = arith.truncf %94 : vector<12x64xf32> to vector<12x64xbf16>
      %cst_72 = arith.constant dense<0.000000e+00> : vector<12x32xf32>
      %97 = tpu.matmul %96, %95, %cst_72 {dimension_numbers = #tpu.dot_dimension_numbers<[1], [0], [0], [1], [0, 0, 1, 1], [], []>} : vector<12x64xbf16>, vector<64x32xbf16>, vector<12x32xf32> -> vector<12x32xf32>
      %c0_73 = arith.constant 0 : index
      %c0_74 = arith.constant 0 : index
      %98 = vector.load %arg25[%c0_73, %c0_74] : memref<1x32xf32, #tpu.memory_space<vmem>>, vector<1x32xf32>
      %99 = vector.broadcast %98 : vector<1x32xf32> to vector<12x32xf32>
      %100 = arith.addf %97, %99 : vector<12x32xf32>
      %c0_75 = arith.constant 0 : index
      %c0_76 = arith.constant 0 : index
      %101 = vector.load %arg31[%c0_75, %c0_76] : memref<12x32xf32, #tpu.memory_space<vmem>>, vector<12x32xf32>
      tpu.vector_store %arg31[%c0_75, %c0_76], %100 {strides = array<i32>} : memref<12x32xf32, #tpu.memory_space<vmem>>, vector<12x32xf32>,
      %c0_77 = arith.constant 0 : index
      %c0_78 = arith.constant 0 : index
      %102 = vector.load %arg7[%c0_77, %c0_78] : memref<2x12xbf16, #tpu.memory_space<vmem>>, vector<2x12xbf16>
      %103 = arith.truncf %100 : vector<12x32xf32> to vector<12x32xbf16>
      %cst_79 = arith.constant dense<0.000000e+00> : vector<2x32xf32>
      %104 = tpu.matmul %102, %103, %cst_79 {dimension_numbers = #tpu.dot_dimension_numbers<[1], [0], [0], [1], [0, 0, 1, 1], [], []>} : vector<2x12xbf16>, vector<12x32xbf16>, vector<2x32xf32> -> vector<2x32xf32>
      %c0_80 = arith.constant 0 : index
      %c0_81 = arith.constant 0 : index
      %105 = vector.load %arg9[%c0_80, %c0_81] : memref<2x1xf32, #tpu.memory_space<vmem>>, vector<2x1xf32>
      %106 = vector.broadcast %105 : vector<2x1xf32> to vector<2x32xf32>
      %107 = arith.mulf %104, %106 : vector<2x32xf32>
      %c0_82 = arith.constant 0 : index
      %c0_83 = arith.constant 0 : index
      %108 = vector.load %arg6[%c0_82, %c0_83] : memref<2x32xf32, #tpu.memory_space<vmem>>, vector<2x32xf32>
      %c0_84 = arith.constant 0 : index
      %c0_85 = arith.constant 0 : index
      %109 = vector.load %arg26[%c0_84, %c0_85] : memref<32x64xbf16, #tpu.memory_space<vmem>>, vector<32x64xbf16>
      %110 = arith.truncf %108 : vector<2x32xf32> to vector<2x32xbf16>
      %cst_86 = arith.constant dense<0.000000e+00> : vector<2x64xf32>
      %111 = tpu.matmul %110, %109, %cst_86 {dimension_numbers = #tpu.dot_dimension_numbers<[1], [0], [0], [1], [0, 0, 1, 1], [], []>} : vector<2x32xbf16>, vector<32x64xbf16>, vector<2x64xf32> -> vector<2x64xf32>
      %c0_87 = arith.constant 0 : index
      %c0_88 = arith.constant 0 : index
      %112 = vector.load %arg27[%c0_87, %c0_88] : memref<32x64xbf16, #tpu.memory_space<vmem>>, vector<32x64xbf16>
      %113 = arith.truncf %107 : vector<2x32xf32> to vector<2x32xbf16>
      %cst_89 = arith.constant dense<0.000000e+00> : vector<2x64xf32>
      %114 = tpu.matmul %113, %112, %cst_89 {dimension_numbers = #tpu.dot_dimension_numbers<[1], [0], [0], [1], [0, 0, 1, 1], [], []>} : vector<2x32xbf16>, vector<32x64xbf16>, vector<2x64xf32> -> vector<2x64xf32>
      %115 = arith.addf %111, %114 : vector<2x64xf32>
      %c0_90 = arith.constant 0 : index
      %c0_91 = arith.constant 0 : index
      %116 = vector.load %arg28[%c0_90, %c0_91] : memref<1x64xf32, #tpu.memory_space<vmem>>, vector<1x64xf32>
      %117 = vector.broadcast %116 : vector<1x64xf32> to vector<2x64xf32>
      %118 = arith.addf %115, %117 : vector<2x64xf32>
      %cst_92 = arith.constant 0.000000e+00 : f32
      %119 = vector.broadcast %cst_92 : f32 to vector<2x64xf32>
      %120 = arith.cmpf ogt, %118, %119 : vector<2x64xf32>
      %cst_93 = arith.constant 0.000000e+00 : f32
      %121 = vector.broadcast %cst_93 : f32 to vector<2x64xf32>
      %122 = arith.minimumf %118, %121 : vector<2x64xf32>
      %123 = math.exp %122 : vector<2x64xf32>
      %cst_94 = arith.constant 1.000000e+00 : f32
      %124 = vector.broadcast %cst_94 : f32 to vector<2x64xf32>
      %125 = arith.subf %123, %124 : vector<2x64xf32>
      %126 = arith.select %120, %118, %125 : vector<2x64xi1>, vector<2x64xf32>
      %c0_95 = arith.constant 0 : index
      %c0_96 = arith.constant 0 : index
      %127 = vector.load %arg29[%c0_95, %c0_96] : memref<64x64xbf16, #tpu.memory_space<vmem>>, vector<64x64xbf16>
      %128 = arith.truncf %126 : vector<2x64xf32> to vector<2x64xbf16>
      %cst_97 = arith.constant dense<0.000000e+00> : vector<2x64xf32>
      %129 = tpu.matmul %128, %127, %cst_97 {dimension_numbers = #tpu.dot_dimension_numbers<[1], [0], [0], [1], [0, 0, 1, 1], [], []>} : vector<2x64xbf16>, vector<64x64xbf16>, vector<2x64xf32> -> vector<2x64xf32>
      %c0_98 = arith.constant 0 : index
      %c0_99 = arith.constant 0 : index
      %130 = vector.load %arg30[%c0_98, %c0_99] : memref<1x64xf32, #tpu.memory_space<vmem>>, vector<1x64xf32>
      %131 = vector.broadcast %130 : vector<1x64xf32> to vector<2x64xf32>
      %132 = arith.addf %129, %131 : vector<2x64xf32>
      %c0_100 = arith.constant 0 : index
      %c0_101 = arith.constant 0 : index
      %133 = vector.load %arg33[%c0_100, %c0_101] : memref<2x64xf32, #tpu.memory_space<vmem>>, vector<2x64xf32>
      tpu.vector_store %arg33[%c0_100, %c0_101], %132 {strides = array<i32>} : memref<2x64xf32, #tpu.memory_space<vmem>>, vector<2x64xf32>,
    } else {
    }
    return
  }
  func.func @transform_0(%arg0: i32) -> (i32, i32) {
    %c0_i32 = arith.constant 0 : i32
    %c0_i32_0 = arith.constant 0 : i32
    return %arg0, %c0_i32 : i32, i32
  }
  func.func @transform_1(%arg0: i32) -> (i32, i32) {
    %c0_i32 = arith.constant 0 : i32
    %c0_i32_0 = arith.constant 0 : i32
    return %arg0, %c0_i32 : i32, i32
  }
  func.func @transform_2(%arg0: i32) -> (i32, i32) {
    %c0_i32 = arith.constant 0 : i32
    %c0_i32_0 = arith.constant 0 : i32
    return %arg0, %c0_i32 : i32, i32
  }
  func.func @transform_3(%arg0: i32) -> (i32, i32) {
    %c0_i32 = arith.constant 0 : i32
    %c0_i32_0 = arith.constant 0 : i32
    return %c0_i32, %arg0 : i32, i32
  }
  func.func @transform_4(%arg0: i32) -> (i32, i32) {
    %c0_i32 = arith.constant 0 : i32
    %c0_i32_0 = arith.constant 0 : i32
    %c0_i32_1 = arith.constant 0 : i32
    return %c0_i32, %c0_i32_0 : i32, i32
  }
  func.func @transform_5(%arg0: i32) -> (i32, i32) {
    %c0_i32 = arith.constant 0 : i32
    %c0_i32_0 = arith.constant 0 : i32
    %c0_i32_1 = arith.constant 0 : i32
    return %c0_i32, %c0_i32_0 : i32, i32
  }
  func.func @transform_6(%arg0: i32) -> (i32, i32) {
    %c0_i32 = arith.constant 0 : i32
    %c0_i32_0 = arith.constant 0 : i32
    %c0_i32_1 = arith.constant 0 : i32
    return %c0_i32, %c0_i32_0 : i32, i32
  }
  func.func @transform_7(%arg0: i32) -> (i32, i32) {
    %c0_i32 = arith.constant 0 : i32
    %c0_i32_0 = arith.constant 0 : i32
    %c0_i32_1 = arith.constant 0 : i32
    return %c0_i32, %c0_i32_0 : i32, i32
  }
  func.func @transform_8(%arg0: i32) -> (i32, i32) {
    %c0_i32 = arith.constant 0 : i32
    %c0_i32_0 = arith.constant 0 : i32
    %c0_i32_1 = arith.constant 0 : i32
    return %c0_i32, %c0_i32_0 : i32, i32
  }
  func.func @transform_9(%arg0: i32) -> (i32, i32) {
    %c0_i32 = arith.constant 0 : i32
    %c0_i32_0 = arith.constant 0 : i32
    %c0_i32_1 = arith.constant 0 : i32
    return %c0_i32, %c0_i32_0 : i32, i32
  }
  func.func @transform_10(%arg0: i32) -> (i32, i32) {
    %c0_i32 = arith.constant 0 : i32
    %c0_i32_0 = arith.constant 0 : i32
    %c0_i32_1 = arith.constant 0 : i32
    return %c0_i32, %c0_i32_0 : i32, i32
  }
  func.func @transform_11(%arg0: i32) -> (i32, i32) {
    %c0_i32 = arith.constant 0 : i32
    %c0_i32_0 = arith.constant 0 : i32
    %c0_i32_1 = arith.constant 0 : i32
    return %c0_i32, %c0_i32_0 : i32, i32
  }
  func.func @transform_12(%arg0: i32) -> (i32, i32) {
    %c0_i32 = arith.constant 0 : i32
    %c0_i32_0 = arith.constant 0 : i32
    %c0_i32_1 = arith.constant 0 : i32
    return %c0_i32, %c0_i32_0 : i32, i32
  }
  func.func @transform_13(%arg0: i32) -> (i32, i32) {
    %c0_i32 = arith.constant 0 : i32
    %c0_i32_0 = arith.constant 0 : i32
    %c0_i32_1 = arith.constant 0 : i32
    return %c0_i32, %c0_i32_0 : i32, i32
  }
  func.func @transform_14(%arg0: i32) -> (i32, i32) {
    %c0_i32 = arith.constant 0 : i32
    %c0_i32_0 = arith.constant 0 : i32
    %c0_i32_1 = arith.constant 0 : i32
    return %c0_i32, %c0_i32_0 : i32, i32
  }
  func.func @transform_15(%arg0: i32) -> (i32, i32) {
    %c0_i32 = arith.constant 0 : i32
    %c0_i32_0 = arith.constant 0 : i32
    %c0_i32_1 = arith.constant 0 : i32
    return %c0_i32, %c0_i32_0 : i32, i32
  }
  func.func @transform_16(%arg0: i32) -> (i32, i32) {
    %c0_i32 = arith.constant 0 : i32
    %c0_i32_0 = arith.constant 0 : i32
    %c0_i32_1 = arith.constant 0 : i32
    return %c0_i32, %c0_i32_0 : i32, i32
  }
  func.func @transform_17(%arg0: i32) -> (i32, i32) {
    %c0_i32 = arith.constant 0 : i32
    %c0_i32_0 = arith.constant 0 : i32
    %c0_i32_1 = arith.constant 0 : i32
    return %c0_i32, %c0_i32_0 : i32, i32
  }
  func.func @transform_18(%arg0: i32) -> (i32, i32) {
    %c0_i32 = arith.constant 0 : i32
    %c0_i32_0 = arith.constant 0 : i32
    %c0_i32_1 = arith.constant 0 : i32
    return %c0_i32, %c0_i32_0 : i32, i32
  }
  func.func @transform_19(%arg0: i32) -> (i32, i32) {
    %c0_i32 = arith.constant 0 : i32
    %c0_i32_0 = arith.constant 0 : i32
    %c0_i32_1 = arith.constant 0 : i32
    return %c0_i32, %c0_i32_0 : i32, i32
  }
  func.func @transform_20(%arg0: i32) -> (i32, i32) {
    %c0_i32 = arith.constant 0 : i32
    %c0_i32_0 = arith.constant 0 : i32
    %c0_i32_1 = arith.constant 0 : i32
    return %c0_i32, %c0_i32_0 : i32, i32
  }
  func.func @transform_21(%arg0: i32) -> (i32, i32) {
    %c0_i32 = arith.constant 0 : i32
    %c0_i32_0 = arith.constant 0 : i32
    %c0_i32_1 = arith.constant 0 : i32
    return %c0_i32, %c0_i32_0 : i32, i32
  }
  func.func @transform_22(%arg0: i32) -> (i32, i32) {
    %c0_i32 = arith.constant 0 : i32
    %c0_i32_0 = arith.constant 0 : i32
    %c0_i32_1 = arith.constant 0 : i32
    return %c0_i32, %c0_i32_0 : i32, i32
  }
  func.func @transform_23(%arg0: i32) -> (i32, i32) {
    %c0_i32 = arith.constant 0 : i32
    %c0_i32_0 = arith.constant 0 : i32
    %c0_i32_1 = arith.constant 0 : i32
    return %c0_i32, %c0_i32_0 : i32, i32
  }
  func.func @transform_24(%arg0: i32) -> (i32, i32) {
    %c0_i32 = arith.constant 0 : i32
    %c0_i32_0 = arith.constant 0 : i32
    %c0_i32_1 = arith.constant 0 : i32
    return %c0_i32, %c0_i32_0 : i32, i32
  }
  func.func @transform_25(%arg0: i32) -> (i32, i32) {
    %c0_i32 = arith.constant 0 : i32
    %c0_i32_0 = arith.constant 0 : i32
    %c0_i32_1 = arith.constant 0 : i32
    return %c0_i32, %c0_i32_0 : i32, i32
  }
  func.func @transform_26(%arg0: i32) -> (i32, i32) {
    %c0_i32 = arith.constant 0 : i32
    %c0_i32_0 = arith.constant 0 : i32
    %c0_i32_1 = arith.constant 0 : i32
    return %c0_i32, %c0_i32_0 : i32, i32
  }
  func.func @transform_27(%arg0: i32) -> (i32, i32) {
    %c0_i32 = arith.constant 0 : i32
    %c0_i32_0 = arith.constant 0 : i32
    %c0_i32_1 = arith.constant 0 : i32
    return %c0_i32, %c0_i32_0 : i32, i32
  }
  func.func @transform_28(%arg0: i32) -> (i32, i32) {
    %c0_i32 = arith.constant 0 : i32
    %c0_i32_0 = arith.constant 0 : i32
    %c0_i32_1 = arith.constant 0 : i32
    return %c0_i32, %c0_i32_0 : i32, i32
  }
  func.func @transform_29(%arg0: i32) -> (i32, i32) {
    %c0_i32 = arith.constant 0 : i32
    %c0_i32_0 = arith.constant 0 : i32
    %c0_i32_1 = arith.constant 0 : i32
    return %c0_i32, %c0_i32_0 : i32, i32
  }
  func.func @transform_30(%arg0: i32) -> (i32, i32) {
    %c0_i32 = arith.constant 0 : i32
    %c0_i32_0 = arith.constant 0 : i32
    %c0_i32_1 = arith.constant 0 : i32
    return %c0_i32, %c0_i32_0 : i32, i32
  }
  func.func @transform_31(%arg0: i32) -> (i32, i32) {
    %c0_i32 = arith.constant 0 : i32
    %c0_i32_0 = arith.constant 0 : i32
    return %arg0, %c0_i32 : i32, i32
  }
  func.func @transform_32(%arg0: i32) -> (i32, i32) {
    %c0_i32 = arith.constant 0 : i32
    %c0_i32_0 = arith.constant 0 : i32
    %c0_i32_1 = arith.constant 0 : i32
    return %c0_i32, %c0_i32_0 : i32, i32
  }
}

module attributes {stable_mosaic.version = 11 : i64} {
  func.func @kernel(%arg0: memref<2x64xf32, #tpu.memory_space<vmem>>, %arg1: memref<64x256xbf16, #tpu.memory_space<vmem>>, %arg2: memref<1x256xf32, #tpu.memory_space<vmem>>, %arg3: memref<256x10xbf16, #tpu.memory_space<vmem>>, %arg4: memref<1x10xf32, #tpu.memory_space<vmem>>, %arg5: memref<2x10xf32, #tpu.memory_space<vmem>>) attributes {dimension_semantics = [], scalar_prefetch = 0 : i64, scratch_operands = 0 : i64, tpu.core_type = #tpu.core_type<tc>} {
    %c0 = arith.constant 0 : index
    %c0_0 = arith.constant 0 : index
    %0 = vector.load %arg0[%c0, %c0_0] : memref<2x64xf32, #tpu.memory_space<vmem>>, vector<2x64xf32>
    %c0_1 = arith.constant 0 : index
    %c0_2 = arith.constant 0 : index
    %1 = vector.load %arg1[%c0_1, %c0_2] : memref<64x256xbf16, #tpu.memory_space<vmem>>, vector<64x256xbf16>
    %2 = arith.truncf %0 : vector<2x64xf32> to vector<2x64xbf16>
    %cst = arith.constant dense<0.000000e+00> : vector<2x256xf32>
    %3 = tpu.matmul %2, %1, %cst {dimension_numbers = #tpu.dot_dimension_numbers<[1], [0], [0], [1], [0, 0, 1, 1], [], []>} : vector<2x64xbf16>, vector<64x256xbf16>, vector<2x256xf32> -> vector<2x256xf32>
    %c0_3 = arith.constant 0 : index
    %c0_4 = arith.constant 0 : index
    %4 = vector.load %arg2[%c0_3, %c0_4] : memref<1x256xf32, #tpu.memory_space<vmem>>, vector<1x256xf32>
    %5 = vector.broadcast %4 : vector<1x256xf32> to vector<2x256xf32>
    %6 = arith.addf %3, %5 : vector<2x256xf32>
    %cst_5 = arith.constant 0.000000e+00 : f32
    %7 = vector.broadcast %cst_5 : f32 to vector<2x256xf32>
    %8 = arith.cmpf ogt, %6, %7 : vector<2x256xf32>
    %cst_6 = arith.constant 0.000000e+00 : f32
    %9 = vector.broadcast %cst_6 : f32 to vector<2x256xf32>
    %10 = arith.minimumf %6, %9 : vector<2x256xf32>
    %11 = math.exp %10 : vector<2x256xf32>
    %cst_7 = arith.constant 1.000000e+00 : f32
    %12 = vector.broadcast %cst_7 : f32 to vector<2x256xf32>
    %13 = arith.subf %11, %12 : vector<2x256xf32>
    %14 = arith.select %8, %6, %13 : vector<2x256xi1>, vector<2x256xf32>
    %c0_8 = arith.constant 0 : index
    %c0_9 = arith.constant 0 : index
    %15 = vector.load %arg3[%c0_8, %c0_9] : memref<256x10xbf16, #tpu.memory_space<vmem>>, vector<256x10xbf16>
    %16 = arith.truncf %14 : vector<2x256xf32> to vector<2x256xbf16>
    %cst_10 = arith.constant dense<0.000000e+00> : vector<2x10xf32>
    %17 = tpu.matmul %16, %15, %cst_10 {dimension_numbers = #tpu.dot_dimension_numbers<[1], [0], [0], [1], [0, 0, 1, 1], [], []>} : vector<2x256xbf16>, vector<256x10xbf16>, vector<2x10xf32> -> vector<2x10xf32>
    %c0_11 = arith.constant 0 : index
    %c0_12 = arith.constant 0 : index
    %18 = vector.load %arg4[%c0_11, %c0_12] : memref<1x10xf32, #tpu.memory_space<vmem>>, vector<1x10xf32>
    %19 = vector.broadcast %18 : vector<1x10xf32> to vector<2x10xf32>
    %20 = arith.addf %17, %19 : vector<2x10xf32>
    %c0_13 = arith.constant 0 : index
    %c0_14 = arith.constant 0 : index
    %21 = vector.load %arg5[%c0_13, %c0_14] : memref<2x10xf32, #tpu.memory_space<vmem>>, vector<2x10xf32>
    tpu.vector_store %arg5[%c0_13, %c0_14], %20 {strides = array<i32>} : memref<2x10xf32, #tpu.memory_space<vmem>>, vector<2x10xf32>,
    return
  }
}

</mosaic_0001>

<llo_original>
// kernel: net_forward.14
$region0: #{net_forward.14}
  #allocation0 [shape = 'u32[]', space=smem, size = 0x4, offset = 0x4, fixed_abs, tag = 'smem constant byte address 0x4 - core index']
  #allocation1 [shape = 'u32[144,128]{1,0:T(1,128)}', space=vmem, size = 0x12000, scoped, tag = 'internal scratch']
  %s0 = inlined_call_operand.vmem [shape: f32[24,8], index: 0, kind: input, shape index: {}]
  %s1 = inlined_call_operand.vmem [shape: f32[1,8], index: 1, kind: output, shape index: {0}]
  %s2 = inlined_call_operand.vmem [shape: f32[1,8], index: 2, kind: output, shape index: {1}]
  %3 = xla_tuple %s1, %s2
  %s4 = sld [smem:[#allocation0]]
  $region26: #{net_forward.14} parent=0
    _
  %s6 = ssub.s32 1, %s4
  %s7 = scalar_select 0, %s6, %s4
  // Predicated region
  $region2: #{net_forward.14} parent=0 // pred_check
    _
  $region3: #{net_forward.14} parent=0 // pred_check_branch
    %9 = sbr.rel (0) target = $region5
  $region4: #{net_forward.14} parent=0 // pred_region
    _
  $region5: #{net_forward.14} parent=0 // pred_fallthru
    _
  %p10 = scmp.eq.s32.totalorder 0, 0
  // Predicated region
  $region6: #{net_forward.14} parent=0 // pred_check
    %p11 = pneg %p10
  $region7: #{net_forward.14} parent=0 // pred_check_branch
    %13 = sbr.rel (%p11) target = $region9
  $region8: #{net_forward.14} parent=0 // pred_region
    %vm14 = vcmask 57344
    %15 = vst.msk [vmem:[%s1] sm:$0x1] %vm14, 0.0
    %16 = vst.msk [vmem:[%s2] sm:$0x1] %vm14, 0.0
  $region9: #{net_forward.14} parent=0 // pred_fallthru
    _
  %v17 = vld [vmem:[%s0] sm:$0xff]
  %v18 = vld [vmem:[%s0 + $0x8] sm:$0xff]
  %v19 = vld [vmem:[%s0 + $0x10] sm:$0xff]
  %v20 = vlaneseq
  %v21 = vshrl.u32 %v20, 7
  %v22 = vadd.s32 %v21, 8
  %v23 = vadd.s32 %v21, 16
  %s24 = smul.u32 0, 24
  %v25 = vstv %s24
  %v26 = vadd.s32 %v21, %v25
  %v27 = vadd.s32 %v22, %v25
  %v28 = vadd.s32 %v23, %v25
  %vm29 = vcmp.lt.s32.totalorder %v26, 24
  %vm30 = vcmp.lt.s32.totalorder %v27, 24
  %vm31 = vcmp.lt.s32.totalorder %v28, 24
  %v32 = vsel %vm29, %v17, 0.0
  %v33 = vsel %vm30, %v18, 0.0
  %v34 = vsel %vm31, %v19, 0.0
  %v35 = vld [vmem:[%s1] sm:$0x1]
  %vm36 = vcmask 64512
  %v37 = vsel %vm36, %v32, 0.0
  %v38 = vsel %vm36, %v33, 0.0
  %v39 = vadd.f32 %v37, %v38
  %v40 = vsel %vm36, %v34, 0.0
  %v41 = vadd.f32 %v39, %v40
  %v42 = vrot.slane %v41, 4
  %v43 = vadd.f32 %v41, %v42
  %v44 = vrot.slane %v43, 2
  %v45 = vadd.f32 %v43, %v44
  %v46 = vrot.slane %v45, 1
  %v47 = vadd.f32 %v45, %v46
  %v48 = vadd.f32 %v35, %v47
  %vm49 = vcmask 57344
  %50 = vst.msk [vmem:[%s1] sm:$0x1] %vm49, %v48
  %v51 = vld [vmem:[%s2] sm:$0x1]
  %v52 = vmul.f32 %v32, %v32
  %v53 = vmul.f32 %v33, %v33
  %v54 = vmul.f32 %v34, %v34
  %v55 = vsel %vm36, %v52, 0.0
  %v56 = vsel %vm36, %v53, 0.0
  %v57 = vadd.f32 %v55, %v56
  %v58 = vsel %vm36, %v54, 0.0
  %v59 = vadd.f32 %v57, %v58
  %v60 = vrot.slane %v59, 4
  %v61 = vadd.f32 %v59, %v60
  %v62 = vrot.slane %v61, 2
  %v63 = vadd.f32 %v61, %v62
  %v64 = vrot.slane %v63, 1
  %v65 = vadd.f32 %v63, %v64
  %v66 = vadd.f32 %v51, %v65
  %67 = vst.msk [vmem:[%s2] sm:$0x1] %vm49, %v66
  // Predicated region
  $region10: #{net_forward.14} parent=0 // pred_check
    _
  $region11: #{net_forward.14} parent=0 // pred_check_branch
    %69 = sbr.rel (0) target = $region13
  $region12: #{net_forward.14} parent=0 // pred_region
    _
  $region13: #{net_forward.14} parent=0 // pred_fallthru
    _
  // Predicated region
  $region14: #{net_forward.14} parent=0 // pred_check
    _
  $region15: #{net_forward.14} parent=0 // pred_check_branch
    %71 = sbr.rel (0) target = $region17
  $region16: #{net_forward.14} parent=0 // pred_region
    _
  $region17: #{net_forward.14} parent=0 // pred_fallthru
    _
  // Predicated region
  $region18: #{net_forward.14} parent=0 // pred_check
    _
  $region19: #{net_forward.14} parent=0 // pred_check_branch
    %73 = sbr.rel (0) target = $region21
  $region20: #{net_forward.14} parent=0 // pred_region
    _
  $region21: #{net_forward.14} parent=0 // pred_fallthru
    _
  // Predicated region
  $region22: #{net_forward.14} parent=0 // pred_check
    _
  $region23: #{net_forward.14} parent=0 // pred_check_branch
    %75 = sbr.rel (0) target = $region25
  $region24: #{net_forward.14} parent=0 // pred_region
    _
  $region25: #{net_forward.14} parent=0 // pred_fallthru
    _

// kernel: net_forward.15
$region0: #{net_forward.15}
  #allocation0 [shape = 'u32[]', space=smem, size = 0x4, offset = 0x4, fixed_abs, tag = 'smem constant byte address 0x4 - core index']
  #allocation1 [shape = 'u32[144,128]{1,0:T(1,128)}', space=vmem, size = 0x12000, scoped, tag = 'internal scratch']
  %s0 = inlined_call_operand.vmem [shape: f32[24,8], index: 0, kind: input, shape index: {}]
  %s1 = inlined_call_operand.vmem [shape: f32[1,8], index: 1, kind: input, shape index: {}]
  %s2 = inlined_call_operand.vmem [shape: f32[1,8], index: 2, kind: input, shape index: {}]
  %s3 = inlined_call_operand.vmem [shape: f32[1,8], index: 3, kind: input, shape index: {}]
  %s4 = inlined_call_operand.vmem [shape: f32[1,8], index: 4, kind: input, shape index: {}]
  %s5 = inlined_call_operand.vmem [shape: f32[24,8], index: 5, kind: output, shape index: {}]
  %s6 = sld [smem:[#allocation0]]
  $region30: #{net_forward.15} parent=0
    _
  %s8 = ssub.s32 1, %s6
  %s9 = scalar_select 0, %s8, %s6
  // Predicated region
  $region2: #{net_forward.15} parent=0 // pred_check
    _
  $region3: #{net_forward.15} parent=0 // pred_check_branch
    %11 = sbr.rel (0) target = $region5
  $region4: #{net_forward.15} parent=0 // pred_region
    _
  $region5: #{net_forward.15} parent=0 // pred_fallthru
    _
  // Predicated region
  $region6: #{net_forward.15} parent=0 // pred_check
    _
  $region7: #{net_forward.15} parent=0 // pred_check_branch
    %13 = sbr.rel (0) target = $region9
  $region8: #{net_forward.15} parent=0 // pred_region
    _
  $region9: #{net_forward.15} parent=0 // pred_fallthru
    _
  // Predicated region
  $region10: #{net_forward.15} parent=0 // pred_check
    _
  $region11: #{net_forward.15} parent=0 // pred_check_branch
    %15 = sbr.rel (0) target = $region13
  $region12: #{net_forward.15} parent=0 // pred_region
    _
  $region13: #{net_forward.15} parent=0 // pred_fallthru
    _
  // Predicated region
  $region14: #{net_forward.15} parent=0 // pred_check
    _
  $region15: #{net_forward.15} parent=0 // pred_check_branch
    %17 = sbr.rel (0) target = $region17
  $region16: #{net_forward.15} parent=0 // pred_region
    _
  $region17: #{net_forward.15} parent=0 // pred_fallthru
    _
  // Predicated region
  $region18: #{net_forward.15} parent=0 // pred_check
    _
  $region19: #{net_forward.15} parent=0 // pred_check_branch
    %19 = sbr.rel (0) target = $region21
  $region20: #{net_forward.15} parent=0 // pred_region
    _
  $region21: #{net_forward.15} parent=0 // pred_fallthru
    _
  %v20 = vld [vmem:[%s1] sm:$0x1]
  %v21 = vmul.f32 %v20, 0.041666668
  %v22 = vld [vmem:[%s2] sm:$0x1]
  %v23 = vmul.f32 %v22, 0.041666668
  %v24 = vmul.f32 %v21, %v21
  %v25 = vsub.f32 %v23, %v24
  %v26 = vmax.f32 %v25, 0.0
  %v27 = vld [vmem:[%s3] sm:$0x1]
  %v28 = vadd.f32 %v26, 1e-05
  %v29 = vrsqrt.pop %v28
  %v30 = vmul.f32 %v27, %v29
  %v31 = vld [vmem:[%s0] sm:$0xff]
  %v32 = vld [vmem:[%s0 + $0x8] sm:$0xff]
  %v33 = vld [vmem:[%s0 + $0x10] sm:$0xff]
  %v35 = vlaneseq
  %v36 = vshrl.u32 %v35, 7
  %v37 = vsub.s32 0, %v36
  %v38 = vrot.slane %v21, %v37
  %v40 = vsub.f32 %v31, %v38
  %v41 = vsub.f32 %v32, %v38
  %v42 = vsub.f32 %v33, %v38
  %v44 = vlaneseq
  %v45 = vshrl.u32 %v44, 7
  %v46 = vsub.s32 0, %v45
  %v47 = vrot.slane %v30, %v46
  %v49 = vmul.f32 %v40, %v47
  %v50 = vmul.f32 %v41, %v47
  %v51 = vmul.f32 %v42, %v47
  %v52 = vld [vmem:[%s4] sm:$0x1]
  %v54 = vlaneseq
  %v55 = vshrl.u32 %v54, 7
  %v56 = vsub.s32 0, %v55
  %v57 = vrot.slane %v52, %v56
  %v59 = vadd.f32 %v49, %v57
  %v60 = vadd.f32 %v50, %v57
  %v61 = vadd.f32 %v51, %v57
  %vm62 = vcmask 64512
  %63 = vst.msk [vmem:[%s5] sm:$0xff] %vm62, %v59
  %64 = vst.msk [vmem:[%s5 + $0x8] sm:$0xff] %vm62, %v60
  %65 = vst.msk [vmem:[%s5 + $0x10] sm:$0xff] %vm62, %v61
  // Predicated region
  $region22: #{net_forward.15} parent=0 // pred_check
    _
  $region23: #{net_forward.15} parent=0 // pred_check_branch
    %67 = sbr.rel (0) target = $region25
  $region24: #{net_forward.15} parent=0 // pred_region
    _
  $region25: #{net_forward.15} parent=0 // pred_fallthru
    _
  // Predicated region
  $region26: #{net_forward.15} parent=0 // pred_check
    _
  $region27: #{net_forward.15} parent=0 // pred_check_branch
    %69 = sbr.rel (0) target = $region29
  $region28: #{net_forward.15} parent=0 // pred_region
    _
  $region29: #{net_forward.15} parent=0 // pred_fallthru
    _

// kernel: net_forward.12
$region0: #{net_forward.12}
  #allocation0 [shape = 'u32[]', space=smem, size = 0x4, offset = 0x4, fixed_abs, tag = 'smem constant byte address 0x4 - core index']
  #allocation1 [shape = 'u32[144,128]{1,0:T(1,128)}', space=vmem, size = 0x12000, scoped, tag = 'internal scratch']
  %s0 = inlined_call_operand.vmem [shape: f32[12,16], index: 0, kind: input, shape index: {}]
  %s1 = inlined_call_operand.vmem [shape: f32[1,16], index: 1, kind: output, shape index: {0}]
  %s2 = inlined_call_operand.vmem [shape: f32[1,16], index: 2, kind: output, shape index: {1}]
  %3 = xla_tuple %s1, %s2
  %s4 = sld [smem:[#allocation0]]
  $region26: #{net_forward.12} parent=0
    _
  %s6 = ssub.s32 1, %s4
  %s7 = scalar_select 0, %s6, %s4
  // Predicated region
  $region2: #{net_forward.12} parent=0 // pred_check
    _
  $region3: #{net_forward.12} parent=0 // pred_check_branch
    %9 = sbr.rel (0) target = $region5
  $region4: #{net_forward.12} parent=0 // pred_region
    _
  $region5: #{net_forward.12} parent=0 // pred_fallthru
    _
  %p10 = scmp.eq.s32.totalorder 0, 0
  // Predicated region
  $region6: #{net_forward.12} parent=0 // pred_check
    %p11 = pneg %p10
  $region7: #{net_forward.12} parent=0 // pred_check_branch
    %13 = sbr.rel (%p11) target = $region9
  $region8: #{net_forward.12} parent=0 // pred_region
    %vm14 = vcmask 122880
    %15 = vst.msk [vmem:[%s1] sm:$0x1] %vm14, 0.0
    %16 = vst.msk [vmem:[%s2] sm:$0x1] %vm14, 0.0
  $region9: #{net_forward.12} parent=0 // pred_fallthru
    _
  %v17 = vld [vmem:[%s0] sm:$0xff]
  %v18 = vld [vmem:[%s0 + $0x8] sm:$0xf]
  %v19 = vlaneseq
  %v20 = vshrl.u32 %v19, 7
  %v21 = vadd.s32 %v20, 8
  %s22 = smul.u32 0, 12
  %v23 = vstv %s22
  %v24 = vadd.s32 %v20, %v23
  %v25 = vadd.s32 %v21, %v23
  %vm26 = vcmp.lt.s32.totalorder %v24, 12
  %vm27 = vcmp.lt.s32.totalorder %v25, 12
  %v28 = vsel %vm26, %v17, 0.0
  %v29 = vsel %vm27, %v18, 0.0
  %v30 = vld [vmem:[%s1] sm:$0x1]
  %vm31 = vcmask 130048
  %v32 = vsel %vm31, %v28, 0.0
  %vm33 = vcmask 125952
  %v34 = vsel %vm33, %v29, 0.0
  %v35 = vadd.f32 %v32, %v34
  %v36 = vrot.slane %v35, 4
  %v37 = vadd.f32 %v35, %v36
  %v38 = vrot.slane %v37, 2
  %v39 = vadd.f32 %v37, %v38
  %v40 = vrot.slane %v39, 1
  %v41 = vadd.f32 %v39, %v40
  %v42 = vadd.f32 %v30, %v41
  %vm43 = vcmask 122880
  %44 = vst.msk [vmem:[%s1] sm:$0x1] %vm43, %v42
  %v45 = vld [vmem:[%s2] sm:$0x1]
  %v46 = vmul.f32 %v28, %v28
  %v47 = vmul.f32 %v29, %v29
  %v48 = vsel %vm31, %v46, 0.0
  %v49 = vsel %vm33, %v47, 0.0
  %v50 = vadd.f32 %v48, %v49
  %v51 = vrot.slane %v50, 4
  %v52 = vadd.f32 %v50, %v51
  %v53 = vrot.slane %v52, 2
  %v54 = vadd.f32 %v52, %v53
  %v55 = vrot.slane %v54, 1
  %v56 = vadd.f32 %v54, %v55
  %v57 = vadd.f32 %v45, %v56
  %58 = vst.msk [vmem:[%s2] sm:$0x1] %vm43, %v57
  // Predicated region
  $region10: #{net_forward.12} parent=0 // pred_check
    _
  $region11: #{net_forward.12} parent=0 // pred_check_branch
    %60 = sbr.rel (0) target = $region13
  $region12: #{net_forward.12} parent=0 // pred_region
    _
  $region13: #{net_forward.12} parent=0 // pred_fallthru
    _
  // Predicated region
  $region14: #{net_forward.12} parent=0 // pred_check
    _
  $region15: #{net_forward.12} parent=0 // pred_check_branch
    %62 = sbr.rel (0) target = $region17
  $region16: #{net_forward.12} parent=0 // pred_region
    _
  $region17: #{net_forward.12} parent=0 // pred_fallthru
    _
  // Predicated region
  $region18: #{net_forward.12} parent=0 // pred_check
    _
  $region19: #{net_forward.12} parent=0 // pred_check_branch
    %64 = sbr.rel (0) target = $region21
  $region20: #{net_forward.12} parent=0 // pred_region
    _
  $region21: #{net_forward.12} parent=0 // pred_fallthru
    _
  // Predicated region
  $region22: #{net_forward.12} parent=0 // pred_check
    _
  $region23: #{net_forward.12} parent=0 // pred_check_branch
    %66 = sbr.rel (0) target = $region25
  $region24: #{net_forward.12} parent=0 // pred_region
    _
  $region25: #{net_forward.12} parent=0 // pred_fallthru
    _

// kernel: net_forward.13
$region0: #{net_forward.13}
  #allocation0 [shape = 'u32[]', space=smem, size = 0x4, offset = 0x4, fixed_abs, tag = 'smem constant byte address 0x4 - core index']
  #allocation1 [shape = 'u32[144,128]{1,0:T(1,128)}', space=vmem, size = 0x12000, scoped, tag = 'internal scratch']
  %s0 = inlined_call_operand.vmem [shape: f32[12,16], index: 0, kind: input, shape index: {}]
  %s1 = inlined_call_operand.vmem [shape: f32[1,16], index: 1, kind: input, shape index: {}]
  %s2 = inlined_call_operand.vmem [shape: f32[1,16], index: 2, kind: input, shape index: {}]
  %s3 = inlined_call_operand.vmem [shape: f32[1,16], index: 3, kind: input, shape index: {}]
  %s4 = inlined_call_operand.vmem [shape: f32[1,16], index: 4, kind: input, shape index: {}]
  %s5 = inlined_call_operand.vmem [shape: f32[12,16], index: 5, kind: output, shape index: {}]
  %s6 = sld [smem:[#allocation0]]
  $region30: #{net_forward.13} parent=0
    _
  %s8 = ssub.s32 1, %s6
  %s9 = scalar_select 0, %s8, %s6
  // Predicated region
  $region2: #{net_forward.13} parent=0 // pred_check
    _
  $region3: #{net_forward.13} parent=0 // pred_check_branch
    %11 = sbr.rel (0) target = $region5
  $region4: #{net_forward.13} parent=0 // pred_region
    _
  $region5: #{net_forward.13} parent=0 // pred_fallthru
    _
  // Predicated region
  $region6: #{net_forward.13} parent=0 // pred_check
    _
  $region7: #{net_forward.13} parent=0 // pred_check_branch
    %13 = sbr.rel (0) target = $region9
  $region8: #{net_forward.13} parent=0 // pred_region
    _
  $region9: #{net_forward.13} parent=0 // pred_fallthru
    _
  // Predicated region
  $region10: #{net_forward.13} parent=0 // pred_check
    _
  $region11: #{net_forward.13} parent=0 // pred_check_branch
    %15 = sbr.rel (0) target = $region13
  $region12: #{net_forward.13} parent=0 // pred_region
    _
  $region13: #{net_forward.13} parent=0 // pred_fallthru
    _
  // Predicated region
  $region14: #{net_forward.13} parent=0 // pred_check
    _
  $region15: #{net_forward.13} parent=0 // pred_check_branch
    %17 = sbr.rel (0) target = $region17
  $region16: #{net_forward.13} parent=0 // pred_region
    _
  $region17: #{net_forward.13} parent=0 // pred_fallthru
    _
  // Predicated region
  $region18: #{net_forward.13} parent=0 // pred_check
    _
  $region19: #{net_forward.13} parent=0 // pred_check_branch
    %19 = sbr.rel (0) target = $region21
  $region20: #{net_forward.13} parent=0 // pred_region
    _
  $region21: #{net_forward.13} parent=0 // pred_fallthru
    _
  %v20 = vld [vmem:[%s1] sm:$0x1]
  %v21 = vmul.f32 %v20, 0.083333336
  %v22 = vld [vmem:[%s2] sm:$0x1]
  %v23 = vmul.f32 %v22, 0.083333336
  %v24 = vmul.f32 %v21, %v21
  %v25 = vsub.f32 %v23, %v24
  %v26 = vmax.f32 %v25, 0.0
  %v27 = vld [vmem:[%s3] sm:$0x1]
  %v28 = vadd.f32 %v26, 1e-05
  %v29 = vrsqrt.pop %v28
  %v30 = vmul.f32 %v27, %v29
  %v31 = vld [vmem:[%s0] sm:$0xff]
  %v32 = vld [vmem:[%s0 + $0x8] sm:$0xf]
  %v34 = vlaneseq
  %v35 = vshrl.u32 %v34, 7
  %v36 = vsub.s32 0, %v35
  %v37 = vrot.slane %v21, %v36
  %v39 = vsub.f32 %v31, %v37
  %v40 = vsub.f32 %v32, %v37
  %v42 = vlaneseq
  %v43 = vshrl.u32 %v42, 7
  %v44 = vsub.s32 0, %v43
  %v45 = vrot.slane %v30, %v44
  %v47 = vmul.f32 %v39, %v45
  %v48 = vmul.f32 %v40, %v45
  %v49 = vld [vmem:[%s4] sm:$0x1]
  %v51 = vlaneseq
  %v52 = vshrl.u32 %v51, 7
  %v53 = vsub.s32 0, %v52
  %v54 = vrot.slane %v49, %v53
  %v56 = vadd.f32 %v47, %v54
  %v57 = vadd.f32 %v48, %v54
  %vm58 = vcmask 130048
  %59 = vst.msk [vmem:[%s5] sm:$0xff] %vm58, %v56
  %vm60 = vcmask 125952
  %61 = vst.msk [vmem:[%s5 + $0x8] sm:$0xf] %vm60, %v57
  // Predicated region
  $region22: #{net_forward.13} parent=0 // pred_check
    _
  $region23: #{net_forward.13} parent=0 // pred_check_branch
    %63 = sbr.rel (0) target = $region25
  $region24: #{net_forward.13} parent=0 // pred_region
    _
  $region25: #{net_forward.13} parent=0 // pred_fallthru
    _
  // Predicated region
  $region26: #{net_forward.13} parent=0 // pred_check
    _
  $region27: #{net_forward.13} parent=0 // pred_check_branch
    %65 = sbr.rel (0) target = $region29
  $region28: #{net_forward.13} parent=0 // pred_region
    _
  $region29: #{net_forward.13} parent=0 // pred_fallthru
    _

// kernel: net_forward.23
$region0: #{net_forward.23}
  #allocation0 [shape = 'u32[]', space=smem, size = 0x4, offset = 0x4, fixed_abs, tag = 'smem constant byte address 0x4 - core index']
  #allocation1 [shape = 'u32[144,128]{1,0:T(1,128)}', space=vmem, size = 0x12000, scoped, tag = 'internal scratch']
  %s0 = inlined_call_operand.vmem [shape: f32[2,64], index: 0, kind: input, shape index: {}]
  %s1 = inlined_call_operand.vmem [shape: bf16[64,256], index: 1, kind: input, shape index: {}]
  %s2 = inlined_call_operand.vmem [shape: f32[1,256], index: 2, kind: input, shape index: {}]
  %s3 = inlined_call_operand.vmem [shape: bf16[256,10], index: 3, kind: input, shape index: {}]
  %s4 = inlined_call_operand.vmem [shape: f32[1,10], index: 4, kind: input, shape index: {}]
  %s5 = inlined_call_operand.hbm [shape: f32[2,10], index: 5, kind: output, shape index: {}]
  %s6 = sld [smem:[#allocation0]]
  $region30: #{net_forward.23} parent=0
    _
  %s8 = ssub.s32 1, %s6
  %s9 = scalar_select 0, %s8, %s6
  $region1: #{net_forward.23} parent=0
    #allocation2 [shape = 'u8[1024]{0}', space=vmem, size = 0x400, scoped, tag = 'output window, operand 0, single buffered']
    #allocation3 [shape = 's32[1]{0}', space=sflag, size = 0x4, scoped, tag = 'scoped memory for net_forward.23']
    %10 = vsyncpa [#allocation3], 0
    // Predicated region
    $region2: #{net_forward.23} parent=1 // pred_check
      _
    $region3: #{net_forward.23} parent=1 // pred_check_branch
      %12 = sbr.rel (0) target = $region5
    $region4: #{net_forward.23} parent=1 // pred_region
      _
    $region5: #{net_forward.23} parent=1 // pred_fallthru
      _
    // Predicated region
    $region6: #{net_forward.23} parent=1 // pred_check
      _
    $region7: #{net_forward.23} parent=1 // pred_check_branch
      %14 = sbr.rel (0) target = $region9
    $region8: #{net_forward.23} parent=1 // pred_region
      _
    $region9: #{net_forward.23} parent=1 // pred_fallthru
      _
    // Predicated region
    $region10: #{net_forward.23} parent=1 // pred_check
      _
    $region11: #{net_forward.23} parent=1 // pred_check_branch
      %16 = sbr.rel (0) target = $region13
    $region12: #{net_forward.23} parent=1 // pred_region
      _
    $region13: #{net_forward.23} parent=1 // pred_fallthru
      _
    // Predicated region
    $region14: #{net_forward.23} parent=1 // pred_check
      _
    $region15: #{net_forward.23} parent=1 // pred_check_branch
      %18 = sbr.rel (0) target = $region17
    $region16: #{net_forward.23} parent=1 // pred_region
      _
    $region17: #{net_forward.23} parent=1 // pred_fallthru
      _
    // Predicated region
    $region18: #{net_forward.23} parent=1 // pred_check
      _
    $region19: #{net_forward.23} parent=1 // pred_check_branch
      %20 = sbr.rel (0) target = $region21
    $region20: #{net_forward.23} parent=1 // pred_region
      _
    $region21: #{net_forward.23} parent=1 // pred_fallthru
      _
    %v22 = vld [vmem:[%s0] sm:$0x3]
    %v23 = vld [vmem:[%s1] sm:$0xff]
    %v24 = vld [vmem:[%s1 + $0x8] sm:$0xff]
    %v25 = vld [vmem:[%s1 + $0x10] sm:$0xff]
    %v26 = vld [vmem:[%s1 + $0x18] sm:$0xff]
    %v27 = vld [vmem:[%s1 + $0x20] sm:$0xff]
    %v28 = vld [vmem:[%s1 + $0x28] sm:$0xff]
    %v29 = vld [vmem:[%s1 + $0x30] sm:$0xff]
    %v30 = vld [vmem:[%s1 + $0x38] sm:$0xff]
    %v31 = vpack.c.bf16 %v22, %v22
    %v32 = vld [vmem:[%s2] sm:$0x3]
    %v34 = vlaneseq
    %v35 = vshrl.u32 %v34, 7
    %v36 = vsub.s32 0, %v35
    %v37 = vrot.slane %v32, %v36
    %v38 = vlaneseq
    %v39 = vshrl.u32 %v38, 7
    %v40 = vsub.s32 1, %v39
    %v41 = vrot.slane %v32, %v40
    %v52 = vunpack.c.l.b16 %v23
    %v53 = vunpack.c.h.b16 %v23
    %v54 = vunpack.c.l.b16 %v24
    %v55 = vunpack.c.h.b16 %v24
    %v56 = vunpack.c.l.b16 %v25
    %v57 = vunpack.c.h.b16 %v25
    %v58 = vunpack.c.l.b16 %v26
    %v59 = vunpack.c.h.b16 %v26
    %v60 = vunpack.c.l.b16 %v27
    %v61 = vunpack.c.h.b16 %v27
    %v62 = vunpack.c.l.b16 %v28
    %v63 = vunpack.c.h.b16 %v28
    %v64 = vunpack.c.l.b16 %v29
    %v65 = vunpack.c.h.b16 %v29
    %v66 = vunpack.c.l.b16 %v30
    %v67 = vunpack.c.h.b16 %v30
    %v68 = vpack.c.b16 %v54, %v52
    %v69 = vpack.c.b16 %v55, %v53
    %v70 = vpack.c.b16 %v58, %v56
    %v71 = vpack.c.b16 %v59, %v57
    %v72 = vpack.c.b16 %v62, %v60
    %v73 = vpack.c.b16 %v63, %v61
    %v74 = vpack.c.b16 %v66, %v64
    %v75 = vpack.c.b16 %v67, %v65
    %vm84 = vcmask 523264
    %v86 = vsel %vm84, %v31, 0
    %88 = vmatprep.subr.bf16.mxu0 %v69
    %89 = vmatpush1.bf16.msra.mxu0 %v68
    %90 = vmatprep.subr.bf16.mxu0 %v71
    %91 = vmatpush1.bf16.msra.mxu0 %v70
    %92 = vmatprep.subr.bf16.mxu0 %v73
    %93 = vmatpush1.bf16.msra.mxu0 %v72
    %94 = vmatprep.subr.bf16.mxu0 %v75
    %95 = vmatpush1.bf16.msra.mxu0 %v74
    %96 = vmatprep.subr.bf16.mxu0 0
    %97 = vmatpush1.bf16.msra.mxu0 0
    %98 = vmatprep.subr.bf16.mxu0 0
    %99 = vmatpush1.bf16.msra.mxu0 0
    %100 = vmatprep.subr.bf16.mxu0 0
    %101 = vmatpush1.bf16.msra.mxu0 0
    %102 = vmatprep.subr.bf16.mxu0 0
    %103 = vmatpush1.bf16.msra.mxu0 0
    %104 = vmatprep.subr.bf16.mxu0 0
    %105 = vmatpush1.bf16.msra.mxu0 0
    %106 = vmatprep.subr.bf16.mxu0 0
    %107 = vmatpush1.bf16.msra.mxu0 0
    %108 = vmatprep.subr.bf16.mxu0 0
    %109 = vmatpush1.bf16.msra.mxu0 0
    %110 = vmatprep.subr.bf16.mxu0 0
    %111 = vmatpush1.bf16.msra.mxu0 0
    %112 = vmatprep.subr.bf16.mxu0 0
    %113 = vmatpush1.bf16.msra.mxu0 0
    %114 = vmatprep.subr.bf16.mxu0 0
    %115 = vmatpush1.bf16.msra.mxu0 0
    %116 = vmatprep.subr.bf16.mxu0 0
    %117 = vmatpush1.bf16.msra.mxu0 0
    %118 = vmatprep.subr.bf16.mxu0 0
    %119 = vmatpush1.bf16.msra.mxu0 0
    %120 = vmatprep.mubr.bf16.mxu0 0
    %121 = vmatmul.mubr.bf16.gmra.mrb[0].mxu0 %v86
    %v122 = vpop.f32.mrb[0].mxu0
    %v123 = vadd.f32 %v37, %v122
    %v124 = vpop.f32.mrb[0].mxu0
    %v125 = vadd.f32 %v41, %v124
    %v126 = vpop.f32.mrb[0].mxu0
    %v127 = vpop.f32.mrb[0].mxu0
    %128 = vdwg.mxu0
    %vm129 = vcmp.gt.f32.partialorder %v123, 0.0
    %vm130 = vcmp.gt.f32.partialorder %v125, 0.0
    %v131 = vmin.f32 %v123, 0.0
    %v132 = vmin.f32 %v125, 0.0
    %v133 = vmul.f32 %v131, 1.442695
    %v134 = vpow.pop %v133
    %v135 = vmul.f32 %v132, 1.442695
    %v136 = vpow.pop %v135
    %v137 = vsub.f32 %v134, 1.0
    %v138 = vsub.f32 %v136, 1.0
    %v139 = vsel %vm129, %v123, %v137
    %v140 = vsel %vm130, %v125, %v138
    %v141 = vld [vmem:[%s3] sm:$0xf]
    %v142 = vld [vmem:[%s3 + $0x4] sm:$0xf]
    %v143 = vld [vmem:[%s3 + $0x8] sm:$0xf]
    %v144 = vld [vmem:[%s3 + $0xc] sm:$0xf]
    %v145 = vld [vmem:[%s3 + $0x10] sm:$0xf]
    %v146 = vld [vmem:[%s3 + $0x14] sm:$0xf]
    %v147 = vld [vmem:[%s3 + $0x18] sm:$0xf]
    %v148 = vld [vmem:[%s3 + $0x1c] sm:$0xf]
    %v149 = vld [vmem:[%s3 + $0x20] sm:$0xf]
    %v150 = vld [vmem:[%s3 + $0x24] sm:$0xf]
    %v151 = vld [vmem:[%s3 + $0x28] sm:$0xf]
    %v152 = vld [vmem:[%s3 + $0x2c] sm:$0xf]
    %v153 = vld [vmem:[%s3 + $0x30] sm:$0xf]
    %v154 = vld [vmem:[%s3 + $0x34] sm:$0xf]
    %v155 = vld [vmem:[%s3 + $0x38] sm:$0xf]
    %v156 = vld [vmem:[%s3 + $0x3c] sm:$0xf]
    %v157 = vld [vmem:[%s3 + $0x40] sm:$0xf]
    %v158 = vld [vmem:[%s3 + $0x44] sm:$0xf]
    %v159 = vld [vmem:[%s3 + $0x48] sm:$0xf]
    %v160 = vld [vmem:[%s3 + $0x4c] sm:$0xf]
    %v161 = vld [vmem:[%s3 + $0x50] sm:$0xf]
    %v162 = vld [vmem:[%s3 + $0x54] sm:$0xf]
    %v163 = vld [vmem:[%s3 + $0x58] sm:$0xf]
    %v164 = vld [vmem:[%s3 + $0x5c] sm:$0xf]
    %v165 = vld [vmem:[%s3 + $0x60] sm:$0xf]
    %v166 = vld [vmem:[%s3 + $0x64] sm:$0xf]
    %v167 = vld [vmem:[%s3 + $0x68] sm:$0xf]
    %v168 = vld [vmem:[%s3 + $0x6c] sm:$0xf]
    %v169 = vld [vmem:[%s3 + $0x70] sm:$0xf]
    %v170 = vld [vmem:[%s3 + $0x74] sm:$0xf]
    %v171 = vld [vmem:[%s3 + $0x78] sm:$0xf]
    %v172 = vld [vmem:[%s3 + $0x7c] sm:$0xf]
    %v173 = vpack.c.bf16 %v139, %v139
    %v174 = vpack.c.bf16 %v140, %v140
    %v175 = vld [vmem:[%s4] sm:$0x1]
    %v177 = vlaneseq
    %v178 = vshrl.u32 %v177, 7
    %v179 = vsub.s32 0, %v178
    %v180 = vrot.slane %v175, %v179
    %v214 = vunpack.c.l.b16 %v141
    %v215 = vunpack.c.l.b16 %v142
    %v216 = vunpack.c.l.b16 %v143
    %v217 = vunpack.c.l.b16 %v144
    %v218 = vunpack.c.l.b16 %v145
    %v219 = vunpack.c.l.b16 %v146
    %v220 = vunpack.c.l.b16 %v147
    %v221 = vunpack.c.l.b16 %v148
    %v222 = vunpack.c.l.b16 %v149
    %v223 = vunpack.c.l.b16 %v150
    %v224 = vunpack.c.l.b16 %v151
    %v225 = vunpack.c.l.b16 %v152
    %v226 = vunpack.c.l.b16 %v153
    %v227 = vunpack.c.l.b16 %v154
    %v228 = vunpack.c.l.b16 %v155
    %v229 = vunpack.c.l.b16 %v156
    %v230 = vunpack.c.l.b16 %v157
    %v231 = vunpack.c.l.b16 %v158
    %v232 = vunpack.c.l.b16 %v159
    %v233 = vunpack.c.l.b16 %v160
    %v234 = vunpack.c.l.b16 %v161
    %v235 = vunpack.c.l.b16 %v162
    %v236 = vunpack.c.l.b16 %v163
    %v237 = vunpack.c.l.b16 %v164
    %v238 = vunpack.c.l.b16 %v165
    %v239 = vunpack.c.l.b16 %v166
    %v240 = vunpack.c.l.b16 %v167
    %v241 = vunpack.c.l.b16 %v168
    %v242 = vunpack.c.l.b16 %v169
    %v243 = vunpack.c.l.b16 %v170
    %v244 = vunpack.c.l.b16 %v171
    %v245 = vunpack.c.l.b16 %v172
    %v246 = vpack.c.b16 %v215, %v214
    %v247 = vpack.c.b16 %v217, %v216
    %v248 = vpack.c.b16 %v219, %v218
    %v249 = vpack.c.b16 %v221, %v220
    %v250 = vpack.c.b16 %v223, %v222
    %v251 = vpack.c.b16 %v225, %v224
    %v252 = vpack.c.b16 %v227, %v226
    %v253 = vpack.c.b16 %v229, %v228
    %v254 = vpack.c.b16 %v231, %v230
    %v255 = vpack.c.b16 %v233, %v232
    %v256 = vpack.c.b16 %v235, %v234
    %v257 = vpack.c.b16 %v237, %v236
    %v258 = vpack.c.b16 %v239, %v238
    %v259 = vpack.c.b16 %v241, %v240
    %v260 = vpack.c.b16 %v243, %v242
    %v261 = vpack.c.b16 %v245, %v244
    %278 = vmatprep.subr.bf16.mxu0 0
    %279 = vmatpush1.bf16.msra.mxu0 %v246
    %280 = vmatprep.subr.bf16.mxu0 0
    %281 = vmatpush1.bf16.msra.mxu0 %v247
    %282 = vmatprep.subr.bf16.mxu0 0
    %283 = vmatpush1.bf16.msra.mxu0 %v248
    %284 = vmatprep.subr.bf16.mxu0 0
    %285 = vmatpush1.bf16.msra.mxu0 %v249
    %286 = vmatprep.subr.bf16.mxu0 0
    %287 = vmatpush1.bf16.msra.mxu0 %v250
    %288 = vmatprep.subr.bf16.mxu0 0
    %289 = vmatpush1.bf16.msra.mxu0 %v251
    %290 = vmatprep.subr.bf16.mxu0 0
    %291 = vmatpush1.bf16.msra.mxu0 %v252
    %292 = vmatprep.subr.bf16.mxu0 0
    %293 = vmatpush1.bf16.msra.mxu0 %v253
    %294 = vmatprep.subr.bf16.mxu0 0
    %295 = vmatpush1.bf16.msra.mxu0 %v254
    %296 = vmatprep.subr.bf16.mxu0 0
    %297 = vmatpush1.bf16.msra.mxu0 %v255
    %298 = vmatprep.subr.bf16.mxu0 0
    %299 = vmatpush1.bf16.msra.mxu0 %v256
    %300 = vmatprep.subr.bf16.mxu0 0
    %301 = vmatpush1.bf16.msra.mxu0 %v257
    %302 = vmatprep.subr.bf16.mxu0 0
    %303 = vmatpush1.bf16.msra.mxu0 %v258
    %304 = vmatprep.subr.bf16.mxu0 0
    %305 = vmatpush1.bf16.msra.mxu0 %v259
    %306 = vmatprep.subr.bf16.mxu0 0
    %307 = vmatpush1.bf16.msra.mxu0 %v260
    %308 = vmatprep.subr.bf16.mxu0 0
    %309 = vmatpush1.bf16.msra.mxu0 %v261
    %310 = vmatprep.mubr.bf16.mxu0 %v174
    %311 = vmatmul.mubr.bf16.gmra.mrb[0].mxu0 %v173
    %v312 = vpop.f32.mrb[0].mxu0
    %v313 = vadd.f32 %v180, %v312
    %v314 = vpop.f32.mrb[0].mxu0
    %v315 = vpop.f32.mrb[0].mxu0
    %v316 = vpop.f32.mrb[0].mxu0
    %317 = vdwg.mxu0
    %vm318 = vcmask 74752
    %319 = vst.msk [vmem:[#allocation2] sm:$0x3] %vm318, %v313
    // Predicated region
    $region22: #{net_forward.23} parent=1 // pred_check
      _
    $region23: #{net_forward.23} parent=1 // pred_check_branch
      %321 = sbr.rel (0) target = $region25
    $region24: #{net_forward.23} parent=1 // pred_region
      %s323 = ssub.s32 32, 32
      %324 = vsyncadd [#allocation3], %s323
      %s326 = sshll.u32 [#allocation2], 4
      %s327 = int_to_ptr.vmem [resolvable:$true] %s326
      %329 = dma.vmem_to_hbm [thread:$0]  %s327, 32, %s5, [#allocation3]
    $region25: #{net_forward.23} parent=1 // pred_fallthru
      _
    // Predicated region
    $region26: #{net_forward.23} parent=1 // pred_check
      _
    $region27: #{net_forward.23} parent=1 // pred_check_branch
      %331 = sbr.rel (0) target = $region29
    $region28: #{net_forward.23} parent=1 // pred_region
      %332 = dma.done [#allocation3], 32
    $region29: #{net_forward.23} parent=1 // pred_fallthru
      _
    %333 = vsyncpa [#allocation3], 1

// kernel: net_forward.16
$region0: #{net_forward.16}
  #allocation0 [shape = 'u32[]', space=smem, size = 0x4, offset = 0x4, fixed_abs, tag = 'smem constant byte address 0x4 - core index']
  #allocation1 [shape = 'u32[144,128]{1,0:T(1,128)}', space=vmem, size = 0x12000, scoped, tag = 'internal scratch']
  #allocation2 [shape = 'f32[12,64]{1,0:T(8,128)}', space=vmem, size = 0x2000, scoped, tag = 'scratch operand']
  %s0 = inlined_call_operand.smem [shape: u32[33], index: -1, kind: input, shape index: {}]
  %s1 = sld [smem:[%s0]]
  %s2 = scalar_lea.smem %s0, 1
  %s3 = sld [smem:[%s2]]
  %s4 = scalar_lea.smem %s0, 2
  %s5 = sld [smem:[%s4]]
  %s6 = scalar_lea.smem %s0, 3
  %s7 = sld [smem:[%s6]]
  %s8 = scalar_lea.smem %s0, 4
  %s9 = sld [smem:[%s8]]
  %s10 = scalar_lea.smem %s0, 5
  %s11 = sld [smem:[%s10]]
  %s12 = scalar_lea.smem %s0, 6
  %s13 = sld [smem:[%s12]]
  %s14 = scalar_lea.smem %s0, 7
  %s15 = sld [smem:[%s14]]
  %s16 = scalar_lea.smem %s0, 8
  %s17 = sld [smem:[%s16]]
  %s18 = scalar_lea.smem %s0, 9
  %s19 = sld [smem:[%s18]]
  %s20 = scalar_lea.smem %s0, 10
  %s21 = sld [smem:[%s20]]
  %s22 = scalar_lea.smem %s0, 11
  %s23 = sld [smem:[%s22]]
  %s24 = scalar_lea.smem %s0, 12
  %s25 = sld [smem:[%s24]]
  %s26 = scalar_lea.smem %s0, 13
  %s27 = sld [smem:[%s26]]
  %s28 = scalar_lea.smem %s0, 14
  %s29 = sld [smem:[%s28]]
  %s30 = scalar_lea.smem %s0, 15
  %s31 = sld [smem:[%s30]]
  %s32 = scalar_lea.smem %s0, 16
  %s33 = sld [smem:[%s32]]
  %s34 = scalar_lea.smem %s0, 17
  %s35 = sld [smem:[%s34]]
  %s36 = scalar_lea.smem %s0, 18
  %s37 = sld [smem:[%s36]]
  %s38 = scalar_lea.smem %s0, 19
  %s39 = sld [smem:[%s38]]
  %s40 = scalar_lea.smem %s0, 20
  %s41 = sld [smem:[%s40]]
  %s42 = scalar_lea.smem %s0, 21
  %s43 = sld [smem:[%s42]]
  %s44 = scalar_lea.smem %s0, 22
  %s45 = sld [smem:[%s44]]
  %s46 = scalar_lea.smem %s0, 23
  %s47 = sld [smem:[%s46]]
  %s48 = scalar_lea.smem %s0, 24
  %s49 = sld [smem:[%s48]]
  %s50 = scalar_lea.smem %s0, 25
  %s51 = sld [smem:[%s50]]
  %s52 = scalar_lea.smem %s0, 26
  %s53 = sld [smem:[%s52]]
  %s54 = scalar_lea.smem %s0, 27
  %s55 = sld [smem:[%s54]]
  %s56 = scalar_lea.smem %s0, 28
  %s57 = sld [smem:[%s56]]
  %s58 = scalar_lea.smem %s0, 29
  %s59 = sld [smem:[%s58]]
  %s60 = scalar_lea.smem %s0, 30
  %s61 = sld [smem:[%s60]]
  %s62 = scalar_lea.smem %s0, 31
  %s63 = sld [smem:[%s62]]
  %s64 = scalar_lea.smem %s0, 32
  %s65 = sld [smem:[%s64]]
  %66 = xla_tuple %s61, %s63, %s65
  %s67 = sld [smem:[#allocation0]]
  $region154: #{net_forward.16} parent=0
    _
  %s69 = ssub.s32 1, %s67
  %s70 = scalar_select 0, %s69, %s67
  // Predicated region
  $region2: #{net_forward.16} parent=0 // pred_check
    _
  $region3: #{net_forward.16} parent=0 // pred_check_branch
    %72 = sbr.rel (0) target = $region5
  $region4: #{net_forward.16} parent=0 // pred_region
    _
  $region5: #{net_forward.16} parent=0 // pred_fallthru
    _
  // Predicated region
  $region6: #{net_forward.16} parent=0 // pred_check
    _
  $region7: #{net_forward.16} parent=0 // pred_check_branch
    %74 = sbr.rel (0) target = $region9
  $region8: #{net_forward.16} parent=0 // pred_region
    _
  $region9: #{net_forward.16} parent=0 // pred_fallthru
    _
  // Predicated region
  $region10: #{net_forward.16} parent=0 // pred_check
    _
  $region11: #{net_forward.16} parent=0 // pred_check_branch
    %76 = sbr.rel (0) target = $region13
  $region12: #{net_forward.16} parent=0 // pred_region
    _
  $region13: #{net_forward.16} parent=0 // pred_fallthru
    _
  // Predicated region
  $region14: #{net_forward.16} parent=0 // pred_check
    _
  $region15: #{net_forward.16} parent=0 // pred_check_branch
    %78 = sbr.rel (0) target = $region17
  $region16: #{net_forward.16} parent=0 // pred_region
    _
  $region17: #{net_forward.16} parent=0 // pred_fallthru
    _
  // Predicated region
  $region18: #{net_forward.16} parent=0 // pred_check
    _
  $region19: #{net_forward.16} parent=0 // pred_check_branch
    %80 = sbr.rel (0) target = $region21
  $region20: #{net_forward.16} parent=0 // pred_region
    _
  $region21: #{net_forward.16} parent=0 // pred_fallthru
    _
  // Predicated region
  $region22: #{net_forward.16} parent=0 // pred_check
    _
  $region23: #{net_forward.16} parent=0 // pred_check_branch
    %82 = sbr.rel (0) target = $region25
  $region24: #{net_forward.16} parent=0 // pred_region
    _
  $region25: #{net_forward.16} parent=0 // pred_fallthru
    _
  // Predicated region
  $region26: #{net_forward.16} parent=0 // pred_check
    _
  $region27: #{net_forward.16} parent=0 // pred_check_branch
    %84 = sbr.rel (0) target = $region29
  $region28: #{net_forward.16} parent=0 // pred_region
    _
  $region29: #{net_forward.16} parent=0 // pred_fallthru
    _
  // Predicated region
  $region30: #{net_forward.16} parent=0 // pred_check
    _
  $region31: #{net_forward.16} parent=0 // pred_check_branch
    %86 = sbr.rel (0) target = $region33
  $region32: #{net_forward.16} parent=0 // pred_region
    _
  $region33: #{net_forward.16} parent=0 // pred_fallthru
    _
  // Predicated region
  $region34: #{net_forward.16} parent=0 // pred_check
    _
  $region35: #{net_forward.16} parent=0 // pred_check_branch
    %88 = sbr.rel (0) target = $region37
  $region36: #{net_forward.16} parent=0 // pred_region
    _
  $region37: #{net_forward.16} parent=0 // pred_fallthru
    _
  // Predicated region
  $region38: #{net_forward.16} parent=0 // pred_check
    _
  $region39: #{net_forward.16} parent=0 // pred_check_branch
    %90 = sbr.rel (0) target = $region41
  $region40: #{net_forward.16} parent=0 // pred_region
    _
  $region41: #{net_forward.16} parent=0 // pred_fallthru
    _
  // Predicated region
  $region42: #{net_forward.16} parent=0 // pred_check
    _
  $region43: #{net_forward.16} parent=0 // pred_check_branch
    %92 = sbr.rel (0) target = $region45
  $region44: #{net_forward.16} parent=0 // pred_region
    _
  $region45: #{net_forward.16} parent=0 // pred_fallthru
    _
  // Predicated region
  $region46: #{net_forward.16} parent=0 // pred_check
    _
  $region47: #{net_forward.16} parent=0 // pred_check_branch
    %94 = sbr.rel (0) target = $region49
  $region48: #{net_forward.16} parent=0 // pred_region
    _
  $region49: #{net_forward.16} parent=0 // pred_fallthru
    _
  // Predicated region
  $region50: #{net_forward.16} parent=0 // pred_check
    _
  $region51: #{net_forward.16} parent=0 // pred_check_branch
    %96 = sbr.rel (0) target = $region53
  $region52: #{net_forward.16} parent=0 // pred_region
    _
  $region53: #{net_forward.16} parent=0 // pred_fallthru
    _
  // Predicated region
  $region54: #{net_forward.16} parent=0 // pred_check
    _
  $region55: #{net_forward.16} parent=0 // pred_check_branch
    %98 = sbr.rel (0) target = $region57
  $region56: #{net_forward.16} parent=0 // pred_region
    _
  $region57: #{net_forward.16} parent=0 // pred_fallthru
    _
  // Predicated region
  $region58: #{net_forward.16} parent=0 // pred_check
    _
  $region59: #{net_forward.16} parent=0 // pred_check_branch
    %100 = sbr.rel (0) target = $region61
  $region60: #{net_forward.16} parent=0 // pred_region
    _
  $region61: #{net_forward.16} parent=0 // pred_fallthru
    _
  // Predicated region
  $region62: #{net_forward.16} parent=0 // pred_check
    _
  $region63: #{net_forward.16} parent=0 // pred_check_branch
    %102 = sbr.rel (0) target = $region65
  $region64: #{net_forward.16} parent=0 // pred_region
    _
  $region65: #{net_forward.16} parent=0 // pred_fallthru
    _
  // Predicated region
  $region66: #{net_forward.16} parent=0 // pred_check
    _
  $region67: #{net_forward.16} parent=0 // pred_check_branch
    %104 = sbr.rel (0) target = $region69
  $region68: #{net_forward.16} parent=0 // pred_region
    _
  $region69: #{net_forward.16} parent=0 // pred_fallthru
    _
  // Predicated region
  $region70: #{net_forward.16} parent=0 // pred_check
    _
  $region71: #{net_forward.16} parent=0 // pred_check_branch
    %106 = sbr.rel (0) target = $region73
  $region72: #{net_forward.16} parent=0 // pred_region
    _
  $region73: #{net_forward.16} parent=0 // pred_fallthru
    _
  // Predicated region
  $region74: #{net_forward.16} parent=0 // pred_check
    _
  $region75: #{net_forward.16} parent=0 // pred_check_branch
    %108 = sbr.rel (0) target = $region77
  $region76: #{net_forward.16} parent=0 // pred_region
    _
  $region77: #{net_forward.16} parent=0 // pred_fallthru
    _
  // Predicated region
  $region78: #{net_forward.16} parent=0 // pred_check
    _
  $region79: #{net_forward.16} parent=0 // pred_check_branch
    %110 = sbr.rel (0) target = $region81
  $region80: #{net_forward.16} parent=0 // pred_region
    _
  $region81: #{net_forward.16} parent=0 // pred_fallthru
    _
  // Predicated region
  $region82: #{net_forward.16} parent=0 // pred_check
    _
  $region83: #{net_forward.16} parent=0 // pred_check_branch
    %112 = sbr.rel (0) target = $region85
  $region84: #{net_forward.16} parent=0 // pred_region
    _
  $region85: #{net_forward.16} parent=0 // pred_fallthru
    _
  // Predicated region
  $region86: #{net_forward.16} parent=0 // pred_check
    _
  $region87: #{net_forward.16} parent=0 // pred_check_branch
    %114 = sbr.rel (0) target = $region89
  $region88: #{net_forward.16} parent=0 // pred_region
    _
  $region89: #{net_forward.16} parent=0 // pred_fallthru
    _
  // Predicated region
  $region90: #{net_forward.16} parent=0 // pred_check
    _
  $region91: #{net_forward.16} parent=0 // pred_check_branch
    %116 = sbr.rel (0) target = $region93
  $region92: #{net_forward.16} parent=0 // pred_region
    _
  $region93: #{net_forward.16} parent=0 // pred_fallthru
    _
  // Predicated region
  $region94: #{net_forward.16} parent=0 // pred_check
    _
  $region95: #{net_forward.16} parent=0 // pred_check_branch
    %118 = sbr.rel (0) target = $region97
  $region96: #{net_forward.16} parent=0 // pred_region
    _
  $region97: #{net_forward.16} parent=0 // pred_fallthru
    _
  // Predicated region
  $region98: #{net_forward.16} parent=0 // pred_check
    _
  $region99: #{net_forward.16} parent=0 // pred_check_branch
    %120 = sbr.rel (0) target = $region101
  $region100: #{net_forward.16} parent=0 // pred_region
    _
  $region101: #{net_forward.16} parent=0 // pred_fallthru
    _
  // Predicated region
  $region102: #{net_forward.16} parent=0 // pred_check
    _
  $region103: #{net_forward.16} parent=0 // pred_check_branch
    %122 = sbr.rel (0) target = $region105
  $region104: #{net_forward.16} parent=0 // pred_region
    _
  $region105: #{net_forward.16} parent=0 // pred_fallthru
    _
  // Predicated region
  $region106: #{net_forward.16} parent=0 // pred_check
    _
  $region107: #{net_forward.16} parent=0 // pred_check_branch
    %124 = sbr.rel (0) target = $region109
  $region108: #{net_forward.16} parent=0 // pred_region
    _
  $region109: #{net_forward.16} parent=0 // pred_fallthru
    _
  // Predicated region
  $region110: #{net_forward.16} parent=0 // pred_check
    _
  $region111: #{net_forward.16} parent=0 // pred_check_branch
    %126 = sbr.rel (0) target = $region113
  $region112: #{net_forward.16} parent=0 // pred_region
    _
  $region113: #{net_forward.16} parent=0 // pred_fallthru
    _
  // Predicated region
  $region114: #{net_forward.16} parent=0 // pred_check
    _
  $region115: #{net_forward.16} parent=0 // pred_check_branch
    %128 = sbr.rel (0) target = $region117
  $region116: #{net_forward.16} parent=0 // pred_region
    _
  $region117: #{net_forward.16} parent=0 // pred_fallthru
    _
  // Predicated region
  $region118: #{net_forward.16} parent=0 // pred_check
    _
  $region119: #{net_forward.16} parent=0 // pred_check_branch
    %130 = sbr.rel (0) target = $region121
  $region120: #{net_forward.16} parent=0 // pred_region
    _
  $region121: #{net_forward.16} parent=0 // pred_fallthru
    _
  %p132 = scmp.eq.s32.totalorder 0, 0
  // Predicated region
  $region122: #{net_forward.16} parent=0 // pred_check
    %p133 = pneg %p132
  $region123: #{net_forward.16} parent=0 // pred_check_branch
    %135 = sbr.rel (%p133) target = $region125
  $region124: #{net_forward.16} parent=0 // pred_region
    %vm136 = vcmask 523264
    %137 = vst.msk [vmem:[#allocation2] sm:$0xff] %vm136, 0.0
    %vm138 = vcmask 519168
    %139 = vst.msk [vmem:[#allocation2 + $0x8] sm:$0xf] %vm138, 0.0
  $region125: #{net_forward.16} parent=0 // pred_fallthru
    _
  %v140 = vld [vmem:[%s9] sm:$0xff]
  %v141 = vld [vmem:[%s9 + $0x8] sm:$0xf]
  %v142 = vld [vmem:[%s3] sm:$0xf]
  %v143 = vld [vmem:[%s3 + $0x4] sm:$0xf]
  %v144 = vld [vmem:[%s3 + $0x8] sm:$0xf]
  %v145 = vld [vmem:[%s3 + $0xc] sm:$0xf]
  %v146 = vld [vmem:[%s3 + $0x10] sm:$0xf]
  %v147 = vld [vmem:[%s3 + $0x14] sm:$0xf]
  %v148 = vld [vmem:[%s3 + $0x18] sm:$0xf]
  %v149 = vld [vmem:[%s3 + $0x1c] sm:$0xf]
  %v150 = vld [vmem:[%s3 + $0x20] sm:$0xf]
  %v151 = vld [vmem:[%s3 + $0x24] sm:$0xf]
  %v152 = vld [vmem:[%s3 + $0x28] sm:$0xf]
  %v153 = vld [vmem:[%s3 + $0x2c] sm:$0xf]
  %v154 = vld [vmem:[%s3 + $0x30] sm:$0xf]
  %v155 = vld [vmem:[%s3 + $0x34] sm:$0xf]
  %v156 = vld [vmem:[%s3 + $0x38] sm:$0xf]
  %v157 = vld [vmem:[%s3 + $0x3c] sm:$0xf]
  %v158 = vpack.c.bf16 %v141, %v140
  %v175 = vunpack.c.l.b16 %v142
  %v176 = vunpack.c.l.b16 %v143
  %v177 = vunpack.c.l.b16 %v144
  %v178 = vunpack.c.l.b16 %v145
  %v179 = vunpack.c.l.b16 %v146
  %v180 = vunpack.c.l.b16 %v147
  %v181 = vunpack.c.l.b16 %v148
  %v182 = vunpack.c.l.b16 %v149
  %v183 = vunpack.c.l.b16 %v150
  %v184 = vunpack.c.l.b16 %v151
  %v185 = vunpack.c.l.b16 %v152
  %v186 = vunpack.c.l.b16 %v153
  %v187 = vunpack.c.l.b16 %v154
  %v188 = vunpack.c.l.b16 %v155
  %v189 = vunpack.c.l.b16 %v156
  %v190 = vunpack.c.l.b16 %v157
  %v191 = vpack.c.b16 %v176, %v175
  %v192 = vpack.c.b16 %v178, %v177
  %v193 = vpack.c.b16 %v180, %v179
  %v194 = vpack.c.b16 %v182, %v181
  %v195 = vpack.c.b16 %v184, %v183
  %v196 = vpack.c.b16 %v186, %v185
  %v197 = vpack.c.b16 %v188, %v187
  %v198 = vpack.c.b16 %v190, %v189
  %vm199 = vcmask 97280
  %v201 = vsel %vm199, %v191, 0
  %v204 = vsel %vm199, %v192, 0
  %v207 = vsel %vm199, %v193, 0
  %v210 = vsel %vm199, %v194, 0
  %v213 = vsel %vm199, %v195, 0
  %v216 = vsel %vm199, %v196, 0
  %v219 = vsel %vm199, %v197, 0
  %v222 = vsel %vm199, %v198, 0
  %vm224 = vcmask 1045504
  %v226 = vsel %vm224, %v158, 0
  %228 = vmatprep.subr.bf16.mxu0 0
  %229 = vmatpush1.bf16.msra.mxu0 %v226
  %230 = vmatprep.subr.bf16.mxu0 0
  %231 = vmatpush1.bf16.msra.mxu0 0
  %232 = vmatprep.subr.bf16.mxu0 0
  %233 = vmatpush1.bf16.msra.mxu0 0
  %234 = vmatprep.subr.bf16.mxu0 0
  %235 = vmatpush1.bf16.msra.mxu0 0
  %236 = vmatprep.subr.bf16.mxu0 0
  %237 = vmatpush1.bf16.msra.mxu0 0
  %238 = vmatprep.subr.bf16.mxu0 0
  %239 = vmatpush1.bf16.msra.mxu0 0
  %240 = vmatprep.subr.bf16.mxu0 0
  %241 = vmatpush1.bf16.msra.mxu0 0
  %242 = vmatprep.subr.bf16.mxu0 0
  %243 = vmatpush1.bf16.msra.mxu0 0
  %244 = vmatprep.subr.bf16.mxu0 0
  %245 = vmatpush1.bf16.msra.mxu0 0
  %246 = vmatprep.subr.bf16.mxu0 0
  %247 = vmatpush1.bf16.msra.mxu0 0
  %248 = vmatprep.subr.bf16.mxu0 0
  %249 = vmatpush1.bf16.msra.mxu0 0
  %250 = vmatprep.subr.bf16.mxu0 0
  %251 = vmatpush1.bf16.msra.mxu0 0
  %252 = vmatprep.subr.bf16.mxu0 0
  %253 = vmatpush1.bf16.msra.mxu0 0
  %254 = vmatprep.subr.bf16.mxu0 0
  %255 = vmatpush1.bf16.msra.mxu0 0
  %256 = vmatprep.subr.bf16.mxu0 0
  %257 = vmatpush1.bf16.msra.mxu0 0
  %258 = vmatprep.subr.bf16.mxu0 0
  %259 = vmatpush1.bf16.msra.mxu0 0
  %260 = vmatprep.mubr.bf16.mxu0 0
  %261 = vmatmul.mubr.bf16.gmra.mrb[0].mxu0 %v201
  %v262 = vpop.f32.mrb[0].mxu0
  %v263 = vadd.f32 0.0, %v262
  %v264 = vpop.f32.mrb[0].mxu0
  %v265 = vpop.f32.mrb[0].mxu0
  %v266 = vadd.f32 0.0, %v265
  %v267 = vpop.f32.mrb[0].mxu0
  %268 = vmatprep.mubr.bf16.mxu0 0
  %269 = vmatmul.mubr.bf16.gmra.mrb[0].mxu0 %v204
  %v270 = vpop.f32.mrb[0].mxu0
  %v271 = vadd.f32 0.0, %v270
  %v272 = vpop.f32.mrb[0].mxu0
  %v273 = vpop.f32.mrb[0].mxu0
  %v274 = vadd.f32 0.0, %v273
  %v275 = vpop.f32.mrb[0].mxu0
  %276 = vmatprep.mubr.bf16.mxu0 0
  %277 = vmatmul.mubr.bf16.gmra.mrb[0].mxu0 %v207
  %v278 = vpop.f32.mrb[0].mxu0
  %v279 = vadd.f32 0.0, %v278
  %v280 = vpop.f32.mrb[0].mxu0
  %v281 = vpop.f32.mrb[0].mxu0
  %v282 = vadd.f32 0.0, %v281
  %v283 = vpop.f32.mrb[0].mxu0
  %284 = vmatprep.mubr.bf16.mxu0 0
  %285 = vmatmul.mubr.bf16.gmra.mrb[0].mxu0 %v210
  %v286 = vpop.f32.mrb[0].mxu0
  %v287 = vadd.f32 0.0, %v286
  %v288 = vpop.f32.mrb[0].mxu0
  %v289 = vpop.f32.mrb[0].mxu0
  %v290 = vadd.f32 0.0, %v289
  %v291 = vpop.f32.mrb[0].mxu0
  %292 = vmatprep.mubr.bf16.mxu0 0
  %293 = vmatmul.mubr.bf16.gmra.mrb[0].mxu0 %v213
  %v294 = vpop.f32.mrb[0].mxu0
  %v295 = vadd.f32 0.0, %v294
  %v296 = vpop.f32.mrb[0].mxu0
  %v297 = vpop.f32.mrb[0].mxu0
  %v298 = vadd.f32 0.0, %v297
  %v299 = vpop.f32.mrb[0].mxu0
  %300 = vmatprep.mubr.bf16.mxu0 0
  %301 = vmatmul.mubr.bf16.gmra.mrb[0].mxu0 %v216
  %v302 = vpop.f32.mrb[0].mxu0
  %v303 = vadd.f32 0.0, %v302
  %v304 = vpop.f32.mrb[0].mxu0
  %v305 = vpop.f32.mrb[0].mxu0
  %v306 = vadd.f32 0.0, %v305
  %v307 = vpop.f32.mrb[0].mxu0
  %308 = vmatprep.mubr.bf16.mxu0 0
  %309 = vmatmul.mubr.bf16.gmra.mrb[0].mxu0 %v219
  %v310 = vpop.f32.mrb[0].mxu0
  %v311 = vadd.f32 0.0, %v310
  %v312 = vpop.f32.mrb[0].mxu0
  %v313 = vpop.f32.mrb[0].mxu0
  %v314 = vadd.f32 0.0, %v313
  %v315 = vpop.f32.mrb[0].mxu0
  %316 = vmatprep.mubr.bf16.mxu0 0
  %317 = vmatmul.mubr.bf16.gmra.mrb[0].mxu0 %v222
  %v318 = vpop.f32.mrb[0].mxu0
  %v319 = vadd.f32 0.0, %v318
  %v320 = vpop.f32.mrb[0].mxu0
  %v321 = vpop.f32.mrb[0].mxu0
  %v322 = vadd.f32 0.0, %v321
  %v323 = vpop.f32.mrb[0].mxu0
  %324 = vdwg.mxu0
  %v325 = vld [vmem:[%s5] sm:$0xf]
  %v326 = vld [vmem:[%s5 + $0x4] sm:$0xf]
  %v327 = vld [vmem:[%s5 + $0x8] sm:$0xf]
  %v328 = vld [vmem:[%s5 + $0xc] sm:$0xf]
  %v329 = vld [vmem:[%s5 + $0x10] sm:$0xf]
  %v330 = vld [vmem:[%s5 + $0x14] sm:$0xf]
  %v331 = vld [vmem:[%s5 + $0x18] sm:$0xf]
  %v332 = vld [vmem:[%s5 + $0x1c] sm:$0xf]
  %v333 = vld [vmem:[%s5 + $0x20] sm:$0xf]
  %v334 = vld [vmem:[%s5 + $0x24] sm:$0xf]
  %v335 = vld [vmem:[%s5 + $0x28] sm:$0xf]
  %v336 = vld [vmem:[%s5 + $0x2c] sm:$0xf]
  %v337 = vld [vmem:[%s5 + $0x30] sm:$0xf]
  %v338 = vld [vmem:[%s5 + $0x34] sm:$0xf]
  %v339 = vld [vmem:[%s5 + $0x38] sm:$0xf]
  %v340 = vld [vmem:[%s5 + $0x3c] sm:$0xf]
  %v357 = vunpack.c.l.b16 %v325
  %v358 = vunpack.c.l.b16 %v326
  %v359 = vunpack.c.l.b16 %v327
  %v360 = vunpack.c.l.b16 %v328
  %v361 = vunpack.c.l.b16 %v329
  %v362 = vunpack.c.l.b16 %v330
  %v363 = vunpack.c.l.b16 %v331
  %v364 = vunpack.c.l.b16 %v332
  %v365 = vunpack.c.l.b16 %v333
  %v366 = vunpack.c.l.b16 %v334
  %v367 = vunpack.c.l.b16 %v335
  %v368 = vunpack.c.l.b16 %v336
  %v369 = vunpack.c.l.b16 %v337
  %v370 = vunpack.c.l.b16 %v338
  %v371 = vunpack.c.l.b16 %v339
  %v372 = vunpack.c.l.b16 %v340
  %v373 = vpack.c.b16 %v358, %v357
  %v374 = vpack.c.b16 %v360, %v359
  %v375 = vpack.c.b16 %v362, %v361
  %v376 = vpack.c.b16 %v364, %v363
  %v377 = vpack.c.b16 %v366, %v365
  %v378 = vpack.c.b16 %v368, %v367
  %v379 = vpack.c.b16 %v370, %v369
  %v380 = vpack.c.b16 %v372, %v371
  %v382 = vsel %vm199, %v373, 0
  %v385 = vsel %vm199, %v374, 0
  %v388 = vsel %vm199, %v375, 0
  %v391 = vsel %vm199, %v376, 0
  %v394 = vsel %vm199, %v377, 0
  %v397 = vsel %vm199, %v378, 0
  %v400 = vsel %vm199, %v379, 0
  %v403 = vsel %vm199, %v380, 0
  %405 = vmatprep.subr.bf16.mxu0 0
  %406 = vmatpush1.bf16.msra.mxu0 %v226
  %407 = vmatprep.subr.bf16.mxu0 0
  %408 = vmatpush1.bf16.msra.mxu0 0
  %409 = vmatprep.subr.bf16.mxu0 0
  %410 = vmatpush1.bf16.msra.mxu0 0
  %411 = vmatprep.subr.bf16.mxu0 0
  %412 = vmatpush1.bf16.msra.mxu0 0
  %413 = vmatprep.subr.bf16.mxu0 0
  %414 = vmatpush1.bf16.msra.mxu0 0
  %415 = vmatprep.subr.bf16.mxu0 0
  %416 = vmatpush1.bf16.msra.mxu0 0
  %417 = vmatprep.subr.bf16.mxu0 0
  %418 = vmatpush1.bf16.msra.mxu0 0
  %419 = vmatprep.subr.bf16.mxu0 0
  %420 = vmatpush1.bf16.msra.mxu0 0
  %421 = vmatprep.subr.bf16.mxu0 0
  %422 = vmatpush1.bf16.msra.mxu0 0
  %423 = vmatprep.subr.bf16.mxu0 0
  %424 = vmatpush1.bf16.msra.mxu0 0
  %425 = vmatprep.subr.bf16.mxu0 0
  %426 = vmatpush1.bf16.msra.mxu0 0
  %427 = vmatprep.subr.bf16.mxu0 0
  %428 = vmatpush1.bf16.msra.mxu0 0
  %429 = vmatprep.subr.bf16.mxu0 0
  %430 = vmatpush1.bf16.msra.mxu0 0
  %431 = vmatprep.subr.bf16.mxu0 0
  %432 = vmatpush1.bf16.msra.mxu0 0
  %433 = vmatprep.subr.bf16.mxu0 0
  %434 = vmatpush1.bf16.msra.mxu0 0
  %435 = vmatprep.subr.bf16.mxu0 0
  %436 = vmatpush1.bf16.msra.mxu0 0
  %437 = vmatprep.mubr.bf16.mxu0 0
  %438 = vmatmul.mubr.bf16.gmra.mrb[0].mxu0 %v382
  %v439 = vpop.f32.mrb[0].mxu0
  %v440 = vadd.f32 0.0, %v439
  %v441 = vpop.f32.mrb[0].mxu0
  %v442 = vpop.f32.mrb[0].mxu0
  %v443 = vadd.f32 0.0, %v442
  %v444 = vpop.f32.mrb[0].mxu0
  %445 = vmatprep.mubr.bf16.mxu0 0
  %446 = vmatmul.mubr.bf16.gmra.mrb[0].mxu0 %v385
  %v447 = vpop.f32.mrb[0].mxu0
  %v448 = vadd.f32 0.0, %v447
  %v449 = vpop.f32.mrb[0].mxu0
  %v450 = vpop.f32.mrb[0].mxu0
  %v451 = vadd.f32 0.0, %v450
  %v452 = vpop.f32.mrb[0].mxu0
  %453 = vmatprep.mubr.bf16.mxu0 0
  %454 = vmatmul.mubr.bf16.gmra.mrb[0].mxu0 %v388
  %v455 = vpop.f32.mrb[0].mxu0
  %v456 = vadd.f32 0.0, %v455
  %v457 = vpop.f32.mrb[0].mxu0
  %v458 = vpop.f32.mrb[0].mxu0
  %v459 = vadd.f32 0.0, %v458
  %v460 = vpop.f32.mrb[0].mxu0
  %461 = vmatprep.mubr.bf16.mxu0 0
  %462 = vmatmul.mubr.bf16.gmra.mrb[0].mxu0 %v391
  %v463 = vpop.f32.mrb[0].mxu0
  %v464 = vadd.f32 0.0, %v463
  %v465 = vpop.f32.mrb[0].mxu0
  %v466 = vpop.f32.mrb[0].mxu0
  %v467 = vadd.f32 0.0, %v466
  %v468 = vpop.f32.mrb[0].mxu0
  %469 = vmatprep.mubr.bf16.mxu0 0
  %470 = vmatmul.mubr.bf16.gmra.mrb[0].mxu0 %v394
  %v471 = vpop.f32.mrb[0].mxu0
  %v472 = vadd.f32 0.0, %v471
  %v473 = vpop.f32.mrb[0].mxu0
  %v474 = vpop.f32.mrb[0].mxu0
  %v475 = vadd.f32 0.0, %v474
  %v476 = vpop.f32.mrb[0].mxu0
  %477 = vmatprep.mubr.bf16.mxu0 0
  %478 = vmatmul.mubr.bf16.gmra.mrb[0].mxu0 %v397
  %v479 = vpop.f32.mrb[0].mxu0
  %v480 = vadd.f32 0.0, %v479
  %v481 = vpop.f32.mrb[0].mxu0
  %v482 = vpop.f32.mrb[0].mxu0
  %v483 = vadd.f32 0.0, %v482
  %v484 = vpop.f32.mrb[0].mxu0
  %485 = vmatprep.mubr.bf16.mxu0 0
  %486 = vmatmul.mubr.bf16.gmra.mrb[0].mxu0 %v400
  %v487 = vpop.f32.mrb[0].mxu0
  %v488 = vadd.f32 0.0, %v487
  %v489 = vpop.f32.mrb[0].mxu0
  %v490 = vpop.f32.mrb[0].mxu0
  %v491 = vadd.f32 0.0, %v490
  %v492 = vpop.f32.mrb[0].mxu0
  %493 = vmatprep.mubr.bf16.mxu0 0
  %494 = vmatmul.mubr.bf16.gmra.mrb[0].mxu0 %v403
  %v495 = vpop.f32.mrb[0].mxu0
  %v496 = vadd.f32 0.0, %v495
  %v497 = vpop.f32.mrb[0].mxu0
  %v498 = vpop.f32.mrb[0].mxu0
  %v499 = vadd.f32 0.0, %v498
  %v500 = vpop.f32.mrb[0].mxu0
  %501 = vdwg.mxu0
  %v502 = vld [vmem:[%s19] sm:$0xf]
  %v503 = vld [vmem:[%s19 + $0x4] sm:$0xf]
  %v504 = vpack.c.bf16 %v266, %v263
  %v505 = vpack.c.bf16 %v274, %v271
  %v506 = vpack.c.bf16 %v282, %v279
  %v507 = vpack.c.bf16 %v290, %v287
  %v508 = vpack.c.bf16 %v298, %v295
  %v509 = vpack.c.bf16 %v306, %v303
  %v510 = vpack.c.bf16 %v314, %v311
  %v511 = vpack.c.bf16 %v322, %v319
  %v512 = vld [vmem:[%s21] sm:$0xf]
  %v513 = vld [vmem:[%s21 + $0x4] sm:$0xf]
  %v514 = vpack.c.bf16 %v443, %v440
  %v515 = vpack.c.bf16 %v451, %v448
  %v516 = vpack.c.bf16 %v459, %v456
  %v517 = vpack.c.bf16 %v467, %v464
  %v518 = vpack.c.bf16 %v475, %v472
  %v519 = vpack.c.bf16 %v483, %v480
  %v520 = vpack.c.bf16 %v491, %v488
  %v521 = vpack.c.bf16 %v499, %v496
  %v524 = vunpack.c.l.b16 %v512
  %v525 = vunpack.c.l.b16 %v513
  %v526 = vpack.c.b16 %v525, %v524
  %vm528 = vcmask 130048
  %v530 = vsel %vm528, %v514, 0
  %v533 = vsel %vm528, %v515, 0
  %v536 = vsel %vm528, %v516, 0
  %v539 = vsel %vm528, %v517, 0
  %v542 = vsel %vm528, %v518, 0
  %v545 = vsel %vm528, %v519, 0
  %v548 = vsel %vm528, %v520, 0
  %v551 = vsel %vm528, %v521, 0
  %553 = vmatprep.subr.bf16.mxu0 0
  %554 = vmatpush1.bf16.msra.mxu0 %v526
  %555 = vmatprep.subr.bf16.mxu0 0
  %556 = vmatpush1.bf16.msra.mxu0 0
  %557 = vmatprep.subr.bf16.mxu0 0
  %558 = vmatpush1.bf16.msra.mxu0 0
  %559 = vmatprep.subr.bf16.mxu0 0
  %560 = vmatpush1.bf16.msra.mxu0 0
  %561 = vmatprep.subr.bf16.mxu0 0
  %562 = vmatpush1.bf16.msra.mxu0 0
  %563 = vmatprep.subr.bf16.mxu0 0
  %564 = vmatpush1.bf16.msra.mxu0 0
  %565 = vmatprep.subr.bf16.mxu0 0
  %566 = vmatpush1.bf16.msra.mxu0 0
  %567 = vmatprep.subr.bf16.mxu0 0
  %568 = vmatpush1.bf16.msra.mxu0 0
  %569 = vmatprep.subr.bf16.mxu0 0
  %570 = vmatpush1.bf16.msra.mxu0 0
  %571 = vmatprep.subr.bf16.mxu0 0
  %572 = vmatpush1.bf16.msra.mxu0 0
  %573 = vmatprep.subr.bf16.mxu0 0
  %574 = vmatpush1.bf16.msra.mxu0 0
  %575 = vmatprep.subr.bf16.mxu0 0
  %576 = vmatpush1.bf16.msra.mxu0 0
  %577 = vmatprep.subr.bf16.mxu0 0
  %578 = vmatpush1.bf16.msra.mxu0 0
  %579 = vmatprep.subr.bf16.mxu0 0
  %580 = vmatpush1.bf16.msra.mxu0 0
  %581 = vmatprep.subr.bf16.mxu0 0
  %582 = vmatpush1.bf16.msra.mxu0 0
  %583 = vmatprep.subr.bf16.mxu0 0
  %584 = vmatpush1.bf16.msra.mxu0 0
  %585 = vmatprep.mubr.bf16.mxu0 0
  %586 = vmatmul.mubr.bf16.gmra.mrb[0].mxu0 %v530
  %v587 = vpop.f32.mrb[0].mxu0
  %v588 = vadd.f32 0.0, %v587
  %v589 = vpop.f32.mrb[0].mxu0
  %v590 = vpop.f32.mrb[0].mxu0
  %v591 = vadd.f32 0.0, %v590
  %v592 = vpop.f32.mrb[0].mxu0
  %593 = vmatprep.mubr.bf16.mxu0 0
  %594 = vmatmul.mubr.bf16.gmra.mrb[0].mxu0 %v533
  %v595 = vpop.f32.mrb[0].mxu0
  %v596 = vadd.f32 0.0, %v595
  %v597 = vpop.f32.mrb[0].mxu0
  %v598 = vpop.f32.mrb[0].mxu0
  %v599 = vadd.f32 0.0, %v598
  %v600 = vpop.f32.mrb[0].mxu0
  %601 = vmatprep.mubr.bf16.mxu0 0
  %602 = vmatmul.mubr.bf16.gmra.mrb[0].mxu0 %v536
  %v603 = vpop.f32.mrb[0].mxu0
  %v604 = vadd.f32 0.0, %v603
  %v605 = vpop.f32.mrb[0].mxu0
  %v606 = vpop.f32.mrb[0].mxu0
  %v607 = vadd.f32 0.0, %v606
  %v608 = vpop.f32.mrb[0].mxu0
  %609 = vmatprep.mubr.bf16.mxu0 0
  %610 = vmatmul.mubr.bf16.gmra.mrb[0].mxu0 %v539
  %v611 = vpop.f32.mrb[0].mxu0
  %v612 = vadd.f32 0.0, %v611
  %v613 = vpop.f32.mrb[0].mxu0
  %v614 = vpop.f32.mrb[0].mxu0
  %v615 = vadd.f32 0.0, %v614
  %v616 = vpop.f32.mrb[0].mxu0
  %617 = vmatprep.mubr.bf16.mxu0 0
  %618 = vmatmul.mubr.bf16.gmra.mrb[0].mxu0 %v542
  %v619 = vpop.f32.mrb[0].mxu0
  %v620 = vadd.f32 0.0, %v619
  %v621 = vpop.f32.mrb[0].mxu0
  %v622 = vpop.f32.mrb[0].mxu0
  %v623 = vadd.f32 0.0, %v622
  %v624 = vpop.f32.mrb[0].mxu0
  %625 = vmatprep.mubr.bf16.mxu0 0
  %626 = vmatmul.mubr.bf16.gmra.mrb[0].mxu0 %v545
  %v627 = vpop.f32.mrb[0].mxu0
  %v628 = vadd.f32 0.0, %v627
  %v629 = vpop.f32.mrb[0].mxu0
  %v630 = vpop.f32.mrb[0].mxu0
  %v631 = vadd.f32 0.0, %v630
  %v632 = vpop.f32.mrb[0].mxu0
  %633 = vmatprep.mubr.bf16.mxu0 0
  %634 = vmatmul.mubr.bf16.gmra.mrb[0].mxu0 %v548
  %v635 = vpop.f32.mrb[0].mxu0
  %v636 = vadd.f32 0.0, %v635
  %v637 = vpop.f32.mrb[0].mxu0
  %v638 = vpop.f32.mrb[0].mxu0
  %v639 = vadd.f32 0.0, %v638
  %v640 = vpop.f32.mrb[0].mxu0
  %641 = vmatprep.mubr.bf16.mxu0 0
  %642 = vmatmul.mubr.bf16.gmra.mrb[0].mxu0 %v551
  %v643 = vpop.f32.mrb[0].mxu0
  %v644 = vadd.f32 0.0, %v643
  %v645 = vpop.f32.mrb[0].mxu0
  %v646 = vpop.f32.mrb[0].mxu0
  %v647 = vadd.f32 0.0, %v646
  %v648 = vpop.f32.mrb[0].mxu0
  %649 = vdwg.mxu0
  %v652 = vunpack.c.l.b16 %v502
  %v653 = vunpack.c.l.b16 %v503
  %v654 = vpack.c.b16 %v653, %v652
  %v657 = vsel %vm528, %v504, 0
  %v660 = vsel %vm528, %v505, 0
  %v663 = vsel %vm528, %v506, 0
  %v666 = vsel %vm528, %v507, 0
  %v669 = vsel %vm528, %v508, 0
  %v672 = vsel %vm528, %v509, 0
  %v675 = vsel %vm528, %v510, 0
  %v678 = vsel %vm528, %v511, 0
  %680 = vmatprep.subr.bf16.mxu0 0
  %681 = vmatpush1.bf16.msra.mxu0 %v654
  %682 = vmatprep.subr.bf16.mxu0 0
  %683 = vmatpush1.bf16.msra.mxu0 0
  %684 = vmatprep.subr.bf16.mxu0 0
  %685 = vmatpush1.bf16.msra.mxu0 0
  %686 = vmatprep.subr.bf16.mxu0 0
  %687 = vmatpush1.bf16.msra.mxu0 0
  %688 = vmatprep.subr.bf16.mxu0 0
  %689 = vmatpush1.bf16.msra.mxu0 0
  %690 = vmatprep.subr.bf16.mxu0 0
  %691 = vmatpush1.bf16.msra.mxu0 0
  %692 = vmatprep.subr.bf16.mxu0 0
  %693 = vmatpush1.bf16.msra.mxu0 0
  %694 = vmatprep.subr.bf16.mxu0 0
  %695 = vmatpush1.bf16.msra.mxu0 0
  %696 = vmatprep.subr.bf16.mxu0 0
  %697 = vmatpush1.bf16.msra.mxu0 0
  %698 = vmatprep.subr.bf16.mxu0 0
  %699 = vmatpush1.bf16.msra.mxu0 0
  %700 = vmatprep.subr.bf16.mxu0 0
  %701 = vmatpush1.bf16.msra.mxu0 0
  %702 = vmatprep.subr.bf16.mxu0 0
  %703 = vmatpush1.bf16.msra.mxu0 0
  %704 = vmatprep.subr.bf16.mxu0 0
  %705 = vmatpush1.bf16.msra.mxu0 0
  %706 = vmatprep.subr.bf16.mxu0 0
  %707 = vmatpush1.bf16.msra.mxu0 0
  %708 = vmatprep.subr.bf16.mxu0 0
  %709 = vmatpush1.bf16.msra.mxu0 0
  %710 = vmatprep.subr.bf16.mxu0 0
  %711 = vmatpush1.bf16.msra.mxu0 0
  %712 = vmatprep.mubr.bf16.mxu0 0
  %713 = vmatmul.mubr.bf16.gmra.mrb[0].mxu0 %v657
  %v714 = vpop.f32.mrb[0].mxu0
  %v715 = vadd.f32 %v588, %v714
  %v716 = vpop.f32.mrb[0].mxu0
  %v717 = vpop.f32.mrb[0].mxu0
  %v718 = vadd.f32 %v591, %v717
  %v719 = vpop.f32.mrb[0].mxu0
  %720 = vmatprep.mubr.bf16.mxu0 0
  %721 = vmatmul.mubr.bf16.gmra.mrb[0].mxu0 %v660
  %v722 = vpop.f32.mrb[0].mxu0
  %v723 = vadd.f32 %v596, %v722
  %v724 = vpop.f32.mrb[0].mxu0
  %v725 = vpop.f32.mrb[0].mxu0
  %v726 = vadd.f32 %v599, %v725
  %v727 = vpop.f32.mrb[0].mxu0
  %728 = vmatprep.mubr.bf16.mxu0 0
  %729 = vmatmul.mubr.bf16.gmra.mrb[0].mxu0 %v663
  %v730 = vpop.f32.mrb[0].mxu0
  %v731 = vadd.f32 %v604, %v730
  %v732 = vpop.f32.mrb[0].mxu0
  %v733 = vpop.f32.mrb[0].mxu0
  %v734 = vadd.f32 %v607, %v733
  %v735 = vpop.f32.mrb[0].mxu0
  %736 = vmatprep.mubr.bf16.mxu0 0
  %737 = vmatmul.mubr.bf16.gmra.mrb[0].mxu0 %v666
  %v738 = vpop.f32.mrb[0].mxu0
  %v739 = vadd.f32 %v612, %v738
  %v740 = vpop.f32.mrb[0].mxu0
  %v741 = vpop.f32.mrb[0].mxu0
  %v742 = vadd.f32 %v615, %v741
  %v743 = vpop.f32.mrb[0].mxu0
  %744 = vmatprep.mubr.bf16.mxu0 0
  %745 = vmatmul.mubr.bf16.gmra.mrb[0].mxu0 %v669
  %v746 = vpop.f32.mrb[0].mxu0
  %v747 = vadd.f32 %v620, %v746
  %v748 = vpop.f32.mrb[0].mxu0
  %v749 = vpop.f32.mrb[0].mxu0
  %v750 = vadd.f32 %v623, %v749
  %v751 = vpop.f32.mrb[0].mxu0
  %752 = vmatprep.mubr.bf16.mxu0 0
  %753 = vmatmul.mubr.bf16.gmra.mrb[0].mxu0 %v672
  %v754 = vpop.f32.mrb[0].mxu0
  %v755 = vadd.f32 %v628, %v754
  %v756 = vpop.f32.mrb[0].mxu0
  %v757 = vpop.f32.mrb[0].mxu0
  %v758 = vadd.f32 %v631, %v757
  %v759 = vpop.f32.mrb[0].mxu0
  %760 = vmatprep.mubr.bf16.mxu0 0
  %761 = vmatmul.mubr.bf16.gmra.mrb[0].mxu0 %v675
  %v762 = vpop.f32.mrb[0].mxu0
  %v763 = vadd.f32 %v636, %v762
  %v764 = vpop.f32.mrb[0].mxu0
  %v765 = vpop.f32.mrb[0].mxu0
  %v766 = vadd.f32 %v639, %v765
  %v767 = vpop.f32.mrb[0].mxu0
  %768 = vmatprep.mubr.bf16.mxu0 0
  %769 = vmatmul.mubr.bf16.gmra.mrb[0].mxu0 %v678
  %v770 = vpop.f32.mrb[0].mxu0
  %v771 = vadd.f32 %v644, %v770
  %v772 = vpop.f32.mrb[0].mxu0
  %v773 = vpop.f32.mrb[0].mxu0
  %v774 = vadd.f32 %v647, %v773
  %v775 = vpop.f32.mrb[0].mxu0
  %776 = vdwg.mxu0
  %v777 = vld [vmem:[%s1] sm:$0xff]
  %v778 = vld [vmem:[%s1 + $0x8] sm:$0xff]
  %v779 = vld [vmem:[%s1 + $0x10] sm:$0xff]
  %v780 = vld [vmem:[%s1 + $0x18] sm:$0xff]
  %v781 = vld [vmem:[%s1 + $0x20] sm:$0xff]
  %v782 = vld [vmem:[%s1 + $0x28] sm:$0xff]
  %v783 = vld [vmem:[%s1 + $0x30] sm:$0xff]
  %v784 = vld [vmem:[%s1 + $0x38] sm:$0xff]
  %v785 = vld [vmem:[%s1 + $0x40] sm:$0xff]
  %v786 = vld [vmem:[%s1 + $0x48] sm:$0xff]
  %v787 = vld [vmem:[%s1 + $0x50] sm:$0xff]
  %v788 = vld [vmem:[%s1 + $0x58] sm:$0xff]
  %v789 = vld [vmem:[%s1 + $0x60] sm:$0xff]
  %v790 = vld [vmem:[%s1 + $0x68] sm:$0xff]
  %v791 = vld [vmem:[%s1 + $0x70] sm:$0xff]
  %v792 = vld [vmem:[%s1 + $0x78] sm:$0xff]
  %v793 = vld [vmem:[%s23] sm:$0xf]
  %v794 = vpack.c.bf16 %v778, %v777
  %v795 = vpack.c.bf16 %v780, %v779
  %v796 = vpack.c.bf16 %v782, %v781
  %v797 = vpack.c.bf16 %v784, %v783
  %v798 = vpack.c.bf16 %v786, %v785
  %v799 = vpack.c.bf16 %v788, %v787
  %v800 = vpack.c.bf16 %v790, %v789
  %v801 = vpack.c.bf16 %v792, %v791
  %vm802 = vcmask 64512
  %v804 = vsel %vm802, %v794, 0
  %v807 = vsel %vm802, %v795, 0
  %v810 = vsel %vm802, %v796, 0
  %v813 = vsel %vm802, %v797, 0
  %v816 = vsel %vm802, %v798, 0
  %v819 = vsel %vm802, %v799, 0
  %v822 = vsel %vm802, %v800, 0
  %v825 = vsel %vm802, %v801, 0
  %vm827 = vcmask 1043456
  %v829 = vsel %vm827, %v793, 0
  %831 = vmatprep.subr.bf16.mxu0 0
  %832 = vmatpush1.bf16.msra.mxu0 %v829
  %833 = vmatprep.subr.bf16.mxu0 0
  %834 = vmatpush1.bf16.msra.mxu0 0
  %835 = vmatprep.subr.bf16.mxu0 0
  %836 = vmatpush1.bf16.msra.mxu0 0
  %837 = vmatprep.subr.bf16.mxu0 0
  %838 = vmatpush1.bf16.msra.mxu0 0
  %839 = vmatprep.subr.bf16.mxu0 0
  %840 = vmatpush1.bf16.msra.mxu0 0
  %841 = vmatprep.subr.bf16.mxu0 0
  %842 = vmatpush1.bf16.msra.mxu0 0
  %843 = vmatprep.subr.bf16.mxu0 0
  %844 = vmatpush1.bf16.msra.mxu0 0
  %845 = vmatprep.subr.bf16.mxu0 0
  %846 = vmatpush1.bf16.msra.mxu0 0
  %847 = vmatprep.subr.bf16.mxu0 0
  %848 = vmatpush1.bf16.msra.mxu0 0
  %849 = vmatprep.subr.bf16.mxu0 0
  %850 = vmatpush1.bf16.msra.mxu0 0
  %851 = vmatprep.subr.bf16.mxu0 0
  %852 = vmatpush1.bf16.msra.mxu0 0
  %853 = vmatprep.subr.bf16.mxu0 0
  %854 = vmatpush1.bf16.msra.mxu0 0
  %855 = vmatprep.subr.bf16.mxu0 0
  %856 = vmatpush1.bf16.msra.mxu0 0
  %857 = vmatprep.subr.bf16.mxu0 0
  %858 = vmatpush1.bf16.msra.mxu0 0
  %859 = vmatprep.subr.bf16.mxu0 0
  %860 = vmatpush1.bf16.msra.mxu0 0
  %861 = vmatprep.subr.bf16.mxu0 0
  %862 = vmatpush1.bf16.msra.mxu0 0
  %863 = vmatprep.mubr.bf16.mxu0 0
  %864 = vmatmul.mubr.bf16.gmra.mrb[0].mxu0 %v804
  %v865 = vpop.f32.mrb[0].mxu0
  %v866 = vadd.f32 0.0, %v865
  %v867 = vpop.f32.mrb[0].mxu0
  %v868 = vpop.f32.mrb[0].mxu0
  %v869 = vadd.f32 0.0, %v868
  %v870 = vpop.f32.mrb[0].mxu0
  %871 = vmatprep.mubr.bf16.mxu0 0
  %872 = vmatmul.mubr.bf16.gmra.mrb[0].mxu0 %v807
  %v873 = vpop.f32.mrb[0].mxu0
  %v874 = vadd.f32 0.0, %v873
  %v875 = vpop.f32.mrb[0].mxu0
  %v876 = vpop.f32.mrb[0].mxu0
  %v877 = vadd.f32 0.0, %v876
  %v878 = vpop.f32.mrb[0].mxu0
  %879 = vmatprep.mubr.bf16.mxu0 0
  %880 = vmatmul.mubr.bf16.gmra.mrb[0].mxu0 %v810
  %v881 = vpop.f32.mrb[0].mxu0
  %v882 = vadd.f32 0.0, %v881
  %v883 = vpop.f32.mrb[0].mxu0
  %v884 = vpop.f32.mrb[0].mxu0
  %v885 = vadd.f32 0.0, %v884
  %v886 = vpop.f32.mrb[0].mxu0
  %887 = vmatprep.mubr.bf16.mxu0 0
  %888 = vmatmul.mubr.bf16.gmra.mrb[0].mxu0 %v813
  %v889 = vpop.f32.mrb[0].mxu0
  %v890 = vadd.f32 0.0, %v889
  %v891 = vpop.f32.mrb[0].mxu0
  %v892 = vpop.f32.mrb[0].mxu0
  %v893 = vadd.f32 0.0, %v892
  %v894 = vpop.f32.mrb[0].mxu0
  %895 = vmatprep.mubr.bf16.mxu0 0
  %896 = vmatmul.mubr.bf16.gmra.mrb[0].mxu0 %v816
  %v897 = vpop.f32.mrb[0].mxu0
  %v898 = vadd.f32 0.0, %v897
  %v899 = vpop.f32.mrb[0].mxu0
  %v900 = vpop.f32.mrb[0].mxu0
  %v901 = vadd.f32 0.0, %v900
  %v902 = vpop.f32.mrb[0].mxu0
  %903 = vmatprep.mubr.bf16.mxu0 0
  %904 = vmatmul.mubr.bf16.gmra.mrb[0].mxu0 %v819
  %v905 = vpop.f32.mrb[0].mxu0
  %v906 = vadd.f32 0.0, %v905
  %v907 = vpop.f32.mrb[0].mxu0
  %v908 = vpop.f32.mrb[0].mxu0
  %v909 = vadd.f32 0.0, %v908
  %v910 = vpop.f32.mrb[0].mxu0
  %911 = vmatprep.mubr.bf16.mxu0 0
  %912 = vmatmul.mubr.bf16.gmra.mrb[0].mxu0 %v822
  %v913 = vpop.f32.mrb[0].mxu0
  %v914 = vadd.f32 0.0, %v913
  %v915 = vpop.f32.mrb[0].mxu0
  %v916 = vpop.f32.mrb[0].mxu0
  %v917 = vadd.f32 0.0, %v916
  %v918 = vpop.f32.mrb[0].mxu0
  %919 = vmatprep.mubr.bf16.mxu0 0
  %920 = vmatmul.mubr.bf16.gmra.mrb[0].mxu0 %v825
  %v921 = vpop.f32.mrb[0].mxu0
  %v922 = vadd.f32 0.0, %v921
  %v923 = vpop.f32.mrb[0].mxu0
  %v924 = vpop.f32.mrb[0].mxu0
  %v925 = vadd.f32 0.0, %v924
  %v926 = vpop.f32.mrb[0].mxu0
  %927 = vdwg.mxu0
  %v928 = vadd.f32 %v715, %v866
  %v929 = vadd.f32 %v718, %v869
  %v930 = vadd.f32 %v723, %v874
  %v931 = vadd.f32 %v726, %v877
  %v932 = vadd.f32 %v731, %v882
  %v933 = vadd.f32 %v734, %v885
  %v934 = vadd.f32 %v739, %v890
  %v935 = vadd.f32 %v742, %v893
  %v936 = vadd.f32 %v747, %v898
  %v937 = vadd.f32 %v750, %v901
  %v938 = vadd.f32 %v755, %v906
  %v939 = vadd.f32 %v758, %v909
  %v940 = vadd.f32 %v763, %v914
  %v941 = vadd.f32 %v766, %v917
  %v942 = vadd.f32 %v771, %v922
  %v943 = vadd.f32 %v774, %v925
  %v944 = vld [vmem:[%s25] sm:$0x1]
  %v946 = vlaneseq
  %v947 = vshrl.u32 %v946, 7
  %v948 = vsub.s32 0, %v947
  %v949 = vrot.slane %v944, %v948
  %v951 = vadd.f32 %v928, %v949
  %v952 = vadd.f32 %v929, %v949
  %v953 = vadd.f32 %v930, %v949
  %v954 = vadd.f32 %v931, %v949
  %v955 = vadd.f32 %v932, %v949
  %v956 = vadd.f32 %v933, %v949
  %v957 = vadd.f32 %v934, %v949
  %v958 = vadd.f32 %v935, %v949
  %v959 = vadd.f32 %v936, %v949
  %v960 = vadd.f32 %v937, %v949
  %v961 = vadd.f32 %v938, %v949
  %v962 = vadd.f32 %v939, %v949
  %v963 = vadd.f32 %v940, %v949
  %v964 = vadd.f32 %v941, %v949
  %v965 = vadd.f32 %v942, %v949
  %v966 = vadd.f32 %v943, %v949
  %vm967 = vcmp.gt.f32.partialorder %v951, 0.0
  %vm968 = vcmp.gt.f32.partialorder %v952, 0.0
  %vm969 = vcmp.gt.f32.partialorder %v953, 0.0
  %vm970 = vcmp.gt.f32.partialorder %v954, 0.0
  %vm971 = vcmp.gt.f32.partialorder %v955, 0.0
  %vm972 = vcmp.gt.f32.partialorder %v956, 0.0
  %vm973 = vcmp.gt.f32.partialorder %v957, 0.0
  %vm974 = vcmp.gt.f32.partialorder %v958, 0.0
  %vm975 = vcmp.gt.f32.partialorder %v959, 0.0
  %vm976 = vcmp.gt.f32.partialorder %v960, 0.0
  %vm977 = vcmp.gt.f32.partialorder %v961, 0.0
  %vm978 = vcmp.gt.f32.partialorder %v962, 0.0
  %vm979 = vcmp.gt.f32.partialorder %v963, 0.0
  %vm980 = vcmp.gt.f32.partialorder %v964, 0.0
  %vm981 = vcmp.gt.f32.partialorder %v965, 0.0
  %vm982 = vcmp.gt.f32.partialorder %v966, 0.0
  %v983 = vmin.f32 %v951, 0.0
  %v984 = vmin.f32 %v952, 0.0
  %v985 = vmin.f32 %v953, 0.0
  %v986 = vmin.f32 %v954, 0.0
  %v987 = vmin.f32 %v955, 0.0
  %v988 = vmin.f32 %v956, 0.0
  %v989 = vmin.f32 %v957, 0.0
  %v990 = vmin.f32 %v958, 0.0
  %v991 = vmin.f32 %v959, 0.0
  %v992 = vmin.f32 %v960, 0.0
  %v993 = vmin.f32 %v961, 0.0
  %v994 = vmin.f32 %v962, 0.0
  %v995 = vmin.f32 %v963, 0.0
  %v996 = vmin.f32 %v964, 0.0
  %v997 = vmin.f32 %v965, 0.0
  %v998 = vmin.f32 %v966, 0.0
  %v999 = vmul.f32 %v983, 1.442695
  %v1000 = vpow.pop %v999
  %v1001 = vmul.f32 %v984, 1.442695
  %v1002 = vpow.pop %v1001
  %v1003 = vmul.f32 %v985, 1.442695
  %v1004 = vpow.pop %v1003
  %v1005 = vmul.f32 %v986, 1.442695
  %v1006 = vpow.pop %v1005
  %v1007 = vmul.f32 %v987, 1.442695
  %v1008 = vpow.pop %v1007
  %v1009 = vmul.f32 %v988, 1.442695
  %v1010 = vpow.pop %v1009
  %v1011 = vmul.f32 %v989, 1.442695
  %v1012 = vpow.pop %v1011
  %v1013 = vmul.f32 %v990, 1.442695
  %v1014 = vpow.pop %v1013
  %v1015 = vmul.f32 %v991, 1.442695
  %v1016 = vpow.pop %v1015
  %v1017 = vmul.f32 %v992, 1.442695
  %v1018 = vpow.pop %v1017
  %v1019 = vmul.f32 %v993, 1.442695
  %v1020 = vpow.pop %v1019
  %v1021 = vmul.f32 %v994, 1.442695
  %v1022 = vpow.pop %v1021
  %v1023 = vmul.f32 %v995, 1.442695
  %v1024 = vpow.pop %v1023
  %v1025 = vmul.f32 %v996, 1.442695
  %v1026 = vpow.pop %v1025
  %v1027 = vmul.f32 %v997, 1.442695
  %v1028 = vpow.pop %v1027
  %v1029 = vmul.f32 %v998, 1.442695
  %v1030 = vpow.pop %v1029
  %v1031 = vsub.f32 %v1000, 1.0
  %v1032 = vsub.f32 %v1002, 1.0
  %v1033 = vsub.f32 %v1004, 1.0
  %v1034 = vsub.f32 %v1006, 1.0
  %v1035 = vsub.f32 %v1008, 1.0
  %v1036 = vsub.f32 %v1010, 1.0
  %v1037 = vsub.f32 %v1012, 1.0
  %v1038 = vsub.f32 %v1014, 1.0
  %v1039 = vsub.f32 %v1016, 1.0
  %v1040 = vsub.f32 %v1018, 1.0
  %v1041 = vsub.f32 %v1020, 1.0
  %v1042 = vsub.f32 %v1022, 1.0
  %v1043 = vsub.f32 %v1024, 1.0
  %v1044 = vsub.f32 %v1026, 1.0
  %v1045 = vsub.f32 %v1028, 1.0
  %v1046 = vsub.f32 %v1030, 1.0
  %v1047 = vsel %vm967, %v951, %v1031
  %v1048 = vsel %vm968, %v952, %v1032
  %v1049 = vsel %vm969, %v953, %v1033
  %v1050 = vsel %vm970, %v954, %v1034
  %v1051 = vsel %vm971, %v955, %v1035
  %v1052 = vsel %vm972, %v956, %v1036
  %v1053 = vsel %vm973, %v957, %v1037
  %v1054 = vsel %vm974, %v958, %v1038
  %v1055 = vsel %vm975, %v959, %v1039
  %v1056 = vsel %vm976, %v960, %v1040
  %v1057 = vsel %vm977, %v961, %v1041
  %v1058 = vsel %vm978, %v962, %v1042
  %v1059 = vsel %vm979, %v963, %v1043
  %v1060 = vsel %vm980, %v964, %v1044
  %v1061 = vsel %vm981, %v965, %v1045
  %v1062 = vsel %vm982, %v966, %v1046
  %v1063 = vld [vmem:[%s27] sm:$0xff]
  %v1064 = vld [vmem:[%s27 + $0x8] sm:$0xff]
  %v1065 = vld [vmem:[%s27 + $0x10] sm:$0xff]
  %v1066 = vld [vmem:[%s27 + $0x18] sm:$0xff]
  %v1067 = vpack.c.bf16 %v1048, %v1047
  %v1068 = vpack.c.bf16 %v1050, %v1049
  %v1069 = vpack.c.bf16 %v1052, %v1051
  %v1070 = vpack.c.bf16 %v1054, %v1053
  %v1071 = vpack.c.bf16 %v1056, %v1055
  %v1072 = vpack.c.bf16 %v1058, %v1057
  %v1073 = vpack.c.bf16 %v1060, %v1059
  %v1074 = vpack.c.bf16 %v1062, %v1061
  %v1075 = vld [vmem:[%s29] sm:$0x3]
  %v1077 = vlaneseq
  %v1078 = vshrl.u32 %v1077, 7
  %v1079 = vsub.s32 0, %v1078
  %v1080 = vrot.slane %v1075, %v1079
  %v1081 = vlaneseq
  %v1082 = vshrl.u32 %v1081, 7
  %v1083 = vsub.s32 1, %v1082
  %v1084 = vrot.slane %v1075, %v1083
  %v1091 = vunpack.c.l.b16 %v1063
  %v1092 = vunpack.c.h.b16 %v1063
  %v1093 = vunpack.c.l.b16 %v1064
  %v1094 = vunpack.c.h.b16 %v1064
  %v1095 = vunpack.c.l.b16 %v1065
  %v1096 = vunpack.c.h.b16 %v1065
  %v1097 = vunpack.c.l.b16 %v1066
  %v1098 = vunpack.c.h.b16 %v1066
  %v1099 = vpack.c.b16 %v1093, %v1091
  %v1100 = vpack.c.b16 %v1094, %v1092
  %v1101 = vpack.c.b16 %v1097, %v1095
  %v1102 = vpack.c.b16 %v1098, %v1096
  %vm1107 = vcmask 261120
  %v1109 = vsel %vm1107, %v1067, 0
  %v1112 = vsel %vm1107, %v1068, 0
  %v1115 = vsel %vm1107, %v1069, 0
  %v1118 = vsel %vm1107, %v1070, 0
  %v1121 = vsel %vm1107, %v1071, 0
  %v1124 = vsel %vm1107, %v1072, 0
  %v1127 = vsel %vm1107, %v1073, 0
  %v1130 = vsel %vm1107, %v1074, 0
  %1132 = vmatprep.subr.bf16.mxu0 %v1100
  %1133 = vmatpush1.bf16.msra.mxu0 %v1099
  %1134 = vmatprep.subr.bf16.mxu0 %v1102
  %1135 = vmatpush1.bf16.msra.mxu0 %v1101
  %1136 = vmatprep.subr.bf16.mxu0 0
  %1137 = vmatpush1.bf16.msra.mxu0 0
  %1138 = vmatprep.subr.bf16.mxu0 0
  %1139 = vmatpush1.bf16.msra.mxu0 0
  %1140 = vmatprep.subr.bf16.mxu0 0
  %1141 = vmatpush1.bf16.msra.mxu0 0
  %1142 = vmatprep.subr.bf16.mxu0 0
  %1143 = vmatpush1.bf16.msra.mxu0 0
  %1144 = vmatprep.subr.bf16.mxu0 0
  %1145 = vmatpush1.bf16.msra.mxu0 0
  %1146 = vmatprep.subr.bf16.mxu0 0
  %1147 = vmatpush1.bf16.msra.mxu0 0
  %1148 = vmatprep.subr.bf16.mxu0 0
  %1149 = vmatpush1.bf16.msra.mxu0 0
  %1150 = vmatprep.subr.bf16.mxu0 0
  %1151 = vmatpush1.bf16.msra.mxu0 0
  %1152 = vmatprep.subr.bf16.mxu0 0
  %1153 = vmatpush1.bf16.msra.mxu0 0
  %1154 = vmatprep.subr.bf16.mxu0 0
  %1155 = vmatpush1.bf16.msra.mxu0 0
  %1156 = vmatprep.subr.bf16.mxu0 0
  %1157 = vmatpush1.bf16.msra.mxu0 0
  %1158 = vmatprep.subr.bf16.mxu0 0
  %1159 = vmatpush1.bf16.msra.mxu0 0
  %1160 = vmatprep.subr.bf16.mxu0 0
  %1161 = vmatpush1.bf16.msra.mxu0 0
  %1162 = vmatprep.subr.bf16.mxu0 0
  %1163 = vmatpush1.bf16.msra.mxu0 0
  %1164 = vmatprep.mubr.bf16.mxu0 0
  %1165 = vmatmul.mubr.bf16.gmra.mrb[0].mxu0 %v1109
  %v1166 = vpop.f32.mrb[0].mxu0
  %v1167 = vadd.f32 %v1080, %v1166
  %v1168 = vpop.f32.mrb[0].mxu0
  %v1169 = vadd.f32 %v1084, %v1168
  %v1170 = vpop.f32.mrb[0].mxu0
  %v1171 = vadd.f32 %v1080, %v1170
  %v1172 = vpop.f32.mrb[0].mxu0
  %v1173 = vadd.f32 %v1084, %v1172
  %1174 = vmatprep.mubr.bf16.mxu0 0
  %1175 = vmatmul.mubr.bf16.gmra.mrb[0].mxu0 %v1112
  %v1176 = vpop.f32.mrb[0].mxu0
  %v1177 = vadd.f32 %v1080, %v1176
  %v1178 = vpop.f32.mrb[0].mxu0
  %v1179 = vadd.f32 %v1084, %v1178
  %v1180 = vpop.f32.mrb[0].mxu0
  %v1181 = vadd.f32 %v1080, %v1180
  %v1182 = vpop.f32.mrb[0].mxu0
  %v1183 = vadd.f32 %v1084, %v1182
  %1184 = vmatprep.mubr.bf16.mxu0 0
  %1185 = vmatmul.mubr.bf16.gmra.mrb[0].mxu0 %v1115
  %v1186 = vpop.f32.mrb[0].mxu0
  %v1187 = vadd.f32 %v1080, %v1186
  %v1188 = vpop.f32.mrb[0].mxu0
  %v1189 = vadd.f32 %v1084, %v1188
  %v1190 = vpop.f32.mrb[0].mxu0
  %v1191 = vadd.f32 %v1080, %v1190
  %v1192 = vpop.f32.mrb[0].mxu0
  %v1193 = vadd.f32 %v1084, %v1192
  %1194 = vmatprep.mubr.bf16.mxu0 0
  %1195 = vmatmul.mubr.bf16.gmra.mrb[0].mxu0 %v1118
  %v1196 = vpop.f32.mrb[0].mxu0
  %v1197 = vadd.f32 %v1080, %v1196
  %v1198 = vpop.f32.mrb[0].mxu0
  %v1199 = vadd.f32 %v1084, %v1198
  %v1200 = vpop.f32.mrb[0].mxu0
  %v1201 = vadd.f32 %v1080, %v1200
  %v1202 = vpop.f32.mrb[0].mxu0
  %v1203 = vadd.f32 %v1084, %v1202
  %1204 = vmatprep.mubr.bf16.mxu0 0
  %1205 = vmatmul.mubr.bf16.gmra.mrb[0].mxu0 %v1121
  %v1206 = vpop.f32.mrb[0].mxu0
  %v1207 = vadd.f32 %v1080, %v1206
  %v1208 = vpop.f32.mrb[0].mxu0
  %v1209 = vadd.f32 %v1084, %v1208
  %v1210 = vpop.f32.mrb[0].mxu0
  %v1211 = vadd.f32 %v1080, %v1210
  %v1212 = vpop.f32.mrb[0].mxu0
  %v1213 = vadd.f32 %v1084, %v1212
  %1214 = vmatprep.mubr.bf16.mxu0 0
  %1215 = vmatmul.mubr.bf16.gmra.mrb[0].mxu0 %v1124
  %v1216 = vpop.f32.mrb[0].mxu0
  %v1217 = vadd.f32 %v1080, %v1216
  %v1218 = vpop.f32.mrb[0].mxu0
  %v1219 = vadd.f32 %v1084, %v1218
  %v1220 = vpop.f32.mrb[0].mxu0
  %v1221 = vadd.f32 %v1080, %v1220
  %v1222 = vpop.f32.mrb[0].mxu0
  %v1223 = vadd.f32 %v1084, %v1222
  %1224 = vmatprep.mubr.bf16.mxu0 0
  %1225 = vmatmul.mubr.bf16.gmra.mrb[0].mxu0 %v1127
  %v1226 = vpop.f32.mrb[0].mxu0
  %v1227 = vadd.f32 %v1080, %v1226
  %v1228 = vpop.f32.mrb[0].mxu0
  %v1229 = vadd.f32 %v1084, %v1228
  %v1230 = vpop.f32.mrb[0].mxu0
  %v1231 = vadd.f32 %v1080, %v1230
  %v1232 = vpop.f32.mrb[0].mxu0
  %v1233 = vadd.f32 %v1084, %v1232
  %1234 = vmatprep.mubr.bf16.mxu0 0
  %1235 = vmatmul.mubr.bf16.gmra.mrb[0].mxu0 %v1130
  %v1236 = vpop.f32.mrb[0].mxu0
  %v1237 = vadd.f32 %v1080, %v1236
  %v1238 = vpop.f32.mrb[0].mxu0
  %v1239 = vadd.f32 %v1084, %v1238
  %v1240 = vpop.f32.mrb[0].mxu0
  %v1241 = vadd.f32 %v1080, %v1240
  %v1242 = vpop.f32.mrb[0].mxu0
  %v1243 = vadd.f32 %v1084, %v1242
  %1244 = vdwg.mxu0
  %v1245 = vpack.c.bf16 %v1171, %v1167
  %v1246 = vpack.c.bf16 %v1173, %v1169
  %v1247 = vpack.c.bf16 %v1181, %v1177
  %v1248 = vpack.c.bf16 %v1183, %v1179
  %v1249 = vpack.c.bf16 %v1191, %v1187
  %v1250 = vpack.c.bf16 %v1193, %v1189
  %v1251 = vpack.c.bf16 %v1201, %v1197
  %v1252 = vpack.c.bf16 %v1203, %v1199
  %v1253 = vpack.c.bf16 %v1211, %v1207
  %v1254 = vpack.c.bf16 %v1213, %v1209
  %v1255 = vpack.c.bf16 %v1221, %v1217
  %v1256 = vpack.c.bf16 %v1223, %v1219
  %v1257 = vpack.c.bf16 %v1231, %v1227
  %v1258 = vpack.c.bf16 %v1233, %v1229
  %v1259 = vpack.c.bf16 %v1241, %v1237
  %v1260 = vpack.c.bf16 %v1243, %v1239
  %v1277 = vunpack.c.l.b16 %v1245
  %v1278 = vunpack.c.l.b16 %v1246
  %v1279 = vunpack.c.h.b16 %v1245
  %v1280 = vunpack.c.h.b16 %v1246
  %v1281 = vunpack.c.l.b16 %v1247
  %v1282 = vunpack.c.l.b16 %v1248
  %v1283 = vunpack.c.h.b16 %v1247
  %v1284 = vunpack.c.h.b16 %v1248
  %v1285 = vunpack.c.l.b16 %v1249
  %v1286 = vunpack.c.l.b16 %v1250
  %v1287 = vunpack.c.h.b16 %v1249
  %v1288 = vunpack.c.h.b16 %v1250
  %v1289 = vunpack.c.l.b16 %v1251
  %v1290 = vunpack.c.l.b16 %v1252
  %v1291 = vunpack.c.h.b16 %v1251
  %v1292 = vunpack.c.h.b16 %v1252
  %v1293 = vunpack.c.l.b16 %v1253
  %v1294 = vunpack.c.l.b16 %v1254
  %v1295 = vunpack.c.h.b16 %v1253
  %v1296 = vunpack.c.h.b16 %v1254
  %v1297 = vunpack.c.l.b16 %v1255
  %v1298 = vunpack.c.l.b16 %v1256
  %v1299 = vunpack.c.h.b16 %v1255
  %v1300 = vunpack.c.h.b16 %v1256
  %v1301 = vunpack.c.l.b16 %v1257
  %v1302 = vunpack.c.l.b16 %v1258
  %v1303 = vunpack.c.h.b16 %v1257
  %v1304 = vunpack.c.h.b16 %v1258
  %v1305 = vunpack.c.l.b16 %v1259
  %v1306 = vunpack.c.l.b16 %v1260
  %v1307 = vunpack.c.h.b16 %v1259
  %v1308 = vunpack.c.h.b16 %v1260
  %v1309 = vpack.c.b16 %v1278, %v1277
  %v1310 = vpack.c.b16 %v1280, %v1279
  %v1311 = vpack.c.b16 %v1282, %v1281
  %v1312 = vpack.c.b16 %v1284, %v1283
  %v1313 = vpack.c.b16 %v1286, %v1285
  %v1314 = vpack.c.b16 %v1288, %v1287
  %v1315 = vpack.c.b16 %v1290, %v1289
  %v1316 = vpack.c.b16 %v1292, %v1291
  %v1317 = vpack.c.b16 %v1294, %v1293
  %v1318 = vpack.c.b16 %v1296, %v1295
  %v1319 = vpack.c.b16 %v1298, %v1297
  %v1320 = vpack.c.b16 %v1300, %v1299
  %v1321 = vpack.c.b16 %v1302, %v1301
  %v1322 = vpack.c.b16 %v1304, %v1303
  %v1323 = vpack.c.b16 %v1306, %v1305
  %v1324 = vpack.c.b16 %v1308, %v1307
  %1341 = vst [vmem:[%s63] sm:$0xff] %v1309
  %1342 = vst [vmem:[%s63 + $0x8] sm:$0xff] %v1310
  %1343 = vst [vmem:[%s63 + $0x10] sm:$0xff] %v1311
  %1344 = vst [vmem:[%s63 + $0x18] sm:$0xff] %v1312
  %1345 = vst [vmem:[%s63 + $0x20] sm:$0xff] %v1313
  %1346 = vst [vmem:[%s63 + $0x28] sm:$0xff] %v1314
  %1347 = vst [vmem:[%s63 + $0x30] sm:$0xff] %v1315
  %1348 = vst [vmem:[%s63 + $0x38] sm:$0xff] %v1316
  %1349 = vst [vmem:[%s63 + $0x40] sm:$0xff] %v1317
  %1350 = vst [vmem:[%s63 + $0x48] sm:$0xff] %v1318
  %1351 = vst [vmem:[%s63 + $0x50] sm:$0xff] %v1319
  %1352 = vst [vmem:[%s63 + $0x58] sm:$0xff] %v1320
  %1353 = vst [vmem:[%s63 + $0x60] sm:$0xff] %v1321
  %1354 = vst [vmem:[%s63 + $0x68] sm:$0xff] %v1322
  %1355 = vst [vmem:[%s63 + $0x70] sm:$0xff] %v1323
  %1356 = vst [vmem:[%s63 + $0x78] sm:$0xff] %v1324
  %v1357 = vld [vmem:[%s31] sm:$0xf]
  %v1358 = vld [vmem:[%s31 + $0x4] sm:$0xf]
  %v1359 = vld [vmem:[%s33] sm:$0xf]
  %v1360 = vld [vmem:[%s33 + $0x4] sm:$0xf]
  %v1361 = vld [vmem:[%s33 + $0x8] sm:$0xf]
  %v1362 = vld [vmem:[%s33 + $0xc] sm:$0xf]
  %v1363 = vld [vmem:[%s33 + $0x10] sm:$0xf]
  %v1364 = vld [vmem:[%s33 + $0x14] sm:$0xf]
  %v1365 = vld [vmem:[%s33 + $0x18] sm:$0xf]
  %v1366 = vld [vmem:[%s33 + $0x1c] sm:$0xf]
  %v1367 = vld [vmem:[%s33 + $0x20] sm:$0xf]
  %v1368 = vld [vmem:[%s33 + $0x24] sm:$0xf]
  %v1369 = vld [vmem:[%s33 + $0x28] sm:$0xf]
  %v1370 = vld [vmem:[%s33 + $0x2c] sm:$0xf]
  %v1371 = vld [vmem:[%s33 + $0x30] sm:$0xf]
  %v1372 = vld [vmem:[%s33 + $0x34] sm:$0xf]
  %v1373 = vld [vmem:[%s33 + $0x38] sm:$0xf]
  %v1374 = vld [vmem:[%s33 + $0x3c] sm:$0xf]
  %v1375 = vld [vmem:[%s33 + $0x40] sm:$0xf]
  %v1376 = vld [vmem:[%s33 + $0x44] sm:$0xf]
  %v1377 = vld [vmem:[%s33 + $0x48] sm:$0xf]
  %v1378 = vld [vmem:[%s33 + $0x4c] sm:$0xf]
  %v1379 = vld [vmem:[%s33 + $0x50] sm:$0xf]
  %v1380 = vld [vmem:[%s33 + $0x54] sm:$0xf]
  %v1381 = vld [vmem:[%s33 + $0x58] sm:$0xf]
  %v1382 = vld [vmem:[%s33 + $0x5c] sm:$0xf]
  %v1383 = vld [vmem:[%s33 + $0x60] sm:$0xf]
  %v1384 = vld [vmem:[%s33 + $0x64] sm:$0xf]
  %v1385 = vld [vmem:[%s33 + $0x68] sm:$0xf]
  %v1386 = vld [vmem:[%s33 + $0x6c] sm:$0xf]
  %v1387 = vld [vmem:[%s33 + $0x70] sm:$0xf]
  %v1388 = vld [vmem:[%s33 + $0x74] sm:$0xf]
  %v1389 = vld [vmem:[%s33 + $0x78] sm:$0xf]
  %v1390 = vld [vmem:[%s33 + $0x7c] sm:$0xf]
  %v1423 = vunpack.c.l.b16 %v1359
  %v1424 = vunpack.c.l.b16 %v1360
  %v1425 = vunpack.c.l.b16 %v1361
  %v1426 = vunpack.c.l.b16 %v1362
  %v1427 = vunpack.c.l.b16 %v1363
  %v1428 = vunpack.c.l.b16 %v1364
  %v1429 = vunpack.c.l.b16 %v1365
  %v1430 = vunpack.c.l.b16 %v1366
  %v1431 = vunpack.c.l.b16 %v1367
  %v1432 = vunpack.c.l.b16 %v1368
  %v1433 = vunpack.c.l.b16 %v1369
  %v1434 = vunpack.c.l.b16 %v1370
  %v1435 = vunpack.c.l.b16 %v1371
  %v1436 = vunpack.c.l.b16 %v1372
  %v1437 = vunpack.c.l.b16 %v1373
  %v1438 = vunpack.c.l.b16 %v1374
  %v1439 = vunpack.c.l.b16 %v1375
  %v1440 = vunpack.c.l.b16 %v1376
  %v1441 = vunpack.c.l.b16 %v1377
  %v1442 = vunpack.c.l.b16 %v1378
  %v1443 = vunpack.c.l.b16 %v1379
  %v1444 = vunpack.c.l.b16 %v1380
  %v1445 = vunpack.c.l.b16 %v1381
  %v1446 = vunpack.c.l.b16 %v1382
  %v1447 = vunpack.c.l.b16 %v1383
  %v1448 = vunpack.c.l.b16 %v1384
  %v1449 = vunpack.c.l.b16 %v1385
  %v1450 = vunpack.c.l.b16 %v1386
  %v1451 = vunpack.c.l.b16 %v1387
  %v1452 = vunpack.c.l.b16 %v1388
  %v1453 = vunpack.c.l.b16 %v1389
  %v1454 = vunpack.c.l.b16 %v1390
  %v1455 = vpack.c.b16 %v1424, %v1423
  %v1456 = vpack.c.b16 %v1426, %v1425
  %v1457 = vpack.c.b16 %v1428, %v1427
  %v1458 = vpack.c.b16 %v1430, %v1429
  %v1459 = vpack.c.b16 %v1432, %v1431
  %v1460 = vpack.c.b16 %v1434, %v1433
  %v1461 = vpack.c.b16 %v1436, %v1435
  %v1462 = vpack.c.b16 %v1438, %v1437
  %v1463 = vpack.c.b16 %v1440, %v1439
  %v1464 = vpack.c.b16 %v1442, %v1441
  %v1465 = vpack.c.b16 %v1444, %v1443
  %v1466 = vpack.c.b16 %v1446, %v1445
  %v1467 = vpack.c.b16 %v1448, %v1447
  %v1468 = vpack.c.b16 %v1450, %v1449
  %v1469 = vpack.c.b16 %v1452, %v1451
  %v1470 = vpack.c.b16 %v1454, %v1453
  %1487 = vmatprep.subr.bf16.mxu0 0
  %1488 = vmatpush1.bf16.msra.mxu0 %v1455
  %1489 = vmatprep.subr.bf16.mxu0 0
  %1490 = vmatpush1.bf16.msra.mxu0 %v1456
  %1491 = vmatprep.subr.bf16.mxu0 0
  %1492 = vmatpush1.bf16.msra.mxu0 %v1457
  %1493 = vmatprep.subr.bf16.mxu0 0
  %1494 = vmatpush1.bf16.msra.mxu0 %v1458
  %1495 = vmatprep.subr.bf16.mxu0 0
  %1496 = vmatpush1.bf16.msra.mxu0 %v1459
  %1497 = vmatprep.subr.bf16.mxu0 0
  %1498 = vmatpush1.bf16.msra.mxu0 %v1460
  %1499 = vmatprep.subr.bf16.mxu0 0
  %1500 = vmatpush1.bf16.msra.mxu0 %v1461
  %1501 = vmatprep.subr.bf16.mxu0 0
  %1502 = vmatpush1.bf16.msra.mxu0 %v1462
  %1503 = vmatprep.subr.bf16.mxu0 0
  %1504 = vmatpush1.bf16.msra.mxu0 %v1463
  %1505 = vmatprep.subr.bf16.mxu0 0
  %1506 = vmatpush1.bf16.msra.mxu0 %v1464
  %1507 = vmatprep.subr.bf16.mxu0 0
  %1508 = vmatpush1.bf16.msra.mxu0 %v1465
  %1509 = vmatprep.subr.bf16.mxu0 0
  %1510 = vmatpush1.bf16.msra.mxu0 %v1466
  %1511 = vmatprep.subr.bf16.mxu0 0
  %1512 = vmatpush1.bf16.msra.mxu0 %v1467
  %1513 = vmatprep.subr.bf16.mxu0 0
  %1514 = vmatpush1.bf16.msra.mxu0 %v1468
  %1515 = vmatprep.subr.bf16.mxu0 0
  %1516 = vmatpush1.bf16.msra.mxu0 %v1469
  %1517 = vmatprep.subr.bf16.mxu0 0
  %1518 = vmatpush1.bf16.msra.mxu0 %v1470
  %1519 = vmatprep.mubr.bf16.mxu0 %v1246
  %1520 = vmatmul.mubr.bf16.gmra.mrb[0].mxu0 %v1245
  %v1521 = vpop.f32.mrb[0].mxu0
  %v1522 = vadd.f32 0.0, %v1521
  %v1523 = vpop.f32.mrb[0].mxu0
  %v1524 = vpop.f32.mrb[0].mxu0
  %v1525 = vadd.f32 0.0, %v1524
  %v1526 = vpop.f32.mrb[0].mxu0
  %1527 = vmatprep.mubr.bf16.mxu0 %v1248
  %1528 = vmatmul.mubr.bf16.gmra.mrb[0].mxu0 %v1247
  %v1529 = vpop.f32.mrb[0].mxu0
  %v1530 = vadd.f32 0.0, %v1529
  %v1531 = vpop.f32.mrb[0].mxu0
  %v1532 = vpop.f32.mrb[0].mxu0
  %v1533 = vadd.f32 0.0, %v1532
  %v1534 = vpop.f32.mrb[0].mxu0
  %1535 = vmatprep.mubr.bf16.mxu0 %v1250
  %1536 = vmatmul.mubr.bf16.gmra.mrb[0].mxu0 %v1249
  %v1537 = vpop.f32.mrb[0].mxu0
  %v1538 = vadd.f32 0.0, %v1537
  %v1539 = vpop.f32.mrb[0].mxu0
  %v1540 = vpop.f32.mrb[0].mxu0
  %v1541 = vadd.f32 0.0, %v1540
  %v1542 = vpop.f32.mrb[0].mxu0
  %1543 = vmatprep.mubr.bf16.mxu0 %v1252
  %1544 = vmatmul.mubr.bf16.gmra.mrb[0].mxu0 %v1251
  %v1545 = vpop.f32.mrb[0].mxu0
  %v1546 = vadd.f32 0.0, %v1545
  %v1547 = vpop.f32.mrb[0].mxu0
  %v1548 = vpop.f32.mrb[0].mxu0
  %v1549 = vadd.f32 0.0, %v1548
  %v1550 = vpop.f32.mrb[0].mxu0
  %1551 = vmatprep.mubr.bf16.mxu0 %v1254
  %1552 = vmatmul.mubr.bf16.gmra.mrb[0].mxu0 %v1253
  %v1553 = vpop.f32.mrb[0].mxu0
  %v1554 = vadd.f32 0.0, %v1553
  %v1555 = vpop.f32.mrb[0].mxu0
  %v1556 = vpop.f32.mrb[0].mxu0
  %v1557 = vadd.f32 0.0, %v1556
  %v1558 = vpop.f32.mrb[0].mxu0
  %1559 = vmatprep.mubr.bf16.mxu0 %v1256
  %1560 = vmatmul.mubr.bf16.gmra.mrb[0].mxu0 %v1255
  %v1561 = vpop.f32.mrb[0].mxu0
  %v1562 = vadd.f32 0.0, %v1561
  %v1563 = vpop.f32.mrb[0].mxu0
  %v1564 = vpop.f32.mrb[0].mxu0
  %v1565 = vadd.f32 0.0, %v1564
  %v1566 = vpop.f32.mrb[0].mxu0
  %1567 = vmatprep.mubr.bf16.mxu0 %v1258
  %1568 = vmatmul.mubr.bf16.gmra.mrb[0].mxu0 %v1257
  %v1569 = vpop.f32.mrb[0].mxu0
  %v1570 = vadd.f32 0.0, %v1569
  %v1571 = vpop.f32.mrb[0].mxu0
  %v1572 = vpop.f32.mrb[0].mxu0
  %v1573 = vadd.f32 0.0, %v1572
  %v1574 = vpop.f32.mrb[0].mxu0
  %1575 = vmatprep.mubr.bf16.mxu0 %v1260
  %1576 = vmatmul.mubr.bf16.gmra.mrb[0].mxu0 %v1259
  %v1577 = vpop.f32.mrb[0].mxu0
  %v1578 = vadd.f32 0.0, %v1577
  %v1579 = vpop.f32.mrb[0].mxu0
  %v1580 = vpop.f32.mrb[0].mxu0
  %v1581 = vadd.f32 0.0, %v1580
  %v1582 = vpop.f32.mrb[0].mxu0
  %1583 = vdwg.mxu0
  %v1586 = vunpack.c.l.b16 %v1357
  %v1587 = vunpack.c.l.b16 %v1358
  %v1588 = vpack.c.b16 %v1587, %v1586
  %1590 = vmatprep.subr.bf16.mxu0 0
  %1591 = vmatpush1.bf16.msra.mxu0 %v1588
  %1592 = vmatprep.subr.bf16.mxu0 0
  %1593 = vmatpush1.bf16.msra.mxu0 0
  %1594 = vmatprep.subr.bf16.mxu0 0
  %1595 = vmatpush1.bf16.msra.mxu0 0
  %1596 = vmatprep.subr.bf16.mxu0 0
  %1597 = vmatpush1.bf16.msra.mxu0 0
  %1598 = vmatprep.subr.bf16.mxu0 0
  %1599 = vmatpush1.bf16.msra.mxu0 0
  %1600 = vmatprep.subr.bf16.mxu0 0
  %1601 = vmatpush1.bf16.msra.mxu0 0
  %1602 = vmatprep.subr.bf16.mxu0 0
  %1603 = vmatpush1.bf16.msra.mxu0 0
  %1604 = vmatprep.subr.bf16.mxu0 0
  %1605 = vmatpush1.bf16.msra.mxu0 0
  %1606 = vmatprep.subr.bf16.mxu0 0
  %1607 = vmatpush1.bf16.msra.mxu0 0
  %1608 = vmatprep.subr.bf16.mxu0 0
  %1609 = vmatpush1.bf16.msra.mxu0 0
  %1610 = vmatprep.subr.bf16.mxu0 0
  %1611 = vmatpush1.bf16.msra.mxu0 0
  %1612 = vmatprep.subr.bf16.mxu0 0
  %1613 = vmatpush1.bf16.msra.mxu0 0
  %1614 = vmatprep.subr.bf16.mxu0 0
  %1615 = vmatpush1.bf16.msra.mxu0 0
  %1616 = vmatprep.subr.bf16.mxu0 0
  %1617 = vmatpush1.bf16.msra.mxu0 0
  %1618 = vmatprep.subr.bf16.mxu0 0
  %1619 = vmatpush1.bf16.msra.mxu0 0
  %1620 = vmatprep.subr.bf16.mxu0 0
  %1621 = vmatpush1.bf16.msra.mxu0 0
  %1622 = vmatprep.mubr.bf16.mxu0 0
  %1623 = vmatmul.mubr.bf16.gmra.mrb[0].mxu0 %v657
  %v1624 = vpop.f32.mrb[0].mxu0
  %v1625 = vadd.f32 %v1522, %v1624
  %v1626 = vpop.f32.mrb[0].mxu0
  %v1627 = vpop.f32.mrb[0].mxu0
  %v1628 = vadd.f32 %v1525, %v1627
  %v1629 = vpop.f32.mrb[0].mxu0
  %1630 = vmatprep.mubr.bf16.mxu0 0
  %1631 = vmatmul.mubr.bf16.gmra.mrb[0].mxu0 %v660
  %v1632 = vpop.f32.mrb[0].mxu0
  %v1633 = vadd.f32 %v1530, %v1632
  %v1634 = vpop.f32.mrb[0].mxu0
  %v1635 = vpop.f32.mrb[0].mxu0
  %v1636 = vadd.f32 %v1533, %v1635
  %v1637 = vpop.f32.mrb[0].mxu0
  %1638 = vmatprep.mubr.bf16.mxu0 0
  %1639 = vmatmul.mubr.bf16.gmra.mrb[0].mxu0 %v663
  %v1640 = vpop.f32.mrb[0].mxu0
  %v1641 = vadd.f32 %v1538, %v1640
  %v1642 = vpop.f32.mrb[0].mxu0
  %v1643 = vpop.f32.mrb[0].mxu0
  %v1644 = vadd.f32 %v1541, %v1643
  %v1645 = vpop.f32.mrb[0].mxu0
  %1646 = vmatprep.mubr.bf16.mxu0 0
  %1647 = vmatmul.mubr.bf16.gmra.mrb[0].mxu0 %v666
  %v1648 = vpop.f32.mrb[0].mxu0
  %v1649 = vadd.f32 %v1546, %v1648
  %v1650 = vpop.f32.mrb[0].mxu0
  %v1651 = vpop.f32.mrb[0].mxu0
  %v1652 = vadd.f32 %v1549, %v1651
  %v1653 = vpop.f32.mrb[0].mxu0
  %1654 = vmatprep.mubr.bf16.mxu0 0
  %1655 = vmatmul.mubr.bf16.gmra.mrb[0].mxu0 %v669
  %v1656 = vpop.f32.mrb[0].mxu0
  %v1657 = vadd.f32 %v1554, %v1656
  %v1658 = vpop.f32.mrb[0].mxu0
  %v1659 = vpop.f32.mrb[0].mxu0
  %v1660 = vadd.f32 %v1557, %v1659
  %v1661 = vpop.f32.mrb[0].mxu0
  %1662 = vmatprep.mubr.bf16.mxu0 0
  %1663 = vmatmul.mubr.bf16.gmra.mrb[0].mxu0 %v672
  %v1664 = vpop.f32.mrb[0].mxu0
  %v1665 = vadd.f32 %v1562, %v1664
  %v1666 = vpop.f32.mrb[0].mxu0
  %v1667 = vpop.f32.mrb[0].mxu0
  %v1668 = vadd.f32 %v1565, %v1667
  %v1669 = vpop.f32.mrb[0].mxu0
  %1670 = vmatprep.mubr.bf16.mxu0 0
  %1671 = vmatmul.mubr.bf16.gmra.mrb[0].mxu0 %v675
  %v1672 = vpop.f32.mrb[0].mxu0
  %v1673 = vadd.f32 %v1570, %v1672
  %v1674 = vpop.f32.mrb[0].mxu0
  %v1675 = vpop.f32.mrb[0].mxu0
  %v1676 = vadd.f32 %v1573, %v1675
  %v1677 = vpop.f32.mrb[0].mxu0
  %1678 = vmatprep.mubr.bf16.mxu0 0
  %1679 = vmatmul.mubr.bf16.gmra.mrb[0].mxu0 %v678
  %v1680 = vpop.f32.mrb[0].mxu0
  %v1681 = vadd.f32 %v1578, %v1680
  %v1682 = vpop.f32.mrb[0].mxu0
  %v1683 = vpop.f32.mrb[0].mxu0
  %v1684 = vadd.f32 %v1581, %v1683
  %v1685 = vpop.f32.mrb[0].mxu0
  %1686 = vdwg.mxu0
  %v1687 = vld [vmem:[%s35] sm:$0x1]
  %v1689 = vlaneseq
  %v1690 = vshrl.u32 %v1689, 7
  %v1691 = vsub.s32 0, %v1690
  %v1692 = vrot.slane %v1687, %v1691
  %v1694 = vadd.f32 %v1625, %v1692
  %v1695 = vadd.f32 %v1628, %v1692
  %v1696 = vadd.f32 %v1633, %v1692
  %v1697 = vadd.f32 %v1636, %v1692
  %v1698 = vadd.f32 %v1641, %v1692
  %v1699 = vadd.f32 %v1644, %v1692
  %v1700 = vadd.f32 %v1649, %v1692
  %v1701 = vadd.f32 %v1652, %v1692
  %v1702 = vadd.f32 %v1657, %v1692
  %v1703 = vadd.f32 %v1660, %v1692
  %v1704 = vadd.f32 %v1665, %v1692
  %v1705 = vadd.f32 %v1668, %v1692
  %v1706 = vadd.f32 %v1673, %v1692
  %v1707 = vadd.f32 %v1676, %v1692
  %v1708 = vadd.f32 %v1681, %v1692
  %v1709 = vadd.f32 %v1684, %v1692
  %vm1710 = vcmp.gt.f32.partialorder %v1694, 0.0
  %vm1711 = vcmp.gt.f32.partialorder %v1695, 0.0
  %vm1712 = vcmp.gt.f32.partialorder %v1696, 0.0
  %vm1713 = vcmp.gt.f32.partialorder %v1697, 0.0
  %vm1714 = vcmp.gt.f32.partialorder %v1698, 0.0
  %vm1715 = vcmp.gt.f32.partialorder %v1699, 0.0
  %vm1716 = vcmp.gt.f32.partialorder %v1700, 0.0
  %vm1717 = vcmp.gt.f32.partialorder %v1701, 0.0
  %vm1718 = vcmp.gt.f32.partialorder %v1702, 0.0
  %vm1719 = vcmp.gt.f32.partialorder %v1703, 0.0
  %vm1720 = vcmp.gt.f32.partialorder %v1704, 0.0
  %vm1721 = vcmp.gt.f32.partialorder %v1705, 0.0
  %vm1722 = vcmp.gt.f32.partialorder %v1706, 0.0
  %vm1723 = vcmp.gt.f32.partialorder %v1707, 0.0
  %vm1724 = vcmp.gt.f32.partialorder %v1708, 0.0
  %vm1725 = vcmp.gt.f32.partialorder %v1709, 0.0
  %v1726 = vmin.f32 %v1694, 0.0
  %v1727 = vmin.f32 %v1695, 0.0
  %v1728 = vmin.f32 %v1696, 0.0
  %v1729 = vmin.f32 %v1697, 0.0
  %v1730 = vmin.f32 %v1698, 0.0
  %v1731 = vmin.f32 %v1699, 0.0
  %v1732 = vmin.f32 %v1700, 0.0
  %v1733 = vmin.f32 %v1701, 0.0
  %v1734 = vmin.f32 %v1702, 0.0
  %v1735 = vmin.f32 %v1703, 0.0
  %v1736 = vmin.f32 %v1704, 0.0
  %v1737 = vmin.f32 %v1705, 0.0
  %v1738 = vmin.f32 %v1706, 0.0
  %v1739 = vmin.f32 %v1707, 0.0
  %v1740 = vmin.f32 %v1708, 0.0
  %v1741 = vmin.f32 %v1709, 0.0
  %v1742 = vmul.f32 %v1726, 1.442695
  %v1743 = vpow.pop %v1742
  %v1744 = vmul.f32 %v1727, 1.442695
  %v1745 = vpow.pop %v1744
  %v1746 = vmul.f32 %v1728, 1.442695
  %v1747 = vpow.pop %v1746
  %v1748 = vmul.f32 %v1729, 1.442695
  %v1749 = vpow.pop %v1748
  %v1750 = vmul.f32 %v1730, 1.442695
  %v1751 = vpow.pop %v1750
  %v1752 = vmul.f32 %v1731, 1.442695
  %v1753 = vpow.pop %v1752
  %v1754 = vmul.f32 %v1732, 1.442695
  %v1755 = vpow.pop %v1754
  %v1756 = vmul.f32 %v1733, 1.442695
  %v1757 = vpow.pop %v1756
  %v1758 = vmul.f32 %v1734, 1.442695
  %v1759 = vpow.pop %v1758
  %v1760 = vmul.f32 %v1735, 1.442695
  %v1761 = vpow.pop %v1760
  %v1762 = vmul.f32 %v1736, 1.442695
  %v1763 = vpow.pop %v1762
  %v1764 = vmul.f32 %v1737, 1.442695
  %v1765 = vpow.pop %v1764
  %v1766 = vmul.f32 %v1738, 1.442695
  %v1767 = vpow.pop %v1766
  %v1768 = vmul.f32 %v1739, 1.442695
  %v1769 = vpow.pop %v1768
  %v1770 = vmul.f32 %v1740, 1.442695
  %v1771 = vpow.pop %v1770
  %v1772 = vmul.f32 %v1741, 1.442695
  %v1773 = vpow.pop %v1772
  %v1774 = vsub.f32 %v1743, 1.0
  %v1775 = vsub.f32 %v1745, 1.0
  %v1776 = vsub.f32 %v1747, 1.0
  %v1777 = vsub.f32 %v1749, 1.0
  %v1778 = vsub.f32 %v1751, 1.0
  %v1779 = vsub.f32 %v1753, 1.0
  %v1780 = vsub.f32 %v1755, 1.0
  %v1781 = vsub.f32 %v1757, 1.0
  %v1782 = vsub.f32 %v1759, 1.0
  %v1783 = vsub.f32 %v1761, 1.0
  %v1784 = vsub.f32 %v1763, 1.0
  %v1785 = vsub.f32 %v1765, 1.0
  %v1786 = vsub.f32 %v1767, 1.0
  %v1787 = vsub.f32 %v1769, 1.0
  %v1788 = vsub.f32 %v1771, 1.0
  %v1789 = vsub.f32 %v1773, 1.0
  %v1790 = vsel %vm1710, %v1694, %v1774
  %v1791 = vsel %vm1711, %v1695, %v1775
  %v1792 = vsel %vm1712, %v1696, %v1776
  %v1793 = vsel %vm1713, %v1697, %v1777
  %v1794 = vsel %vm1714, %v1698, %v1778
  %v1795 = vsel %vm1715, %v1699, %v1779
  %v1796 = vsel %vm1716, %v1700, %v1780
  %v1797 = vsel %vm1717, %v1701, %v1781
  %v1798 = vsel %vm1718, %v1702, %v1782
  %v1799 = vsel %vm1719, %v1703, %v1783
  %v1800 = vsel %vm1720, %v1704, %v1784
  %v1801 = vsel %vm1721, %v1705, %v1785
  %v1802 = vsel %vm1722, %v1706, %v1786
  %v1803 = vsel %vm1723, %v1707, %v1787
  %v1804 = vsel %vm1724, %v1708, %v1788
  %v1805 = vsel %vm1725, %v1709, %v1789
  %v1806 = vld [vmem:[%s37] sm:$0xf]
  %v1807 = vld [vmem:[%s37 + $0x4] sm:$0xf]
  %v1808 = vld [vmem:[%s37 + $0x8] sm:$0xf]
  %v1809 = vld [vmem:[%s37 + $0xc] sm:$0xf]
  %v1810 = vld [vmem:[%s37 + $0x10] sm:$0xf]
  %v1811 = vld [vmem:[%s37 + $0x14] sm:$0xf]
  %v1812 = vld [vmem:[%s37 + $0x18] sm:$0xf]
  %v1813 = vld [vmem:[%s37 + $0x1c] sm:$0xf]
  %v1814 = vpack.c.bf16 %v1791, %v1790
  %v1815 = vpack.c.bf16 %v1793, %v1792
  %v1816 = vpack.c.bf16 %v1795, %v1794
  %v1817 = vpack.c.bf16 %v1797, %v1796
  %v1818 = vpack.c.bf16 %v1799, %v1798
  %v1819 = vpack.c.bf16 %v1801, %v1800
  %v1820 = vpack.c.bf16 %v1803, %v1802
  %v1821 = vpack.c.bf16 %v1805, %v1804
  %v1822 = vld [vmem:[%s39] sm:$0x1]
  %v1824 = vlaneseq
  %v1825 = vshrl.u32 %v1824, 7
  %v1826 = vsub.s32 0, %v1825
  %v1827 = vrot.slane %v1822, %v1826
  %v1837 = vunpack.c.l.b16 %v1806
  %v1838 = vunpack.c.l.b16 %v1807
  %v1839 = vunpack.c.l.b16 %v1808
  %v1840 = vunpack.c.l.b16 %v1809
  %v1841 = vunpack.c.l.b16 %v1810
  %v1842 = vunpack.c.l.b16 %v1811
  %v1843 = vunpack.c.l.b16 %v1812
  %v1844 = vunpack.c.l.b16 %v1813
  %v1845 = vpack.c.b16 %v1838, %v1837
  %v1846 = vpack.c.b16 %v1840, %v1839
  %v1847 = vpack.c.b16 %v1842, %v1841
  %v1848 = vpack.c.b16 %v1844, %v1843
  %vm1853 = vcmask 523264
  %v1855 = vsel %vm1853, %v1814, 0
  %v1858 = vsel %vm1853, %v1815, 0
  %v1861 = vsel %vm1853, %v1816, 0
  %v1864 = vsel %vm1853, %v1817, 0
  %v1867 = vsel %vm1853, %v1818, 0
  %v1870 = vsel %vm1853, %v1819, 0
  %v1873 = vsel %vm1853, %v1820, 0
  %v1876 = vsel %vm1853, %v1821, 0
  %1878 = vmatprep.subr.bf16.mxu0 0
  %1879 = vmatpush1.bf16.msra.mxu0 %v1845
  %1880 = vmatprep.subr.bf16.mxu0 0
  %1881 = vmatpush1.bf16.msra.mxu0 %v1846
  %1882 = vmatprep.subr.bf16.mxu0 0
  %1883 = vmatpush1.bf16.msra.mxu0 %v1847
  %1884 = vmatprep.subr.bf16.mxu0 0
  %1885 = vmatpush1.bf16.msra.mxu0 %v1848
  %1886 = vmatprep.subr.bf16.mxu0 0
  %1887 = vmatpush1.bf16.msra.mxu0 0
  %1888 = vmatprep.subr.bf16.mxu0 0
  %1889 = vmatpush1.bf16.msra.mxu0 0
  %1890 = vmatprep.subr.bf16.mxu0 0
  %1891 = vmatpush1.bf16.msra.mxu0 0
  %1892 = vmatprep.subr.bf16.mxu0 0
  %1893 = vmatpush1.bf16.msra.mxu0 0
  %1894 = vmatprep.subr.bf16.mxu0 0
  %1895 = vmatpush1.bf16.msra.mxu0 0
  %1896 = vmatprep.subr.bf16.mxu0 0
  %1897 = vmatpush1.bf16.msra.mxu0 0
  %1898 = vmatprep.subr.bf16.mxu0 0
  %1899 = vmatpush1.bf16.msra.mxu0 0
  %1900 = vmatprep.subr.bf16.mxu0 0
  %1901 = vmatpush1.bf16.msra.mxu0 0
  %1902 = vmatprep.subr.bf16.mxu0 0
  %1903 = vmatpush1.bf16.msra.mxu0 0
  %1904 = vmatprep.subr.bf16.mxu0 0
  %1905 = vmatpush1.bf16.msra.mxu0 0
  %1906 = vmatprep.subr.bf16.mxu0 0
  %1907 = vmatpush1.bf16.msra.mxu0 0
  %1908 = vmatprep.subr.bf16.mxu0 0
  %1909 = vmatpush1.bf16.msra.mxu0 0
  %1910 = vmatprep.mubr.bf16.mxu0 0
  %1911 = vmatmul.mubr.bf16.gmra.mrb[0].mxu0 %v1855
  %v1912 = vpop.f32.mrb[0].mxu0
  %v1913 = vadd.f32 %v1827, %v1912
  %v1914 = vpop.f32.mrb[0].mxu0
  %v1915 = vpop.f32.mrb[0].mxu0
  %v1916 = vadd.f32 %v1827, %v1915
  %v1917 = vpop.f32.mrb[0].mxu0
  %1918 = vmatprep.mubr.bf16.mxu0 0
  %1919 = vmatmul.mubr.bf16.gmra.mrb[0].mxu0 %v1858
  %v1920 = vpop.f32.mrb[0].mxu0
  %v1921 = vadd.f32 %v1827, %v1920
  %v1922 = vpop.f32.mrb[0].mxu0
  %v1923 = vpop.f32.mrb[0].mxu0
  %v1924 = vadd.f32 %v1827, %v1923
  %v1925 = vpop.f32.mrb[0].mxu0
  %1926 = vmatprep.mubr.bf16.mxu0 0
  %1927 = vmatmul.mubr.bf16.gmra.mrb[0].mxu0 %v1861
  %v1928 = vpop.f32.mrb[0].mxu0
  %v1929 = vadd.f32 %v1827, %v1928
  %v1930 = vpop.f32.mrb[0].mxu0
  %v1931 = vpop.f32.mrb[0].mxu0
  %v1932 = vadd.f32 %v1827, %v1931
  %v1933 = vpop.f32.mrb[0].mxu0
  %1934 = vmatprep.mubr.bf16.mxu0 0
  %1935 = vmatmul.mubr.bf16.gmra.mrb[0].mxu0 %v1864
  %v1936 = vpop.f32.mrb[0].mxu0
  %v1937 = vadd.f32 %v1827, %v1936
  %v1938 = vpop.f32.mrb[0].mxu0
  %v1939 = vpop.f32.mrb[0].mxu0
  %v1940 = vadd.f32 %v1827, %v1939
  %v1941 = vpop.f32.mrb[0].mxu0
  %1942 = vmatprep.mubr.bf16.mxu0 0
  %1943 = vmatmul.mubr.bf16.gmra.mrb[0].mxu0 %v1867
  %v1944 = vpop.f32.mrb[0].mxu0
  %v1945 = vadd.f32 %v1827, %v1944
  %v1946 = vpop.f32.mrb[0].mxu0
  %v1947 = vpop.f32.mrb[0].mxu0
  %v1948 = vadd.f32 %v1827, %v1947
  %v1949 = vpop.f32.mrb[0].mxu0
  %1950 = vmatprep.mubr.bf16.mxu0 0
  %1951 = vmatmul.mubr.bf16.gmra.mrb[0].mxu0 %v1870
  %v1952 = vpop.f32.mrb[0].mxu0
  %v1953 = vadd.f32 %v1827, %v1952
  %v1954 = vpop.f32.mrb[0].mxu0
  %v1955 = vpop.f32.mrb[0].mxu0
  %v1956 = vadd.f32 %v1827, %v1955
  %v1957 = vpop.f32.mrb[0].mxu0
  %1958 = vmatprep.mubr.bf16.mxu0 0
  %1959 = vmatmul.mubr.bf16.gmra.mrb[0].mxu0 %v1873
  %v1960 = vpop.f32.mrb[0].mxu0
  %v1961 = vadd.f32 %v1827, %v1960
  %v1962 = vpop.f32.mrb[0].mxu0
  %v1963 = vpop.f32.mrb[0].mxu0
  %v1964 = vadd.f32 %v1827, %v1963
  %v1965 = vpop.f32.mrb[0].mxu0
  %1966 = vmatprep.mubr.bf16.mxu0 0
  %1967 = vmatmul.mubr.bf16.gmra.mrb[0].mxu0 %v1876
  %v1968 = vpop.f32.mrb[0].mxu0
  %v1969 = vadd.f32 %v1827, %v1968
  %v1970 = vpop.f32.mrb[0].mxu0
  %v1971 = vpop.f32.mrb[0].mxu0
  %v1972 = vadd.f32 %v1827, %v1971
  %v1973 = vpop.f32.mrb[0].mxu0
  %1974 = vdwg.mxu0
  %v1975 = vld [vmem:[#allocation2] sm:$0xff]
  %v1976 = vld [vmem:[#allocation2 + $0x8] sm:$0xf]
  %v1977 = vld [vmem:[%s7] sm:$0xf]
  %v1978 = vld [vmem:[%s7 + $0x4] sm:$0x3]
  %v1979 = vpack.c.bf16 %v1916, %v1913
  %v1980 = vpack.c.bf16 %v1924, %v1921
  %v1981 = vpack.c.bf16 %v1932, %v1929
  %v1982 = vpack.c.bf16 %v1940, %v1937
  %v1983 = vpack.c.bf16 %v1948, %v1945
  %v1984 = vpack.c.bf16 %v1956, %v1953
  %v1985 = vpack.c.bf16 %v1964, %v1961
  %v1986 = vpack.c.bf16 %v1972, %v1969
  %v1989 = vunpack.c.l.b16 %v1977
  %v1990 = vunpack.c.l.b16 %v1978
  %v1991 = vpack.c.b16 %v1990, %v1989
  %1993 = vmatprep.subr.bf16.mxu0 0
  %1994 = vmatpush1.bf16.msra.mxu0 %v1979
  %1995 = vmatprep.subr.bf16.mxu0 0
  %1996 = vmatpush1.bf16.msra.mxu0 %v1980
  %1997 = vmatprep.subr.bf16.mxu0 0
  %1998 = vmatpush1.bf16.msra.mxu0 %v1981
  %1999 = vmatprep.subr.bf16.mxu0 0
  %2000 = vmatpush1.bf16.msra.mxu0 %v1982
  %2001 = vmatprep.subr.bf16.mxu0 0
  %2002 = vmatpush1.bf16.msra.mxu0 %v1983
  %2003 = vmatprep.subr.bf16.mxu0 0
  %2004 = vmatpush1.bf16.msra.mxu0 %v1984
  %2005 = vmatprep.subr.bf16.mxu0 0
  %2006 = vmatpush1.bf16.msra.mxu0 %v1985
  %2007 = vmatprep.subr.bf16.mxu0 0
  %2008 = vmatpush1.bf16.msra.mxu0 %v1986
  %2009 = vmatprep.subr.bf16.mxu0 0
  %2010 = vmatpush1.bf16.msra.mxu0 0
  %2011 = vmatprep.subr.bf16.mxu0 0
  %2012 = vmatpush1.bf16.msra.mxu0 0
  %2013 = vmatprep.subr.bf16.mxu0 0
  %2014 = vmatpush1.bf16.msra.mxu0 0
  %2015 = vmatprep.subr.bf16.mxu0 0
  %2016 = vmatpush1.bf16.msra.mxu0 0
  %2017 = vmatprep.subr.bf16.mxu0 0
  %2018 = vmatpush1.bf16.msra.mxu0 0
  %2019 = vmatprep.subr.bf16.mxu0 0
  %2020 = vmatpush1.bf16.msra.mxu0 0
  %2021 = vmatprep.subr.bf16.mxu0 0
  %2022 = vmatpush1.bf16.msra.mxu0 0
  %2023 = vmatprep.subr.bf16.mxu0 0
  %2024 = vmatpush1.bf16.msra.mxu0 0
  %2025 = vmatprep.mubr.bf16.mxu0 0
  %2026 = vmatmul.mubr.bf16.gmra.mrb[0].mxu0 %v1991
  %v2027 = vpop.f32.mrb[0].mxu0
  %v2028 = vadd.f32 0.0, %v2027
  %v2029 = vpop.f32.mrb[0].mxu0
  %v2030 = vpop.f32.mrb[0].mxu0
  %v2031 = vadd.f32 0.0, %v2030
  %v2032 = vpop.f32.mrb[0].mxu0
  %2033 = vdwg.mxu0
  %v2034 = vadd.f32 %v1975, %v2028
  %v2035 = vadd.f32 %v1976, %v2031
  %2036 = vst.msk [vmem:[#allocation2] sm:$0xff] %vm1853, %v2034
  %vm2037 = vcmask 519168
  %2038 = vst.msk [vmem:[#allocation2 + $0x8] sm:$0xf] %vm2037, %v2035
  // Predicated region
  $region126: #{net_forward.16} parent=0 // pred_check
    %p2039 = pneg %p132
  $region127: #{net_forward.16} parent=0 // pred_check_branch
    %2041 = sbr.rel (%p2039) target = $region129
  $region128: #{net_forward.16} parent=0 // pred_region
    %v2042 = vld [vmem:[#allocation2] sm:$0xff]
    %v2043 = vld [vmem:[#allocation2 + $0x8] sm:$0xf]
    %v2044 = vld [vmem:[%s15] sm:$0xff]
    %v2045 = vld [vmem:[%s15 + $0x8] sm:$0xf]
    %2047 = vset.pattern.permute.xlu0 0
    %2048 = vperm.xlu0 %2047, %v2044
    %v2049 = vpop.permute.xlu0 %2048
    %2052 = vset.pattern.permute.xlu0 0
    %2053 = vperm.xlu0 %2052, %v2045
    %v2054 = vpop.permute.xlu0 %2053
    %v2056 = vmul.f32 %v2042, %v2049
    %v2057 = vmul.f32 %v2043, %v2054
    %v2058 = vld [vmem:[%s41] sm:$0xf]
    %v2059 = vld [vmem:[%s41 + $0x4] sm:$0xf]
    %v2060 = vld [vmem:[%s43] sm:$0xf]
    %v2061 = vld [vmem:[%s43 + $0x4] sm:$0xf]
    %v2062 = vld [vmem:[%s43 + $0x8] sm:$0xf]
    %v2063 = vld [vmem:[%s43 + $0xc] sm:$0xf]
    %v2064 = vld [vmem:[%s43 + $0x10] sm:$0xf]
    %v2065 = vld [vmem:[%s43 + $0x14] sm:$0xf]
    %v2066 = vld [vmem:[%s43 + $0x18] sm:$0xf]
    %v2067 = vld [vmem:[%s43 + $0x1c] sm:$0xf]
    %v2068 = vpack.c.bf16 %v2057, %v2056
    %v2077 = vunpack.c.l.b16 %v2060
    %v2078 = vunpack.c.l.b16 %v2061
    %v2079 = vunpack.c.l.b16 %v2062
    %v2080 = vunpack.c.l.b16 %v2063
    %v2081 = vunpack.c.l.b16 %v2064
    %v2082 = vunpack.c.l.b16 %v2065
    %v2083 = vunpack.c.l.b16 %v2066
    %v2084 = vunpack.c.l.b16 %v2067
    %v2085 = vpack.c.b16 %v2078, %v2077
    %v2086 = vpack.c.b16 %v2080, %v2079
    %v2087 = vpack.c.b16 %v2082, %v2081
    %v2088 = vpack.c.b16 %v2084, %v2083
    %v2094 = vsel %vm1853, %v2068, 0
    %2096 = vmatprep.subr.bf16.mxu0 0
    %2097 = vmatpush1.bf16.msra.mxu0 %v2085
    %2098 = vmatprep.subr.bf16.mxu0 0
    %2099 = vmatpush1.bf16.msra.mxu0 %v2086
    %2100 = vmatprep.subr.bf16.mxu0 0
    %2101 = vmatpush1.bf16.msra.mxu0 %v2087
    %2102 = vmatprep.subr.bf16.mxu0 0
    %2103 = vmatpush1.bf16.msra.mxu0 %v2088
    %2104 = vmatprep.subr.bf16.mxu0 0
    %2105 = vmatpush1.bf16.msra.mxu0 0
    %2106 = vmatprep.subr.bf16.mxu0 0
    %2107 = vmatpush1.bf16.msra.mxu0 0
    %2108 = vmatprep.subr.bf16.mxu0 0
    %2109 = vmatpush1.bf16.msra.mxu0 0
    %2110 = vmatprep.subr.bf16.mxu0 0
    %2111 = vmatpush1.bf16.msra.mxu0 0
    %2112 = vmatprep.subr.bf16.mxu0 0
    %2113 = vmatpush1.bf16.msra.mxu0 0
    %2114 = vmatprep.subr.bf16.mxu0 0
    %2115 = vmatpush1.bf16.msra.mxu0 0
    %2116 = vmatprep.subr.bf16.mxu0 0
    %2117 = vmatpush1.bf16.msra.mxu0 0
    %2118 = vmatprep.subr.bf16.mxu0 0
    %2119 = vmatpush1.bf16.msra.mxu0 0
    %2120 = vmatprep.subr.bf16.mxu0 0
    %2121 = vmatpush1.bf16.msra.mxu0 0
    %2122 = vmatprep.subr.bf16.mxu0 0
    %2123 = vmatpush1.bf16.msra.mxu0 0
    %2124 = vmatprep.subr.bf16.mxu0 0
    %2125 = vmatpush1.bf16.msra.mxu0 0
    %2126 = vmatprep.subr.bf16.mxu0 0
    %2127 = vmatpush1.bf16.msra.mxu0 0
    %2128 = vmatprep.mubr.bf16.mxu0 0
    %2129 = vmatmul.mubr.bf16.gmra.mrb[0].mxu0 %v2094
    %v2130 = vpop.f32.mrb[0].mxu0
    %v2131 = vadd.f32 0.0, %v2130
    %v2132 = vpop.f32.mrb[0].mxu0
    %v2133 = vpop.f32.mrb[0].mxu0
    %v2134 = vadd.f32 0.0, %v2133
    %v2135 = vpop.f32.mrb[0].mxu0
    %2136 = vdwg.mxu0
    %v2139 = vunpack.c.l.b16 %v2058
    %v2140 = vunpack.c.l.b16 %v2059
    %v2141 = vpack.c.b16 %v2140, %v2139
    %v2143 = vsel %vm528, %v158, 0
    %2145 = vmatprep.subr.bf16.mxu0 0
    %2146 = vmatpush1.bf16.msra.mxu0 %v2141
    %2147 = vmatprep.subr.bf16.mxu0 0
    %2148 = vmatpush1.bf16.msra.mxu0 0
    %2149 = vmatprep.subr.bf16.mxu0 0
    %2150 = vmatpush1.bf16.msra.mxu0 0
    %2151 = vmatprep.subr.bf16.mxu0 0
    %2152 = vmatpush1.bf16.msra.mxu0 0
    %2153 = vmatprep.subr.bf16.mxu0 0
    %2154 = vmatpush1.bf16.msra.mxu0 0
    %2155 = vmatprep.subr.bf16.mxu0 0
    %2156 = vmatpush1.bf16.msra.mxu0 0
    %2157 = vmatprep.subr.bf16.mxu0 0
    %2158 = vmatpush1.bf16.msra.mxu0 0
    %2159 = vmatprep.subr.bf16.mxu0 0
    %2160 = vmatpush1.bf16.msra.mxu0 0
    %2161 = vmatprep.subr.bf16.mxu0 0
    %2162 = vmatpush1.bf16.msra.mxu0 0
    %2163 = vmatprep.subr.bf16.mxu0 0
    %2164 = vmatpush1.bf16.msra.mxu0 0
    %2165 = vmatprep.subr.bf16.mxu0 0
    %2166 = vmatpush1.bf16.msra.mxu0 0
    %2167 = vmatprep.subr.bf16.mxu0 0
    %2168 = vmatpush1.bf16.msra.mxu0 0
    %2169 = vmatprep.subr.bf16.mxu0 0
    %2170 = vmatpush1.bf16.msra.mxu0 0
    %2171 = vmatprep.subr.bf16.mxu0 0
    %2172 = vmatpush1.bf16.msra.mxu0 0
    %2173 = vmatprep.subr.bf16.mxu0 0
    %2174 = vmatpush1.bf16.msra.mxu0 0
    %2175 = vmatprep.subr.bf16.mxu0 0
    %2176 = vmatpush1.bf16.msra.mxu0 0
    %2177 = vmatprep.mubr.bf16.mxu0 0
    %2178 = vmatmul.mubr.bf16.gmra.mrb[0].mxu0 %v2143
    %v2179 = vpop.f32.mrb[0].mxu0
    %v2180 = vadd.f32 %v2131, %v2179
    %v2181 = vpop.f32.mrb[0].mxu0
    %v2182 = vpop.f32.mrb[0].mxu0
    %v2183 = vadd.f32 %v2134, %v2182
    %v2184 = vpop.f32.mrb[0].mxu0
    %2185 = vdwg.mxu0
    %v2186 = vld [vmem:[%s45] sm:$0x1]
    %v2188 = vlaneseq
    %v2189 = vshrl.u32 %v2188, 7
    %v2190 = vsub.s32 0, %v2189
    %v2191 = vrot.slane %v2186, %v2190
    %v2193 = vadd.f32 %v2180, %v2191
    %v2194 = vadd.f32 %v2183, %v2191
    %vm2195 = vcmp.gt.f32.partialorder %v2193, 0.0
    %vm2196 = vcmp.gt.f32.partialorder %v2194, 0.0
    %v2197 = vmin.f32 %v2193, 0.0
    %v2198 = vmin.f32 %v2194, 0.0
    %v2199 = vmul.f32 %v2197, 1.442695
    %v2200 = vpow.pop %v2199
    %v2201 = vmul.f32 %v2198, 1.442695
    %v2202 = vpow.pop %v2201
    %v2203 = vsub.f32 %v2200, 1.0
    %v2204 = vsub.f32 %v2202, 1.0
    %v2205 = vsel %vm2195, %v2193, %v2203
    %v2206 = vsel %vm2196, %v2194, %v2204
    %v2207 = vld [vmem:[%s47] sm:$0xf]
    %v2208 = vld [vmem:[%s47 + $0x4] sm:$0xf]
    %v2209 = vld [vmem:[%s47 + $0x8] sm:$0xf]
    %v2210 = vld [vmem:[%s47 + $0xc] sm:$0xf]
    %v2211 = vld [vmem:[%s47 + $0x10] sm:$0xf]
    %v2212 = vld [vmem:[%s47 + $0x14] sm:$0xf]
    %v2213 = vld [vmem:[%s47 + $0x18] sm:$0xf]
    %v2214 = vld [vmem:[%s47 + $0x1c] sm:$0xf]
    %v2215 = vpack.c.bf16 %v2206, %v2205
    %v2216 = vld [vmem:[%s49] sm:$0x1]
    %v2218 = vlaneseq
    %v2219 = vshrl.u32 %v2218, 7
    %v2220 = vsub.s32 0, %v2219
    %v2221 = vrot.slane %v2216, %v2220
    %v2231 = vunpack.c.l.b16 %v2207
    %v2232 = vunpack.c.l.b16 %v2208
    %v2233 = vunpack.c.l.b16 %v2209
    %v2234 = vunpack.c.l.b16 %v2210
    %v2235 = vunpack.c.l.b16 %v2211
    %v2236 = vunpack.c.l.b16 %v2212
    %v2237 = vunpack.c.l.b16 %v2213
    %v2238 = vunpack.c.l.b16 %v2214
    %v2239 = vpack.c.b16 %v2232, %v2231
    %v2240 = vpack.c.b16 %v2234, %v2233
    %v2241 = vpack.c.b16 %v2236, %v2235
    %v2242 = vpack.c.b16 %v2238, %v2237
    %v2248 = vsel %vm1853, %v2215, 0
    %2250 = vmatprep.subr.bf16.mxu0 0
    %2251 = vmatpush1.bf16.msra.mxu0 %v2239
    %2252 = vmatprep.subr.bf16.mxu0 0
    %2253 = vmatpush1.bf16.msra.mxu0 %v2240
    %2254 = vmatprep.subr.bf16.mxu0 0
    %2255 = vmatpush1.bf16.msra.mxu0 %v2241
    %2256 = vmatprep.subr.bf16.mxu0 0
    %2257 = vmatpush1.bf16.msra.mxu0 %v2242
    %2258 = vmatprep.subr.bf16.mxu0 0
    %2259 = vmatpush1.bf16.msra.mxu0 0
    %2260 = vmatprep.subr.bf16.mxu0 0
    %2261 = vmatpush1.bf16.msra.mxu0 0
    %2262 = vmatprep.subr.bf16.mxu0 0
    %2263 = vmatpush1.bf16.msra.mxu0 0
    %2264 = vmatprep.subr.bf16.mxu0 0
    %2265 = vmatpush1.bf16.msra.mxu0 0
    %2266 = vmatprep.subr.bf16.mxu0 0
    %2267 = vmatpush1.bf16.msra.mxu0 0
    %2268 = vmatprep.subr.bf16.mxu0 0
    %2269 = vmatpush1.bf16.msra.mxu0 0
    %2270 = vmatprep.subr.bf16.mxu0 0
    %2271 = vmatpush1.bf16.msra.mxu0 0
    %2272 = vmatprep.subr.bf16.mxu0 0
    %2273 = vmatpush1.bf16.msra.mxu0 0
    %2274 = vmatprep.subr.bf16.mxu0 0
    %2275 = vmatpush1.bf16.msra.mxu0 0
    %2276 = vmatprep.subr.bf16.mxu0 0
    %2277 = vmatpush1.bf16.msra.mxu0 0
    %2278 = vmatprep.subr.bf16.mxu0 0
    %2279 = vmatpush1.bf16.msra.mxu0 0
    %2280 = vmatprep.subr.bf16.mxu0 0
    %2281 = vmatpush1.bf16.msra.mxu0 0
    %2282 = vmatprep.mubr.bf16.mxu0 0
    %2283 = vmatmul.mubr.bf16.gmra.mrb[0].mxu0 %v2248
    %v2284 = vpop.f32.mrb[0].mxu0
    %v2285 = vadd.f32 %v2221, %v2284
    %v2286 = vpop.f32.mrb[0].mxu0
    %v2287 = vpop.f32.mrb[0].mxu0
    %v2288 = vadd.f32 %v2221, %v2287
    %v2289 = vpop.f32.mrb[0].mxu0
    %2290 = vdwg.mxu0
    %2291 = vst.msk [vmem:[%s61] sm:$0xff] %vm1107, %v2285
    %vm2292 = vcmask 257024
    %2293 = vst.msk [vmem:[%s61 + $0x8] sm:$0xf] %vm2292, %v2288
    %v2294 = vld [vmem:[%s13] sm:$0x1]
    %v2295 = vpack.c.bf16 %v2288, %v2285
    %v2297 = vsel %vm199, %v2294, 0
    %v2300 = vsel %vm224, %v2295, 0
    %2302 = vmatprep.subr.bf16.mxu0 0
    %2303 = vmatpush1.bf16.msra.mxu0 %v2300
    %2304 = vmatprep.subr.bf16.mxu0 0
    %2305 = vmatpush1.bf16.msra.mxu0 0
    %2306 = vmatprep.subr.bf16.mxu0 0
    %2307 = vmatpush1.bf16.msra.mxu0 0
    %2308 = vmatprep.subr.bf16.mxu0 0
    %2309 = vmatpush1.bf16.msra.mxu0 0
    %2310 = vmatprep.subr.bf16.mxu0 0
    %2311 = vmatpush1.bf16.msra.mxu0 0
    %2312 = vmatprep.subr.bf16.mxu0 0
    %2313 = vmatpush1.bf16.msra.mxu0 0
    %2314 = vmatprep.subr.bf16.mxu0 0
    %2315 = vmatpush1.bf16.msra.mxu0 0
    %2316 = vmatprep.subr.bf16.mxu0 0
    %2317 = vmatpush1.bf16.msra.mxu0 0
    %2318 = vmatprep.subr.bf16.mxu0 0
    %2319 = vmatpush1.bf16.msra.mxu0 0
    %2320 = vmatprep.subr.bf16.mxu0 0
    %2321 = vmatpush1.bf16.msra.mxu0 0
    %2322 = vmatprep.subr.bf16.mxu0 0
    %2323 = vmatpush1.bf16.msra.mxu0 0
    %2324 = vmatprep.subr.bf16.mxu0 0
    %2325 = vmatpush1.bf16.msra.mxu0 0
    %2326 = vmatprep.subr.bf16.mxu0 0
    %2327 = vmatpush1.bf16.msra.mxu0 0
    %2328 = vmatprep.subr.bf16.mxu0 0
    %2329 = vmatpush1.bf16.msra.mxu0 0
    %2330 = vmatprep.subr.bf16.mxu0 0
    %2331 = vmatpush1.bf16.msra.mxu0 0
    %2332 = vmatprep.subr.bf16.mxu0 0
    %2333 = vmatpush1.bf16.msra.mxu0 0
    %2334 = vmatprep.mubr.bf16.mxu0 0
    %2335 = vmatmul.mubr.bf16.gmra.mrb[0].mxu0 %v2297
    %v2336 = vpop.f32.mrb[0].mxu0
    %v2337 = vadd.f32 0.0, %v2336
    %v2338 = vpop.f32.mrb[0].mxu0
    %v2339 = vpop.f32.mrb[0].mxu0
    %v2340 = vpop.f32.mrb[0].mxu0
    %2341 = vdwg.mxu0
    %v2342 = vld [vmem:[%s17] sm:$0x3]
    %2344 = vset.pattern.permute.xlu0 0
    %2345 = vperm.xlu0 %2344, %v2342
    %v2346 = vpop.permute.xlu0 %2345
    %v2348 = vmul.f32 %v2337, %v2346
    %v2349 = vld [vmem:[%s11] sm:$0x3]
    %v2350 = vld [vmem:[%s51] sm:$0xf]
    %v2351 = vld [vmem:[%s51 + $0x4] sm:$0xf]
    %v2352 = vld [vmem:[%s51 + $0x8] sm:$0xf]
    %v2353 = vld [vmem:[%s51 + $0xc] sm:$0xf]
    %v2354 = vpack.c.bf16 %v2349, %v2349
    %v2355 = vld [vmem:[%s53] sm:$0xf]
    %v2356 = vld [vmem:[%s53 + $0x4] sm:$0xf]
    %v2357 = vld [vmem:[%s53 + $0x8] sm:$0xf]
    %v2358 = vld [vmem:[%s53 + $0xc] sm:$0xf]
    %v2359 = vpack.c.bf16 %v2348, %v2348
    %v2364 = vunpack.c.l.b16 %v2355
    %v2365 = vunpack.c.l.b16 %v2356
    %v2366 = vunpack.c.l.b16 %v2357
    %v2367 = vunpack.c.l.b16 %v2358
    %v2368 = vpack.c.b16 %v2365, %v2364
    %v2369 = vpack.c.b16 %v2367, %v2366
    %v2373 = vsel %vm1107, %v2359, 0
    %2375 = vmatprep.subr.bf16.mxu0 0
    %2376 = vmatpush1.bf16.msra.mxu0 %v2368
    %2377 = vmatprep.subr.bf16.mxu0 0
    %2378 = vmatpush1.bf16.msra.mxu0 %v2369
    %2379 = vmatprep.subr.bf16.mxu0 0
    %2380 = vmatpush1.bf16.msra.mxu0 0
    %2381 = vmatprep.subr.bf16.mxu0 0
    %2382 = vmatpush1.bf16.msra.mxu0 0
    %2383 = vmatprep.subr.bf16.mxu0 0
    %2384 = vmatpush1.bf16.msra.mxu0 0
    %2385 = vmatprep.subr.bf16.mxu0 0
    %2386 = vmatpush1.bf16.msra.mxu0 0
    %2387 = vmatprep.subr.bf16.mxu0 0
    %2388 = vmatpush1.bf16.msra.mxu0 0
    %2389 = vmatprep.subr.bf16.mxu0 0
    %2390 = vmatpush1.bf16.msra.mxu0 0
    %2391 = vmatprep.subr.bf16.mxu0 0
    %2392 = vmatpush1.bf16.msra.mxu0 0
    %2393 = vmatprep.subr.bf16.mxu0 0
    %2394 = vmatpush1.bf16.msra.mxu0 0
    %2395 = vmatprep.subr.bf16.mxu0 0
    %2396 = vmatpush1.bf16.msra.mxu0 0
    %2397 = vmatprep.subr.bf16.mxu0 0
    %2398 = vmatpush1.bf16.msra.mxu0 0
    %2399 = vmatprep.subr.bf16.mxu0 0
    %2400 = vmatpush1.bf16.msra.mxu0 0
    %2401 = vmatprep.subr.bf16.mxu0 0
    %2402 = vmatpush1.bf16.msra.mxu0 0
    %2403 = vmatprep.subr.bf16.mxu0 0
    %2404 = vmatpush1.bf16.msra.mxu0 0
    %2405 = vmatprep.subr.bf16.mxu0 0
    %2406 = vmatpush1.bf16.msra.mxu0 0
    %2407 = vmatprep.mubr.bf16.mxu0 0
    %2408 = vmatmul.mubr.bf16.gmra.mrb[0].mxu0 %v2373
    %v2409 = vpop.f32.mrb[0].mxu0
    %v2410 = vadd.f32 0.0, %v2409
    %v2411 = vpop.f32.mrb[0].mxu0
    %v2412 = vpop.f32.mrb[0].mxu0
    %v2413 = vpop.f32.mrb[0].mxu0
    %2414 = vdwg.mxu0
    %v2419 = vunpack.c.l.b16 %v2350
    %v2420 = vunpack.c.l.b16 %v2351
    %v2421 = vunpack.c.l.b16 %v2352
    %v2422 = vunpack.c.l.b16 %v2353
    %v2423 = vpack.c.b16 %v2420, %v2419
    %v2424 = vpack.c.b16 %v2422, %v2421
    %v2428 = vsel %vm1107, %v2354, 0
    %2430 = vmatprep.subr.bf16.mxu0 0
    %2431 = vmatpush1.bf16.msra.mxu0 %v2423
    %2432 = vmatprep.subr.bf16.mxu0 0
    %2433 = vmatpush1.bf16.msra.mxu0 %v2424
    %2434 = vmatprep.subr.bf16.mxu0 0
    %2435 = vmatpush1.bf16.msra.mxu0 0
    %2436 = vmatprep.subr.bf16.mxu0 0
    %2437 = vmatpush1.bf16.msra.mxu0 0
    %2438 = vmatprep.subr.bf16.mxu0 0
    %2439 = vmatpush1.bf16.msra.mxu0 0
    %2440 = vmatprep.subr.bf16.mxu0 0
    %2441 = vmatpush1.bf16.msra.mxu0 0
    %2442 = vmatprep.subr.bf16.mxu0 0
    %2443 = vmatpush1.bf16.msra.mxu0 0
    %2444 = vmatprep.subr.bf16.mxu0 0
    %2445 = vmatpush1.bf16.msra.mxu0 0
    %2446 = vmatprep.subr.bf16.mxu0 0
    %2447 = vmatpush1.bf16.msra.mxu0 0
    %2448 = vmatprep.subr.bf16.mxu0 0
    %2449 = vmatpush1.bf16.msra.mxu0 0
    %2450 = vmatprep.subr.bf16.mxu0 0
    %2451 = vmatpush1.bf16.msra.mxu0 0
    %2452 = vmatprep.subr.bf16.mxu0 0
    %2453 = vmatpush1.bf16.msra.mxu0 0
    %2454 = vmatprep.subr.bf16.mxu0 0
    %2455 = vmatpush1.bf16.msra.mxu0 0
    %2456 = vmatprep.subr.bf16.mxu0 0
    %2457 = vmatpush1.bf16.msra.mxu0 0
    %2458 = vmatprep.subr.bf16.mxu0 0
    %2459 = vmatpush1.bf16.msra.mxu0 0
    %2460 = vmatprep.subr.bf16.mxu0 0
    %2461 = vmatpush1.bf16.msra.mxu0 0
    %2462 = vmatprep.mubr.bf16.mxu0 0
    %2463 = vmatmul.mubr.bf16.gmra.mrb[0].mxu0 %v2428
    %v2464 = vpop.f32.mrb[0].mxu0
    %v2465 = vadd.f32 %v2410, %v2464
    %v2466 = vpop.f32.mrb[0].mxu0
    %v2467 = vpop.f32.mrb[0].mxu0
    %v2468 = vpop.f32.mrb[0].mxu0
    %2469 = vdwg.mxu0
    %v2470 = vld [vmem:[%s55] sm:$0x1]
    %v2472 = vlaneseq
    %v2473 = vshrl.u32 %v2472, 7
    %v2474 = vsub.s32 0, %v2473
    %v2475 = vrot.slane %v2470, %v2474
    %v2477 = vadd.f32 %v2465, %v2475
    %vm2478 = vcmp.gt.f32.partialorder %v2477, 0.0
    %v2479 = vmin.f32 %v2477, 0.0
    %v2480 = vmul.f32 %v2479, 1.442695
    %v2481 = vpow.pop %v2480
    %v2482 = vsub.f32 %v2481, 1.0
    %v2483 = vsel %vm2478, %v2477, %v2482
    %v2484 = vld [vmem:[%s57] sm:$0xf]
    %v2485 = vld [vmem:[%s57 + $0x4] sm:$0xf]
    %v2486 = vld [vmem:[%s57 + $0x8] sm:$0xf]
    %v2487 = vld [vmem:[%s57 + $0xc] sm:$0xf]
    %v2488 = vld [vmem:[%s57 + $0x10] sm:$0xf]
    %v2489 = vld [vmem:[%s57 + $0x14] sm:$0xf]
    %v2490 = vld [vmem:[%s57 + $0x18] sm:$0xf]
    %v2491 = vld [vmem:[%s57 + $0x1c] sm:$0xf]
    %v2492 = vpack.c.bf16 %v2483, %v2483
    %v2493 = vld [vmem:[%s59] sm:$0x1]
    %v2495 = vlaneseq
    %v2496 = vshrl.u32 %v2495, 7
    %v2497 = vsub.s32 0, %v2496
    %v2498 = vrot.slane %v2493, %v2497
    %v2508 = vunpack.c.l.b16 %v2484
    %v2509 = vunpack.c.l.b16 %v2485
    %v2510 = vunpack.c.l.b16 %v2486
    %v2511 = vunpack.c.l.b16 %v2487
    %v2512 = vunpack.c.l.b16 %v2488
    %v2513 = vunpack.c.l.b16 %v2489
    %v2514 = vunpack.c.l.b16 %v2490
    %v2515 = vunpack.c.l.b16 %v2491
    %v2516 = vpack.c.b16 %v2509, %v2508
    %v2517 = vpack.c.b16 %v2511, %v2510
    %v2518 = vpack.c.b16 %v2513, %v2512
    %v2519 = vpack.c.b16 %v2515, %v2514
    %v2525 = vsel %vm1853, %v2492, 0
    %2527 = vmatprep.subr.bf16.mxu0 0
    %2528 = vmatpush1.bf16.msra.mxu0 %v2516
    %2529 = vmatprep.subr.bf16.mxu0 0
    %2530 = vmatpush1.bf16.msra.mxu0 %v2517
    %2531 = vmatprep.subr.bf16.mxu0 0
    %2532 = vmatpush1.bf16.msra.mxu0 %v2518
    %2533 = vmatprep.subr.bf16.mxu0 0
    %2534 = vmatpush1.bf16.msra.mxu0 %v2519
    %2535 = vmatprep.subr.bf16.mxu0 0
    %2536 = vmatpush1.bf16.msra.mxu0 0
    %2537 = vmatprep.subr.bf16.mxu0 0
    %2538 = vmatpush1.bf16.msra.mxu0 0
    %2539 = vmatprep.subr.bf16.mxu0 0
    %2540 = vmatpush1.bf16.msra.mxu0 0
    %2541 = vmatprep.subr.bf16.mxu0 0
    %2542 = vmatpush1.bf16.msra.mxu0 0
    %2543 = vmatprep.subr.bf16.mxu0 0
    %2544 = vmatpush1.bf16.msra.mxu0 0
    %2545 = vmatprep.subr.bf16.mxu0 0
    %2546 = vmatpush1.bf16.msra.mxu0 0
    %2547 = vmatprep.subr.bf16.mxu0 0
    %2548 = vmatpush1.bf16.msra.mxu0 0
    %2549 = vmatprep.subr.bf16.mxu0 0
    %2550 = vmatpush1.bf16.msra.mxu0 0
    %2551 = vmatprep.subr.bf16.mxu0 0
    %2552 = vmatpush1.bf16.msra.mxu0 0
    %2553 = vmatprep.subr.bf16.mxu0 0
    %2554 = vmatpush1.bf16.msra.mxu0 0
    %2555 = vmatprep.subr.bf16.mxu0 0
    %2556 = vmatpush1.bf16.msra.mxu0 0
    %2557 = vmatprep.subr.bf16.mxu0 0
    %2558 = vmatpush1.bf16.msra.mxu0 0
    %2559 = vmatprep.mubr.bf16.mxu0 0
    %2560 = vmatmul.mubr.bf16.gmra.mrb[0].mxu0 %v2525
    %v2561 = vpop.f32.mrb[0].mxu0
    %v2562 = vadd.f32 %v2498, %v2561
    %v2563 = vpop.f32.mrb[0].mxu0
    %v2564 = vpop.f32.mrb[0].mxu0
    %v2565 = vpop.f32.mrb[0].mxu0
    %2566 = vdwg.mxu0
    %vm2567 = vcmask 254976
    %2568 = vst.msk [vmem:[%s65] sm:$0x3] %vm2567, %v2562
  $region129: #{net_forward.16} parent=0 // pred_fallthru
    _
  // Predicated region
  $region130: #{net_forward.16} parent=0 // pred_check
    _
  $region131: #{net_forward.16} parent=0 // pred_check_branch
    %2570 = sbr.rel (0) target = $region133
  $region132: #{net_forward.16} parent=0 // pred_region
    _
  $region133: #{net_forward.16} parent=0 // pred_fallthru
    _
  // Predicated region
  $region134: #{net_forward.16} parent=0 // pred_check
    _
  $region135: #{net_forward.16} parent=0 // pred_check_branch
    %2572 = sbr.rel (0) target = $region137
  $region136: #{net_forward.16} parent=0 // pred_region
    _
  $region137: #{net_forward.16} parent=0 // pred_fallthru
    _
  // Predicated region
  $region138: #{net_forward.16} parent=0 // pred_check
    _
  $region139: #{net_forward.16} parent=0 // pred_check_branch
    %2574 = sbr.rel (0) target = $region141
  $region140: #{net_forward.16} parent=0 // pred_region
    _
  $region141: #{net_forward.16} parent=0 // pred_fallthru
    _
  // Predicated region
  $region142: #{net_forward.16} parent=0 // pred_check
    _
  $region143: #{net_forward.16} parent=0 // pred_check_branch
    %2576 = sbr.rel (0) target = $region145
  $region144: #{net_forward.16} parent=0 // pred_region
    _
  $region145: #{net_forward.16} parent=0 // pred_fallthru
    _
  // Predicated region
  $region146: #{net_forward.16} parent=0 // pred_check
    _
  $region147: #{net_forward.16} parent=0 // pred_check_branch
    %2578 = sbr.rel (0) target = $region149
  $region148: #{net_forward.16} parent=0 // pred_region
    _
  $region149: #{net_forward.16} parent=0 // pred_fallthru
    _
  // Predicated region
  $region150: #{net_forward.16} parent=0 // pred_check
    _
  $region151: #{net_forward.16} parent=0 // pred_check_branch
    %2580 = sbr.rel (0) target = $region153
  $region152: #{net_forward.16} parent=0 // pred_region
    _
  $region153: #{net_forward.16} parent=0 // pred_fallthru
    _

// kernel: net_forward.17
$region0: #{net_forward.17}
  #allocation0 [shape = 'u32[]', space=smem, size = 0x4, offset = 0x4, fixed_abs, tag = 'smem constant byte address 0x4 - core index']
  #allocation1 [shape = 'u32[144,128]{1,0:T(1,128)}', space=vmem, size = 0x12000, scoped, tag = 'internal scratch']
  #allocation2 [shape = 'f32[12,64]{1,0:T(8,128)}', space=vmem, size = 0x2000, scoped, tag = 'scratch operand']
  %s0 = inlined_call_operand.smem [shape: u32[33], index: -1, kind: input, shape index: {}]
  %s1 = sld [smem:[%s0]]
  %s2 = scalar_lea.smem %s0, 1
  %s3 = sld [smem:[%s2]]
  %s4 = scalar_lea.smem %s0, 2
  %s5 = sld [smem:[%s4]]
  %s6 = scalar_lea.smem %s0, 3
  %s7 = sld [smem:[%s6]]
  %s8 = scalar_lea.smem %s0, 4
  %s9 = sld [smem:[%s8]]
  %s10 = scalar_lea.smem %s0, 5
  %s11 = sld [smem:[%s10]]
  %s12 = scalar_lea.smem %s0, 6
  %s13 = sld [smem:[%s12]]
  %s14 = scalar_lea.smem %s0, 7
  %s15 = sld [smem:[%s14]]
  %s16 = scalar_lea.smem %s0, 8
  %s17 = sld [smem:[%s16]]
  %s18 = scalar_lea.smem %s0, 9
  %s19 = sld [smem:[%s18]]
  %s20 = scalar_lea.smem %s0, 10
  %s21 = sld [smem:[%s20]]
  %s22 = scalar_lea.smem %s0, 11
  %s23 = sld [smem:[%s22]]
  %s24 = scalar_lea.smem %s0, 12
  %s25 = sld [smem:[%s24]]
  %s26 = scalar_lea.smem %s0, 13
  %s27 = sld [smem:[%s26]]
  %s28 = scalar_lea.smem %s0, 14
  %s29 = sld [smem:[%s28]]
  %s30 = scalar_lea.smem %s0, 15
  %s31 = sld [smem:[%s30]]
  %s32 = scalar_lea.smem %s0, 16
  %s33 = sld [smem:[%s32]]
  %s34 = scalar_lea.smem %s0, 17
  %s35 = sld [smem:[%s34]]
  %s36 = scalar_lea.smem %s0, 18
  %s37 = sld [smem:[%s36]]
  %s38 = scalar_lea.smem %s0, 19
  %s39 = sld [smem:[%s38]]
  %s40 = scalar_lea.smem %s0, 20
  %s41 = sld [smem:[%s40]]
  %s42 = scalar_lea.smem %s0, 21
  %s43 = sld [smem:[%s42]]
  %s44 = scalar_lea.smem %s0, 22
  %s45 = sld [smem:[%s44]]
  %s46 = scalar_lea.smem %s0, 23
  %s47 = sld [smem:[%s46]]
  %s48 = scalar_lea.smem %s0, 24
  %s49 = sld [smem:[%s48]]
  %s50 = scalar_lea.smem %s0, 25
  %s51 = sld [smem:[%s50]]
  %s52 = scalar_lea.smem %s0, 26
  %s53 = sld [smem:[%s52]]
  %s54 = scalar_lea.smem %s0, 27
  %s55 = sld [smem:[%s54]]
  %s56 = scalar_lea.smem %s0, 28
  %s57 = sld [smem:[%s56]]
  %s58 = scalar_lea.smem %s0, 29
  %s59 = sld [smem:[%s58]]
  %s60 = scalar_lea.smem %s0, 30
  %s61 = sld [smem:[%s60]]
  %s62 = scalar_lea.smem %s0, 31
  %s63 = sld [smem:[%s62]]
  %s64 = scalar_lea.smem %s0, 32
  %s65 = sld [smem:[%s64]]
  %66 = xla_tuple %s61, %s63, %s65
  %s67 = sld [smem:[#allocation0]]
  $region154: #{net_forward.17} parent=0
    _
  %s69 = ssub.s32 1, %s67
  %s70 = scalar_select 0, %s69, %s67
  // Predicated region
  $region2: #{net_forward.17} parent=0 // pred_check
    _
  $region3: #{net_forward.17} parent=0 // pred_check_branch
    %72 = sbr.rel (0) target = $region5
  $region4: #{net_forward.17} parent=0 // pred_region
    _
  $region5: #{net_forward.17} parent=0 // pred_fallthru
    _
  // Predicated region
  $region6: #{net_forward.17} parent=0 // pred_check
    _
  $region7: #{net_forward.17} parent=0 // pred_check_branch
    %74 = sbr.rel (0) target = $region9
  $region8: #{net_forward.17} parent=0 // pred_region
    _
  $region9: #{net_forward.17} parent=0 // pred_fallthru
    _
  // Predicated region
  $region10: #{net_forward.17} parent=0 // pred_check
    _
  $region11: #{net_forward.17} parent=0 // pred_check_branch
    %76 = sbr.rel (0) target = $region13
  $region12: #{net_forward.17} parent=0 // pred_region
    _
  $region13: #{net_forward.17} parent=0 // pred_fallthru
    _
  // Predicated region
  $region14: #{net_forward.17} parent=0 // pred_check
    _
  $region15: #{net_forward.17} parent=0 // pred_check_branch
    %78 = sbr.rel (0) target = $region17
  $region16: #{net_forward.17} parent=0 // pred_region
    _
  $region17: #{net_forward.17} parent=0 // pred_fallthru
    _
  // Predicated region
  $region18: #{net_forward.17} parent=0 // pred_check
    _
  $region19: #{net_forward.17} parent=0 // pred_check_branch
    %80 = sbr.rel (0) target = $region21
  $region20: #{net_forward.17} parent=0 // pred_region
    _
  $region21: #{net_forward.17} parent=0 // pred_fallthru
    _
  // Predicated region
  $region22: #{net_forward.17} parent=0 // pred_check
    _
  $region23: #{net_forward.17} parent=0 // pred_check_branch
    %82 = sbr.rel (0) target = $region25
  $region24: #{net_forward.17} parent=0 // pred_region
    _
  $region25: #{net_forward.17} parent=0 // pred_fallthru
    _
  // Predicated region
  $region26: #{net_forward.17} parent=0 // pred_check
    _
  $region27: #{net_forward.17} parent=0 // pred_check_branch
    %84 = sbr.rel (0) target = $region29
  $region28: #{net_forward.17} parent=0 // pred_region
    _
  $region29: #{net_forward.17} parent=0 // pred_fallthru
    _
  // Predicated region
  $region30: #{net_forward.17} parent=0 // pred_check
    _
  $region31: #{net_forward.17} parent=0 // pred_check_branch
    %86 = sbr.rel (0) target = $region33
  $region32: #{net_forward.17} parent=0 // pred_region
    _
  $region33: #{net_forward.17} parent=0 // pred_fallthru
    _
  // Predicated region
  $region34: #{net_forward.17} parent=0 // pred_check
    _
  $region35: #{net_forward.17} parent=0 // pred_check_branch
    %88 = sbr.rel (0) target = $region37
  $region36: #{net_forward.17} parent=0 // pred_region
    _
  $region37: #{net_forward.17} parent=0 // pred_fallthru
    _
  // Predicated region
  $region38: #{net_forward.17} parent=0 // pred_check
    _
  $region39: #{net_forward.17} parent=0 // pred_check_branch
    %90 = sbr.rel (0) target = $region41
  $region40: #{net_forward.17} parent=0 // pred_region
    _
  $region41: #{net_forward.17} parent=0 // pred_fallthru
    _
  // Predicated region
  $region42: #{net_forward.17} parent=0 // pred_check
    _
  $region43: #{net_forward.17} parent=0 // pred_check_branch
    %92 = sbr.rel (0) target = $region45
  $region44: #{net_forward.17} parent=0 // pred_region
    _
  $region45: #{net_forward.17} parent=0 // pred_fallthru
    _
  // Predicated region
  $region46: #{net_forward.17} parent=0 // pred_check
    _
  $region47: #{net_forward.17} parent=0 // pred_check_branch
    %94 = sbr.rel (0) target = $region49
  $region48: #{net_forward.17} parent=0 // pred_region
    _
  $region49: #{net_forward.17} parent=0 // pred_fallthru
    _
  // Predicated region
  $region50: #{net_forward.17} parent=0 // pred_check
    _
  $region51: #{net_forward.17} parent=0 // pred_check_branch
    %96 = sbr.rel (0) target = $region53
  $region52: #{net_forward.17} parent=0 // pred_region
    _
  $region53: #{net_forward.17} parent=0 // pred_fallthru
    _
  // Predicated region
  $region54: #{net_forward.17} parent=0 // pred_check
    _
  $region55: #{net_forward.17} parent=0 // pred_check_branch
    %98 = sbr.rel (0) target = $region57
  $region56: #{net_forward.17} parent=0 // pred_region
    _
  $region57: #{net_forward.17} parent=0 // pred_fallthru
    _
  // Predicated region
  $region58: #{net_forward.17} parent=0 // pred_check
    _
  $region59: #{net_forward.17} parent=0 // pred_check_branch
    %100 = sbr.rel (0) target = $region61
  $region60: #{net_forward.17} parent=0 // pred_region
    _
  $region61: #{net_forward.17} parent=0 // pred_fallthru
    _
  // Predicated region
  $region62: #{net_forward.17} parent=0 // pred_check
    _
  $region63: #{net_forward.17} parent=0 // pred_check_branch
    %102 = sbr.rel (0) target = $region65
  $region64: #{net_forward.17} parent=0 // pred_region
    _
  $region65: #{net_forward.17} parent=0 // pred_fallthru
    _
  // Predicated region
  $region66: #{net_forward.17} parent=0 // pred_check
    _
  $region67: #{net_forward.17} parent=0 // pred_check_branch
    %104 = sbr.rel (0) target = $region69
  $region68: #{net_forward.17} parent=0 // pred_region
    _
  $region69: #{net_forward.17} parent=0 // pred_fallthru
    _
  // Predicated region
  $region70: #{net_forward.17} parent=0 // pred_check
    _
  $region71: #{net_forward.17} parent=0 // pred_check_branch
    %106 = sbr.rel (0) target = $region73
  $region72: #{net_forward.17} parent=0 // pred_region
    _
  $region73: #{net_forward.17} parent=0 // pred_fallthru
    _
  // Predicated region
  $region74: #{net_forward.17} parent=0 // pred_check
    _
  $region75: #{net_forward.17} parent=0 // pred_check_branch
    %108 = sbr.rel (0) target = $region77
  $region76: #{net_forward.17} parent=0 // pred_region
    _
  $region77: #{net_forward.17} parent=0 // pred_fallthru
    _
  // Predicated region
  $region78: #{net_forward.17} parent=0 // pred_check
    _
  $region79: #{net_forward.17} parent=0 // pred_check_branch
    %110 = sbr.rel (0) target = $region81
  $region80: #{net_forward.17} parent=0 // pred_region
    _
  $region81: #{net_forward.17} parent=0 // pred_fallthru
    _
  // Predicated region
  $region82: #{net_forward.17} parent=0 // pred_check
    _
  $region83: #{net_forward.17} parent=0 // pred_check_branch
    %112 = sbr.rel (0) target = $region85
  $region84: #{net_forward.17} parent=0 // pred_region
    _
  $region85: #{net_forward.17} parent=0 // pred_fallthru
    _
  // Predicated region
  $region86: #{net_forward.17} parent=0 // pred_check
    _
  $region87: #{net_forward.17} parent=0 // pred_check_branch
    %114 = sbr.rel (0) target = $region89
  $region88: #{net_forward.17} parent=0 // pred_region
    _
  $region89: #{net_forward.17} parent=0 // pred_fallthru
    _
  // Predicated region
  $region90: #{net_forward.17} parent=0 // pred_check
    _
  $region91: #{net_forward.17} parent=0 // pred_check_branch
    %116 = sbr.rel (0) target = $region93
  $region92: #{net_forward.17} parent=0 // pred_region
    _
  $region93: #{net_forward.17} parent=0 // pred_fallthru
    _
  // Predicated region
  $region94: #{net_forward.17} parent=0 // pred_check
    _
  $region95: #{net_forward.17} parent=0 // pred_check_branch
    %118 = sbr.rel (0) target = $region97
  $region96: #{net_forward.17} parent=0 // pred_region
    _
  $region97: #{net_forward.17} parent=0 // pred_fallthru
    _
  // Predicated region
  $region98: #{net_forward.17} parent=0 // pred_check
    _
  $region99: #{net_forward.17} parent=0 // pred_check_branch
    %120 = sbr.rel (0) target = $region101
  $region100: #{net_forward.17} parent=0 // pred_region
    _
  $region101: #{net_forward.17} parent=0 // pred_fallthru
    _
  // Predicated region
  $region102: #{net_forward.17} parent=0 // pred_check
    _
  $region103: #{net_forward.17} parent=0 // pred_check_branch
    %122 = sbr.rel (0) target = $region105
  $region104: #{net_forward.17} parent=0 // pred_region
    _
  $region105: #{net_forward.17} parent=0 // pred_fallthru
    _
  // Predicated region
  $region106: #{net_forward.17} parent=0 // pred_check
    _
  $region107: #{net_forward.17} parent=0 // pred_check_branch
    %124 = sbr.rel (0) target = $region109
  $region108: #{net_forward.17} parent=0 // pred_region
    _
  $region109: #{net_forward.17} parent=0 // pred_fallthru
    _
  // Predicated region
  $region110: #{net_forward.17} parent=0 // pred_check
    _
  $region111: #{net_forward.17} parent=0 // pred_check_branch
    %126 = sbr.rel (0) target = $region113
  $region112: #{net_forward.17} parent=0 // pred_region
    _
  $region113: #{net_forward.17} parent=0 // pred_fallthru
    _
  // Predicated region
  $region114: #{net_forward.17} parent=0 // pred_check
    _
  $region115: #{net_forward.17} parent=0 // pred_check_branch
    %128 = sbr.rel (0) target = $region117
  $region116: #{net_forward.17} parent=0 // pred_region
    _
  $region117: #{net_forward.17} parent=0 // pred_fallthru
    _
  // Predicated region
  $region118: #{net_forward.17} parent=0 // pred_check
    _
  $region119: #{net_forward.17} parent=0 // pred_check_branch
    %130 = sbr.rel (0) target = $region121
  $region120: #{net_forward.17} parent=0 // pred_region
    _
  $region121: #{net_forward.17} parent=0 // pred_fallthru
    _
  %p132 = scmp.eq.s32.totalorder 0, 0
  // Predicated region
  $region122: #{net_forward.17} parent=0 // pred_check
    %p133 = pneg %p132
  $region123: #{net_forward.17} parent=0 // pred_check_branch
    %135 = sbr.rel (%p133) target = $region125
  $region124: #{net_forward.17} parent=0 // pred_region
    %vm136 = vcmask 523264
    %137 = vst.msk [vmem:[#allocation2] sm:$0xff] %vm136, 0.0
    %vm138 = vcmask 519168
    %139 = vst.msk [vmem:[#allocation2 + $0x8] sm:$0xf] %vm138, 0.0
  $region125: #{net_forward.17} parent=0 // pred_fallthru
    _
  %v140 = vld [vmem:[%s9] sm:$0xff]
  %v141 = vld [vmem:[%s9 + $0x8] sm:$0xf]
  %v142 = vld [vmem:[%s3] sm:$0xf]
  %v143 = vld [vmem:[%s3 + $0x4] sm:$0xf]
  %v144 = vld [vmem:[%s3 + $0x8] sm:$0xf]
  %v145 = vld [vmem:[%s3 + $0xc] sm:$0xf]
  %v146 = vld [vmem:[%s3 + $0x10] sm:$0xf]
  %v147 = vld [vmem:[%s3 + $0x14] sm:$0xf]
  %v148 = vld [vmem:[%s3 + $0x18] sm:$0xf]
  %v149 = vld [vmem:[%s3 + $0x1c] sm:$0xf]
  %v150 = vld [vmem:[%s3 + $0x20] sm:$0xf]
  %v151 = vld [vmem:[%s3 + $0x24] sm:$0xf]
  %v152 = vld [vmem:[%s3 + $0x28] sm:$0xf]
  %v153 = vld [vmem:[%s3 + $0x2c] sm:$0xf]
  %v154 = vld [vmem:[%s3 + $0x30] sm:$0xf]
  %v155 = vld [vmem:[%s3 + $0x34] sm:$0xf]
  %v156 = vld [vmem:[%s3 + $0x38] sm:$0xf]
  %v157 = vld [vmem:[%s3 + $0x3c] sm:$0xf]
  %v158 = vpack.c.bf16 %v141, %v140
  %v175 = vunpack.c.l.b16 %v142
  %v176 = vunpack.c.l.b16 %v143
  %v177 = vunpack.c.l.b16 %v144
  %v178 = vunpack.c.l.b16 %v145
  %v179 = vunpack.c.l.b16 %v146
  %v180 = vunpack.c.l.b16 %v147
  %v181 = vunpack.c.l.b16 %v148
  %v182 = vunpack.c.l.b16 %v149
  %v183 = vunpack.c.l.b16 %v150
  %v184 = vunpack.c.l.b16 %v151
  %v185 = vunpack.c.l.b16 %v152
  %v186 = vunpack.c.l.b16 %v153
  %v187 = vunpack.c.l.b16 %v154
  %v188 = vunpack.c.l.b16 %v155
  %v189 = vunpack.c.l.b16 %v156
  %v190 = vunpack.c.l.b16 %v157
  %v191 = vpack.c.b16 %v176, %v175
  %v192 = vpack.c.b16 %v178, %v177
  %v193 = vpack.c.b16 %v180, %v179
  %v194 = vpack.c.b16 %v182, %v181
  %v195 = vpack.c.b16 %v184, %v183
  %v196 = vpack.c.b16 %v186, %v185
  %v197 = vpack.c.b16 %v188, %v187
  %v198 = vpack.c.b16 %v190, %v189
  %vm199 = vcmask 97280
  %v201 = vsel %vm199, %v191, 0
  %v204 = vsel %vm199, %v192, 0
  %v207 = vsel %vm199, %v193, 0
  %v210 = vsel %vm199, %v194, 0
  %v213 = vsel %vm199, %v195, 0
  %v216 = vsel %vm199, %v196, 0
  %v219 = vsel %vm199, %v197, 0
  %v222 = vsel %vm199, %v198, 0
  %vm224 = vcmask 1045504
  %v226 = vsel %vm224, %v158, 0
  %228 = vmatprep.subr.bf16.mxu0 0
  %229 = vmatpush1.bf16.msra.mxu0 %v226
  %230 = vmatprep.subr.bf16.mxu0 0
  %231 = vmatpush1.bf16.msra.mxu0 0
  %232 = vmatprep.subr.bf16.mxu0 0
  %233 = vmatpush1.bf16.msra.mxu0 0
  %234 = vmatprep.subr.bf16.mxu0 0
  %235 = vmatpush1.bf16.msra.mxu0 0
  %236 = vmatprep.subr.bf16.mxu0 0
  %237 = vmatpush1.bf16.msra.mxu0 0
  %238 = vmatprep.subr.bf16.mxu0 0
  %239 = vmatpush1.bf16.msra.mxu0 0
  %240 = vmatprep.subr.bf16.mxu0 0
  %241 = vmatpush1.bf16.msra.mxu0 0
  %242 = vmatprep.subr.bf16.mxu0 0
  %243 = vmatpush1.bf16.msra.mxu0 0
  %244 = vmatprep.subr.bf16.mxu0 0
  %245 = vmatpush1.bf16.msra.mxu0 0
  %246 = vmatprep.subr.bf16.mxu0 0
  %247 = vmatpush1.bf16.msra.mxu0 0
  %248 = vmatprep.subr.bf16.mxu0 0
  %249 = vmatpush1.bf16.msra.mxu0 0
  %250 = vmatprep.subr.bf16.mxu0 0
  %251 = vmatpush1.bf16.msra.mxu0 0
  %252 = vmatprep.subr.bf16.mxu0 0
  %253 = vmatpush1.bf16.msra.mxu0 0
  %254 = vmatprep.subr.bf16.mxu0 0
  %255 = vmatpush1.bf16.msra.mxu0 0
  %256 = vmatprep.subr.bf16.mxu0 0
  %257 = vmatpush1.bf16.msra.mxu0 0
  %258 = vmatprep.subr.bf16.mxu0 0
  %259 = vmatpush1.bf16.msra.mxu0 0
  %260 = vmatprep.mubr.bf16.mxu0 0
  %261 = vmatmul.mubr.bf16.gmra.mrb[0].mxu0 %v201
  %v262 = vpop.f32.mrb[0].mxu0
  %v263 = vadd.f32 0.0, %v262
  %v264 = vpop.f32.mrb[0].mxu0
  %v265 = vpop.f32.mrb[0].mxu0
  %v266 = vadd.f32 0.0, %v265
  %v267 = vpop.f32.mrb[0].mxu0
  %268 = vmatprep.mubr.bf16.mxu0 0
  %269 = vmatmul.mubr.bf16.gmra.mrb[0].mxu0 %v204
  %v270 = vpop.f32.mrb[0].mxu0
  %v271 = vadd.f32 0.0, %v270
  %v272 = vpop.f32.mrb[0].mxu0
  %v273 = vpop.f32.mrb[0].mxu0
  %v274 = vadd.f32 0.0, %v273
  %v275 = vpop.f32.mrb[0].mxu0
  %276 = vmatprep.mubr.bf16.mxu0 0
  %277 = vmatmul.mubr.bf16.gmra.mrb[0].mxu0 %v207
  %v278 = vpop.f32.mrb[0].mxu0
  %v279 = vadd.f32 0.0, %v278
  %v280 = vpop.f32.mrb[0].mxu0
  %v281 = vpop.f32.mrb[0].mxu0
  %v282 = vadd.f32 0.0, %v281
  %v283 = vpop.f32.mrb[0].mxu0
  %284 = vmatprep.mubr.bf16.mxu0 0
  %285 = vmatmul.mubr.bf16.gmra.mrb[0].mxu0 %v210
  %v286 = vpop.f32.mrb[0].mxu0
  %v287 = vadd.f32 0.0, %v286
  %v288 = vpop.f32.mrb[0].mxu0
  %v289 = vpop.f32.mrb[0].mxu0
  %v290 = vadd.f32 0.0, %v289
  %v291 = vpop.f32.mrb[0].mxu0
  %292 = vmatprep.mubr.bf16.mxu0 0
  %293 = vmatmul.mubr.bf16.gmra.mrb[0].mxu0 %v213
  %v294 = vpop.f32.mrb[0].mxu0
  %v295 = vadd.f32 0.0, %v294
  %v296 = vpop.f32.mrb[0].mxu0
  %v297 = vpop.f32.mrb[0].mxu0
  %v298 = vadd.f32 0.0, %v297
  %v299 = vpop.f32.mrb[0].mxu0
  %300 = vmatprep.mubr.bf16.mxu0 0
  %301 = vmatmul.mubr.bf16.gmra.mrb[0].mxu0 %v216
  %v302 = vpop.f32.mrb[0].mxu0
  %v303 = vadd.f32 0.0, %v302
  %v304 = vpop.f32.mrb[0].mxu0
  %v305 = vpop.f32.mrb[0].mxu0
  %v306 = vadd.f32 0.0, %v305
  %v307 = vpop.f32.mrb[0].mxu0
  %308 = vmatprep.mubr.bf16.mxu0 0
  %309 = vmatmul.mubr.bf16.gmra.mrb[0].mxu0 %v219
  %v310 = vpop.f32.mrb[0].mxu0
  %v311 = vadd.f32 0.0, %v310
  %v312 = vpop.f32.mrb[0].mxu0
  %v313 = vpop.f32.mrb[0].mxu0
  %v314 = vadd.f32 0.0, %v313
  %v315 = vpop.f32.mrb[0].mxu0
  %316 = vmatprep.mubr.bf16.mxu0 0
  %317 = vmatmul.mubr.bf16.gmra.mrb[0].mxu0 %v222
  %v318 = vpop.f32.mrb[0].mxu0
  %v319 = vadd.f32 0.0, %v318
  %v320 = vpop.f32.mrb[0].mxu0
  %v321 = vpop.f32.mrb[0].mxu0
  %v322 = vadd.f32 0.0, %v321
  %v323 = vpop.f32.mrb[0].mxu0
  %324 = vdwg.mxu0
  %v325 = vld [vmem:[%s5] sm:$0xf]
  %v326 = vld [vmem:[%s5 + $0x4] sm:$0xf]
  %v327 = vld [vmem:[%s5 + $0x8] sm:$0xf]
  %v328 = vld [vmem:[%s5 + $0xc] sm:$0xf]
  %v329 = vld [vmem:[%s5 + $0x10] sm:$0xf]
  %v330 = vld [vmem:[%s5 + $0x14] sm:$0xf]
  %v331 = vld [vmem:[%s5 + $0x18] sm:$0xf]
  %v332 = vld [vmem:[%s5 + $0x1c] sm:$0xf]
  %v333 = vld [vmem:[%s5 + $0x20] sm:$0xf]
  %v334 = vld [vmem:[%s5 + $0x24] sm:$0xf]
  %v335 = vld [vmem:[%s5 + $0x28] sm:$0xf]
  %v336 = vld [vmem:[%s5 + $0x2c] sm:$0xf]
  %v337 = vld [vmem:[%s5 + $0x30] sm:$0xf]
  %v338 = vld [vmem:[%s5 + $0x34] sm:$0xf]
  %v339 = vld [vmem:[%s5 + $0x38] sm:$0xf]
  %v340 = vld [vmem:[%s5 + $0x3c] sm:$0xf]
  %v357 = vunpack.c.l.b16 %v325
  %v358 = vunpack.c.l.b16 %v326
  %v359 = vunpack.c.l.b16 %v327
  %v360 = vunpack.c.l.b16 %v328
  %v361 = vunpack.c.l.b16 %v329
  %v362 = vunpack.c.l.b16 %v330
  %v363 = vunpack.c.l.b16 %v331
  %v364 = vunpack.c.l.b16 %v332
  %v365 = vunpack.c.l.b16 %v333
  %v366 = vunpack.c.l.b16 %v334
  %v367 = vunpack.c.l.b16 %v335
  %v368 = vunpack.c.l.b16 %v336
  %v369 = vunpack.c.l.b16 %v337
  %v370 = vunpack.c.l.b16 %v338
  %v371 = vunpack.c.l.b16 %v339
  %v372 = vunpack.c.l.b16 %v340
  %v373 = vpack.c.b16 %v358, %v357
  %v374 = vpack.c.b16 %v360, %v359
  %v375 = vpack.c.b16 %v362, %v361
  %v376 = vpack.c.b16 %v364, %v363
  %v377 = vpack.c.b16 %v366, %v365
  %v378 = vpack.c.b16 %v368, %v367
  %v379 = vpack.c.b16 %v370, %v369
  %v380 = vpack.c.b16 %v372, %v371
  %v382 = vsel %vm199, %v373, 0
  %v385 = vsel %vm199, %v374, 0
  %v388 = vsel %vm199, %v375, 0
  %v391 = vsel %vm199, %v376, 0
  %v394 = vsel %vm199, %v377, 0
  %v397 = vsel %vm199, %v378, 0
  %v400 = vsel %vm199, %v379, 0
  %v403 = vsel %vm199, %v380, 0
  %405 = vmatprep.subr.bf16.mxu0 0
  %406 = vmatpush1.bf16.msra.mxu0 %v226
  %407 = vmatprep.subr.bf16.mxu0 0
  %408 = vmatpush1.bf16.msra.mxu0 0
  %409 = vmatprep.subr.bf16.mxu0 0
  %410 = vmatpush1.bf16.msra.mxu0 0
  %411 = vmatprep.subr.bf16.mxu0 0
  %412 = vmatpush1.bf16.msra.mxu0 0
  %413 = vmatprep.subr.bf16.mxu0 0
  %414 = vmatpush1.bf16.msra.mxu0 0
  %415 = vmatprep.subr.bf16.mxu0 0
  %416 = vmatpush1.bf16.msra.mxu0 0
  %417 = vmatprep.subr.bf16.mxu0 0
  %418 = vmatpush1.bf16.msra.mxu0 0
  %419 = vmatprep.subr.bf16.mxu0 0
  %420 = vmatpush1.bf16.msra.mxu0 0
  %421 = vmatprep.subr.bf16.mxu0 0
  %422 = vmatpush1.bf16.msra.mxu0 0
  %423 = vmatprep.subr.bf16.mxu0 0
  %424 = vmatpush1.bf16.msra.mxu0 0
  %425 = vmatprep.subr.bf16.mxu0 0
  %426 = vmatpush1.bf16.msra.mxu0 0
  %427 = vmatprep.subr.bf16.mxu0 0
  %428 = vmatpush1.bf16.msra.mxu0 0
  %429 = vmatprep.subr.bf16.mxu0 0
  %430 = vmatpush1.bf16.msra.mxu0 0
  %431 = vmatprep.subr.bf16.mxu0 0
  %432 = vmatpush1.bf16.msra.mxu0 0
  %433 = vmatprep.subr.bf16.mxu0 0
  %434 = vmatpush1.bf16.msra.mxu0 0
  %435 = vmatprep.subr.bf16.mxu0 0
  %436 = vmatpush1.bf16.msra.mxu0 0
  %437 = vmatprep.mubr.bf16.mxu0 0
  %438 = vmatmul.mubr.bf16.gmra.mrb[0].mxu0 %v382
  %v439 = vpop.f32.mrb[0].mxu0
  %v440 = vadd.f32 0.0, %v439
  %v441 = vpop.f32.mrb[0].mxu0
  %v442 = vpop.f32.mrb[0].mxu0
  %v443 = vadd.f32 0.0, %v442
  %v444 = vpop.f32.mrb[0].mxu0
  %445 = vmatprep.mubr.bf16.mxu0 0
  %446 = vmatmul.mubr.bf16.gmra.mrb[0].mxu0 %v385
  %v447 = vpop.f32.mrb[0].mxu0
  %v448 = vadd.f32 0.0, %v447
  %v449 = vpop.f32.mrb[0].mxu0
  %v450 = vpop.f32.mrb[0].mxu0
  %v451 = vadd.f32 0.0, %v450
  %v452 = vpop.f32.mrb[0].mxu0
  %453 = vmatprep.mubr.bf16.mxu0 0
  %454 = vmatmul.mubr.bf16.gmra.mrb[0].mxu0 %v388
  %v455 = vpop.f32.mrb[0].mxu0
  %v456 = vadd.f32 0.0, %v455
  %v457 = vpop.f32.mrb[0].mxu0
  %v458 = vpop.f32.mrb[0].mxu0
  %v459 = vadd.f32 0.0, %v458
  %v460 = vpop.f32.mrb[0].mxu0
  %461 = vmatprep.mubr.bf16.mxu0 0
  %462 = vmatmul.mubr.bf16.gmra.mrb[0].mxu0 %v391
  %v463 = vpop.f32.mrb[0].mxu0
  %v464 = vadd.f32 0.0, %v463
  %v465 = vpop.f32.mrb[0].mxu0
  %v466 = vpop.f32.mrb[0].mxu0
  %v467 = vadd.f32 0.0, %v466
  %v468 = vpop.f32.mrb[0].mxu0
  %469 = vmatprep.mubr.bf16.mxu0 0
  %470 = vmatmul.mubr.bf16.gmra.mrb[0].mxu0 %v394
  %v471 = vpop.f32.mrb[0].mxu0
  %v472 = vadd.f32 0.0, %v471
  %v473 = vpop.f32.mrb[0].mxu0
  %v474 = vpop.f32.mrb[0].mxu0
  %v475 = vadd.f32 0.0, %v474
  %v476 = vpop.f32.mrb[0].mxu0
  %477 = vmatprep.mubr.bf16.mxu0 0
  %478 = vmatmul.mubr.bf16.gmra.mrb[0].mxu0 %v397
  %v479 = vpop.f32.mrb[0].mxu0
  %v480 = vadd.f32 0.0, %v479
  %v481 = vpop.f32.mrb[0].mxu0
  %v482 = vpop.f32.mrb[0].mxu0
  %v483 = vadd.f32 0.0, %v482
  %v484 = vpop.f32.mrb[0].mxu0
  %485 = vmatprep.mubr.bf16.mxu0 0
  %486 = vmatmul.mubr.bf16.gmra.mrb[0].mxu0 %v400
  %v487 = vpop.f32.mrb[0].mxu0
  %v488 = vadd.f32 0.0, %v487
  %v489 = vpop.f32.mrb[0].mxu0
  %v490 = vpop.f32.mrb[0].mxu0
  %v491 = vadd.f32 0.0, %v490
  %v492 = vpop.f32.mrb[0].mxu0
  %493 = vmatprep.mubr.bf16.mxu0 0
  %494 = vmatmul.mubr.bf16.gmra.mrb[0].mxu0 %v403
  %v495 = vpop.f32.mrb[0].mxu0
  %v496 = vadd.f32 0.0, %v495
  %v497 = vpop.f32.mrb[0].mxu0
  %v498 = vpop.f32.mrb[0].mxu0
  %v499 = vadd.f32 0.0, %v498
  %v500 = vpop.f32.mrb[0].mxu0
  %501 = vdwg.mxu0
  %v502 = vld [vmem:[%s19] sm:$0xf]
  %v503 = vld [vmem:[%s19 + $0x4] sm:$0xf]
  %v504 = vld [vmem:[%s19 + $0x8] sm:$0xf]
  %v505 = vld [vmem:[%s19 + $0xc] sm:$0xf]
  %v506 = vpack.c.bf16 %v266, %v263
  %v507 = vpack.c.bf16 %v274, %v271
  %v508 = vpack.c.bf16 %v282, %v279
  %v509 = vpack.c.bf16 %v290, %v287
  %v510 = vpack.c.bf16 %v298, %v295
  %v511 = vpack.c.bf16 %v306, %v303
  %v512 = vpack.c.bf16 %v314, %v311
  %v513 = vpack.c.bf16 %v322, %v319
  %v514 = vld [vmem:[%s21] sm:$0xf]
  %v515 = vld [vmem:[%s21 + $0x4] sm:$0xf]
  %v516 = vld [vmem:[%s21 + $0x8] sm:$0xf]
  %v517 = vld [vmem:[%s21 + $0xc] sm:$0xf]
  %v518 = vpack.c.bf16 %v443, %v440
  %v519 = vpack.c.bf16 %v451, %v448
  %v520 = vpack.c.bf16 %v459, %v456
  %v521 = vpack.c.bf16 %v467, %v464
  %v522 = vpack.c.bf16 %v475, %v472
  %v523 = vpack.c.bf16 %v483, %v480
  %v524 = vpack.c.bf16 %v491, %v488
  %v525 = vpack.c.bf16 %v499, %v496
  %v530 = vunpack.c.l.b16 %v514
  %v531 = vunpack.c.l.b16 %v515
  %v532 = vunpack.c.l.b16 %v516
  %v533 = vunpack.c.l.b16 %v517
  %v534 = vpack.c.b16 %v531, %v530
  %v535 = vpack.c.b16 %v533, %v532
  %vm538 = vcmask 261120
  %v540 = vsel %vm538, %v518, 0
  %v543 = vsel %vm538, %v519, 0
  %v546 = vsel %vm538, %v520, 0
  %v549 = vsel %vm538, %v521, 0
  %v552 = vsel %vm538, %v522, 0
  %v555 = vsel %vm538, %v523, 0
  %v558 = vsel %vm538, %v524, 0
  %v561 = vsel %vm538, %v525, 0
  %563 = vmatprep.subr.bf16.mxu0 0
  %564 = vmatpush1.bf16.msra.mxu0 %v534
  %565 = vmatprep.subr.bf16.mxu0 0
  %566 = vmatpush1.bf16.msra.mxu0 %v535
  %567 = vmatprep.subr.bf16.mxu0 0
  %568 = vmatpush1.bf16.msra.mxu0 0
  %569 = vmatprep.subr.bf16.mxu0 0
  %570 = vmatpush1.bf16.msra.mxu0 0
  %571 = vmatprep.subr.bf16.mxu0 0
  %572 = vmatpush1.bf16.msra.mxu0 0
  %573 = vmatprep.subr.bf16.mxu0 0
  %574 = vmatpush1.bf16.msra.mxu0 0
  %575 = vmatprep.subr.bf16.mxu0 0
  %576 = vmatpush1.bf16.msra.mxu0 0
  %577 = vmatprep.subr.bf16.mxu0 0
  %578 = vmatpush1.bf16.msra.mxu0 0
  %579 = vmatprep.subr.bf16.mxu0 0
  %580 = vmatpush1.bf16.msra.mxu0 0
  %581 = vmatprep.subr.bf16.mxu0 0
  %582 = vmatpush1.bf16.msra.mxu0 0
  %583 = vmatprep.subr.bf16.mxu0 0
  %584 = vmatpush1.bf16.msra.mxu0 0
  %585 = vmatprep.subr.bf16.mxu0 0
  %586 = vmatpush1.bf16.msra.mxu0 0
  %587 = vmatprep.subr.bf16.mxu0 0
  %588 = vmatpush1.bf16.msra.mxu0 0
  %589 = vmatprep.subr.bf16.mxu0 0
  %590 = vmatpush1.bf16.msra.mxu0 0
  %591 = vmatprep.subr.bf16.mxu0 0
  %592 = vmatpush1.bf16.msra.mxu0 0
  %593 = vmatprep.subr.bf16.mxu0 0
  %594 = vmatpush1.bf16.msra.mxu0 0
  %595 = vmatprep.mubr.bf16.mxu0 0
  %596 = vmatmul.mubr.bf16.gmra.mrb[0].mxu0 %v540
  %v597 = vpop.f32.mrb[0].mxu0
  %v598 = vadd.f32 0.0, %v597
  %v599 = vpop.f32.mrb[0].mxu0
  %v600 = vpop.f32.mrb[0].mxu0
  %v601 = vadd.f32 0.0, %v600
  %v602 = vpop.f32.mrb[0].mxu0
  %603 = vmatprep.mubr.bf16.mxu0 0
  %604 = vmatmul.mubr.bf16.gmra.mrb[0].mxu0 %v543
  %v605 = vpop.f32.mrb[0].mxu0
  %v606 = vadd.f32 0.0, %v605
  %v607 = vpop.f32.mrb[0].mxu0
  %v608 = vpop.f32.mrb[0].mxu0
  %v609 = vadd.f32 0.0, %v608
  %v610 = vpop.f32.mrb[0].mxu0
  %611 = vmatprep.mubr.bf16.mxu0 0
  %612 = vmatmul.mubr.bf16.gmra.mrb[0].mxu0 %v546
  %v613 = vpop.f32.mrb[0].mxu0
  %v614 = vadd.f32 0.0, %v613
  %v615 = vpop.f32.mrb[0].mxu0
  %v616 = vpop.f32.mrb[0].mxu0
  %v617 = vadd.f32 0.0, %v616
  %v618 = vpop.f32.mrb[0].mxu0
  %619 = vmatprep.mubr.bf16.mxu0 0
  %620 = vmatmul.mubr.bf16.gmra.mrb[0].mxu0 %v549
  %v621 = vpop.f32.mrb[0].mxu0
  %v622 = vadd.f32 0.0, %v621
  %v623 = vpop.f32.mrb[0].mxu0
  %v624 = vpop.f32.mrb[0].mxu0
  %v625 = vadd.f32 0.0, %v624
  %v626 = vpop.f32.mrb[0].mxu0
  %627 = vmatprep.mubr.bf16.mxu0 0
  %628 = vmatmul.mubr.bf16.gmra.mrb[0].mxu0 %v552
  %v629 = vpop.f32.mrb[0].mxu0
  %v630 = vadd.f32 0.0, %v629
  %v631 = vpop.f32.mrb[0].mxu0
  %v632 = vpop.f32.mrb[0].mxu0
  %v633 = vadd.f32 0.0, %v632
  %v634 = vpop.f32.mrb[0].mxu0
  %635 = vmatprep.mubr.bf16.mxu0 0
  %636 = vmatmul.mubr.bf16.gmra.mrb[0].mxu0 %v555
  %v637 = vpop.f32.mrb[0].mxu0
  %v638 = vadd.f32 0.0, %v637
  %v639 = vpop.f32.mrb[0].mxu0
  %v640 = vpop.f32.mrb[0].mxu0
  %v641 = vadd.f32 0.0, %v640
  %v642 = vpop.f32.mrb[0].mxu0
  %643 = vmatprep.mubr.bf16.mxu0 0
  %644 = vmatmul.mubr.bf16.gmra.mrb[0].mxu0 %v558
  %v645 = vpop.f32.mrb[0].mxu0
  %v646 = vadd.f32 0.0, %v645
  %v647 = vpop.f32.mrb[0].mxu0
  %v648 = vpop.f32.mrb[0].mxu0
  %v649 = vadd.f32 0.0, %v648
  %v650 = vpop.f32.mrb[0].mxu0
  %651 = vmatprep.mubr.bf16.mxu0 0
  %652 = vmatmul.mubr.bf16.gmra.mrb[0].mxu0 %v561
  %v653 = vpop.f32.mrb[0].mxu0
  %v654 = vadd.f32 0.0, %v653
  %v655 = vpop.f32.mrb[0].mxu0
  %v656 = vpop.f32.mrb[0].mxu0
  %v657 = vadd.f32 0.0, %v656
  %v658 = vpop.f32.mrb[0].mxu0
  %659 = vdwg.mxu0
  %v664 = vunpack.c.l.b16 %v502
  %v665 = vunpack.c.l.b16 %v503
  %v666 = vunpack.c.l.b16 %v504
  %v667 = vunpack.c.l.b16 %v505
  %v668 = vpack.c.b16 %v665, %v664
  %v669 = vpack.c.b16 %v667, %v666
  %v673 = vsel %vm538, %v506, 0
  %v676 = vsel %vm538, %v507, 0
  %v679 = vsel %vm538, %v508, 0
  %v682 = vsel %vm538, %v509, 0
  %v685 = vsel %vm538, %v510, 0
  %v688 = vsel %vm538, %v511, 0
  %v691 = vsel %vm538, %v512, 0
  %v694 = vsel %vm538, %v513, 0
  %696 = vmatprep.subr.bf16.mxu0 0
  %697 = vmatpush1.bf16.msra.mxu0 %v668
  %698 = vmatprep.subr.bf16.mxu0 0
  %699 = vmatpush1.bf16.msra.mxu0 %v669
  %700 = vmatprep.subr.bf16.mxu0 0
  %701 = vmatpush1.bf16.msra.mxu0 0
  %702 = vmatprep.subr.bf16.mxu0 0
  %703 = vmatpush1.bf16.msra.mxu0 0
  %704 = vmatprep.subr.bf16.mxu0 0
  %705 = vmatpush1.bf16.msra.mxu0 0
  %706 = vmatprep.subr.bf16.mxu0 0
  %707 = vmatpush1.bf16.msra.mxu0 0
  %708 = vmatprep.subr.bf16.mxu0 0
  %709 = vmatpush1.bf16.msra.mxu0 0
  %710 = vmatprep.subr.bf16.mxu0 0
  %711 = vmatpush1.bf16.msra.mxu0 0
  %712 = vmatprep.subr.bf16.mxu0 0
  %713 = vmatpush1.bf16.msra.mxu0 0
  %714 = vmatprep.subr.bf16.mxu0 0
  %715 = vmatpush1.bf16.msra.mxu0 0
  %716 = vmatprep.subr.bf16.mxu0 0
  %717 = vmatpush1.bf16.msra.mxu0 0
  %718 = vmatprep.subr.bf16.mxu0 0
  %719 = vmatpush1.bf16.msra.mxu0 0
  %720 = vmatprep.subr.bf16.mxu0 0
  %721 = vmatpush1.bf16.msra.mxu0 0
  %722 = vmatprep.subr.bf16.mxu0 0
  %723 = vmatpush1.bf16.msra.mxu0 0
  %724 = vmatprep.subr.bf16.mxu0 0
  %725 = vmatpush1.bf16.msra.mxu0 0
  %726 = vmatprep.subr.bf16.mxu0 0
  %727 = vmatpush1.bf16.msra.mxu0 0
  %728 = vmatprep.mubr.bf16.mxu0 0
  %729 = vmatmul.mubr.bf16.gmra.mrb[0].mxu0 %v673
  %v730 = vpop.f32.mrb[0].mxu0
  %v731 = vadd.f32 %v598, %v730
  %v732 = vpop.f32.mrb[0].mxu0
  %v733 = vpop.f32.mrb[0].mxu0
  %v734 = vadd.f32 %v601, %v733
  %v735 = vpop.f32.mrb[0].mxu0
  %736 = vmatprep.mubr.bf16.mxu0 0
  %737 = vmatmul.mubr.bf16.gmra.mrb[0].mxu0 %v676
  %v738 = vpop.f32.mrb[0].mxu0
  %v739 = vadd.f32 %v606, %v738
  %v740 = vpop.f32.mrb[0].mxu0
  %v741 = vpop.f32.mrb[0].mxu0
  %v742 = vadd.f32 %v609, %v741
  %v743 = vpop.f32.mrb[0].mxu0
  %744 = vmatprep.mubr.bf16.mxu0 0
  %745 = vmatmul.mubr.bf16.gmra.mrb[0].mxu0 %v679
  %v746 = vpop.f32.mrb[0].mxu0
  %v747 = vadd.f32 %v614, %v746
  %v748 = vpop.f32.mrb[0].mxu0
  %v749 = vpop.f32.mrb[0].mxu0
  %v750 = vadd.f32 %v617, %v749
  %v751 = vpop.f32.mrb[0].mxu0
  %752 = vmatprep.mubr.bf16.mxu0 0
  %753 = vmatmul.mubr.bf16.gmra.mrb[0].mxu0 %v682
  %v754 = vpop.f32.mrb[0].mxu0
  %v755 = vadd.f32 %v622, %v754
  %v756 = vpop.f32.mrb[0].mxu0
  %v757 = vpop.f32.mrb[0].mxu0
  %v758 = vadd.f32 %v625, %v757
  %v759 = vpop.f32.mrb[0].mxu0
  %760 = vmatprep.mubr.bf16.mxu0 0
  %761 = vmatmul.mubr.bf16.gmra.mrb[0].mxu0 %v685
  %v762 = vpop.f32.mrb[0].mxu0
  %v763 = vadd.f32 %v630, %v762
  %v764 = vpop.f32.mrb[0].mxu0
  %v765 = vpop.f32.mrb[0].mxu0
  %v766 = vadd.f32 %v633, %v765
  %v767 = vpop.f32.mrb[0].mxu0
  %768 = vmatprep.mubr.bf16.mxu0 0
  %769 = vmatmul.mubr.bf16.gmra.mrb[0].mxu0 %v688
  %v770 = vpop.f32.mrb[0].mxu0
  %v771 = vadd.f32 %v638, %v770
  %v772 = vpop.f32.mrb[0].mxu0
  %v773 = vpop.f32.mrb[0].mxu0
  %v774 = vadd.f32 %v641, %v773
  %v775 = vpop.f32.mrb[0].mxu0
  %776 = vmatprep.mubr.bf16.mxu0 0
  %777 = vmatmul.mubr.bf16.gmra.mrb[0].mxu0 %v691
  %v778 = vpop.f32.mrb[0].mxu0
  %v779 = vadd.f32 %v646, %v778
  %v780 = vpop.f32.mrb[0].mxu0
  %v781 = vpop.f32.mrb[0].mxu0
  %v782 = vadd.f32 %v649, %v781
  %v783 = vpop.f32.mrb[0].mxu0
  %784 = vmatprep.mubr.bf16.mxu0 0
  %785 = vmatmul.mubr.bf16.gmra.mrb[0].mxu0 %v694
  %v786 = vpop.f32.mrb[0].mxu0
  %v787 = vadd.f32 %v654, %v786
  %v788 = vpop.f32.mrb[0].mxu0
  %v789 = vpop.f32.mrb[0].mxu0
  %v790 = vadd.f32 %v657, %v789
  %v791 = vpop.f32.mrb[0].mxu0
  %792 = vdwg.mxu0
  %v793 = vld [vmem:[%s1] sm:$0xff]
  %v794 = vld [vmem:[%s1 + $0x8] sm:$0xff]
  %v795 = vld [vmem:[%s1 + $0x10] sm:$0xff]
  %v796 = vld [vmem:[%s1 + $0x18] sm:$0xff]
  %v797 = vld [vmem:[%s1 + $0x20] sm:$0xff]
  %v798 = vld [vmem:[%s1 + $0x28] sm:$0xff]
  %v799 = vld [vmem:[%s1 + $0x30] sm:$0xff]
  %v800 = vld [vmem:[%s1 + $0x38] sm:$0xff]
  %v801 = vld [vmem:[%s1 + $0x40] sm:$0xff]
  %v802 = vld [vmem:[%s1 + $0x48] sm:$0xff]
  %v803 = vld [vmem:[%s1 + $0x50] sm:$0xff]
  %v804 = vld [vmem:[%s1 + $0x58] sm:$0xff]
  %v805 = vld [vmem:[%s1 + $0x60] sm:$0xff]
  %v806 = vld [vmem:[%s1 + $0x68] sm:$0xff]
  %v807 = vld [vmem:[%s1 + $0x70] sm:$0xff]
  %v808 = vld [vmem:[%s1 + $0x78] sm:$0xff]
  %v809 = vld [vmem:[%s23] sm:$0xf]
  %v810 = vld [vmem:[%s23 + $0x4] sm:$0xf]
  %v811 = vld [vmem:[%s23 + $0x8] sm:$0xf]
  %v812 = vld [vmem:[%s23 + $0xc] sm:$0xf]
  %v813 = vld [vmem:[%s23 + $0x10] sm:$0xf]
  %v814 = vld [vmem:[%s23 + $0x14] sm:$0xf]
  %v815 = vld [vmem:[%s23 + $0x18] sm:$0xf]
  %v816 = vld [vmem:[%s23 + $0x1c] sm:$0xf]
  %v817 = vld [vmem:[%s23 + $0x20] sm:$0xf]
  %v818 = vld [vmem:[%s23 + $0x24] sm:$0xf]
  %v819 = vld [vmem:[%s23 + $0x28] sm:$0xf]
  %v820 = vld [vmem:[%s23 + $0x2c] sm:$0xf]
  %v821 = vld [vmem:[%s23 + $0x30] sm:$0xf]
  %v822 = vld [vmem:[%s23 + $0x34] sm:$0xf]
  %v823 = vld [vmem:[%s23 + $0x38] sm:$0xf]
  %v824 = vld [vmem:[%s23 + $0x3c] sm:$0xf]
  %v825 = vld [vmem:[%s23 + $0x40] sm:$0xf]
  %v826 = vld [vmem:[%s23 + $0x44] sm:$0xf]
  %v827 = vld [vmem:[%s23 + $0x48] sm:$0xf]
  %v828 = vld [vmem:[%s23 + $0x4c] sm:$0xf]
  %v829 = vld [vmem:[%s23 + $0x50] sm:$0xf]
  %v830 = vld [vmem:[%s23 + $0x54] sm:$0xf]
  %v831 = vld [vmem:[%s23 + $0x58] sm:$0xf]
  %v832 = vld [vmem:[%s23 + $0x5c] sm:$0xf]
  %v833 = vld [vmem:[%s23 + $0x60] sm:$0xf]
  %v834 = vld [vmem:[%s23 + $0x64] sm:$0xf]
  %v835 = vld [vmem:[%s23 + $0x68] sm:$0xf]
  %v836 = vld [vmem:[%s23 + $0x6c] sm:$0xf]
  %v837 = vld [vmem:[%s23 + $0x70] sm:$0xf]
  %v838 = vld [vmem:[%s23 + $0x74] sm:$0xf]
  %v839 = vld [vmem:[%s23 + $0x78] sm:$0xf]
  %v840 = vld [vmem:[%s23 + $0x7c] sm:$0xf]
  %v857 = vunpack.c.l.b16 %v793
  %v858 = vunpack.c.h.b16 %v793
  %v859 = vunpack.c.l.b16 %v794
  %v860 = vunpack.c.h.b16 %v794
  %v861 = vunpack.c.l.b16 %v795
  %v862 = vunpack.c.h.b16 %v795
  %v863 = vunpack.c.l.b16 %v796
  %v864 = vunpack.c.h.b16 %v796
  %v865 = vunpack.c.l.b16 %v797
  %v866 = vunpack.c.h.b16 %v797
  %v867 = vunpack.c.l.b16 %v798
  %v868 = vunpack.c.h.b16 %v798
  %v869 = vunpack.c.l.b16 %v799
  %v870 = vunpack.c.h.b16 %v799
  %v871 = vunpack.c.l.b16 %v800
  %v872 = vunpack.c.h.b16 %v800
  %v873 = vunpack.c.l.b16 %v801
  %v874 = vunpack.c.h.b16 %v801
  %v875 = vunpack.c.l.b16 %v802
  %v876 = vunpack.c.h.b16 %v802
  %v877 = vunpack.c.l.b16 %v803
  %v878 = vunpack.c.h.b16 %v803
  %v879 = vunpack.c.l.b16 %v804
  %v880 = vunpack.c.h.b16 %v804
  %v881 = vunpack.c.l.b16 %v805
  %v882 = vunpack.c.h.b16 %v805
  %v883 = vunpack.c.l.b16 %v806
  %v884 = vunpack.c.h.b16 %v806
  %v885 = vunpack.c.l.b16 %v807
  %v886 = vunpack.c.h.b16 %v807
  %v887 = vunpack.c.l.b16 %v808
  %v888 = vunpack.c.h.b16 %v808
  %v889 = vpack.c.b16 %v859, %v857
  %v890 = vpack.c.b16 %v860, %v858
  %v891 = vpack.c.b16 %v863, %v861
  %v892 = vpack.c.b16 %v864, %v862
  %v893 = vpack.c.b16 %v867, %v865
  %v894 = vpack.c.b16 %v868, %v866
  %v895 = vpack.c.b16 %v871, %v869
  %v896 = vpack.c.b16 %v872, %v870
  %v897 = vpack.c.b16 %v875, %v873
  %v898 = vpack.c.b16 %v876, %v874
  %v899 = vpack.c.b16 %v879, %v877
  %v900 = vpack.c.b16 %v880, %v878
  %v901 = vpack.c.b16 %v883, %v881
  %v902 = vpack.c.b16 %v884, %v882
  %v903 = vpack.c.b16 %v887, %v885
  %v904 = vpack.c.b16 %v888, %v886
  %v953 = vunpack.c.l.b16 %v809
  %v954 = vunpack.c.l.b16 %v810
  %v955 = vunpack.c.l.b16 %v811
  %v956 = vunpack.c.l.b16 %v812
  %v957 = vunpack.c.l.b16 %v813
  %v958 = vunpack.c.l.b16 %v814
  %v959 = vunpack.c.l.b16 %v815
  %v960 = vunpack.c.l.b16 %v816
  %v961 = vunpack.c.l.b16 %v817
  %v962 = vunpack.c.l.b16 %v818
  %v963 = vunpack.c.l.b16 %v819
  %v964 = vunpack.c.l.b16 %v820
  %v965 = vunpack.c.l.b16 %v821
  %v966 = vunpack.c.l.b16 %v822
  %v967 = vunpack.c.l.b16 %v823
  %v968 = vunpack.c.l.b16 %v824
  %v969 = vunpack.c.l.b16 %v825
  %v970 = vunpack.c.l.b16 %v826
  %v971 = vunpack.c.l.b16 %v827
  %v972 = vunpack.c.l.b16 %v828
  %v973 = vunpack.c.l.b16 %v829
  %v974 = vunpack.c.l.b16 %v830
  %v975 = vunpack.c.l.b16 %v831
  %v976 = vunpack.c.l.b16 %v832
  %v977 = vunpack.c.l.b16 %v833
  %v978 = vunpack.c.l.b16 %v834
  %v979 = vunpack.c.l.b16 %v835
  %v980 = vunpack.c.l.b16 %v836
  %v981 = vunpack.c.l.b16 %v837
  %v982 = vunpack.c.l.b16 %v838
  %v983 = vunpack.c.l.b16 %v839
  %v984 = vunpack.c.l.b16 %v840
  %v985 = vpack.c.b16 %v954, %v953
  %v986 = vpack.c.b16 %v956, %v955
  %v987 = vpack.c.b16 %v958, %v957
  %v988 = vpack.c.b16 %v960, %v959
  %v989 = vpack.c.b16 %v962, %v961
  %v990 = vpack.c.b16 %v964, %v963
  %v991 = vpack.c.b16 %v966, %v965
  %v992 = vpack.c.b16 %v968, %v967
  %v993 = vpack.c.b16 %v970, %v969
  %v994 = vpack.c.b16 %v972, %v971
  %v995 = vpack.c.b16 %v974, %v973
  %v996 = vpack.c.b16 %v976, %v975
  %v997 = vpack.c.b16 %v978, %v977
  %v998 = vpack.c.b16 %v980, %v979
  %v999 = vpack.c.b16 %v982, %v981
  %v1000 = vpack.c.b16 %v984, %v983
  %1017 = vmatprep.subr.bf16.mxu0 0
  %1018 = vmatpush1.bf16.msra.mxu0 %v985
  %1019 = vmatprep.subr.bf16.mxu0 0
  %1020 = vmatpush1.bf16.msra.mxu0 %v986
  %1021 = vmatprep.subr.bf16.mxu0 0
  %1022 = vmatpush1.bf16.msra.mxu0 %v987
  %1023 = vmatprep.subr.bf16.mxu0 0
  %1024 = vmatpush1.bf16.msra.mxu0 %v988
  %1025 = vmatprep.subr.bf16.mxu0 0
  %1026 = vmatpush1.bf16.msra.mxu0 %v989
  %1027 = vmatprep.subr.bf16.mxu0 0
  %1028 = vmatpush1.bf16.msra.mxu0 %v990
  %1029 = vmatprep.subr.bf16.mxu0 0
  %1030 = vmatpush1.bf16.msra.mxu0 %v991
  %1031 = vmatprep.subr.bf16.mxu0 0
  %1032 = vmatpush1.bf16.msra.mxu0 %v992
  %1033 = vmatprep.subr.bf16.mxu0 0
  %1034 = vmatpush1.bf16.msra.mxu0 %v993
  %1035 = vmatprep.subr.bf16.mxu0 0
  %1036 = vmatpush1.bf16.msra.mxu0 %v994
  %1037 = vmatprep.subr.bf16.mxu0 0
  %1038 = vmatpush1.bf16.msra.mxu0 %v995
  %1039 = vmatprep.subr.bf16.mxu0 0
  %1040 = vmatpush1.bf16.msra.mxu0 %v996
  %1041 = vmatprep.subr.bf16.mxu0 0
  %1042 = vmatpush1.bf16.msra.mxu0 %v997
  %1043 = vmatprep.subr.bf16.mxu0 0
  %1044 = vmatpush1.bf16.msra.mxu0 %v998
  %1045 = vmatprep.subr.bf16.mxu0 0
  %1046 = vmatpush1.bf16.msra.mxu0 %v999
  %1047 = vmatprep.subr.bf16.mxu0 0
  %1048 = vmatpush1.bf16.msra.mxu0 %v1000
  %1049 = vmatprep.mubr.bf16.mxu0 %v890
  %1050 = vmatmul.mubr.bf16.gmra.mrb[0].mxu0 %v889
  %v1051 = vpop.f32.mrb[0].mxu0
  %v1052 = vadd.f32 0.0, %v1051
  %v1053 = vpop.f32.mrb[0].mxu0
  %v1054 = vpop.f32.mrb[0].mxu0
  %v1055 = vadd.f32 0.0, %v1054
  %v1056 = vpop.f32.mrb[0].mxu0
  %1057 = vmatprep.mubr.bf16.mxu0 %v892
  %1058 = vmatmul.mubr.bf16.gmra.mrb[0].mxu0 %v891
  %v1059 = vpop.f32.mrb[0].mxu0
  %v1060 = vadd.f32 0.0, %v1059
  %v1061 = vpop.f32.mrb[0].mxu0
  %v1062 = vpop.f32.mrb[0].mxu0
  %v1063 = vadd.f32 0.0, %v1062
  %v1064 = vpop.f32.mrb[0].mxu0
  %1065 = vmatprep.mubr.bf16.mxu0 %v894
  %1066 = vmatmul.mubr.bf16.gmra.mrb[0].mxu0 %v893
  %v1067 = vpop.f32.mrb[0].mxu0
  %v1068 = vadd.f32 0.0, %v1067
  %v1069 = vpop.f32.mrb[0].mxu0
  %v1070 = vpop.f32.mrb[0].mxu0
  %v1071 = vadd.f32 0.0, %v1070
  %v1072 = vpop.f32.mrb[0].mxu0
  %1073 = vmatprep.mubr.bf16.mxu0 %v896
  %1074 = vmatmul.mubr.bf16.gmra.mrb[0].mxu0 %v895
  %v1075 = vpop.f32.mrb[0].mxu0
  %v1076 = vadd.f32 0.0, %v1075
  %v1077 = vpop.f32.mrb[0].mxu0
  %v1078 = vpop.f32.mrb[0].mxu0
  %v1079 = vadd.f32 0.0, %v1078
  %v1080 = vpop.f32.mrb[0].mxu0
  %1081 = vmatprep.mubr.bf16.mxu0 %v898
  %1082 = vmatmul.mubr.bf16.gmra.mrb[0].mxu0 %v897
  %v1083 = vpop.f32.mrb[0].mxu0
  %v1084 = vadd.f32 0.0, %v1083
  %v1085 = vpop.f32.mrb[0].mxu0
  %v1086 = vpop.f32.mrb[0].mxu0
  %v1087 = vadd.f32 0.0, %v1086
  %v1088 = vpop.f32.mrb[0].mxu0
  %1089 = vmatprep.mubr.bf16.mxu0 %v900
  %1090 = vmatmul.mubr.bf16.gmra.mrb[0].mxu0 %v899
  %v1091 = vpop.f32.mrb[0].mxu0
  %v1092 = vadd.f32 0.0, %v1091
  %v1093 = vpop.f32.mrb[0].mxu0
  %v1094 = vpop.f32.mrb[0].mxu0
  %v1095 = vadd.f32 0.0, %v1094
  %v1096 = vpop.f32.mrb[0].mxu0
  %1097 = vmatprep.mubr.bf16.mxu0 %v902
  %1098 = vmatmul.mubr.bf16.gmra.mrb[0].mxu0 %v901
  %v1099 = vpop.f32.mrb[0].mxu0
  %v1100 = vadd.f32 0.0, %v1099
  %v1101 = vpop.f32.mrb[0].mxu0
  %v1102 = vpop.f32.mrb[0].mxu0
  %v1103 = vadd.f32 0.0, %v1102
  %v1104 = vpop.f32.mrb[0].mxu0
  %1105 = vmatprep.mubr.bf16.mxu0 %v904
  %1106 = vmatmul.mubr.bf16.gmra.mrb[0].mxu0 %v903
  %v1107 = vpop.f32.mrb[0].mxu0
  %v1108 = vadd.f32 0.0, %v1107
  %v1109 = vpop.f32.mrb[0].mxu0
  %v1110 = vpop.f32.mrb[0].mxu0
  %v1111 = vadd.f32 0.0, %v1110
  %v1112 = vpop.f32.mrb[0].mxu0
  %1113 = vdwg.mxu0
  %v1114 = vadd.f32 %v731, %v1052
  %v1115 = vadd.f32 %v734, %v1055
  %v1116 = vadd.f32 %v739, %v1060
  %v1117 = vadd.f32 %v742, %v1063
  %v1118 = vadd.f32 %v747, %v1068
  %v1119 = vadd.f32 %v750, %v1071
  %v1120 = vadd.f32 %v755, %v1076
  %v1121 = vadd.f32 %v758, %v1079
  %v1122 = vadd.f32 %v763, %v1084
  %v1123 = vadd.f32 %v766, %v1087
  %v1124 = vadd.f32 %v771, %v1092
  %v1125 = vadd.f32 %v774, %v1095
  %v1126 = vadd.f32 %v779, %v1100
  %v1127 = vadd.f32 %v782, %v1103
  %v1128 = vadd.f32 %v787, %v1108
  %v1129 = vadd.f32 %v790, %v1111
  %v1130 = vld [vmem:[%s25] sm:$0x1]
  %v1132 = vlaneseq
  %v1133 = vshrl.u32 %v1132, 7
  %v1134 = vsub.s32 0, %v1133
  %v1135 = vrot.slane %v1130, %v1134
  %v1137 = vadd.f32 %v1114, %v1135
  %v1138 = vadd.f32 %v1115, %v1135
  %v1139 = vadd.f32 %v1116, %v1135
  %v1140 = vadd.f32 %v1117, %v1135
  %v1141 = vadd.f32 %v1118, %v1135
  %v1142 = vadd.f32 %v1119, %v1135
  %v1143 = vadd.f32 %v1120, %v1135
  %v1144 = vadd.f32 %v1121, %v1135
  %v1145 = vadd.f32 %v1122, %v1135
  %v1146 = vadd.f32 %v1123, %v1135
  %v1147 = vadd.f32 %v1124, %v1135
  %v1148 = vadd.f32 %v1125, %v1135
  %v1149 = vadd.f32 %v1126, %v1135
  %v1150 = vadd.f32 %v1127, %v1135
  %v1151 = vadd.f32 %v1128, %v1135
  %v1152 = vadd.f32 %v1129, %v1135
  %vm1153 = vcmp.gt.f32.partialorder %v1137, 0.0
  %vm1154 = vcmp.gt.f32.partialorder %v1138, 0.0
  %vm1155 = vcmp.gt.f32.partialorder %v1139, 0.0
  %vm1156 = vcmp.gt.f32.partialorder %v1140, 0.0
  %vm1157 = vcmp.gt.f32.partialorder %v1141, 0.0
  %vm1158 = vcmp.gt.f32.partialorder %v1142, 0.0
  %vm1159 = vcmp.gt.f32.partialorder %v1143, 0.0
  %vm1160 = vcmp.gt.f32.partialorder %v1144, 0.0
  %vm1161 = vcmp.gt.f32.partialorder %v1145, 0.0
  %vm1162 = vcmp.gt.f32.partialorder %v1146, 0.0
  %vm1163 = vcmp.gt.f32.partialorder %v1147, 0.0
  %vm1164 = vcmp.gt.f32.partialorder %v1148, 0.0
  %vm1165 = vcmp.gt.f32.partialorder %v1149, 0.0
  %vm1166 = vcmp.gt.f32.partialorder %v1150, 0.0
  %vm1167 = vcmp.gt.f32.partialorder %v1151, 0.0
  %vm1168 = vcmp.gt.f32.partialorder %v1152, 0.0
  %v1169 = vmin.f32 %v1137, 0.0
  %v1170 = vmin.f32 %v1138, 0.0
  %v1171 = vmin.f32 %v1139, 0.0
  %v1172 = vmin.f32 %v1140, 0.0
  %v1173 = vmin.f32 %v1141, 0.0
  %v1174 = vmin.f32 %v1142, 0.0
  %v1175 = vmin.f32 %v1143, 0.0
  %v1176 = vmin.f32 %v1144, 0.0
  %v1177 = vmin.f32 %v1145, 0.0
  %v1178 = vmin.f32 %v1146, 0.0
  %v1179 = vmin.f32 %v1147, 0.0
  %v1180 = vmin.f32 %v1148, 0.0
  %v1181 = vmin.f32 %v1149, 0.0
  %v1182 = vmin.f32 %v1150, 0.0
  %v1183 = vmin.f32 %v1151, 0.0
  %v1184 = vmin.f32 %v1152, 0.0
  %v1185 = vmul.f32 %v1169, 1.442695
  %v1186 = vpow.pop %v1185
  %v1187 = vmul.f32 %v1170, 1.442695
  %v1188 = vpow.pop %v1187
  %v1189 = vmul.f32 %v1171, 1.442695
  %v1190 = vpow.pop %v1189
  %v1191 = vmul.f32 %v1172, 1.442695
  %v1192 = vpow.pop %v1191
  %v1193 = vmul.f32 %v1173, 1.442695
  %v1194 = vpow.pop %v1193
  %v1195 = vmul.f32 %v1174, 1.442695
  %v1196 = vpow.pop %v1195
  %v1197 = vmul.f32 %v1175, 1.442695
  %v1198 = vpow.pop %v1197
  %v1199 = vmul.f32 %v1176, 1.442695
  %v1200 = vpow.pop %v1199
  %v1201 = vmul.f32 %v1177, 1.442695
  %v1202 = vpow.pop %v1201
  %v1203 = vmul.f32 %v1178, 1.442695
  %v1204 = vpow.pop %v1203
  %v1205 = vmul.f32 %v1179, 1.442695
  %v1206 = vpow.pop %v1205
  %v1207 = vmul.f32 %v1180, 1.442695
  %v1208 = vpow.pop %v1207
  %v1209 = vmul.f32 %v1181, 1.442695
  %v1210 = vpow.pop %v1209
  %v1211 = vmul.f32 %v1182, 1.442695
  %v1212 = vpow.pop %v1211
  %v1213 = vmul.f32 %v1183, 1.442695
  %v1214 = vpow.pop %v1213
  %v1215 = vmul.f32 %v1184, 1.442695
  %v1216 = vpow.pop %v1215
  %v1217 = vsub.f32 %v1186, 1.0
  %v1218 = vsub.f32 %v1188, 1.0
  %v1219 = vsub.f32 %v1190, 1.0
  %v1220 = vsub.f32 %v1192, 1.0
  %v1221 = vsub.f32 %v1194, 1.0
  %v1222 = vsub.f32 %v1196, 1.0
  %v1223 = vsub.f32 %v1198, 1.0
  %v1224 = vsub.f32 %v1200, 1.0
  %v1225 = vsub.f32 %v1202, 1.0
  %v1226 = vsub.f32 %v1204, 1.0
  %v1227 = vsub.f32 %v1206, 1.0
  %v1228 = vsub.f32 %v1208, 1.0
  %v1229 = vsub.f32 %v1210, 1.0
  %v1230 = vsub.f32 %v1212, 1.0
  %v1231 = vsub.f32 %v1214, 1.0
  %v1232 = vsub.f32 %v1216, 1.0
  %v1233 = vsel %vm1153, %v1137, %v1217
  %v1234 = vsel %vm1154, %v1138, %v1218
  %v1235 = vsel %vm1155, %v1139, %v1219
  %v1236 = vsel %vm1156, %v1140, %v1220
  %v1237 = vsel %vm1157, %v1141, %v1221
  %v1238 = vsel %vm1158, %v1142, %v1222
  %v1239 = vsel %vm1159, %v1143, %v1223
  %v1240 = vsel %vm1160, %v1144, %v1224
  %v1241 = vsel %vm1161, %v1145, %v1225
  %v1242 = vsel %vm1162, %v1146, %v1226
  %v1243 = vsel %vm1163, %v1147, %v1227
  %v1244 = vsel %vm1164, %v1148, %v1228
  %v1245 = vsel %vm1165, %v1149, %v1229
  %v1246 = vsel %vm1166, %v1150, %v1230
  %v1247 = vsel %vm1167, %v1151, %v1231
  %v1248 = vsel %vm1168, %v1152, %v1232
  %v1249 = vld [vmem:[%s27] sm:$0xff]
  %v1250 = vld [vmem:[%s27 + $0x8] sm:$0xff]
  %v1251 = vld [vmem:[%s27 + $0x10] sm:$0xff]
  %v1252 = vld [vmem:[%s27 + $0x18] sm:$0xff]
  %v1253 = vpack.c.bf16 %v1234, %v1233
  %v1254 = vpack.c.bf16 %v1236, %v1235
  %v1255 = vpack.c.bf16 %v1238, %v1237
  %v1256 = vpack.c.bf16 %v1240, %v1239
  %v1257 = vpack.c.bf16 %v1242, %v1241
  %v1258 = vpack.c.bf16 %v1244, %v1243
  %v1259 = vpack.c.bf16 %v1246, %v1245
  %v1260 = vpack.c.bf16 %v1248, %v1247
  %v1261 = vld [vmem:[%s29] sm:$0x3]
  %v1263 = vlaneseq
  %v1264 = vshrl.u32 %v1263, 7
  %v1265 = vsub.s32 0, %v1264
  %v1266 = vrot.slane %v1261, %v1265
  %v1267 = vlaneseq
  %v1268 = vshrl.u32 %v1267, 7
  %v1269 = vsub.s32 1, %v1268
  %v1270 = vrot.slane %v1261, %v1269
  %v1277 = vunpack.c.l.b16 %v1249
  %v1278 = vunpack.c.h.b16 %v1249
  %v1279 = vunpack.c.l.b16 %v1250
  %v1280 = vunpack.c.h.b16 %v1250
  %v1281 = vunpack.c.l.b16 %v1251
  %v1282 = vunpack.c.h.b16 %v1251
  %v1283 = vunpack.c.l.b16 %v1252
  %v1284 = vunpack.c.h.b16 %v1252
  %v1285 = vpack.c.b16 %v1279, %v1277
  %v1286 = vpack.c.b16 %v1280, %v1278
  %v1287 = vpack.c.b16 %v1283, %v1281
  %v1288 = vpack.c.b16 %v1284, %v1282
  %v1294 = vsel %vm538, %v1253, 0
  %v1297 = vsel %vm538, %v1254, 0
  %v1300 = vsel %vm538, %v1255, 0
  %v1303 = vsel %vm538, %v1256, 0
  %v1306 = vsel %vm538, %v1257, 0
  %v1309 = vsel %vm538, %v1258, 0
  %v1312 = vsel %vm538, %v1259, 0
  %v1315 = vsel %vm538, %v1260, 0
  %1317 = vmatprep.subr.bf16.mxu0 %v1286
  %1318 = vmatpush1.bf16.msra.mxu0 %v1285
  %1319 = vmatprep.subr.bf16.mxu0 %v1288
  %1320 = vmatpush1.bf16.msra.mxu0 %v1287
  %1321 = vmatprep.subr.bf16.mxu0 0
  %1322 = vmatpush1.bf16.msra.mxu0 0
  %1323 = vmatprep.subr.bf16.mxu0 0
  %1324 = vmatpush1.bf16.msra.mxu0 0
  %1325 = vmatprep.subr.bf16.mxu0 0
  %1326 = vmatpush1.bf16.msra.mxu0 0
  %1327 = vmatprep.subr.bf16.mxu0 0
  %1328 = vmatpush1.bf16.msra.mxu0 0
  %1329 = vmatprep.subr.bf16.mxu0 0
  %1330 = vmatpush1.bf16.msra.mxu0 0
  %1331 = vmatprep.subr.bf16.mxu0 0
  %1332 = vmatpush1.bf16.msra.mxu0 0
  %1333 = vmatprep.subr.bf16.mxu0 0
  %1334 = vmatpush1.bf16.msra.mxu0 0
  %1335 = vmatprep.subr.bf16.mxu0 0
  %1336 = vmatpush1.bf16.msra.mxu0 0
  %1337 = vmatprep.subr.bf16.mxu0 0
  %1338 = vmatpush1.bf16.msra.mxu0 0
  %1339 = vmatprep.subr.bf16.mxu0 0
  %1340 = vmatpush1.bf16.msra.mxu0 0
  %1341 = vmatprep.subr.bf16.mxu0 0
  %1342 = vmatpush1.bf16.msra.mxu0 0
  %1343 = vmatprep.subr.bf16.mxu0 0
  %1344 = vmatpush1.bf16.msra.mxu0 0
  %1345 = vmatprep.subr.bf16.mxu0 0
  %1346 = vmatpush1.bf16.msra.mxu0 0
  %1347 = vmatprep.subr.bf16.mxu0 0
  %1348 = vmatpush1.bf16.msra.mxu0 0
  %1349 = vmatprep.mubr.bf16.mxu0 0
  %1350 = vmatmul.mubr.bf16.gmra.mrb[0].mxu0 %v1294
  %v1351 = vpop.f32.mrb[0].mxu0
  %v1352 = vadd.f32 %v1266, %v1351
  %v1353 = vpop.f32.mrb[0].mxu0
  %v1354 = vadd.f32 %v1270, %v1353
  %v1355 = vpop.f32.mrb[0].mxu0
  %v1356 = vadd.f32 %v1266, %v1355
  %v1357 = vpop.f32.mrb[0].mxu0
  %v1358 = vadd.f32 %v1270, %v1357
  %1359 = vmatprep.mubr.bf16.mxu0 0
  %1360 = vmatmul.mubr.bf16.gmra.mrb[0].mxu0 %v1297
  %v1361 = vpop.f32.mrb[0].mxu0
  %v1362 = vadd.f32 %v1266, %v1361
  %v1363 = vpop.f32.mrb[0].mxu0
  %v1364 = vadd.f32 %v1270, %v1363
  %v1365 = vpop.f32.mrb[0].mxu0
  %v1366 = vadd.f32 %v1266, %v1365
  %v1367 = vpop.f32.mrb[0].mxu0
  %v1368 = vadd.f32 %v1270, %v1367
  %1369 = vmatprep.mubr.bf16.mxu0 0
  %1370 = vmatmul.mubr.bf16.gmra.mrb[0].mxu0 %v1300
  %v1371 = vpop.f32.mrb[0].mxu0
  %v1372 = vadd.f32 %v1266, %v1371
  %v1373 = vpop.f32.mrb[0].mxu0
  %v1374 = vadd.f32 %v1270, %v1373
  %v1375 = vpop.f32.mrb[0].mxu0
  %v1376 = vadd.f32 %v1266, %v1375
  %v1377 = vpop.f32.mrb[0].mxu0
  %v1378 = vadd.f32 %v1270, %v1377
  %1379 = vmatprep.mubr.bf16.mxu0 0
  %1380 = vmatmul.mubr.bf16.gmra.mrb[0].mxu0 %v1303
  %v1381 = vpop.f32.mrb[0].mxu0
  %v1382 = vadd.f32 %v1266, %v1381
  %v1383 = vpop.f32.mrb[0].mxu0
  %v1384 = vadd.f32 %v1270, %v1383
  %v1385 = vpop.f32.mrb[0].mxu0
  %v1386 = vadd.f32 %v1266, %v1385
  %v1387 = vpop.f32.mrb[0].mxu0
  %v1388 = vadd.f32 %v1270, %v1387
  %1389 = vmatprep.mubr.bf16.mxu0 0
  %1390 = vmatmul.mubr.bf16.gmra.mrb[0].mxu0 %v1306
  %v1391 = vpop.f32.mrb[0].mxu0
  %v1392 = vadd.f32 %v1266, %v1391
  %v1393 = vpop.f32.mrb[0].mxu0
  %v1394 = vadd.f32 %v1270, %v1393
  %v1395 = vpop.f32.mrb[0].mxu0
  %v1396 = vadd.f32 %v1266, %v1395
  %v1397 = vpop.f32.mrb[0].mxu0
  %v1398 = vadd.f32 %v1270, %v1397
  %1399 = vmatprep.mubr.bf16.mxu0 0
  %1400 = vmatmul.mubr.bf16.gmra.mrb[0].mxu0 %v1309
  %v1401 = vpop.f32.mrb[0].mxu0
  %v1402 = vadd.f32 %v1266, %v1401
  %v1403 = vpop.f32.mrb[0].mxu0
  %v1404 = vadd.f32 %v1270, %v1403
  %v1405 = vpop.f32.mrb[0].mxu0
  %v1406 = vadd.f32 %v1266, %v1405
  %v1407 = vpop.f32.mrb[0].mxu0
  %v1408 = vadd.f32 %v1270, %v1407
  %1409 = vmatprep.mubr.bf16.mxu0 0
  %1410 = vmatmul.mubr.bf16.gmra.mrb[0].mxu0 %v1312
  %v1411 = vpop.f32.mrb[0].mxu0
  %v1412 = vadd.f32 %v1266, %v1411
  %v1413 = vpop.f32.mrb[0].mxu0
  %v1414 = vadd.f32 %v1270, %v1413
  %v1415 = vpop.f32.mrb[0].mxu0
  %v1416 = vadd.f32 %v1266, %v1415
  %v1417 = vpop.f32.mrb[0].mxu0
  %v1418 = vadd.f32 %v1270, %v1417
  %1419 = vmatprep.mubr.bf16.mxu0 0
  %1420 = vmatmul.mubr.bf16.gmra.mrb[0].mxu0 %v1315
  %v1421 = vpop.f32.mrb[0].mxu0
  %v1422 = vadd.f32 %v1266, %v1421
  %v1423 = vpop.f32.mrb[0].mxu0
  %v1424 = vadd.f32 %v1270, %v1423
  %v1425 = vpop.f32.mrb[0].mxu0
  %v1426 = vadd.f32 %v1266, %v1425
  %v1427 = vpop.f32.mrb[0].mxu0
  %v1428 = vadd.f32 %v1270, %v1427
  %1429 = vdwg.mxu0
  %v1430 = vpack.c.bf16 %v1356, %v1352
  %v1431 = vpack.c.bf16 %v1358, %v1354
  %v1432 = vpack.c.bf16 %v1366, %v1362
  %v1433 = vpack.c.bf16 %v1368, %v1364
  %v1434 = vpack.c.bf16 %v1376, %v1372
  %v1435 = vpack.c.bf16 %v1378, %v1374
  %v1436 = vpack.c.bf16 %v1386, %v1382
  %v1437 = vpack.c.bf16 %v1388, %v1384
  %v1438 = vpack.c.bf16 %v1396, %v1392
  %v1439 = vpack.c.bf16 %v1398, %v1394
  %v1440 = vpack.c.bf16 %v1406, %v1402
  %v1441 = vpack.c.bf16 %v1408, %v1404
  %v1442 = vpack.c.bf16 %v1416, %v1412
  %v1443 = vpack.c.bf16 %v1418, %v1414
  %v1444 = vpack.c.bf16 %v1426, %v1422
  %v1445 = vpack.c.bf16 %v1428, %v1424
  %v1462 = vunpack.c.l.b16 %v1430
  %v1463 = vunpack.c.l.b16 %v1431
  %v1464 = vunpack.c.h.b16 %v1430
  %v1465 = vunpack.c.h.b16 %v1431
  %v1466 = vunpack.c.l.b16 %v1432
  %v1467 = vunpack.c.l.b16 %v1433
  %v1468 = vunpack.c.h.b16 %v1432
  %v1469 = vunpack.c.h.b16 %v1433
  %v1470 = vunpack.c.l.b16 %v1434
  %v1471 = vunpack.c.l.b16 %v1435
  %v1472 = vunpack.c.h.b16 %v1434
  %v1473 = vunpack.c.h.b16 %v1435
  %v1474 = vunpack.c.l.b16 %v1436
  %v1475 = vunpack.c.l.b16 %v1437
  %v1476 = vunpack.c.h.b16 %v1436
  %v1477 = vunpack.c.h.b16 %v1437
  %v1478 = vunpack.c.l.b16 %v1438
  %v1479 = vunpack.c.l.b16 %v1439
  %v1480 = vunpack.c.h.b16 %v1438
  %v1481 = vunpack.c.h.b16 %v1439
  %v1482 = vunpack.c.l.b16 %v1440
  %v1483 = vunpack.c.l.b16 %v1441
  %v1484 = vunpack.c.h.b16 %v1440
  %v1485 = vunpack.c.h.b16 %v1441
  %v1486 = vunpack.c.l.b16 %v1442
  %v1487 = vunpack.c.l.b16 %v1443
  %v1488 = vunpack.c.h.b16 %v1442
  %v1489 = vunpack.c.h.b16 %v1443
  %v1490 = vunpack.c.l.b16 %v1444
  %v1491 = vunpack.c.l.b16 %v1445
  %v1492 = vunpack.c.h.b16 %v1444
  %v1493 = vunpack.c.h.b16 %v1445
  %v1494 = vpack.c.b16 %v1463, %v1462
  %v1495 = vpack.c.b16 %v1465, %v1464
  %v1496 = vpack.c.b16 %v1467, %v1466
  %v1497 = vpack.c.b16 %v1469, %v1468
  %v1498 = vpack.c.b16 %v1471, %v1470
  %v1499 = vpack.c.b16 %v1473, %v1472
  %v1500 = vpack.c.b16 %v1475, %v1474
  %v1501 = vpack.c.b16 %v1477, %v1476
  %v1502 = vpack.c.b16 %v1479, %v1478
  %v1503 = vpack.c.b16 %v1481, %v1480
  %v1504 = vpack.c.b16 %v1483, %v1482
  %v1505 = vpack.c.b16 %v1485, %v1484
  %v1506 = vpack.c.b16 %v1487, %v1486
  %v1507 = vpack.c.b16 %v1489, %v1488
  %v1508 = vpack.c.b16 %v1491, %v1490
  %v1509 = vpack.c.b16 %v1493, %v1492
  %1526 = vst [vmem:[%s63] sm:$0xff] %v1494
  %1527 = vst [vmem:[%s63 + $0x8] sm:$0xff] %v1495
  %1528 = vst [vmem:[%s63 + $0x10] sm:$0xff] %v1496
  %1529 = vst [vmem:[%s63 + $0x18] sm:$0xff] %v1497
  %1530 = vst [vmem:[%s63 + $0x20] sm:$0xff] %v1498
  %1531 = vst [vmem:[%s63 + $0x28] sm:$0xff] %v1499
  %1532 = vst [vmem:[%s63 + $0x30] sm:$0xff] %v1500
  %1533 = vst [vmem:[%s63 + $0x38] sm:$0xff] %v1501
  %1534 = vst [vmem:[%s63 + $0x40] sm:$0xff] %v1502
  %1535 = vst [vmem:[%s63 + $0x48] sm:$0xff] %v1503
  %1536 = vst [vmem:[%s63 + $0x50] sm:$0xff] %v1504
  %1537 = vst [vmem:[%s63 + $0x58] sm:$0xff] %v1505
  %1538 = vst [vmem:[%s63 + $0x60] sm:$0xff] %v1506
  %1539 = vst [vmem:[%s63 + $0x68] sm:$0xff] %v1507
  %1540 = vst [vmem:[%s63 + $0x70] sm:$0xff] %v1508
  %1541 = vst [vmem:[%s63 + $0x78] sm:$0xff] %v1509
  %v1542 = vld [vmem:[%s31] sm:$0xf]
  %v1543 = vld [vmem:[%s31 + $0x4] sm:$0xf]
  %v1544 = vld [vmem:[%s31 + $0x8] sm:$0xf]
  %v1545 = vld [vmem:[%s31 + $0xc] sm:$0xf]
  %v1546 = vld [vmem:[%s33] sm:$0xf]
  %v1547 = vld [vmem:[%s33 + $0x4] sm:$0xf]
  %v1548 = vld [vmem:[%s33 + $0x8] sm:$0xf]
  %v1549 = vld [vmem:[%s33 + $0xc] sm:$0xf]
  %v1550 = vld [vmem:[%s33 + $0x10] sm:$0xf]
  %v1551 = vld [vmem:[%s33 + $0x14] sm:$0xf]
  %v1552 = vld [vmem:[%s33 + $0x18] sm:$0xf]
  %v1553 = vld [vmem:[%s33 + $0x1c] sm:$0xf]
  %v1554 = vld [vmem:[%s33 + $0x20] sm:$0xf]
  %v1555 = vld [vmem:[%s33 + $0x24] sm:$0xf]
  %v1556 = vld [vmem:[%s33 + $0x28] sm:$0xf]
  %v1557 = vld [vmem:[%s33 + $0x2c] sm:$0xf]
  %v1558 = vld [vmem:[%s33 + $0x30] sm:$0xf]
  %v1559 = vld [vmem:[%s33 + $0x34] sm:$0xf]
  %v1560 = vld [vmem:[%s33 + $0x38] sm:$0xf]
  %v1561 = vld [vmem:[%s33 + $0x3c] sm:$0xf]
  %v1562 = vld [vmem:[%s33 + $0x40] sm:$0xf]
  %v1563 = vld [vmem:[%s33 + $0x44] sm:$0xf]
  %v1564 = vld [vmem:[%s33 + $0x48] sm:$0xf]
  %v1565 = vld [vmem:[%s33 + $0x4c] sm:$0xf]
  %v1566 = vld [vmem:[%s33 + $0x50] sm:$0xf]
  %v1567 = vld [vmem:[%s33 + $0x54] sm:$0xf]
  %v1568 = vld [vmem:[%s33 + $0x58] sm:$0xf]
  %v1569 = vld [vmem:[%s33 + $0x5c] sm:$0xf]
  %v1570 = vld [vmem:[%s33 + $0x60] sm:$0xf]
  %v1571 = vld [vmem:[%s33 + $0x64] sm:$0xf]
  %v1572 = vld [vmem:[%s33 + $0x68] sm:$0xf]
  %v1573 = vld [vmem:[%s33 + $0x6c] sm:$0xf]
  %v1574 = vld [vmem:[%s33 + $0x70] sm:$0xf]
  %v1575 = vld [vmem:[%s33 + $0x74] sm:$0xf]
  %v1576 = vld [vmem:[%s33 + $0x78] sm:$0xf]
  %v1577 = vld [vmem:[%s33 + $0x7c] sm:$0xf]
  %v1610 = vunpack.c.l.b16 %v1546
  %v1611 = vunpack.c.l.b16 %v1547
  %v1612 = vunpack.c.l.b16 %v1548
  %v1613 = vunpack.c.l.b16 %v1549
  %v1614 = vunpack.c.l.b16 %v1550
  %v1615 = vunpack.c.l.b16 %v1551
  %v1616 = vunpack.c.l.b16 %v1552
  %v1617 = vunpack.c.l.b16 %v1553
  %v1618 = vunpack.c.l.b16 %v1554
  %v1619 = vunpack.c.l.b16 %v1555
  %v1620 = vunpack.c.l.b16 %v1556
  %v1621 = vunpack.c.l.b16 %v1557
  %v1622 = vunpack.c.l.b16 %v1558
  %v1623 = vunpack.c.l.b16 %v1559
  %v1624 = vunpack.c.l.b16 %v1560
  %v1625 = vunpack.c.l.b16 %v1561
  %v1626 = vunpack.c.l.b16 %v1562
  %v1627 = vunpack.c.l.b16 %v1563
  %v1628 = vunpack.c.l.b16 %v1564
  %v1629 = vunpack.c.l.b16 %v1565
  %v1630 = vunpack.c.l.b16 %v1566
  %v1631 = vunpack.c.l.b16 %v1567
  %v1632 = vunpack.c.l.b16 %v1568
  %v1633 = vunpack.c.l.b16 %v1569
  %v1634 = vunpack.c.l.b16 %v1570
  %v1635 = vunpack.c.l.b16 %v1571
  %v1636 = vunpack.c.l.b16 %v1572
  %v1637 = vunpack.c.l.b16 %v1573
  %v1638 = vunpack.c.l.b16 %v1574
  %v1639 = vunpack.c.l.b16 %v1575
  %v1640 = vunpack.c.l.b16 %v1576
  %v1641 = vunpack.c.l.b16 %v1577
  %v1642 = vpack.c.b16 %v1611, %v1610
  %v1643 = vpack.c.b16 %v1613, %v1612
  %v1644 = vpack.c.b16 %v1615, %v1614
  %v1645 = vpack.c.b16 %v1617, %v1616
  %v1646 = vpack.c.b16 %v1619, %v1618
  %v1647 = vpack.c.b16 %v1621, %v1620
  %v1648 = vpack.c.b16 %v1623, %v1622
  %v1649 = vpack.c.b16 %v1625, %v1624
  %v1650 = vpack.c.b16 %v1627, %v1626
  %v1651 = vpack.c.b16 %v1629, %v1628
  %v1652 = vpack.c.b16 %v1631, %v1630
  %v1653 = vpack.c.b16 %v1633, %v1632
  %v1654 = vpack.c.b16 %v1635, %v1634
  %v1655 = vpack.c.b16 %v1637, %v1636
  %v1656 = vpack.c.b16 %v1639, %v1638
  %v1657 = vpack.c.b16 %v1641, %v1640
  %1674 = vmatprep.subr.bf16.mxu0 0
  %1675 = vmatpush1.bf16.msra.mxu0 %v1642
  %1676 = vmatprep.subr.bf16.mxu0 0
  %1677 = vmatpush1.bf16.msra.mxu0 %v1643
  %1678 = vmatprep.subr.bf16.mxu0 0
  %1679 = vmatpush1.bf16.msra.mxu0 %v1644
  %1680 = vmatprep.subr.bf16.mxu0 0
  %1681 = vmatpush1.bf16.msra.mxu0 %v1645
  %1682 = vmatprep.subr.bf16.mxu0 0
  %1683 = vmatpush1.bf16.msra.mxu0 %v1646
  %1684 = vmatprep.subr.bf16.mxu0 0
  %1685 = vmatpush1.bf16.msra.mxu0 %v1647
  %1686 = vmatprep.subr.bf16.mxu0 0
  %1687 = vmatpush1.bf16.msra.mxu0 %v1648
  %1688 = vmatprep.subr.bf16.mxu0 0
  %1689 = vmatpush1.bf16.msra.mxu0 %v1649
  %1690 = vmatprep.subr.bf16.mxu0 0
  %1691 = vmatpush1.bf16.msra.mxu0 %v1650
  %1692 = vmatprep.subr.bf16.mxu0 0
  %1693 = vmatpush1.bf16.msra.mxu0 %v1651
  %1694 = vmatprep.subr.bf16.mxu0 0
  %1695 = vmatpush1.bf16.msra.mxu0 %v1652
  %1696 = vmatprep.subr.bf16.mxu0 0
  %1697 = vmatpush1.bf16.msra.mxu0 %v1653
  %1698 = vmatprep.subr.bf16.mxu0 0
  %1699 = vmatpush1.bf16.msra.mxu0 %v1654
  %1700 = vmatprep.subr.bf16.mxu0 0
  %1701 = vmatpush1.bf16.msra.mxu0 %v1655
  %1702 = vmatprep.subr.bf16.mxu0 0
  %1703 = vmatpush1.bf16.msra.mxu0 %v1656
  %1704 = vmatprep.subr.bf16.mxu0 0
  %1705 = vmatpush1.bf16.msra.mxu0 %v1657
  %1706 = vmatprep.mubr.bf16.mxu0 %v1431
  %1707 = vmatmul.mubr.bf16.gmra.mrb[0].mxu0 %v1430
  %v1708 = vpop.f32.mrb[0].mxu0
  %v1709 = vadd.f32 0.0, %v1708
  %v1710 = vpop.f32.mrb[0].mxu0
  %v1711 = vpop.f32.mrb[0].mxu0
  %v1712 = vadd.f32 0.0, %v1711
  %v1713 = vpop.f32.mrb[0].mxu0
  %1714 = vmatprep.mubr.bf16.mxu0 %v1433
  %1715 = vmatmul.mubr.bf16.gmra.mrb[0].mxu0 %v1432
  %v1716 = vpop.f32.mrb[0].mxu0
  %v1717 = vadd.f32 0.0, %v1716
  %v1718 = vpop.f32.mrb[0].mxu0
  %v1719 = vpop.f32.mrb[0].mxu0
  %v1720 = vadd.f32 0.0, %v1719
  %v1721 = vpop.f32.mrb[0].mxu0
  %1722 = vmatprep.mubr.bf16.mxu0 %v1435
  %1723 = vmatmul.mubr.bf16.gmra.mrb[0].mxu0 %v1434
  %v1724 = vpop.f32.mrb[0].mxu0
  %v1725 = vadd.f32 0.0, %v1724
  %v1726 = vpop.f32.mrb[0].mxu0
  %v1727 = vpop.f32.mrb[0].mxu0
  %v1728 = vadd.f32 0.0, %v1727
  %v1729 = vpop.f32.mrb[0].mxu0
  %1730 = vmatprep.mubr.bf16.mxu0 %v1437
  %1731 = vmatmul.mubr.bf16.gmra.mrb[0].mxu0 %v1436
  %v1732 = vpop.f32.mrb[0].mxu0
  %v1733 = vadd.f32 0.0, %v1732
  %v1734 = vpop.f32.mrb[0].mxu0
  %v1735 = vpop.f32.mrb[0].mxu0
  %v1736 = vadd.f32 0.0, %v1735
  %v1737 = vpop.f32.mrb[0].mxu0
  %1738 = vmatprep.mubr.bf16.mxu0 %v1439
  %1739 = vmatmul.mubr.bf16.gmra.mrb[0].mxu0 %v1438
  %v1740 = vpop.f32.mrb[0].mxu0
  %v1741 = vadd.f32 0.0, %v1740
  %v1742 = vpop.f32.mrb[0].mxu0
  %v1743 = vpop.f32.mrb[0].mxu0
  %v1744 = vadd.f32 0.0, %v1743
  %v1745 = vpop.f32.mrb[0].mxu0
  %1746 = vmatprep.mubr.bf16.mxu0 %v1441
  %1747 = vmatmul.mubr.bf16.gmra.mrb[0].mxu0 %v1440
  %v1748 = vpop.f32.mrb[0].mxu0
  %v1749 = vadd.f32 0.0, %v1748
  %v1750 = vpop.f32.mrb[0].mxu0
  %v1751 = vpop.f32.mrb[0].mxu0
  %v1752 = vadd.f32 0.0, %v1751
  %v1753 = vpop.f32.mrb[0].mxu0
  %1754 = vmatprep.mubr.bf16.mxu0 %v1443
  %1755 = vmatmul.mubr.bf16.gmra.mrb[0].mxu0 %v1442
  %v1756 = vpop.f32.mrb[0].mxu0
  %v1757 = vadd.f32 0.0, %v1756
  %v1758 = vpop.f32.mrb[0].mxu0
  %v1759 = vpop.f32.mrb[0].mxu0
  %v1760 = vadd.f32 0.0, %v1759
  %v1761 = vpop.f32.mrb[0].mxu0
  %1762 = vmatprep.mubr.bf16.mxu0 %v1445
  %1763 = vmatmul.mubr.bf16.gmra.mrb[0].mxu0 %v1444
  %v1764 = vpop.f32.mrb[0].mxu0
  %v1765 = vadd.f32 0.0, %v1764
  %v1766 = vpop.f32.mrb[0].mxu0
  %v1767 = vpop.f32.mrb[0].mxu0
  %v1768 = vadd.f32 0.0, %v1767
  %v1769 = vpop.f32.mrb[0].mxu0
  %1770 = vdwg.mxu0
  %v1775 = vunpack.c.l.b16 %v1542
  %v1776 = vunpack.c.l.b16 %v1543
  %v1777 = vunpack.c.l.b16 %v1544
  %v1778 = vunpack.c.l.b16 %v1545
  %v1779 = vpack.c.b16 %v1776, %v1775
  %v1780 = vpack.c.b16 %v1778, %v1777
  %1783 = vmatprep.subr.bf16.mxu0 0
  %1784 = vmatpush1.bf16.msra.mxu0 %v1779
  %1785 = vmatprep.subr.bf16.mxu0 0
  %1786 = vmatpush1.bf16.msra.mxu0 %v1780
  %1787 = vmatprep.subr.bf16.mxu0 0
  %1788 = vmatpush1.bf16.msra.mxu0 0
  %1789 = vmatprep.subr.bf16.mxu0 0
  %1790 = vmatpush1.bf16.msra.mxu0 0
  %1791 = vmatprep.subr.bf16.mxu0 0
  %1792 = vmatpush1.bf16.msra.mxu0 0
  %1793 = vmatprep.subr.bf16.mxu0 0
  %1794 = vmatpush1.bf16.msra.mxu0 0
  %1795 = vmatprep.subr.bf16.mxu0 0
  %1796 = vmatpush1.bf16.msra.mxu0 0
  %1797 = vmatprep.subr.bf16.mxu0 0
  %1798 = vmatpush1.bf16.msra.mxu0 0
  %1799 = vmatprep.subr.bf16.mxu0 0
  %1800 = vmatpush1.bf16.msra.mxu0 0
  %1801 = vmatprep.subr.bf16.mxu0 0
  %1802 = vmatpush1.bf16.msra.mxu0 0
  %1803 = vmatprep.subr.bf16.mxu0 0
  %1804 = vmatpush1.bf16.msra.mxu0 0
  %1805 = vmatprep.subr.bf16.mxu0 0
  %1806 = vmatpush1.bf16.msra.mxu0 0
  %1807 = vmatprep.subr.bf16.mxu0 0
  %1808 = vmatpush1.bf16.msra.mxu0 0
  %1809 = vmatprep.subr.bf16.mxu0 0
  %1810 = vmatpush1.bf16.msra.mxu0 0
  %1811 = vmatprep.subr.bf16.mxu0 0
  %1812 = vmatpush1.bf16.msra.mxu0 0
  %1813 = vmatprep.subr.bf16.mxu0 0
  %1814 = vmatpush1.bf16.msra.mxu0 0
  %1815 = vmatprep.mubr.bf16.mxu0 0
  %1816 = vmatmul.mubr.bf16.gmra.mrb[0].mxu0 %v673
  %v1817 = vpop.f32.mrb[0].mxu0
  %v1818 = vadd.f32 %v1709, %v1817
  %v1819 = vpop.f32.mrb[0].mxu0
  %v1820 = vpop.f32.mrb[0].mxu0
  %v1821 = vadd.f32 %v1712, %v1820
  %v1822 = vpop.f32.mrb[0].mxu0
  %1823 = vmatprep.mubr.bf16.mxu0 0
  %1824 = vmatmul.mubr.bf16.gmra.mrb[0].mxu0 %v676
  %v1825 = vpop.f32.mrb[0].mxu0
  %v1826 = vadd.f32 %v1717, %v1825
  %v1827 = vpop.f32.mrb[0].mxu0
  %v1828 = vpop.f32.mrb[0].mxu0
  %v1829 = vadd.f32 %v1720, %v1828
  %v1830 = vpop.f32.mrb[0].mxu0
  %1831 = vmatprep.mubr.bf16.mxu0 0
  %1832 = vmatmul.mubr.bf16.gmra.mrb[0].mxu0 %v679
  %v1833 = vpop.f32.mrb[0].mxu0
  %v1834 = vadd.f32 %v1725, %v1833
  %v1835 = vpop.f32.mrb[0].mxu0
  %v1836 = vpop.f32.mrb[0].mxu0
  %v1837 = vadd.f32 %v1728, %v1836
  %v1838 = vpop.f32.mrb[0].mxu0
  %1839 = vmatprep.mubr.bf16.mxu0 0
  %1840 = vmatmul.mubr.bf16.gmra.mrb[0].mxu0 %v682
  %v1841 = vpop.f32.mrb[0].mxu0
  %v1842 = vadd.f32 %v1733, %v1841
  %v1843 = vpop.f32.mrb[0].mxu0
  %v1844 = vpop.f32.mrb[0].mxu0
  %v1845 = vadd.f32 %v1736, %v1844
  %v1846 = vpop.f32.mrb[0].mxu0
  %1847 = vmatprep.mubr.bf16.mxu0 0
  %1848 = vmatmul.mubr.bf16.gmra.mrb[0].mxu0 %v685
  %v1849 = vpop.f32.mrb[0].mxu0
  %v1850 = vadd.f32 %v1741, %v1849
  %v1851 = vpop.f32.mrb[0].mxu0
  %v1852 = vpop.f32.mrb[0].mxu0
  %v1853 = vadd.f32 %v1744, %v1852
  %v1854 = vpop.f32.mrb[0].mxu0
  %1855 = vmatprep.mubr.bf16.mxu0 0
  %1856 = vmatmul.mubr.bf16.gmra.mrb[0].mxu0 %v688
  %v1857 = vpop.f32.mrb[0].mxu0
  %v1858 = vadd.f32 %v1749, %v1857
  %v1859 = vpop.f32.mrb[0].mxu0
  %v1860 = vpop.f32.mrb[0].mxu0
  %v1861 = vadd.f32 %v1752, %v1860
  %v1862 = vpop.f32.mrb[0].mxu0
  %1863 = vmatprep.mubr.bf16.mxu0 0
  %1864 = vmatmul.mubr.bf16.gmra.mrb[0].mxu0 %v691
  %v1865 = vpop.f32.mrb[0].mxu0
  %v1866 = vadd.f32 %v1757, %v1865
  %v1867 = vpop.f32.mrb[0].mxu0
  %v1868 = vpop.f32.mrb[0].mxu0
  %v1869 = vadd.f32 %v1760, %v1868
  %v1870 = vpop.f32.mrb[0].mxu0
  %1871 = vmatprep.mubr.bf16.mxu0 0
  %1872 = vmatmul.mubr.bf16.gmra.mrb[0].mxu0 %v694
  %v1873 = vpop.f32.mrb[0].mxu0
  %v1874 = vadd.f32 %v1765, %v1873
  %v1875 = vpop.f32.mrb[0].mxu0
  %v1876 = vpop.f32.mrb[0].mxu0
  %v1877 = vadd.f32 %v1768, %v1876
  %v1878 = vpop.f32.mrb[0].mxu0
  %1879 = vdwg.mxu0
  %v1880 = vld [vmem:[%s35] sm:$0x1]
  %v1882 = vlaneseq
  %v1883 = vshrl.u32 %v1882, 7
  %v1884 = vsub.s32 0, %v1883
  %v1885 = vrot.slane %v1880, %v1884
  %v1887 = vadd.f32 %v1818, %v1885
  %v1888 = vadd.f32 %v1821, %v1885
  %v1889 = vadd.f32 %v1826, %v1885
  %v1890 = vadd.f32 %v1829, %v1885
  %v1891 = vadd.f32 %v1834, %v1885
  %v1892 = vadd.f32 %v1837, %v1885
  %v1893 = vadd.f32 %v1842, %v1885
  %v1894 = vadd.f32 %v1845, %v1885
  %v1895 = vadd.f32 %v1850, %v1885
  %v1896 = vadd.f32 %v1853, %v1885
  %v1897 = vadd.f32 %v1858, %v1885
  %v1898 = vadd.f32 %v1861, %v1885
  %v1899 = vadd.f32 %v1866, %v1885
  %v1900 = vadd.f32 %v1869, %v1885
  %v1901 = vadd.f32 %v1874, %v1885
  %v1902 = vadd.f32 %v1877, %v1885
  %vm1903 = vcmp.gt.f32.partialorder %v1887, 0.0
  %vm1904 = vcmp.gt.f32.partialorder %v1888, 0.0
  %vm1905 = vcmp.gt.f32.partialorder %v1889, 0.0
  %vm1906 = vcmp.gt.f32.partialorder %v1890, 0.0
  %vm1907 = vcmp.gt.f32.partialorder %v1891, 0.0
  %vm1908 = vcmp.gt.f32.partialorder %v1892, 0.0
  %vm1909 = vcmp.gt.f32.partialorder %v1893, 0.0
  %vm1910 = vcmp.gt.f32.partialorder %v1894, 0.0
  %vm1911 = vcmp.gt.f32.partialorder %v1895, 0.0
  %vm1912 = vcmp.gt.f32.partialorder %v1896, 0.0
  %vm1913 = vcmp.gt.f32.partialorder %v1897, 0.0
  %vm1914 = vcmp.gt.f32.partialorder %v1898, 0.0
  %vm1915 = vcmp.gt.f32.partialorder %v1899, 0.0
  %vm1916 = vcmp.gt.f32.partialorder %v1900, 0.0
  %vm1917 = vcmp.gt.f32.partialorder %v1901, 0.0
  %vm1918 = vcmp.gt.f32.partialorder %v1902, 0.0
  %v1919 = vmin.f32 %v1887, 0.0
  %v1920 = vmin.f32 %v1888, 0.0
  %v1921 = vmin.f32 %v1889, 0.0
  %v1922 = vmin.f32 %v1890, 0.0
  %v1923 = vmin.f32 %v1891, 0.0
  %v1924 = vmin.f32 %v1892, 0.0
  %v1925 = vmin.f32 %v1893, 0.0
  %v1926 = vmin.f32 %v1894, 0.0
  %v1927 = vmin.f32 %v1895, 0.0
  %v1928 = vmin.f32 %v1896, 0.0
  %v1929 = vmin.f32 %v1897, 0.0
  %v1930 = vmin.f32 %v1898, 0.0
  %v1931 = vmin.f32 %v1899, 0.0
  %v1932 = vmin.f32 %v1900, 0.0
  %v1933 = vmin.f32 %v1901, 0.0
  %v1934 = vmin.f32 %v1902, 0.0
  %v1935 = vmul.f32 %v1919, 1.442695
  %v1936 = vpow.pop %v1935
  %v1937 = vmul.f32 %v1920, 1.442695
  %v1938 = vpow.pop %v1937
  %v1939 = vmul.f32 %v1921, 1.442695
  %v1940 = vpow.pop %v1939
  %v1941 = vmul.f32 %v1922, 1.442695
  %v1942 = vpow.pop %v1941
  %v1943 = vmul.f32 %v1923, 1.442695
  %v1944 = vpow.pop %v1943
  %v1945 = vmul.f32 %v1924, 1.442695
  %v1946 = vpow.pop %v1945
  %v1947 = vmul.f32 %v1925, 1.442695
  %v1948 = vpow.pop %v1947
  %v1949 = vmul.f32 %v1926, 1.442695
  %v1950 = vpow.pop %v1949
  %v1951 = vmul.f32 %v1927, 1.442695
  %v1952 = vpow.pop %v1951
  %v1953 = vmul.f32 %v1928, 1.442695
  %v1954 = vpow.pop %v1953
  %v1955 = vmul.f32 %v1929, 1.442695
  %v1956 = vpow.pop %v1955
  %v1957 = vmul.f32 %v1930, 1.442695
  %v1958 = vpow.pop %v1957
  %v1959 = vmul.f32 %v1931, 1.442695
  %v1960 = vpow.pop %v1959
  %v1961 = vmul.f32 %v1932, 1.442695
  %v1962 = vpow.pop %v1961
  %v1963 = vmul.f32 %v1933, 1.442695
  %v1964 = vpow.pop %v1963
  %v1965 = vmul.f32 %v1934, 1.442695
  %v1966 = vpow.pop %v1965
  %v1967 = vsub.f32 %v1936, 1.0
  %v1968 = vsub.f32 %v1938, 1.0
  %v1969 = vsub.f32 %v1940, 1.0
  %v1970 = vsub.f32 %v1942, 1.0
  %v1971 = vsub.f32 %v1944, 1.0
  %v1972 = vsub.f32 %v1946, 1.0
  %v1973 = vsub.f32 %v1948, 1.0
  %v1974 = vsub.f32 %v1950, 1.0
  %v1975 = vsub.f32 %v1952, 1.0
  %v1976 = vsub.f32 %v1954, 1.0
  %v1977 = vsub.f32 %v1956, 1.0
  %v1978 = vsub.f32 %v1958, 1.0
  %v1979 = vsub.f32 %v1960, 1.0
  %v1980 = vsub.f32 %v1962, 1.0
  %v1981 = vsub.f32 %v1964, 1.0
  %v1982 = vsub.f32 %v1966, 1.0
  %v1983 = vsel %vm1903, %v1887, %v1967
  %v1984 = vsel %vm1904, %v1888, %v1968
  %v1985 = vsel %vm1905, %v1889, %v1969
  %v1986 = vsel %vm1906, %v1890, %v1970
  %v1987 = vsel %vm1907, %v1891, %v1971
  %v1988 = vsel %vm1908, %v1892, %v1972
  %v1989 = vsel %vm1909, %v1893, %v1973
  %v1990 = vsel %vm1910, %v1894, %v1974
  %v1991 = vsel %vm1911, %v1895, %v1975
  %v1992 = vsel %vm1912, %v1896, %v1976
  %v1993 = vsel %vm1913, %v1897, %v1977
  %v1994 = vsel %vm1914, %v1898, %v1978
  %v1995 = vsel %vm1915, %v1899, %v1979
  %v1996 = vsel %vm1916, %v1900, %v1980
  %v1997 = vsel %vm1917, %v1901, %v1981
  %v1998 = vsel %vm1918, %v1902, %v1982
  %v1999 = vld [vmem:[%s37] sm:$0xf]
  %v2000 = vld [vmem:[%s37 + $0x4] sm:$0xf]
  %v2001 = vld [vmem:[%s37 + $0x8] sm:$0xf]
  %v2002 = vld [vmem:[%s37 + $0xc] sm:$0xf]
  %v2003 = vld [vmem:[%s37 + $0x10] sm:$0xf]
  %v2004 = vld [vmem:[%s37 + $0x14] sm:$0xf]
  %v2005 = vld [vmem:[%s37 + $0x18] sm:$0xf]
  %v2006 = vld [vmem:[%s37 + $0x1c] sm:$0xf]
  %v2007 = vpack.c.bf16 %v1984, %v1983
  %v2008 = vpack.c.bf16 %v1986, %v1985
  %v2009 = vpack.c.bf16 %v1988, %v1987
  %v2010 = vpack.c.bf16 %v1990, %v1989
  %v2011 = vpack.c.bf16 %v1992, %v1991
  %v2012 = vpack.c.bf16 %v1994, %v1993
  %v2013 = vpack.c.bf16 %v1996, %v1995
  %v2014 = vpack.c.bf16 %v1998, %v1997
  %v2015 = vld [vmem:[%s39] sm:$0x1]
  %v2017 = vlaneseq
  %v2018 = vshrl.u32 %v2017, 7
  %v2019 = vsub.s32 0, %v2018
  %v2020 = vrot.slane %v2015, %v2019
  %v2030 = vunpack.c.l.b16 %v1999
  %v2031 = vunpack.c.l.b16 %v2000
  %v2032 = vunpack.c.l.b16 %v2001
  %v2033 = vunpack.c.l.b16 %v2002
  %v2034 = vunpack.c.l.b16 %v2003
  %v2035 = vunpack.c.l.b16 %v2004
  %v2036 = vunpack.c.l.b16 %v2005
  %v2037 = vunpack.c.l.b16 %v2006
  %v2038 = vpack.c.b16 %v2031, %v2030
  %v2039 = vpack.c.b16 %v2033, %v2032
  %v2040 = vpack.c.b16 %v2035, %v2034
  %v2041 = vpack.c.b16 %v2037, %v2036
  %vm2046 = vcmask 523264
  %v2048 = vsel %vm2046, %v2007, 0
  %v2051 = vsel %vm2046, %v2008, 0
  %v2054 = vsel %vm2046, %v2009, 0
  %v2057 = vsel %vm2046, %v2010, 0
  %v2060 = vsel %vm2046, %v2011, 0
  %v2063 = vsel %vm2046, %v2012, 0
  %v2066 = vsel %vm2046, %v2013, 0
  %v2069 = vsel %vm2046, %v2014, 0
  %2071 = vmatprep.subr.bf16.mxu0 0
  %2072 = vmatpush1.bf16.msra.mxu0 %v2038
  %2073 = vmatprep.subr.bf16.mxu0 0
  %2074 = vmatpush1.bf16.msra.mxu0 %v2039
  %2075 = vmatprep.subr.bf16.mxu0 0
  %2076 = vmatpush1.bf16.msra.mxu0 %v2040
  %2077 = vmatprep.subr.bf16.mxu0 0
  %2078 = vmatpush1.bf16.msra.mxu0 %v2041
  %2079 = vmatprep.subr.bf16.mxu0 0
  %2080 = vmatpush1.bf16.msra.mxu0 0
  %2081 = vmatprep.subr.bf16.mxu0 0
  %2082 = vmatpush1.bf16.msra.mxu0 0
  %2083 = vmatprep.subr.bf16.mxu0 0
  %2084 = vmatpush1.bf16.msra.mxu0 0
  %2085 = vmatprep.subr.bf16.mxu0 0
  %2086 = vmatpush1.bf16.msra.mxu0 0
  %2087 = vmatprep.subr.bf16.mxu0 0
  %2088 = vmatpush1.bf16.msra.mxu0 0
  %2089 = vmatprep.subr.bf16.mxu0 0
  %2090 = vmatpush1.bf16.msra.mxu0 0
  %2091 = vmatprep.subr.bf16.mxu0 0
  %2092 = vmatpush1.bf16.msra.mxu0 0
  %2093 = vmatprep.subr.bf16.mxu0 0
  %2094 = vmatpush1.bf16.msra.mxu0 0
  %2095 = vmatprep.subr.bf16.mxu0 0
  %2096 = vmatpush1.bf16.msra.mxu0 0
  %2097 = vmatprep.subr.bf16.mxu0 0
  %2098 = vmatpush1.bf16.msra.mxu0 0
  %2099 = vmatprep.subr.bf16.mxu0 0
  %2100 = vmatpush1.bf16.msra.mxu0 0
  %2101 = vmatprep.subr.bf16.mxu0 0
  %2102 = vmatpush1.bf16.msra.mxu0 0
  %2103 = vmatprep.mubr.bf16.mxu0 0
  %2104 = vmatmul.mubr.bf16.gmra.mrb[0].mxu0 %v2048
  %v2105 = vpop.f32.mrb[0].mxu0
  %v2106 = vadd.f32 %v2020, %v2105
  %v2107 = vpop.f32.mrb[0].mxu0
  %v2108 = vpop.f32.mrb[0].mxu0
  %v2109 = vadd.f32 %v2020, %v2108
  %v2110 = vpop.f32.mrb[0].mxu0
  %2111 = vmatprep.mubr.bf16.mxu0 0
  %2112 = vmatmul.mubr.bf16.gmra.mrb[0].mxu0 %v2051
  %v2113 = vpop.f32.mrb[0].mxu0
  %v2114 = vadd.f32 %v2020, %v2113
  %v2115 = vpop.f32.mrb[0].mxu0
  %v2116 = vpop.f32.mrb[0].mxu0
  %v2117 = vadd.f32 %v2020, %v2116
  %v2118 = vpop.f32.mrb[0].mxu0
  %2119 = vmatprep.mubr.bf16.mxu0 0
  %2120 = vmatmul.mubr.bf16.gmra.mrb[0].mxu0 %v2054
  %v2121 = vpop.f32.mrb[0].mxu0
  %v2122 = vadd.f32 %v2020, %v2121
  %v2123 = vpop.f32.mrb[0].mxu0
  %v2124 = vpop.f32.mrb[0].mxu0
  %v2125 = vadd.f32 %v2020, %v2124
  %v2126 = vpop.f32.mrb[0].mxu0
  %2127 = vmatprep.mubr.bf16.mxu0 0
  %2128 = vmatmul.mubr.bf16.gmra.mrb[0].mxu0 %v2057
  %v2129 = vpop.f32.mrb[0].mxu0
  %v2130 = vadd.f32 %v2020, %v2129
  %v2131 = vpop.f32.mrb[0].mxu0
  %v2132 = vpop.f32.mrb[0].mxu0
  %v2133 = vadd.f32 %v2020, %v2132
  %v2134 = vpop.f32.mrb[0].mxu0
  %2135 = vmatprep.mubr.bf16.mxu0 0
  %2136 = vmatmul.mubr.bf16.gmra.mrb[0].mxu0 %v2060
  %v2137 = vpop.f32.mrb[0].mxu0
  %v2138 = vadd.f32 %v2020, %v2137
  %v2139 = vpop.f32.mrb[0].mxu0
  %v2140 = vpop.f32.mrb[0].mxu0
  %v2141 = vadd.f32 %v2020, %v2140
  %v2142 = vpop.f32.mrb[0].mxu0
  %2143 = vmatprep.mubr.bf16.mxu0 0
  %2144 = vmatmul.mubr.bf16.gmra.mrb[0].mxu0 %v2063
  %v2145 = vpop.f32.mrb[0].mxu0
  %v2146 = vadd.f32 %v2020, %v2145
  %v2147 = vpop.f32.mrb[0].mxu0
  %v2148 = vpop.f32.mrb[0].mxu0
  %v2149 = vadd.f32 %v2020, %v2148
  %v2150 = vpop.f32.mrb[0].mxu0
  %2151 = vmatprep.mubr.bf16.mxu0 0
  %2152 = vmatmul.mubr.bf16.gmra.mrb[0].mxu0 %v2066
  %v2153 = vpop.f32.mrb[0].mxu0
  %v2154 = vadd.f32 %v2020, %v2153
  %v2155 = vpop.f32.mrb[0].mxu0
  %v2156 = vpop.f32.mrb[0].mxu0
  %v2157 = vadd.f32 %v2020, %v2156
  %v2158 = vpop.f32.mrb[0].mxu0
  %2159 = vmatprep.mubr.bf16.mxu0 0
  %2160 = vmatmul.mubr.bf16.gmra.mrb[0].mxu0 %v2069
  %v2161 = vpop.f32.mrb[0].mxu0
  %v2162 = vadd.f32 %v2020, %v2161
  %v2163 = vpop.f32.mrb[0].mxu0
  %v2164 = vpop.f32.mrb[0].mxu0
  %v2165 = vadd.f32 %v2020, %v2164
  %v2166 = vpop.f32.mrb[0].mxu0
  %2167 = vdwg.mxu0
  %v2168 = vld [vmem:[#allocation2] sm:$0xff]
  %v2169 = vld [vmem:[#allocation2 + $0x8] sm:$0xf]
  %v2170 = vld [vmem:[%s7] sm:$0xf]
  %v2171 = vld [vmem:[%s7 + $0x4] sm:$0x3]
  %v2172 = vpack.c.bf16 %v2109, %v2106
  %v2173 = vpack.c.bf16 %v2117, %v2114
  %v2174 = vpack.c.bf16 %v2125, %v2122
  %v2175 = vpack.c.bf16 %v2133, %v2130
  %v2176 = vpack.c.bf16 %v2141, %v2138
  %v2177 = vpack.c.bf16 %v2149, %v2146
  %v2178 = vpack.c.bf16 %v2157, %v2154
  %v2179 = vpack.c.bf16 %v2165, %v2162
  %v2182 = vunpack.c.l.b16 %v2170
  %v2183 = vunpack.c.l.b16 %v2171
  %v2184 = vpack.c.b16 %v2183, %v2182
  %2186 = vmatprep.subr.bf16.mxu0 0
  %2187 = vmatpush1.bf16.msra.mxu0 %v2172
  %2188 = vmatprep.subr.bf16.mxu0 0
  %2189 = vmatpush1.bf16.msra.mxu0 %v2173
  %2190 = vmatprep.subr.bf16.mxu0 0
  %2191 = vmatpush1.bf16.msra.mxu0 %v2174
  %2192 = vmatprep.subr.bf16.mxu0 0
  %2193 = vmatpush1.bf16.msra.mxu0 %v2175
  %2194 = vmatprep.subr.bf16.mxu0 0
  %2195 = vmatpush1.bf16.msra.mxu0 %v2176
  %2196 = vmatprep.subr.bf16.mxu0 0
  %2197 = vmatpush1.bf16.msra.mxu0 %v2177
  %2198 = vmatprep.subr.bf16.mxu0 0
  %2199 = vmatpush1.bf16.msra.mxu0 %v2178
  %2200 = vmatprep.subr.bf16.mxu0 0
  %2201 = vmatpush1.bf16.msra.mxu0 %v2179
  %2202 = vmatprep.subr.bf16.mxu0 0
  %2203 = vmatpush1.bf16.msra.mxu0 0
  %2204 = vmatprep.subr.bf16.mxu0 0
  %2205 = vmatpush1.bf16.msra.mxu0 0
  %2206 = vmatprep.subr.bf16.mxu0 0
  %2207 = vmatpush1.bf16.msra.mxu0 0
  %2208 = vmatprep.subr.bf16.mxu0 0
  %2209 = vmatpush1.bf16.msra.mxu0 0
  %2210 = vmatprep.subr.bf16.mxu0 0
  %2211 = vmatpush1.bf16.msra.mxu0 0
  %2212 = vmatprep.subr.bf16.mxu0 0
  %2213 = vmatpush1.bf16.msra.mxu0 0
  %2214 = vmatprep.subr.bf16.mxu0 0
  %2215 = vmatpush1.bf16.msra.mxu0 0
  %2216 = vmatprep.subr.bf16.mxu0 0
  %2217 = vmatpush1.bf16.msra.mxu0 0
  %2218 = vmatprep.mubr.bf16.mxu0 0
  %2219 = vmatmul.mubr.bf16.gmra.mrb[0].mxu0 %v2184
  %v2220 = vpop.f32.mrb[0].mxu0
  %v2221 = vadd.f32 0.0, %v2220
  %v2222 = vpop.f32.mrb[0].mxu0
  %v2223 = vpop.f32.mrb[0].mxu0
  %v2224 = vadd.f32 0.0, %v2223
  %v2225 = vpop.f32.mrb[0].mxu0
  %2226 = vdwg.mxu0
  %v2227 = vadd.f32 %v2168, %v2221
  %v2228 = vadd.f32 %v2169, %v2224
  %2229 = vst.msk [vmem:[#allocation2] sm:$0xff] %vm2046, %v2227
  %vm2230 = vcmask 519168
  %2231 = vst.msk [vmem:[#allocation2 + $0x8] sm:$0xf] %vm2230, %v2228
  // Predicated region
  $region126: #{net_forward.17} parent=0 // pred_check
    %p2232 = pneg %p132
  $region127: #{net_forward.17} parent=0 // pred_check_branch
    %2234 = sbr.rel (%p2232) target = $region129
  $region128: #{net_forward.17} parent=0 // pred_region
    %v2235 = vld [vmem:[#allocation2] sm:$0xff]
    %v2236 = vld [vmem:[#allocation2 + $0x8] sm:$0xf]
    %v2237 = vld [vmem:[%s15] sm:$0xff]
    %v2238 = vld [vmem:[%s15 + $0x8] sm:$0xf]
    %2240 = vset.pattern.permute.xlu0 0
    %2241 = vperm.xlu0 %2240, %v2237
    %v2242 = vpop.permute.xlu0 %2241
    %2245 = vset.pattern.permute.xlu0 0
    %2246 = vperm.xlu0 %2245, %v2238
    %v2247 = vpop.permute.xlu0 %2246
    %v2249 = vmul.f32 %v2235, %v2242
    %v2250 = vmul.f32 %v2236, %v2247
    %v2251 = vld [vmem:[%s41] sm:$0xf]
    %v2252 = vld [vmem:[%s41 + $0x4] sm:$0xf]
    %v2253 = vld [vmem:[%s41 + $0x8] sm:$0xf]
    %v2254 = vld [vmem:[%s41 + $0xc] sm:$0xf]
    %v2255 = vld [vmem:[%s43] sm:$0xf]
    %v2256 = vld [vmem:[%s43 + $0x4] sm:$0xf]
    %v2257 = vld [vmem:[%s43 + $0x8] sm:$0xf]
    %v2258 = vld [vmem:[%s43 + $0xc] sm:$0xf]
    %v2259 = vld [vmem:[%s43 + $0x10] sm:$0xf]
    %v2260 = vld [vmem:[%s43 + $0x14] sm:$0xf]
    %v2261 = vld [vmem:[%s43 + $0x18] sm:$0xf]
    %v2262 = vld [vmem:[%s43 + $0x1c] sm:$0xf]
    %v2263 = vpack.c.bf16 %v2250, %v2249
    %v2272 = vunpack.c.l.b16 %v2255
    %v2273 = vunpack.c.l.b16 %v2256
    %v2274 = vunpack.c.l.b16 %v2257
    %v2275 = vunpack.c.l.b16 %v2258
    %v2276 = vunpack.c.l.b16 %v2259
    %v2277 = vunpack.c.l.b16 %v2260
    %v2278 = vunpack.c.l.b16 %v2261
    %v2279 = vunpack.c.l.b16 %v2262
    %v2280 = vpack.c.b16 %v2273, %v2272
    %v2281 = vpack.c.b16 %v2275, %v2274
    %v2282 = vpack.c.b16 %v2277, %v2276
    %v2283 = vpack.c.b16 %v2279, %v2278
    %v2289 = vsel %vm2046, %v2263, 0
    %2291 = vmatprep.subr.bf16.mxu0 0
    %2292 = vmatpush1.bf16.msra.mxu0 %v2280
    %2293 = vmatprep.subr.bf16.mxu0 0
    %2294 = vmatpush1.bf16.msra.mxu0 %v2281
    %2295 = vmatprep.subr.bf16.mxu0 0
    %2296 = vmatpush1.bf16.msra.mxu0 %v2282
    %2297 = vmatprep.subr.bf16.mxu0 0
    %2298 = vmatpush1.bf16.msra.mxu0 %v2283
    %2299 = vmatprep.subr.bf16.mxu0 0
    %2300 = vmatpush1.bf16.msra.mxu0 0
    %2301 = vmatprep.subr.bf16.mxu0 0
    %2302 = vmatpush1.bf16.msra.mxu0 0
    %2303 = vmatprep.subr.bf16.mxu0 0
    %2304 = vmatpush1.bf16.msra.mxu0 0
    %2305 = vmatprep.subr.bf16.mxu0 0
    %2306 = vmatpush1.bf16.msra.mxu0 0
    %2307 = vmatprep.subr.bf16.mxu0 0
    %2308 = vmatpush1.bf16.msra.mxu0 0
    %2309 = vmatprep.subr.bf16.mxu0 0
    %2310 = vmatpush1.bf16.msra.mxu0 0
    %2311 = vmatprep.subr.bf16.mxu0 0
    %2312 = vmatpush1.bf16.msra.mxu0 0
    %2313 = vmatprep.subr.bf16.mxu0 0
    %2314 = vmatpush1.bf16.msra.mxu0 0
    %2315 = vmatprep.subr.bf16.mxu0 0
    %2316 = vmatpush1.bf16.msra.mxu0 0
    %2317 = vmatprep.subr.bf16.mxu0 0
    %2318 = vmatpush1.bf16.msra.mxu0 0
    %2319 = vmatprep.subr.bf16.mxu0 0
    %2320 = vmatpush1.bf16.msra.mxu0 0
    %2321 = vmatprep.subr.bf16.mxu0 0
    %2322 = vmatpush1.bf16.msra.mxu0 0
    %2323 = vmatprep.mubr.bf16.mxu0 0
    %2324 = vmatmul.mubr.bf16.gmra.mrb[0].mxu0 %v2289
    %v2325 = vpop.f32.mrb[0].mxu0
    %v2326 = vadd.f32 0.0, %v2325
    %v2327 = vpop.f32.mrb[0].mxu0
    %v2328 = vpop.f32.mrb[0].mxu0
    %v2329 = vadd.f32 0.0, %v2328
    %v2330 = vpop.f32.mrb[0].mxu0
    %2331 = vdwg.mxu0
    %v2336 = vunpack.c.l.b16 %v2251
    %v2337 = vunpack.c.l.b16 %v2252
    %v2338 = vunpack.c.l.b16 %v2253
    %v2339 = vunpack.c.l.b16 %v2254
    %v2340 = vpack.c.b16 %v2337, %v2336
    %v2341 = vpack.c.b16 %v2339, %v2338
    %v2344 = vsel %vm538, %v158, 0
    %2346 = vmatprep.subr.bf16.mxu0 0
    %2347 = vmatpush1.bf16.msra.mxu0 %v2340
    %2348 = vmatprep.subr.bf16.mxu0 0
    %2349 = vmatpush1.bf16.msra.mxu0 %v2341
    %2350 = vmatprep.subr.bf16.mxu0 0
    %2351 = vmatpush1.bf16.msra.mxu0 0
    %2352 = vmatprep.subr.bf16.mxu0 0
    %2353 = vmatpush1.bf16.msra.mxu0 0
    %2354 = vmatprep.subr.bf16.mxu0 0
    %2355 = vmatpush1.bf16.msra.mxu0 0
    %2356 = vmatprep.subr.bf16.mxu0 0
    %2357 = vmatpush1.bf16.msra.mxu0 0
    %2358 = vmatprep.subr.bf16.mxu0 0
    %2359 = vmatpush1.bf16.msra.mxu0 0
    %2360 = vmatprep.subr.bf16.mxu0 0
    %2361 = vmatpush1.bf16.msra.mxu0 0
    %2362 = vmatprep.subr.bf16.mxu0 0
    %2363 = vmatpush1.bf16.msra.mxu0 0
    %2364 = vmatprep.subr.bf16.mxu0 0
    %2365 = vmatpush1.bf16.msra.mxu0 0
    %2366 = vmatprep.subr.bf16.mxu0 0
    %2367 = vmatpush1.bf16.msra.mxu0 0
    %2368 = vmatprep.subr.bf16.mxu0 0
    %2369 = vmatpush1.bf16.msra.mxu0 0
    %2370 = vmatprep.subr.bf16.mxu0 0
    %2371 = vmatpush1.bf16.msra.mxu0 0
    %2372 = vmatprep.subr.bf16.mxu0 0
    %2373 = vmatpush1.bf16.msra.mxu0 0
    %2374 = vmatprep.subr.bf16.mxu0 0
    %2375 = vmatpush1.bf16.msra.mxu0 0
    %2376 = vmatprep.subr.bf16.mxu0 0
    %2377 = vmatpush1.bf16.msra.mxu0 0
    %2378 = vmatprep.mubr.bf16.mxu0 0
    %2379 = vmatmul.mubr.bf16.gmra.mrb[0].mxu0 %v2344
    %v2380 = vpop.f32.mrb[0].mxu0
    %v2381 = vadd.f32 %v2326, %v2380
    %v2382 = vpop.f32.mrb[0].mxu0
    %v2383 = vpop.f32.mrb[0].mxu0
    %v2384 = vadd.f32 %v2329, %v2383
    %v2385 = vpop.f32.mrb[0].mxu0
    %2386 = vdwg.mxu0
    %v2387 = vld [vmem:[%s45] sm:$0x1]
    %v2389 = vlaneseq
    %v2390 = vshrl.u32 %v2389, 7
    %v2391 = vsub.s32 0, %v2390
    %v2392 = vrot.slane %v2387, %v2391
    %v2394 = vadd.f32 %v2381, %v2392
    %v2395 = vadd.f32 %v2384, %v2392
    %vm2396 = vcmp.gt.f32.partialorder %v2394, 0.0
    %vm2397 = vcmp.gt.f32.partialorder %v2395, 0.0
    %v2398 = vmin.f32 %v2394, 0.0
    %v2399 = vmin.f32 %v2395, 0.0
    %v2400 = vmul.f32 %v2398, 1.442695
    %v2401 = vpow.pop %v2400
    %v2402 = vmul.f32 %v2399, 1.442695
    %v2403 = vpow.pop %v2402
    %v2404 = vsub.f32 %v2401, 1.0
    %v2405 = vsub.f32 %v2403, 1.0
    %v2406 = vsel %vm2396, %v2394, %v2404
    %v2407 = vsel %vm2397, %v2395, %v2405
    %v2408 = vld [vmem:[%s47] sm:$0xf]
    %v2409 = vld [vmem:[%s47 + $0x4] sm:$0xf]
    %v2410 = vld [vmem:[%s47 + $0x8] sm:$0xf]
    %v2411 = vld [vmem:[%s47 + $0xc] sm:$0xf]
    %v2412 = vld [vmem:[%s47 + $0x10] sm:$0xf]
    %v2413 = vld [vmem:[%s47 + $0x14] sm:$0xf]
    %v2414 = vld [vmem:[%s47 + $0x18] sm:$0xf]
    %v2415 = vld [vmem:[%s47 + $0x1c] sm:$0xf]
    %v2416 = vpack.c.bf16 %v2407, %v2406
    %v2417 = vld [vmem:[%s49] sm:$0x1]
    %v2419 = vlaneseq
    %v2420 = vshrl.u32 %v2419, 7
    %v2421 = vsub.s32 0, %v2420
    %v2422 = vrot.slane %v2417, %v2421
    %v2432 = vunpack.c.l.b16 %v2408
    %v2433 = vunpack.c.l.b16 %v2409
    %v2434 = vunpack.c.l.b16 %v2410
    %v2435 = vunpack.c.l.b16 %v2411
    %v2436 = vunpack.c.l.b16 %v2412
    %v2437 = vunpack.c.l.b16 %v2413
    %v2438 = vunpack.c.l.b16 %v2414
    %v2439 = vunpack.c.l.b16 %v2415
    %v2440 = vpack.c.b16 %v2433, %v2432
    %v2441 = vpack.c.b16 %v2435, %v2434
    %v2442 = vpack.c.b16 %v2437, %v2436
    %v2443 = vpack.c.b16 %v2439, %v2438
    %v2449 = vsel %vm2046, %v2416, 0
    %2451 = vmatprep.subr.bf16.mxu0 0
    %2452 = vmatpush1.bf16.msra.mxu0 %v2440
    %2453 = vmatprep.subr.bf16.mxu0 0
    %2454 = vmatpush1.bf16.msra.mxu0 %v2441
    %2455 = vmatprep.subr.bf16.mxu0 0
    %2456 = vmatpush1.bf16.msra.mxu0 %v2442
    %2457 = vmatprep.subr.bf16.mxu0 0
    %2458 = vmatpush1.bf16.msra.mxu0 %v2443
    %2459 = vmatprep.subr.bf16.mxu0 0
    %2460 = vmatpush1.bf16.msra.mxu0 0
    %2461 = vmatprep.subr.bf16.mxu0 0
    %2462 = vmatpush1.bf16.msra.mxu0 0
    %2463 = vmatprep.subr.bf16.mxu0 0
    %2464 = vmatpush1.bf16.msra.mxu0 0
    %2465 = vmatprep.subr.bf16.mxu0 0
    %2466 = vmatpush1.bf16.msra.mxu0 0
    %2467 = vmatprep.subr.bf16.mxu0 0
    %2468 = vmatpush1.bf16.msra.mxu0 0
    %2469 = vmatprep.subr.bf16.mxu0 0
    %2470 = vmatpush1.bf16.msra.mxu0 0
    %2471 = vmatprep.subr.bf16.mxu0 0
    %2472 = vmatpush1.bf16.msra.mxu0 0
    %2473 = vmatprep.subr.bf16.mxu0 0
    %2474 = vmatpush1.bf16.msra.mxu0 0
    %2475 = vmatprep.subr.bf16.mxu0 0
    %2476 = vmatpush1.bf16.msra.mxu0 0
    %2477 = vmatprep.subr.bf16.mxu0 0
    %2478 = vmatpush1.bf16.msra.mxu0 0
    %2479 = vmatprep.subr.bf16.mxu0 0
    %2480 = vmatpush1.bf16.msra.mxu0 0
    %2481 = vmatprep.subr.bf16.mxu0 0
    %2482 = vmatpush1.bf16.msra.mxu0 0
    %2483 = vmatprep.mubr.bf16.mxu0 0
    %2484 = vmatmul.mubr.bf16.gmra.mrb[0].mxu0 %v2449
    %v2485 = vpop.f32.mrb[0].mxu0
    %v2486 = vadd.f32 %v2422, %v2485
    %v2487 = vpop.f32.mrb[0].mxu0
    %v2488 = vpop.f32.mrb[0].mxu0
    %v2489 = vadd.f32 %v2422, %v2488
    %v2490 = vpop.f32.mrb[0].mxu0
    %2491 = vdwg.mxu0
    %2492 = vst.msk [vmem:[%s61] sm:$0xff] %vm538, %v2486
    %vm2493 = vcmask 257024
    %2494 = vst.msk [vmem:[%s61 + $0x8] sm:$0xf] %vm2493, %v2489
    %v2495 = vld [vmem:[%s13] sm:$0x1]
    %v2496 = vpack.c.bf16 %v2489, %v2486
    %v2498 = vsel %vm199, %v2495, 0
    %v2501 = vsel %vm224, %v2496, 0
    %2503 = vmatprep.subr.bf16.mxu0 0
    %2504 = vmatpush1.bf16.msra.mxu0 %v2501
    %2505 = vmatprep.subr.bf16.mxu0 0
    %2506 = vmatpush1.bf16.msra.mxu0 0
    %2507 = vmatprep.subr.bf16.mxu0 0
    %2508 = vmatpush1.bf16.msra.mxu0 0
    %2509 = vmatprep.subr.bf16.mxu0 0
    %2510 = vmatpush1.bf16.msra.mxu0 0
    %2511 = vmatprep.subr.bf16.mxu0 0
    %2512 = vmatpush1.bf16.msra.mxu0 0
    %2513 = vmatprep.subr.bf16.mxu0 0
    %2514 = vmatpush1.bf16.msra.mxu0 0
    %2515 = vmatprep.subr.bf16.mxu0 0
    %2516 = vmatpush1.bf16.msra.mxu0 0
    %2517 = vmatprep.subr.bf16.mxu0 0
    %2518 = vmatpush1.bf16.msra.mxu0 0
    %2519 = vmatprep.subr.bf16.mxu0 0
    %2520 = vmatpush1.bf16.msra.mxu0 0
    %2521 = vmatprep.subr.bf16.mxu0 0
    %2522 = vmatpush1.bf16.msra.mxu0 0
    %2523 = vmatprep.subr.bf16.mxu0 0
    %2524 = vmatpush1.bf16.msra.mxu0 0
    %2525 = vmatprep.subr.bf16.mxu0 0
    %2526 = vmatpush1.bf16.msra.mxu0 0
    %2527 = vmatprep.subr.bf16.mxu0 0
    %2528 = vmatpush1.bf16.msra.mxu0 0
    %2529 = vmatprep.subr.bf16.mxu0 0
    %2530 = vmatpush1.bf16.msra.mxu0 0
    %2531 = vmatprep.subr.bf16.mxu0 0
    %2532 = vmatpush1.bf16.msra.mxu0 0
    %2533 = vmatprep.subr.bf16.mxu0 0
    %2534 = vmatpush1.bf16.msra.mxu0 0
    %2535 = vmatprep.mubr.bf16.mxu0 0
    %2536 = vmatmul.mubr.bf16.gmra.mrb[0].mxu0 %v2498
    %v2537 = vpop.f32.mrb[0].mxu0
    %v2538 = vadd.f32 0.0, %v2537
    %v2539 = vpop.f32.mrb[0].mxu0
    %v2540 = vpop.f32.mrb[0].mxu0
    %v2541 = vpop.f32.mrb[0].mxu0
    %2542 = vdwg.mxu0
    %v2543 = vld [vmem:[%s17] sm:$0x3]
    %2545 = vset.pattern.permute.xlu0 0
    %2546 = vperm.xlu0 %2545, %v2543
    %v2547 = vpop.permute.xlu0 %2546
    %v2549 = vmul.f32 %v2538, %v2547
    %v2550 = vld [vmem:[%s11] sm:$0x3]
    %v2551 = vld [vmem:[%s51] sm:$0xf]
    %v2552 = vld [vmem:[%s51 + $0x4] sm:$0xf]
    %v2553 = vld [vmem:[%s51 + $0x8] sm:$0xf]
    %v2554 = vld [vmem:[%s51 + $0xc] sm:$0xf]
    %v2555 = vpack.c.bf16 %v2550, %v2550
    %v2556 = vld [vmem:[%s53] sm:$0xf]
    %v2557 = vld [vmem:[%s53 + $0x4] sm:$0xf]
    %v2558 = vld [vmem:[%s53 + $0x8] sm:$0xf]
    %v2559 = vld [vmem:[%s53 + $0xc] sm:$0xf]
    %v2560 = vpack.c.bf16 %v2549, %v2549
    %v2565 = vunpack.c.l.b16 %v2556
    %v2566 = vunpack.c.l.b16 %v2557
    %v2567 = vunpack.c.l.b16 %v2558
    %v2568 = vunpack.c.l.b16 %v2559
    %v2569 = vpack.c.b16 %v2566, %v2565
    %v2570 = vpack.c.b16 %v2568, %v2567
    %v2574 = vsel %vm538, %v2560, 0
    %2576 = vmatprep.subr.bf16.mxu0 0
    %2577 = vmatpush1.bf16.msra.mxu0 %v2569
    %2578 = vmatprep.subr.bf16.mxu0 0
    %2579 = vmatpush1.bf16.msra.mxu0 %v2570
    %2580 = vmatprep.subr.bf16.mxu0 0
    %2581 = vmatpush1.bf16.msra.mxu0 0
    %2582 = vmatprep.subr.bf16.mxu0 0
    %2583 = vmatpush1.bf16.msra.mxu0 0
    %2584 = vmatprep.subr.bf16.mxu0 0
    %2585 = vmatpush1.bf16.msra.mxu0 0
    %2586 = vmatprep.subr.bf16.mxu0 0
    %2587 = vmatpush1.bf16.msra.mxu0 0
    %2588 = vmatprep.subr.bf16.mxu0 0
    %2589 = vmatpush1.bf16.msra.mxu0 0
    %2590 = vmatprep.subr.bf16.mxu0 0
    %2591 = vmatpush1.bf16.msra.mxu0 0
    %2592 = vmatprep.subr.bf16.mxu0 0
    %2593 = vmatpush1.bf16.msra.mxu0 0
    %2594 = vmatprep.subr.bf16.mxu0 0
    %2595 = vmatpush1.bf16.msra.mxu0 0
    %2596 = vmatprep.subr.bf16.mxu0 0
    %2597 = vmatpush1.bf16.msra.mxu0 0
    %2598 = vmatprep.subr.bf16.mxu0 0
    %2599 = vmatpush1.bf16.msra.mxu0 0
    %2600 = vmatprep.subr.bf16.mxu0 0
    %2601 = vmatpush1.bf16.msra.mxu0 0
    %2602 = vmatprep.subr.bf16.mxu0 0
    %2603 = vmatpush1.bf16.msra.mxu0 0
    %2604 = vmatprep.subr.bf16.mxu0 0
    %2605 = vmatpush1.bf16.msra.mxu0 0
    %2606 = vmatprep.subr.bf16.mxu0 0
    %2607 = vmatpush1.bf16.msra.mxu0 0
    %2608 = vmatprep.mubr.bf16.mxu0 0
    %2609 = vmatmul.mubr.bf16.gmra.mrb[0].mxu0 %v2574
    %v2610 = vpop.f32.mrb[0].mxu0
    %v2611 = vadd.f32 0.0, %v2610
    %v2612 = vpop.f32.mrb[0].mxu0
    %v2613 = vpop.f32.mrb[0].mxu0
    %v2614 = vpop.f32.mrb[0].mxu0
    %2615 = vdwg.mxu0
    %v2620 = vunpack.c.l.b16 %v2551
    %v2621 = vunpack.c.l.b16 %v2552
    %v2622 = vunpack.c.l.b16 %v2553
    %v2623 = vunpack.c.l.b16 %v2554
    %v2624 = vpack.c.b16 %v2621, %v2620
    %v2625 = vpack.c.b16 %v2623, %v2622
    %v2629 = vsel %vm538, %v2555, 0
    %2631 = vmatprep.subr.bf16.mxu0 0
    %2632 = vmatpush1.bf16.msra.mxu0 %v2624
    %2633 = vmatprep.subr.bf16.mxu0 0
    %2634 = vmatpush1.bf16.msra.mxu0 %v2625
    %2635 = vmatprep.subr.bf16.mxu0 0
    %2636 = vmatpush1.bf16.msra.mxu0 0
    %2637 = vmatprep.subr.bf16.mxu0 0
    %2638 = vmatpush1.bf16.msra.mxu0 0
    %2639 = vmatprep.subr.bf16.mxu0 0
    %2640 = vmatpush1.bf16.msra.mxu0 0
    %2641 = vmatprep.subr.bf16.mxu0 0
    %2642 = vmatpush1.bf16.msra.mxu0 0
    %2643 = vmatprep.subr.bf16.mxu0 0
    %2644 = vmatpush1.bf16.msra.mxu0 0
    %2645 = vmatprep.subr.bf16.mxu0 0
    %2646 = vmatpush1.bf16.msra.mxu0 0
    %2647 = vmatprep.subr.bf16.mxu0 0
    %2648 = vmatpush1.bf16.msra.mxu0 0
    %2649 = vmatprep.subr.bf16.mxu0 0
    %2650 = vmatpush1.bf16.msra.mxu0 0
    %2651 = vmatprep.subr.bf16.mxu0 0
    %2652 = vmatpush1.bf16.msra.mxu0 0
    %2653 = vmatprep.subr.bf16.mxu0 0
    %2654 = vmatpush1.bf16.msra.mxu0 0
    %2655 = vmatprep.subr.bf16.mxu0 0
    %2656 = vmatpush1.bf16.msra.mxu0 0
    %2657 = vmatprep.subr.bf16.mxu0 0
    %2658 = vmatpush1.bf16.msra.mxu0 0
    %2659 = vmatprep.subr.bf16.mxu0 0
    %2660 = vmatpush1.bf16.msra.mxu0 0
    %2661 = vmatprep.subr.bf16.mxu0 0
    %2662 = vmatpush1.bf16.msra.mxu0 0
    %2663 = vmatprep.mubr.bf16.mxu0 0
    %2664 = vmatmul.mubr.bf16.gmra.mrb[0].mxu0 %v2629
    %v2665 = vpop.f32.mrb[0].mxu0
    %v2666 = vadd.f32 %v2611, %v2665
    %v2667 = vpop.f32.mrb[0].mxu0
    %v2668 = vpop.f32.mrb[0].mxu0
    %v2669 = vpop.f32.mrb[0].mxu0
    %2670 = vdwg.mxu0
    %v2671 = vld [vmem:[%s55] sm:$0x1]
    %v2673 = vlaneseq
    %v2674 = vshrl.u32 %v2673, 7
    %v2675 = vsub.s32 0, %v2674
    %v2676 = vrot.slane %v2671, %v2675
    %v2678 = vadd.f32 %v2666, %v2676
    %vm2679 = vcmp.gt.f32.partialorder %v2678, 0.0
    %v2680 = vmin.f32 %v2678, 0.0
    %v2681 = vmul.f32 %v2680, 1.442695
    %v2682 = vpow.pop %v2681
    %v2683 = vsub.f32 %v2682, 1.0
    %v2684 = vsel %vm2679, %v2678, %v2683
    %v2685 = vld [vmem:[%s57] sm:$0xf]
    %v2686 = vld [vmem:[%s57 + $0x4] sm:$0xf]
    %v2687 = vld [vmem:[%s57 + $0x8] sm:$0xf]
    %v2688 = vld [vmem:[%s57 + $0xc] sm:$0xf]
    %v2689 = vld [vmem:[%s57 + $0x10] sm:$0xf]
    %v2690 = vld [vmem:[%s57 + $0x14] sm:$0xf]
    %v2691 = vld [vmem:[%s57 + $0x18] sm:$0xf]
    %v2692 = vld [vmem:[%s57 + $0x1c] sm:$0xf]
    %v2693 = vpack.c.bf16 %v2684, %v2684
    %v2694 = vld [vmem:[%s59] sm:$0x1]
    %v2696 = vlaneseq
    %v2697 = vshrl.u32 %v2696, 7
    %v2698 = vsub.s32 0, %v2697
    %v2699 = vrot.slane %v2694, %v2698
    %v2709 = vunpack.c.l.b16 %v2685
    %v2710 = vunpack.c.l.b16 %v2686
    %v2711 = vunpack.c.l.b16 %v2687
    %v2712 = vunpack.c.l.b16 %v2688
    %v2713 = vunpack.c.l.b16 %v2689
    %v2714 = vunpack.c.l.b16 %v2690
    %v2715 = vunpack.c.l.b16 %v2691
    %v2716 = vunpack.c.l.b16 %v2692
    %v2717 = vpack.c.b16 %v2710, %v2709
    %v2718 = vpack.c.b16 %v2712, %v2711
    %v2719 = vpack.c.b16 %v2714, %v2713
    %v2720 = vpack.c.b16 %v2716, %v2715
    %v2726 = vsel %vm2046, %v2693, 0
    %2728 = vmatprep.subr.bf16.mxu0 0
    %2729 = vmatpush1.bf16.msra.mxu0 %v2717
    %2730 = vmatprep.subr.bf16.mxu0 0
    %2731 = vmatpush1.bf16.msra.mxu0 %v2718
    %2732 = vmatprep.subr.bf16.mxu0 0
    %2733 = vmatpush1.bf16.msra.mxu0 %v2719
    %2734 = vmatprep.subr.bf16.mxu0 0
    %2735 = vmatpush1.bf16.msra.mxu0 %v2720
    %2736 = vmatprep.subr.bf16.mxu0 0
    %2737 = vmatpush1.bf16.msra.mxu0 0
    %2738 = vmatprep.subr.bf16.mxu0 0
    %2739 = vmatpush1.bf16.msra.mxu0 0
    %2740 = vmatprep.subr.bf16.mxu0 0
    %2741 = vmatpush1.bf16.msra.mxu0 0
    %2742 = vmatprep.subr.bf16.mxu0 0
    %2743 = vmatpush1.bf16.msra.mxu0 0
    %2744 = vmatprep.subr.bf16.mxu0 0
    %2745 = vmatpush1.bf16.msra.mxu0 0
    %2746 = vmatprep.subr.bf16.mxu0 0
    %2747 = vmatpush1.bf16.msra.mxu0 0
    %2748 = vmatprep.subr.bf16.mxu0 0
    %2749 = vmatpush1.bf16.msra.mxu0 0
    %2750 = vmatprep.subr.bf16.mxu0 0
    %2751 = vmatpush1.bf16.msra.mxu0 0
    %2752 = vmatprep.subr.bf16.mxu0 0
    %2753 = vmatpush1.bf16.msra.mxu0 0
    %2754 = vmatprep.subr.bf16.mxu0 0
    %2755 = vmatpush1.bf16.msra.mxu0 0
    %2756 = vmatprep.subr.bf16.mxu0 0
    %2757 = vmatpush1.bf16.msra.mxu0 0
    %2758 = vmatprep.subr.bf16.mxu0 0
    %2759 = vmatpush1.bf16.msra.mxu0 0
    %2760 = vmatprep.mubr.bf16.mxu0 0
    %2761 = vmatmul.mubr.bf16.gmra.mrb[0].mxu0 %v2726
    %v2762 = vpop.f32.mrb[0].mxu0
    %v2763 = vadd.f32 %v2699, %v2762
    %v2764 = vpop.f32.mrb[0].mxu0
    %v2765 = vpop.f32.mrb[0].mxu0
    %v2766 = vpop.f32.mrb[0].mxu0
    %2767 = vdwg.mxu0
    %vm2768 = vcmask 254976
    %2769 = vst.msk [vmem:[%s65] sm:$0x3] %vm2768, %v2763
  $region129: #{net_forward.17} parent=0 // pred_fallthru
    _
  // Predicated region
  $region130: #{net_forward.17} parent=0 // pred_check
    _
  $region131: #{net_forward.17} parent=0 // pred_check_branch
    %2771 = sbr.rel (0) target = $region133
  $region132: #{net_forward.17} parent=0 // pred_region
    _
  $region133: #{net_forward.17} parent=0 // pred_fallthru
    _
  // Predicated region
  $region134: #{net_forward.17} parent=0 // pred_check
    _
  $region135: #{net_forward.17} parent=0 // pred_check_branch
    %2773 = sbr.rel (0) target = $region137
  $region136: #{net_forward.17} parent=0 // pred_region
    _
  $region137: #{net_forward.17} parent=0 // pred_fallthru
    _
  // Predicated region
  $region138: #{net_forward.17} parent=0 // pred_check
    _
  $region139: #{net_forward.17} parent=0 // pred_check_branch
    %2775 = sbr.rel (0) target = $region141
  $region140: #{net_forward.17} parent=0 // pred_region
    _
  $region141: #{net_forward.17} parent=0 // pred_fallthru
    _
  // Predicated region
  $region142: #{net_forward.17} parent=0 // pred_check
    _
  $region143: #{net_forward.17} parent=0 // pred_check_branch
    %2777 = sbr.rel (0) target = $region145
  $region144: #{net_forward.17} parent=0 // pred_region
    _
  $region145: #{net_forward.17} parent=0 // pred_fallthru
    _
  // Predicated region
  $region146: #{net_forward.17} parent=0 // pred_check
    _
  $region147: #{net_forward.17} parent=0 // pred_check_branch
    %2779 = sbr.rel (0) target = $region149
  $region148: #{net_forward.17} parent=0 // pred_region
    _
  $region149: #{net_forward.17} parent=0 // pred_fallthru
    _
  // Predicated region
  $region150: #{net_forward.17} parent=0 // pred_check
    _
  $region151: #{net_forward.17} parent=0 // pred_check_branch
    %2781 = sbr.rel (0) target = $region153
  $region152: #{net_forward.17} parent=0 // pred_region
    _
  $region153: #{net_forward.17} parent=0 // pred_fallthru
    _

// kernel: net_forward.22
$region0: #{net_forward.22}
  #allocation0 [shape = 'u32[]', space=smem, size = 0x4, offset = 0x4, fixed_abs, tag = 'smem constant byte address 0x4 - core index']
  #allocation1 [shape = 'u32[144,128]{1,0:T(1,128)}', space=vmem, size = 0x12000, scoped, tag = 'internal scratch']
  #allocation2 [shape = 'f32[12,64]{1,0:T(8,128)}', space=vmem, size = 0x2000, scoped, tag = 'scratch operand']
  %s0 = inlined_call_operand.smem [shape: u32[33], index: -1, kind: input, shape index: {}]
  %s1 = sld [smem:[%s0]]
  %s2 = scalar_lea.smem %s0, 1
  %s3 = sld [smem:[%s2]]
  %s4 = scalar_lea.smem %s0, 2
  %s5 = sld [smem:[%s4]]
  %s6 = scalar_lea.smem %s0, 3
  %s7 = sld [smem:[%s6]]
  %s8 = scalar_lea.smem %s0, 4
  %s9 = sld [smem:[%s8]]
  %s10 = scalar_lea.smem %s0, 5
  %s11 = sld [smem:[%s10]]
  %s12 = scalar_lea.smem %s0, 6
  %s13 = sld [smem:[%s12]]
  %s14 = scalar_lea.smem %s0, 7
  %s15 = sld [smem:[%s14]]
  %s16 = scalar_lea.smem %s0, 8
  %s17 = sld [smem:[%s16]]
  %s18 = scalar_lea.smem %s0, 9
  %s19 = sld [smem:[%s18]]
  %s20 = scalar_lea.smem %s0, 10
  %s21 = sld [smem:[%s20]]
  %s22 = scalar_lea.smem %s0, 11
  %s23 = sld [smem:[%s22]]
  %s24 = scalar_lea.smem %s0, 12
  %s25 = sld [smem:[%s24]]
  %s26 = scalar_lea.smem %s0, 13
  %s27 = sld [smem:[%s26]]
  %s28 = scalar_lea.smem %s0, 14
  %s29 = sld [smem:[%s28]]
  %s30 = scalar_lea.smem %s0, 15
  %s31 = sld [smem:[%s30]]
  %s32 = scalar_lea.smem %s0, 16
  %s33 = sld [smem:[%s32]]
  %s34 = scalar_lea.smem %s0, 17
  %s35 = sld [smem:[%s34]]
  %s36 = scalar_lea.smem %s0, 18
  %s37 = sld [smem:[%s36]]
  %s38 = scalar_lea.smem %s0, 19
  %s39 = sld [smem:[%s38]]
  %s40 = scalar_lea.smem %s0, 20
  %s41 = sld [smem:[%s40]]
  %s42 = scalar_lea.smem %s0, 21
  %s43 = sld [smem:[%s42]]
  %s44 = scalar_lea.smem %s0, 22
  %s45 = sld [smem:[%s44]]
  %s46 = scalar_lea.smem %s0, 23
  %s47 = sld [smem:[%s46]]
  %s48 = scalar_lea.smem %s0, 24
  %s49 = sld [smem:[%s48]]
  %s50 = scalar_lea.smem %s0, 25
  %s51 = sld [smem:[%s50]]
  %s52 = scalar_lea.smem %s0, 26
  %s53 = sld [smem:[%s52]]
  %s54 = scalar_lea.smem %s0, 27
  %s55 = sld [smem:[%s54]]
  %s56 = scalar_lea.smem %s0, 28
  %s57 = sld [smem:[%s56]]
  %s58 = scalar_lea.smem %s0, 29
  %s59 = sld [smem:[%s58]]
  %s60 = scalar_lea.smem %s0, 30
  %s61 = sld [smem:[%s60]]
  %s62 = scalar_lea.smem %s0, 31
  %s63 = sld [smem:[%s62]]
  %s64 = scalar_lea.smem %s0, 32
  %s65 = sld [smem:[%s64]]
  %66 = xla_tuple %s61, %s63, %s65
  %s67 = sld [smem:[#allocation0]]
  $region154: #{net_forward.22} parent=0
    _
  %s69 = ssub.s32 1, %s67
  %s70 = scalar_select 0, %s69, %s67
  $region1: #{net_forward.22} parent=0
    #allocation3 [shape = 'u8[8192]{0}', space=vmem, size = 0x2000, scoped, tag = 'output window, operand 0, single buffered']
    #allocation4 [shape = 's32[1]{0}', space=sflag, size = 0x4, scoped, tag = 'scoped memory for net_forward.22']
    #allocation5 [shape = 'u8[32768]{0}', space=vmem, size = 0x8000, scoped, tag = 'output window, operand 1, single buffered']
    #allocation6 [shape = 's32[1]{0}', space=sflag, size = 0x4, scoped, tag = 'scoped memory for net_forward.22']
    %71 = vsyncpa [#allocation4], 0
    %72 = vsyncpa [#allocation6], 0
    // Predicated region
    $region2: #{net_forward.22} parent=1 // pred_check
      _
    $region3: #{net_forward.22} parent=1 // pred_check_branch
      %74 = sbr.rel (0) target = $region5
    $region4: #{net_forward.22} parent=1 // pred_region
      _
    $region5: #{net_forward.22} parent=1 // pred_fallthru
      _
    // Predicated region
    $region6: #{net_forward.22} parent=1 // pred_check
      _
    $region7: #{net_forward.22} parent=1 // pred_check_branch
      %76 = sbr.rel (0) target = $region9
    $region8: #{net_forward.22} parent=1 // pred_region
      _
    $region9: #{net_forward.22} parent=1 // pred_fallthru
      _
    // Predicated region
    $region10: #{net_forward.22} parent=1 // pred_check
      _
    $region11: #{net_forward.22} parent=1 // pred_check_branch
      %78 = sbr.rel (0) target = $region13
    $region12: #{net_forward.22} parent=1 // pred_region
      _
    $region13: #{net_forward.22} parent=1 // pred_fallthru
      _
    // Predicated region
    $region14: #{net_forward.22} parent=1 // pred_check
      _
    $region15: #{net_forward.22} parent=1 // pred_check_branch
      %80 = sbr.rel (0) target = $region17
    $region16: #{net_forward.22} parent=1 // pred_region
      _
    $region17: #{net_forward.22} parent=1 // pred_fallthru
      _
    // Predicated region
    $region18: #{net_forward.22} parent=1 // pred_check
      _
    $region19: #{net_forward.22} parent=1 // pred_check_branch
      %82 = sbr.rel (0) target = $region21
    $region20: #{net_forward.22} parent=1 // pred_region
      _
    $region21: #{net_forward.22} parent=1 // pred_fallthru
      _
    // Predicated region
    $region22: #{net_forward.22} parent=1 // pred_check
      _
    $region23: #{net_forward.22} parent=1 // pred_check_branch
      %84 = sbr.rel (0) target = $region25
    $region24: #{net_forward.22} parent=1 // pred_region
      _
    $region25: #{net_forward.22} parent=1 // pred_fallthru
      _
    // Predicated region
    $region26: #{net_forward.22} parent=1 // pred_check
      _
    $region27: #{net_forward.22} parent=1 // pred_check_branch
      %86 = sbr.rel (0) target = $region29
    $region28: #{net_forward.22} parent=1 // pred_region
      _
    $region29: #{net_forward.22} parent=1 // pred_fallthru
      _
    // Predicated region
    $region30: #{net_forward.22} parent=1 // pred_check
      _
    $region31: #{net_forward.22} parent=1 // pred_check_branch
      %88 = sbr.rel (0) target = $region33
    $region32: #{net_forward.22} parent=1 // pred_region
      _
    $region33: #{net_forward.22} parent=1 // pred_fallthru
      _
    // Predicated region
    $region34: #{net_forward.22} parent=1 // pred_check
      _
    $region35: #{net_forward.22} parent=1 // pred_check_branch
      %90 = sbr.rel (0) target = $region37
    $region36: #{net_forward.22} parent=1 // pred_region
      _
    $region37: #{net_forward.22} parent=1 // pred_fallthru
      _
    // Predicated region
    $region38: #{net_forward.22} parent=1 // pred_check
      _
    $region39: #{net_forward.22} parent=1 // pred_check_branch
      %92 = sbr.rel (0) target = $region41
    $region40: #{net_forward.22} parent=1 // pred_region
      _
    $region41: #{net_forward.22} parent=1 // pred_fallthru
      _
    // Predicated region
    $region42: #{net_forward.22} parent=1 // pred_check
      _
    $region43: #{net_forward.22} parent=1 // pred_check_branch
      %94 = sbr.rel (0) target = $region45
    $region44: #{net_forward.22} parent=1 // pred_region
      _
    $region45: #{net_forward.22} parent=1 // pred_fallthru
      _
    // Predicated region
    $region46: #{net_forward.22} parent=1 // pred_check
      _
    $region47: #{net_forward.22} parent=1 // pred_check_branch
      %96 = sbr.rel (0) target = $region49
    $region48: #{net_forward.22} parent=1 // pred_region
      _
    $region49: #{net_forward.22} parent=1 // pred_fallthru
      _
    // Predicated region
    $region50: #{net_forward.22} parent=1 // pred_check
      _
    $region51: #{net_forward.22} parent=1 // pred_check_branch
      %98 = sbr.rel (0) target = $region53
    $region52: #{net_forward.22} parent=1 // pred_region
      _
    $region53: #{net_forward.22} parent=1 // pred_fallthru
      _
    // Predicated region
    $region54: #{net_forward.22} parent=1 // pred_check
      _
    $region55: #{net_forward.22} parent=1 // pred_check_branch
      %100 = sbr.rel (0) target = $region57
    $region56: #{net_forward.22} parent=1 // pred_region
      _
    $region57: #{net_forward.22} parent=1 // pred_fallthru
      _
    // Predicated region
    $region58: #{net_forward.22} parent=1 // pred_check
      _
    $region59: #{net_forward.22} parent=1 // pred_check_branch
      %102 = sbr.rel (0) target = $region61
    $region60: #{net_forward.22} parent=1 // pred_region
      _
    $region61: #{net_forward.22} parent=1 // pred_fallthru
      _
    // Predicated region
    $region62: #{net_forward.22} parent=1 // pred_check
      _
    $region63: #{net_forward.22} parent=1 // pred_check_branch
      %104 = sbr.rel (0) target = $region65
    $region64: #{net_forward.22} parent=1 // pred_region
      _
    $region65: #{net_forward.22} parent=1 // pred_fallthru
      _
    // Predicated region
    $region66: #{net_forward.22} parent=1 // pred_check
      _
    $region67: #{net_forward.22} parent=1 // pred_check_branch
      %106 = sbr.rel (0) target = $region69
    $region68: #{net_forward.22} parent=1 // pred_region
      _
    $region69: #{net_forward.22} parent=1 // pred_fallthru
      _
    // Predicated region
    $region70: #{net_forward.22} parent=1 // pred_check
      _
    $region71: #{net_forward.22} parent=1 // pred_check_branch
      %108 = sbr.rel (0) target = $region73
    $region72: #{net_forward.22} parent=1 // pred_region
      _
    $region73: #{net_forward.22} parent=1 // pred_fallthru
      _
    // Predicated region
    $region74: #{net_forward.22} parent=1 // pred_check
      _
    $region75: #{net_forward.22} parent=1 // pred_check_branch
      %110 = sbr.rel (0) target = $region77
    $region76: #{net_forward.22} parent=1 // pred_region
      _
    $region77: #{net_forward.22} parent=1 // pred_fallthru
      _
    // Predicated region
    $region78: #{net_forward.22} parent=1 // pred_check
      _
    $region79: #{net_forward.22} parent=1 // pred_check_branch
      %112 = sbr.rel (0) target = $region81
    $region80: #{net_forward.22} parent=1 // pred_region
      _
    $region81: #{net_forward.22} parent=1 // pred_fallthru
      _
    // Predicated region
    $region82: #{net_forward.22} parent=1 // pred_check
      _
    $region83: #{net_forward.22} parent=1 // pred_check_branch
      %114 = sbr.rel (0) target = $region85
    $region84: #{net_forward.22} parent=1 // pred_region
      _
    $region85: #{net_forward.22} parent=1 // pred_fallthru
      _
    // Predicated region
    $region86: #{net_forward.22} parent=1 // pred_check
      _
    $region87: #{net_forward.22} parent=1 // pred_check_branch
      %116 = sbr.rel (0) target = $region89
    $region88: #{net_forward.22} parent=1 // pred_region
      _
    $region89: #{net_forward.22} parent=1 // pred_fallthru
      _
    // Predicated region
    $region90: #{net_forward.22} parent=1 // pred_check
      _
    $region91: #{net_forward.22} parent=1 // pred_check_branch
      %118 = sbr.rel (0) target = $region93
    $region92: #{net_forward.22} parent=1 // pred_region
      _
    $region93: #{net_forward.22} parent=1 // pred_fallthru
      _
    // Predicated region
    $region94: #{net_forward.22} parent=1 // pred_check
      _
    $region95: #{net_forward.22} parent=1 // pred_check_branch
      %120 = sbr.rel (0) target = $region97
    $region96: #{net_forward.22} parent=1 // pred_region
      _
    $region97: #{net_forward.22} parent=1 // pred_fallthru
      _
    // Predicated region
    $region98: #{net_forward.22} parent=1 // pred_check
      _
    $region99: #{net_forward.22} parent=1 // pred_check_branch
      %122 = sbr.rel (0) target = $region101
    $region100: #{net_forward.22} parent=1 // pred_region
      _
    $region101: #{net_forward.22} parent=1 // pred_fallthru
      _
    // Predicated region
    $region102: #{net_forward.22} parent=1 // pred_check
      _
    $region103: #{net_forward.22} parent=1 // pred_check_branch
      %124 = sbr.rel (0) target = $region105
    $region104: #{net_forward.22} parent=1 // pred_region
      _
    $region105: #{net_forward.22} parent=1 // pred_fallthru
      _
    // Predicated region
    $region106: #{net_forward.22} parent=1 // pred_check
      _
    $region107: #{net_forward.22} parent=1 // pred_check_branch
      %126 = sbr.rel (0) target = $region109
    $region108: #{net_forward.22} parent=1 // pred_region
      _
    $region109: #{net_forward.22} parent=1 // pred_fallthru
      _
    // Predicated region
    $region110: #{net_forward.22} parent=1 // pred_check
      _
    $region111: #{net_forward.22} parent=1 // pred_check_branch
      %128 = sbr.rel (0) target = $region113
    $region112: #{net_forward.22} parent=1 // pred_region
      _
    $region113: #{net_forward.22} parent=1 // pred_fallthru
      _
    // Predicated region
    $region114: #{net_forward.22} parent=1 // pred_check
      _
    $region115: #{net_forward.22} parent=1 // pred_check_branch
      %130 = sbr.rel (0) target = $region117
    $region116: #{net_forward.22} parent=1 // pred_region
      _
    $region117: #{net_forward.22} parent=1 // pred_fallthru
      _
    // Predicated region
    $region118: #{net_forward.22} parent=1 // pred_check
      _
    $region119: #{net_forward.22} parent=1 // pred_check_branch
      %132 = sbr.rel (0) target = $region121
    $region120: #{net_forward.22} parent=1 // pred_region
      _
    $region121: #{net_forward.22} parent=1 // pred_fallthru
      _
    %p134 = scmp.eq.s32.totalorder 0, 0
    // Predicated region
    $region122: #{net_forward.22} parent=1 // pred_check
      %p135 = pneg %p134
    $region123: #{net_forward.22} parent=1 // pred_check_branch
      %137 = sbr.rel (%p135) target = $region125
    $region124: #{net_forward.22} parent=1 // pred_region
      %vm138 = vcmask 523264
      %139 = vst.msk [vmem:[#allocation2] sm:$0xff] %vm138, 0.0
      %vm140 = vcmask 519168
      %141 = vst.msk [vmem:[#allocation2 + $0x8] sm:$0xf] %vm140, 0.0
    $region125: #{net_forward.22} parent=1 // pred_fallthru
      _
    %v142 = vld [vmem:[%s9] sm:$0xff]
    %v143 = vld [vmem:[%s9 + $0x8] sm:$0xf]
    %v144 = vld [vmem:[%s3] sm:$0xf]
    %v145 = vld [vmem:[%s3 + $0x4] sm:$0xf]
    %v146 = vld [vmem:[%s3 + $0x8] sm:$0xf]
    %v147 = vld [vmem:[%s3 + $0xc] sm:$0xf]
    %v148 = vld [vmem:[%s3 + $0x10] sm:$0xf]
    %v149 = vld [vmem:[%s3 + $0x14] sm:$0xf]
    %v150 = vld [vmem:[%s3 + $0x18] sm:$0xf]
    %v151 = vld [vmem:[%s3 + $0x1c] sm:$0xf]
    %v152 = vld [vmem:[%s3 + $0x20] sm:$0xf]
    %v153 = vld [vmem:[%s3 + $0x24] sm:$0xf]
    %v154 = vld [vmem:[%s3 + $0x28] sm:$0xf]
    %v155 = vld [vmem:[%s3 + $0x2c] sm:$0xf]
    %v156 = vld [vmem:[%s3 + $0x30] sm:$0xf]
    %v157 = vld [vmem:[%s3 + $0x34] sm:$0xf]
    %v158 = vld [vmem:[%s3 + $0x38] sm:$0xf]
    %v159 = vld [vmem:[%s3 + $0x3c] sm:$0xf]
    %v160 = vpack.c.bf16 %v143, %v142
    %v177 = vunpack.c.l.b16 %v144
    %v178 = vunpack.c.l.b16 %v145
    %v179 = vunpack.c.l.b16 %v146
    %v180 = vunpack.c.l.b16 %v147
    %v181 = vunpack.c.l.b16 %v148
    %v182 = vunpack.c.l.b16 %v149
    %v183 = vunpack.c.l.b16 %v150
    %v184 = vunpack.c.l.b16 %v151
    %v185 = vunpack.c.l.b16 %v152
    %v186 = vunpack.c.l.b16 %v153
    %v187 = vunpack.c.l.b16 %v154
    %v188 = vunpack.c.l.b16 %v155
    %v189 = vunpack.c.l.b16 %v156
    %v190 = vunpack.c.l.b16 %v157
    %v191 = vunpack.c.l.b16 %v158
    %v192 = vunpack.c.l.b16 %v159
    %v193 = vpack.c.b16 %v178, %v177
    %v194 = vpack.c.b16 %v180, %v179
    %v195 = vpack.c.b16 %v182, %v181
    %v196 = vpack.c.b16 %v184, %v183
    %v197 = vpack.c.b16 %v186, %v185
    %v198 = vpack.c.b16 %v188, %v187
    %v199 = vpack.c.b16 %v190, %v189
    %v200 = vpack.c.b16 %v192, %v191
    %vm201 = vcmask 97280
    %v203 = vsel %vm201, %v193, 0
    %v206 = vsel %vm201, %v194, 0
    %v209 = vsel %vm201, %v195, 0
    %v212 = vsel %vm201, %v196, 0
    %v215 = vsel %vm201, %v197, 0
    %v218 = vsel %vm201, %v198, 0
    %v221 = vsel %vm201, %v199, 0
    %v224 = vsel %vm201, %v200, 0
    %vm226 = vcmask 1045504
    %v228 = vsel %vm226, %v160, 0
    %230 = vmatprep.subr.bf16.mxu0 0
    %231 = vmatpush1.bf16.msra.mxu0 %v228
    %232 = vmatprep.subr.bf16.mxu0 0
    %233 = vmatpush1.bf16.msra.mxu0 0
    %234 = vmatprep.subr.bf16.mxu0 0
    %235 = vmatpush1.bf16.msra.mxu0 0
    %236 = vmatprep.subr.bf16.mxu0 0
    %237 = vmatpush1.bf16.msra.mxu0 0
    %238 = vmatprep.subr.bf16.mxu0 0
    %239 = vmatpush1.bf16.msra.mxu0 0
    %240 = vmatprep.subr.bf16.mxu0 0
    %241 = vmatpush1.bf16.msra.mxu0 0
    %242 = vmatprep.subr.bf16.mxu0 0
    %243 = vmatpush1.bf16.msra.mxu0 0
    %244 = vmatprep.subr.bf16.mxu0 0
    %245 = vmatpush1.bf16.msra.mxu0 0
    %246 = vmatprep.subr.bf16.mxu0 0
    %247 = vmatpush1.bf16.msra.mxu0 0
    %248 = vmatprep.subr.bf16.mxu0 0
    %249 = vmatpush1.bf16.msra.mxu0 0
    %250 = vmatprep.subr.bf16.mxu0 0
    %251 = vmatpush1.bf16.msra.mxu0 0
    %252 = vmatprep.subr.bf16.mxu0 0
    %253 = vmatpush1.bf16.msra.mxu0 0
    %254 = vmatprep.subr.bf16.mxu0 0
    %255 = vmatpush1.bf16.msra.mxu0 0
    %256 = vmatprep.subr.bf16.mxu0 0
    %257 = vmatpush1.bf16.msra.mxu0 0
    %258 = vmatprep.subr.bf16.mxu0 0
    %259 = vmatpush1.bf16.msra.mxu0 0
    %260 = vmatprep.subr.bf16.mxu0 0
    %261 = vmatpush1.bf16.msra.mxu0 0
    %262 = vmatprep.mubr.bf16.mxu0 0
    %263 = vmatmul.mubr.bf16.gmra.mrb[0].mxu0 %v203
    %v264 = vpop.f32.mrb[0].mxu0
    %v265 = vadd.f32 0.0, %v264
    %v266 = vpop.f32.mrb[0].mxu0
    %v267 = vpop.f32.mrb[0].mxu0
    %v268 = vadd.f32 0.0, %v267
    %v269 = vpop.f32.mrb[0].mxu0
    %270 = vmatprep.mubr.bf16.mxu0 0
    %271 = vmatmul.mubr.bf16.gmra.mrb[0].mxu0 %v206
    %v272 = vpop.f32.mrb[0].mxu0
    %v273 = vadd.f32 0.0, %v272
    %v274 = vpop.f32.mrb[0].mxu0
    %v275 = vpop.f32.mrb[0].mxu0
    %v276 = vadd.f32 0.0, %v275
    %v277 = vpop.f32.mrb[0].mxu0
    %278 = vmatprep.mubr.bf16.mxu0 0
    %279 = vmatmul.mubr.bf16.gmra.mrb[0].mxu0 %v209
    %v280 = vpop.f32.mrb[0].mxu0
    %v281 = vadd.f32 0.0, %v280
    %v282 = vpop.f32.mrb[0].mxu0
    %v283 = vpop.f32.mrb[0].mxu0
    %v284 = vadd.f32 0.0, %v283
    %v285 = vpop.f32.mrb[0].mxu0
    %286 = vmatprep.mubr.bf16.mxu0 0
    %287 = vmatmul.mubr.bf16.gmra.mrb[0].mxu0 %v212
    %v288 = vpop.f32.mrb[0].mxu0
    %v289 = vadd.f32 0.0, %v288
    %v290 = vpop.f32.mrb[0].mxu0
    %v291 = vpop.f32.mrb[0].mxu0
    %v292 = vadd.f32 0.0, %v291
    %v293 = vpop.f32.mrb[0].mxu0
    %294 = vmatprep.mubr.bf16.mxu0 0
    %295 = vmatmul.mubr.bf16.gmra.mrb[0].mxu0 %v215
    %v296 = vpop.f32.mrb[0].mxu0
    %v297 = vadd.f32 0.0, %v296
    %v298 = vpop.f32.mrb[0].mxu0
    %v299 = vpop.f32.mrb[0].mxu0
    %v300 = vadd.f32 0.0, %v299
    %v301 = vpop.f32.mrb[0].mxu0
    %302 = vmatprep.mubr.bf16.mxu0 0
    %303 = vmatmul.mubr.bf16.gmra.mrb[0].mxu0 %v218
    %v304 = vpop.f32.mrb[0].mxu0
    %v305 = vadd.f32 0.0, %v304
    %v306 = vpop.f32.mrb[0].mxu0
    %v307 = vpop.f32.mrb[0].mxu0
    %v308 = vadd.f32 0.0, %v307
    %v309 = vpop.f32.mrb[0].mxu0
    %310 = vmatprep.mubr.bf16.mxu0 0
    %311 = vmatmul.mubr.bf16.gmra.mrb[0].mxu0 %v221
    %v312 = vpop.f32.mrb[0].mxu0
    %v313 = vadd.f32 0.0, %v312
    %v314 = vpop.f32.mrb[0].mxu0
    %v315 = vpop.f32.mrb[0].mxu0
    %v316 = vadd.f32 0.0, %v315
    %v317 = vpop.f32.mrb[0].mxu0
    %318 = vmatprep.mubr.bf16.mxu0 0
    %319 = vmatmul.mubr.bf16.gmra.mrb[0].mxu0 %v224
    %v320 = vpop.f32.mrb[0].mxu0
    %v321 = vadd.f32 0.0, %v320
    %v322 = vpop.f32.mrb[0].mxu0
    %v323 = vpop.f32.mrb[0].mxu0
    %v324 = vadd.f32 0.0, %v323
    %v325 = vpop.f32.mrb[0].mxu0
    %326 = vdwg.mxu0
    %v327 = vld [vmem:[%s5] sm:$0xf]
    %v328 = vld [vmem:[%s5 + $0x4] sm:$0xf]
    %v329 = vld [vmem:[%s5 + $0x8] sm:$0xf]
    %v330 = vld [vmem:[%s5 + $0xc] sm:$0xf]
    %v331 = vld [vmem:[%s5 + $0x10] sm:$0xf]
    %v332 = vld [vmem:[%s5 + $0x14] sm:$0xf]
    %v333 = vld [vmem:[%s5 + $0x18] sm:$0xf]
    %v334 = vld [vmem:[%s5 + $0x1c] sm:$0xf]
    %v335 = vld [vmem:[%s5 + $0x20] sm:$0xf]
    %v336 = vld [vmem:[%s5 + $0x24] sm:$0xf]
    %v337 = vld [vmem:[%s5 + $0x28] sm:$0xf]
    %v338 = vld [vmem:[%s5 + $0x2c] sm:$0xf]
    %v339 = vld [vmem:[%s5 + $0x30] sm:$0xf]
    %v340 = vld [vmem:[%s5 + $0x34] sm:$0xf]
    %v341 = vld [vmem:[%s5 + $0x38] sm:$0xf]
    %v342 = vld [vmem:[%s5 + $0x3c] sm:$0xf]
    %v359 = vunpack.c.l.b16 %v327
    %v360 = vunpack.c.l.b16 %v328
    %v361 = vunpack.c.l.b16 %v329
    %v362 = vunpack.c.l.b16 %v330
    %v363 = vunpack.c.l.b16 %v331
    %v364 = vunpack.c.l.b16 %v332
    %v365 = vunpack.c.l.b16 %v333
    %v366 = vunpack.c.l.b16 %v334
    %v367 = vunpack.c.l.b16 %v335
    %v368 = vunpack.c.l.b16 %v336
    %v369 = vunpack.c.l.b16 %v337
    %v370 = vunpack.c.l.b16 %v338
    %v371 = vunpack.c.l.b16 %v339
    %v372 = vunpack.c.l.b16 %v340
    %v373 = vunpack.c.l.b16 %v341
    %v374 = vunpack.c.l.b16 %v342
    %v375 = vpack.c.b16 %v360, %v359
    %v376 = vpack.c.b16 %v362, %v361
    %v377 = vpack.c.b16 %v364, %v363
    %v378 = vpack.c.b16 %v366, %v365
    %v379 = vpack.c.b16 %v368, %v367
    %v380 = vpack.c.b16 %v370, %v369
    %v381 = vpack.c.b16 %v372, %v371
    %v382 = vpack.c.b16 %v374, %v373
    %v384 = vsel %vm201, %v375, 0
    %v387 = vsel %vm201, %v376, 0
    %v390 = vsel %vm201, %v377, 0
    %v393 = vsel %vm201, %v378, 0
    %v396 = vsel %vm201, %v379, 0
    %v399 = vsel %vm201, %v380, 0
    %v402 = vsel %vm201, %v381, 0
    %v405 = vsel %vm201, %v382, 0
    %407 = vmatprep.subr.bf16.mxu0 0
    %408 = vmatpush1.bf16.msra.mxu0 %v228
    %409 = vmatprep.subr.bf16.mxu0 0
    %410 = vmatpush1.bf16.msra.mxu0 0
    %411 = vmatprep.subr.bf16.mxu0 0
    %412 = vmatpush1.bf16.msra.mxu0 0
    %413 = vmatprep.subr.bf16.mxu0 0
    %414 = vmatpush1.bf16.msra.mxu0 0
    %415 = vmatprep.subr.bf16.mxu0 0
    %416 = vmatpush1.bf16.msra.mxu0 0
    %417 = vmatprep.subr.bf16.mxu0 0
    %418 = vmatpush1.bf16.msra.mxu0 0
    %419 = vmatprep.subr.bf16.mxu0 0
    %420 = vmatpush1.bf16.msra.mxu0 0
    %421 = vmatprep.subr.bf16.mxu0 0
    %422 = vmatpush1.bf16.msra.mxu0 0
    %423 = vmatprep.subr.bf16.mxu0 0
    %424 = vmatpush1.bf16.msra.mxu0 0
    %425 = vmatprep.subr.bf16.mxu0 0
    %426 = vmatpush1.bf16.msra.mxu0 0
    %427 = vmatprep.subr.bf16.mxu0 0
    %428 = vmatpush1.bf16.msra.mxu0 0
    %429 = vmatprep.subr.bf16.mxu0 0
    %430 = vmatpush1.bf16.msra.mxu0 0
    %431 = vmatprep.subr.bf16.mxu0 0
    %432 = vmatpush1.bf16.msra.mxu0 0
    %433 = vmatprep.subr.bf16.mxu0 0
    %434 = vmatpush1.bf16.msra.mxu0 0
    %435 = vmatprep.subr.bf16.mxu0 0
    %436 = vmatpush1.bf16.msra.mxu0 0
    %437 = vmatprep.subr.bf16.mxu0 0
    %438 = vmatpush1.bf16.msra.mxu0 0
    %439 = vmatprep.mubr.bf16.mxu0 0
    %440 = vmatmul.mubr.bf16.gmra.mrb[0].mxu0 %v384
    %v441 = vpop.f32.mrb[0].mxu0
    %v442 = vadd.f32 0.0, %v441
    %v443 = vpop.f32.mrb[0].mxu0
    %v444 = vpop.f32.mrb[0].mxu0
    %v445 = vadd.f32 0.0, %v444
    %v446 = vpop.f32.mrb[0].mxu0
    %447 = vmatprep.mubr.bf16.mxu0 0
    %448 = vmatmul.mubr.bf16.gmra.mrb[0].mxu0 %v387
    %v449 = vpop.f32.mrb[0].mxu0
    %v450 = vadd.f32 0.0, %v449
    %v451 = vpop.f32.mrb[0].mxu0
    %v452 = vpop.f32.mrb[0].mxu0
    %v453 = vadd.f32 0.0, %v452
    %v454 = vpop.f32.mrb[0].mxu0
    %455 = vmatprep.mubr.bf16.mxu0 0
    %456 = vmatmul.mubr.bf16.gmra.mrb[0].mxu0 %v390
    %v457 = vpop.f32.mrb[0].mxu0
    %v458 = vadd.f32 0.0, %v457
    %v459 = vpop.f32.mrb[0].mxu0
    %v460 = vpop.f32.mrb[0].mxu0
    %v461 = vadd.f32 0.0, %v460
    %v462 = vpop.f32.mrb[0].mxu0
    %463 = vmatprep.mubr.bf16.mxu0 0
    %464 = vmatmul.mubr.bf16.gmra.mrb[0].mxu0 %v393
    %v465 = vpop.f32.mrb[0].mxu0
    %v466 = vadd.f32 0.0, %v465
    %v467 = vpop.f32.mrb[0].mxu0
    %v468 = vpop.f32.mrb[0].mxu0
    %v469 = vadd.f32 0.0, %v468
    %v470 = vpop.f32.mrb[0].mxu0
    %471 = vmatprep.mubr.bf16.mxu0 0
    %472 = vmatmul.mubr.bf16.gmra.mrb[0].mxu0 %v396
    %v473 = vpop.f32.mrb[0].mxu0
    %v474 = vadd.f32 0.0, %v473
    %v475 = vpop.f32.mrb[0].mxu0
    %v476 = vpop.f32.mrb[0].mxu0
    %v477 = vadd.f32 0.0, %v476
    %v478 = vpop.f32.mrb[0].mxu0
    %479 = vmatprep.mubr.bf16.mxu0 0
    %480 = vmatmul.mubr.bf16.gmra.mrb[0].mxu0 %v399
    %v481 = vpop.f32.mrb[0].mxu0
    %v482 = vadd.f32 0.0, %v481
    %v483 = vpop.f32.mrb[0].mxu0
    %v484 = vpop.f32.mrb[0].mxu0
    %v485 = vadd.f32 0.0, %v484
    %v486 = vpop.f32.mrb[0].mxu0
    %487 = vmatprep.mubr.bf16.mxu0 0
    %488 = vmatmul.mubr.bf16.gmra.mrb[0].mxu0 %v402
    %v489 = vpop.f32.mrb[0].mxu0
    %v490 = vadd.f32 0.0, %v489
    %v491 = vpop.f32.mrb[0].mxu0
    %v492 = vpop.f32.mrb[0].mxu0
    %v493 = vadd.f32 0.0, %v492
    %v494 = vpop.f32.mrb[0].mxu0
    %495 = vmatprep.mubr.bf16.mxu0 0
    %496 = vmatmul.mubr.bf16.gmra.mrb[0].mxu0 %v405
    %v497 = vpop.f32.mrb[0].mxu0
    %v498 = vadd.f32 0.0, %v497
    %v499 = vpop.f32.mrb[0].mxu0
    %v500 = vpop.f32.mrb[0].mxu0
    %v501 = vadd.f32 0.0, %v500
    %v502 = vpop.f32.mrb[0].mxu0
    %503 = vdwg.mxu0
    %v504 = vld [vmem:[%s19] sm:$0xf]
    %v505 = vld [vmem:[%s19 + $0x4] sm:$0xf]
    %v506 = vld [vmem:[%s19 + $0x8] sm:$0xf]
    %v507 = vld [vmem:[%s19 + $0xc] sm:$0xf]
    %v508 = vpack.c.bf16 %v268, %v265
    %v509 = vpack.c.bf16 %v276, %v273
    %v510 = vpack.c.bf16 %v284, %v281
    %v511 = vpack.c.bf16 %v292, %v289
    %v512 = vpack.c.bf16 %v300, %v297
    %v513 = vpack.c.bf16 %v308, %v305
    %v514 = vpack.c.bf16 %v316, %v313
    %v515 = vpack.c.bf16 %v324, %v321
    %v516 = vld [vmem:[%s21] sm:$0xf]
    %v517 = vld [vmem:[%s21 + $0x4] sm:$0xf]
    %v518 = vld [vmem:[%s21 + $0x8] sm:$0xf]
    %v519 = vld [vmem:[%s21 + $0xc] sm:$0xf]
    %v520 = vpack.c.bf16 %v445, %v442
    %v521 = vpack.c.bf16 %v453, %v450
    %v522 = vpack.c.bf16 %v461, %v458
    %v523 = vpack.c.bf16 %v469, %v466
    %v524 = vpack.c.bf16 %v477, %v474
    %v525 = vpack.c.bf16 %v485, %v482
    %v526 = vpack.c.bf16 %v493, %v490
    %v527 = vpack.c.bf16 %v501, %v498
    %v532 = vunpack.c.l.b16 %v516
    %v533 = vunpack.c.l.b16 %v517
    %v534 = vunpack.c.l.b16 %v518
    %v535 = vunpack.c.l.b16 %v519
    %v536 = vpack.c.b16 %v533, %v532
    %v537 = vpack.c.b16 %v535, %v534
    %vm540 = vcmask 261120
    %v542 = vsel %vm540, %v520, 0
    %v545 = vsel %vm540, %v521, 0
    %v548 = vsel %vm540, %v522, 0
    %v551 = vsel %vm540, %v523, 0
    %v554 = vsel %vm540, %v524, 0
    %v557 = vsel %vm540, %v525, 0
    %v560 = vsel %vm540, %v526, 0
    %v563 = vsel %vm540, %v527, 0
    %565 = vmatprep.subr.bf16.mxu0 0
    %566 = vmatpush1.bf16.msra.mxu0 %v536
    %567 = vmatprep.subr.bf16.mxu0 0
    %568 = vmatpush1.bf16.msra.mxu0 %v537
    %569 = vmatprep.subr.bf16.mxu0 0
    %570 = vmatpush1.bf16.msra.mxu0 0
    %571 = vmatprep.subr.bf16.mxu0 0
    %572 = vmatpush1.bf16.msra.mxu0 0
    %573 = vmatprep.subr.bf16.mxu0 0
    %574 = vmatpush1.bf16.msra.mxu0 0
    %575 = vmatprep.subr.bf16.mxu0 0
    %576 = vmatpush1.bf16.msra.mxu0 0
    %577 = vmatprep.subr.bf16.mxu0 0
    %578 = vmatpush1.bf16.msra.mxu0 0
    %579 = vmatprep.subr.bf16.mxu0 0
    %580 = vmatpush1.bf16.msra.mxu0 0
    %581 = vmatprep.subr.bf16.mxu0 0
    %582 = vmatpush1.bf16.msra.mxu0 0
    %583 = vmatprep.subr.bf16.mxu0 0
    %584 = vmatpush1.bf16.msra.mxu0 0
    %585 = vmatprep.subr.bf16.mxu0 0
    %586 = vmatpush1.bf16.msra.mxu0 0
    %587 = vmatprep.subr.bf16.mxu0 0
    %588 = vmatpush1.bf16.msra.mxu0 0
    %589 = vmatprep.subr.bf16.mxu0 0
    %590 = vmatpush1.bf16.msra.mxu0 0
    %591 = vmatprep.subr.bf16.mxu0 0
    %592 = vmatpush1.bf16.msra.mxu0 0
    %593 = vmatprep.subr.bf16.mxu0 0
    %594 = vmatpush1.bf16.msra.mxu0 0
    %595 = vmatprep.subr.bf16.mxu0 0
    %596 = vmatpush1.bf16.msra.mxu0 0
    %597 = vmatprep.mubr.bf16.mxu0 0
    %598 = vmatmul.mubr.bf16.gmra.mrb[0].mxu0 %v542
    %v599 = vpop.f32.mrb[0].mxu0
    %v600 = vadd.f32 0.0, %v599
    %v601 = vpop.f32.mrb[0].mxu0
    %v602 = vpop.f32.mrb[0].mxu0
    %v603 = vadd.f32 0.0, %v602
    %v604 = vpop.f32.mrb[0].mxu0
    %605 = vmatprep.mubr.bf16.mxu0 0
    %606 = vmatmul.mubr.bf16.gmra.mrb[0].mxu0 %v545
    %v607 = vpop.f32.mrb[0].mxu0
    %v608 = vadd.f32 0.0, %v607
    %v609 = vpop.f32.mrb[0].mxu0
    %v610 = vpop.f32.mrb[0].mxu0
    %v611 = vadd.f32 0.0, %v610
    %v612 = vpop.f32.mrb[0].mxu0
    %613 = vmatprep.mubr.bf16.mxu0 0
    %614 = vmatmul.mubr.bf16.gmra.mrb[0].mxu0 %v548
    %v615 = vpop.f32.mrb[0].mxu0
    %v616 = vadd.f32 0.0, %v615
    %v617 = vpop.f32.mrb[0].mxu0
    %v618 = vpop.f32.mrb[0].mxu0
    %v619 = vadd.f32 0.0, %v618
    %v620 = vpop.f32.mrb[0].mxu0
    %621 = vmatprep.mubr.bf16.mxu0 0
    %622 = vmatmul.mubr.bf16.gmra.mrb[0].mxu0 %v551
    %v623 = vpop.f32.mrb[0].mxu0
    %v624 = vadd.f32 0.0, %v623
    %v625 = vpop.f32.mrb[0].mxu0
    %v626 = vpop.f32.mrb[0].mxu0
    %v627 = vadd.f32 0.0, %v626
    %v628 = vpop.f32.mrb[0].mxu0
    %629 = vmatprep.mubr.bf16.mxu0 0
    %630 = vmatmul.mubr.bf16.gmra.mrb[0].mxu0 %v554
    %v631 = vpop.f32.mrb[0].mxu0
    %v632 = vadd.f32 0.0, %v631
    %v633 = vpop.f32.mrb[0].mxu0
    %v634 = vpop.f32.mrb[0].mxu0
    %v635 = vadd.f32 0.0, %v634
    %v636 = vpop.f32.mrb[0].mxu0
    %637 = vmatprep.mubr.bf16.mxu0 0
    %638 = vmatmul.mubr.bf16.gmra.mrb[0].mxu0 %v557
    %v639 = vpop.f32.mrb[0].mxu0
    %v640 = vadd.f32 0.0, %v639
    %v641 = vpop.f32.mrb[0].mxu0
    %v642 = vpop.f32.mrb[0].mxu0
    %v643 = vadd.f32 0.0, %v642
    %v644 = vpop.f32.mrb[0].mxu0
    %645 = vmatprep.mubr.bf16.mxu0 0
    %646 = vmatmul.mubr.bf16.gmra.mrb[0].mxu0 %v560
    %v647 = vpop.f32.mrb[0].mxu0
    %v648 = vadd.f32 0.0, %v647
    %v649 = vpop.f32.mrb[0].mxu0
    %v650 = vpop.f32.mrb[0].mxu0
    %v651 = vadd.f32 0.0, %v650
    %v652 = vpop.f32.mrb[0].mxu0
    %653 = vmatprep.mubr.bf16.mxu0 0
    %654 = vmatmul.mubr.bf16.gmra.mrb[0].mxu0 %v563
    %v655 = vpop.f32.mrb[0].mxu0
    %v656 = vadd.f32 0.0, %v655
    %v657 = vpop.f32.mrb[0].mxu0
    %v658 = vpop.f32.mrb[0].mxu0
    %v659 = vadd.f32 0.0, %v658
    %v660 = vpop.f32.mrb[0].mxu0
    %661 = vdwg.mxu0
    %v666 = vunpack.c.l.b16 %v504
    %v667 = vunpack.c.l.b16 %v505
    %v668 = vunpack.c.l.b16 %v506
    %v669 = vunpack.c.l.b16 %v507
    %v670 = vpack.c.b16 %v667, %v666
    %v671 = vpack.c.b16 %v669, %v668
    %v675 = vsel %vm540, %v508, 0
    %v678 = vsel %vm540, %v509, 0
    %v681 = vsel %vm540, %v510, 0
    %v684 = vsel %vm540, %v511, 0
    %v687 = vsel %vm540, %v512, 0
    %v690 = vsel %vm540, %v513, 0
    %v693 = vsel %vm540, %v514, 0
    %v696 = vsel %vm540, %v515, 0
    %698 = vmatprep.subr.bf16.mxu0 0
    %699 = vmatpush1.bf16.msra.mxu0 %v670
    %700 = vmatprep.subr.bf16.mxu0 0
    %701 = vmatpush1.bf16.msra.mxu0 %v671
    %702 = vmatprep.subr.bf16.mxu0 0
    %703 = vmatpush1.bf16.msra.mxu0 0
    %704 = vmatprep.subr.bf16.mxu0 0
    %705 = vmatpush1.bf16.msra.mxu0 0
    %706 = vmatprep.subr.bf16.mxu0 0
    %707 = vmatpush1.bf16.msra.mxu0 0
    %708 = vmatprep.subr.bf16.mxu0 0
    %709 = vmatpush1.bf16.msra.mxu0 0
    %710 = vmatprep.subr.bf16.mxu0 0
    %711 = vmatpush1.bf16.msra.mxu0 0
    %712 = vmatprep.subr.bf16.mxu0 0
    %713 = vmatpush1.bf16.msra.mxu0 0
    %714 = vmatprep.subr.bf16.mxu0 0
    %715 = vmatpush1.bf16.msra.mxu0 0
    %716 = vmatprep.subr.bf16.mxu0 0
    %717 = vmatpush1.bf16.msra.mxu0 0
    %718 = vmatprep.subr.bf16.mxu0 0
    %719 = vmatpush1.bf16.msra.mxu0 0
    %720 = vmatprep.subr.bf16.mxu0 0
    %721 = vmatpush1.bf16.msra.mxu0 0
    %722 = vmatprep.subr.bf16.mxu0 0
    %723 = vmatpush1.bf16.msra.mxu0 0
    %724 = vmatprep.subr.bf16.mxu0 0
    %725 = vmatpush1.bf16.msra.mxu0 0
    %726 = vmatprep.subr.bf16.mxu0 0
    %727 = vmatpush1.bf16.msra.mxu0 0
    %728 = vmatprep.subr.bf16.mxu0 0
    %729 = vmatpush1.bf16.msra.mxu0 0
    %730 = vmatprep.mubr.bf16.mxu0 0
    %731 = vmatmul.mubr.bf16.gmra.mrb[0].mxu0 %v675
    %v732 = vpop.f32.mrb[0].mxu0
    %v733 = vadd.f32 %v600, %v732
    %v734 = vpop.f32.mrb[0].mxu0
    %v735 = vpop.f32.mrb[0].mxu0
    %v736 = vadd.f32 %v603, %v735
    %v737 = vpop.f32.mrb[0].mxu0
    %738 = vmatprep.mubr.bf16.mxu0 0
    %739 = vmatmul.mubr.bf16.gmra.mrb[0].mxu0 %v678
    %v740 = vpop.f32.mrb[0].mxu0
    %v741 = vadd.f32 %v608, %v740
    %v742 = vpop.f32.mrb[0].mxu0
    %v743 = vpop.f32.mrb[0].mxu0
    %v744 = vadd.f32 %v611, %v743
    %v745 = vpop.f32.mrb[0].mxu0
    %746 = vmatprep.mubr.bf16.mxu0 0
    %747 = vmatmul.mubr.bf16.gmra.mrb[0].mxu0 %v681
    %v748 = vpop.f32.mrb[0].mxu0
    %v749 = vadd.f32 %v616, %v748
    %v750 = vpop.f32.mrb[0].mxu0
    %v751 = vpop.f32.mrb[0].mxu0
    %v752 = vadd.f32 %v619, %v751
    %v753 = vpop.f32.mrb[0].mxu0
    %754 = vmatprep.mubr.bf16.mxu0 0
    %755 = vmatmul.mubr.bf16.gmra.mrb[0].mxu0 %v684
    %v756 = vpop.f32.mrb[0].mxu0
    %v757 = vadd.f32 %v624, %v756
    %v758 = vpop.f32.mrb[0].mxu0
    %v759 = vpop.f32.mrb[0].mxu0
    %v760 = vadd.f32 %v627, %v759
    %v761 = vpop.f32.mrb[0].mxu0
    %762 = vmatprep.mubr.bf16.mxu0 0
    %763 = vmatmul.mubr.bf16.gmra.mrb[0].mxu0 %v687
    %v764 = vpop.f32.mrb[0].mxu0
    %v765 = vadd.f32 %v632, %v764
    %v766 = vpop.f32.mrb[0].mxu0
    %v767 = vpop.f32.mrb[0].mxu0
    %v768 = vadd.f32 %v635, %v767
    %v769 = vpop.f32.mrb[0].mxu0
    %770 = vmatprep.mubr.bf16.mxu0 0
    %771 = vmatmul.mubr.bf16.gmra.mrb[0].mxu0 %v690
    %v772 = vpop.f32.mrb[0].mxu0
    %v773 = vadd.f32 %v640, %v772
    %v774 = vpop.f32.mrb[0].mxu0
    %v775 = vpop.f32.mrb[0].mxu0
    %v776 = vadd.f32 %v643, %v775
    %v777 = vpop.f32.mrb[0].mxu0
    %778 = vmatprep.mubr.bf16.mxu0 0
    %779 = vmatmul.mubr.bf16.gmra.mrb[0].mxu0 %v693
    %v780 = vpop.f32.mrb[0].mxu0
    %v781 = vadd.f32 %v648, %v780
    %v782 = vpop.f32.mrb[0].mxu0
    %v783 = vpop.f32.mrb[0].mxu0
    %v784 = vadd.f32 %v651, %v783
    %v785 = vpop.f32.mrb[0].mxu0
    %786 = vmatprep.mubr.bf16.mxu0 0
    %787 = vmatmul.mubr.bf16.gmra.mrb[0].mxu0 %v696
    %v788 = vpop.f32.mrb[0].mxu0
    %v789 = vadd.f32 %v656, %v788
    %v790 = vpop.f32.mrb[0].mxu0
    %v791 = vpop.f32.mrb[0].mxu0
    %v792 = vadd.f32 %v659, %v791
    %v793 = vpop.f32.mrb[0].mxu0
    %794 = vdwg.mxu0
    %v795 = vld [vmem:[%s1] sm:$0xff]
    %v796 = vld [vmem:[%s1 + $0x8] sm:$0xff]
    %v797 = vld [vmem:[%s1 + $0x10] sm:$0xff]
    %v798 = vld [vmem:[%s1 + $0x18] sm:$0xff]
    %v799 = vld [vmem:[%s1 + $0x20] sm:$0xff]
    %v800 = vld [vmem:[%s1 + $0x28] sm:$0xff]
    %v801 = vld [vmem:[%s1 + $0x30] sm:$0xff]
    %v802 = vld [vmem:[%s1 + $0x38] sm:$0xff]
    %v803 = vld [vmem:[%s1 + $0x40] sm:$0xff]
    %v804 = vld [vmem:[%s1 + $0x48] sm:$0xff]
    %v805 = vld [vmem:[%s1 + $0x50] sm:$0xff]
    %v806 = vld [vmem:[%s1 + $0x58] sm:$0xff]
    %v807 = vld [vmem:[%s1 + $0x60] sm:$0xff]
    %v808 = vld [vmem:[%s1 + $0x68] sm:$0xff]
    %v809 = vld [vmem:[%s1 + $0x70] sm:$0xff]
    %v810 = vld [vmem:[%s1 + $0x78] sm:$0xff]
    %v811 = vld [vmem:[%s23] sm:$0xf]
    %v812 = vld [vmem:[%s23 + $0x4] sm:$0xf]
    %v813 = vld [vmem:[%s23 + $0x8] sm:$0xf]
    %v814 = vld [vmem:[%s23 + $0xc] sm:$0xf]
    %v815 = vld [vmem:[%s23 + $0x10] sm:$0xf]
    %v816 = vld [vmem:[%s23 + $0x14] sm:$0xf]
    %v817 = vld [vmem:[%s23 + $0x18] sm:$0xf]
    %v818 = vld [vmem:[%s23 + $0x1c] sm:$0xf]
    %v819 = vld [vmem:[%s23 + $0x20] sm:$0xf]
    %v820 = vld [vmem:[%s23 + $0x24] sm:$0xf]
    %v821 = vld [vmem:[%s23 + $0x28] sm:$0xf]
    %v822 = vld [vmem:[%s23 + $0x2c] sm:$0xf]
    %v823 = vld [vmem:[%s23 + $0x30] sm:$0xf]
    %v824 = vld [vmem:[%s23 + $0x34] sm:$0xf]
    %v825 = vld [vmem:[%s23 + $0x38] sm:$0xf]
    %v826 = vld [vmem:[%s23 + $0x3c] sm:$0xf]
    %v827 = vld [vmem:[%s23 + $0x40] sm:$0xf]
    %v828 = vld [vmem:[%s23 + $0x44] sm:$0xf]
    %v829 = vld [vmem:[%s23 + $0x48] sm:$0xf]
    %v830 = vld [vmem:[%s23 + $0x4c] sm:$0xf]
    %v831 = vld [vmem:[%s23 + $0x50] sm:$0xf]
    %v832 = vld [vmem:[%s23 + $0x54] sm:$0xf]
    %v833 = vld [vmem:[%s23 + $0x58] sm:$0xf]
    %v834 = vld [vmem:[%s23 + $0x5c] sm:$0xf]
    %v835 = vld [vmem:[%s23 + $0x60] sm:$0xf]
    %v836 = vld [vmem:[%s23 + $0x64] sm:$0xf]
    %v837 = vld [vmem:[%s23 + $0x68] sm:$0xf]
    %v838 = vld [vmem:[%s23 + $0x6c] sm:$0xf]
    %v839 = vld [vmem:[%s23 + $0x70] sm:$0xf]
    %v840 = vld [vmem:[%s23 + $0x74] sm:$0xf]
    %v841 = vld [vmem:[%s23 + $0x78] sm:$0xf]
    %v842 = vld [vmem:[%s23 + $0x7c] sm:$0xf]
    %v859 = vunpack.c.l.b16 %v795
    %v860 = vunpack.c.h.b16 %v795
    %v861 = vunpack.c.l.b16 %v796
    %v862 = vunpack.c.h.b16 %v796
    %v863 = vunpack.c.l.b16 %v797
    %v864 = vunpack.c.h.b16 %v797
    %v865 = vunpack.c.l.b16 %v798
    %v866 = vunpack.c.h.b16 %v798
    %v867 = vunpack.c.l.b16 %v799
    %v868 = vunpack.c.h.b16 %v799
    %v869 = vunpack.c.l.b16 %v800
    %v870 = vunpack.c.h.b16 %v800
    %v871 = vunpack.c.l.b16 %v801
    %v872 = vunpack.c.h.b16 %v801
    %v873 = vunpack.c.l.b16 %v802
    %v874 = vunpack.c.h.b16 %v802
    %v875 = vunpack.c.l.b16 %v803
    %v876 = vunpack.c.h.b16 %v803
    %v877 = vunpack.c.l.b16 %v804
    %v878 = vunpack.c.h.b16 %v804
    %v879 = vunpack.c.l.b16 %v805
    %v880 = vunpack.c.h.b16 %v805
    %v881 = vunpack.c.l.b16 %v806
    %v882 = vunpack.c.h.b16 %v806
    %v883 = vunpack.c.l.b16 %v807
    %v884 = vunpack.c.h.b16 %v807
    %v885 = vunpack.c.l.b16 %v808
    %v886 = vunpack.c.h.b16 %v808
    %v887 = vunpack.c.l.b16 %v809
    %v888 = vunpack.c.h.b16 %v809
    %v889 = vunpack.c.l.b16 %v810
    %v890 = vunpack.c.h.b16 %v810
    %v891 = vpack.c.b16 %v861, %v859
    %v892 = vpack.c.b16 %v862, %v860
    %v893 = vpack.c.b16 %v865, %v863
    %v894 = vpack.c.b16 %v866, %v864
    %v895 = vpack.c.b16 %v869, %v867
    %v896 = vpack.c.b16 %v870, %v868
    %v897 = vpack.c.b16 %v873, %v871
    %v898 = vpack.c.b16 %v874, %v872
    %v899 = vpack.c.b16 %v877, %v875
    %v900 = vpack.c.b16 %v878, %v876
    %v901 = vpack.c.b16 %v881, %v879
    %v902 = vpack.c.b16 %v882, %v880
    %v903 = vpack.c.b16 %v885, %v883
    %v904 = vpack.c.b16 %v886, %v884
    %v905 = vpack.c.b16 %v889, %v887
    %v906 = vpack.c.b16 %v890, %v888
    %v955 = vunpack.c.l.b16 %v811
    %v956 = vunpack.c.l.b16 %v812
    %v957 = vunpack.c.l.b16 %v813
    %v958 = vunpack.c.l.b16 %v814
    %v959 = vunpack.c.l.b16 %v815
    %v960 = vunpack.c.l.b16 %v816
    %v961 = vunpack.c.l.b16 %v817
    %v962 = vunpack.c.l.b16 %v818
    %v963 = vunpack.c.l.b16 %v819
    %v964 = vunpack.c.l.b16 %v820
    %v965 = vunpack.c.l.b16 %v821
    %v966 = vunpack.c.l.b16 %v822
    %v967 = vunpack.c.l.b16 %v823
    %v968 = vunpack.c.l.b16 %v824
    %v969 = vunpack.c.l.b16 %v825
    %v970 = vunpack.c.l.b16 %v826
    %v971 = vunpack.c.l.b16 %v827
    %v972 = vunpack.c.l.b16 %v828
    %v973 = vunpack.c.l.b16 %v829
    %v974 = vunpack.c.l.b16 %v830
    %v975 = vunpack.c.l.b16 %v831
    %v976 = vunpack.c.l.b16 %v832
    %v977 = vunpack.c.l.b16 %v833
    %v978 = vunpack.c.l.b16 %v834
    %v979 = vunpack.c.l.b16 %v835
    %v980 = vunpack.c.l.b16 %v836
    %v981 = vunpack.c.l.b16 %v837
    %v982 = vunpack.c.l.b16 %v838
    %v983 = vunpack.c.l.b16 %v839
    %v984 = vunpack.c.l.b16 %v840
    %v985 = vunpack.c.l.b16 %v841
    %v986 = vunpack.c.l.b16 %v842
    %v987 = vpack.c.b16 %v956, %v955
    %v988 = vpack.c.b16 %v958, %v957
    %v989 = vpack.c.b16 %v960, %v959
    %v990 = vpack.c.b16 %v962, %v961
    %v991 = vpack.c.b16 %v964, %v963
    %v992 = vpack.c.b16 %v966, %v965
    %v993 = vpack.c.b16 %v968, %v967
    %v994 = vpack.c.b16 %v970, %v969
    %v995 = vpack.c.b16 %v972, %v971
    %v996 = vpack.c.b16 %v974, %v973
    %v997 = vpack.c.b16 %v976, %v975
    %v998 = vpack.c.b16 %v978, %v977
    %v999 = vpack.c.b16 %v980, %v979
    %v1000 = vpack.c.b16 %v982, %v981
    %v1001 = vpack.c.b16 %v984, %v983
    %v1002 = vpack.c.b16 %v986, %v985
    %1019 = vmatprep.subr.bf16.mxu0 0
    %1020 = vmatpush1.bf16.msra.mxu0 %v987
    %1021 = vmatprep.subr.bf16.mxu0 0
    %1022 = vmatpush1.bf16.msra.mxu0 %v988
    %1023 = vmatprep.subr.bf16.mxu0 0
    %1024 = vmatpush1.bf16.msra.mxu0 %v989
    %1025 = vmatprep.subr.bf16.mxu0 0
    %1026 = vmatpush1.bf16.msra.mxu0 %v990
    %1027 = vmatprep.subr.bf16.mxu0 0
    %1028 = vmatpush1.bf16.msra.mxu0 %v991
    %1029 = vmatprep.subr.bf16.mxu0 0
    %1030 = vmatpush1.bf16.msra.mxu0 %v992
    %1031 = vmatprep.subr.bf16.mxu0 0
    %1032 = vmatpush1.bf16.msra.mxu0 %v993
    %1033 = vmatprep.subr.bf16.mxu0 0
    %1034 = vmatpush1.bf16.msra.mxu0 %v994
    %1035 = vmatprep.subr.bf16.mxu0 0
    %1036 = vmatpush1.bf16.msra.mxu0 %v995
    %1037 = vmatprep.subr.bf16.mxu0 0
    %1038 = vmatpush1.bf16.msra.mxu0 %v996
    %1039 = vmatprep.subr.bf16.mxu0 0
    %1040 = vmatpush1.bf16.msra.mxu0 %v997
    %1041 = vmatprep.subr.bf16.mxu0 0
    %1042 = vmatpush1.bf16.msra.mxu0 %v998
    %1043 = vmatprep.subr.bf16.mxu0 0
    %1044 = vmatpush1.bf16.msra.mxu0 %v999
    %1045 = vmatprep.subr.bf16.mxu0 0
    %1046 = vmatpush1.bf16.msra.mxu0 %v1000
    %1047 = vmatprep.subr.bf16.mxu0 0
    %1048 = vmatpush1.bf16.msra.mxu0 %v1001
    %1049 = vmatprep.subr.bf16.mxu0 0
    %1050 = vmatpush1.bf16.msra.mxu0 %v1002
    %1051 = vmatprep.mubr.bf16.mxu0 %v892
    %1052 = vmatmul.mubr.bf16.gmra.mrb[0].mxu0 %v891
    %v1053 = vpop.f32.mrb[0].mxu0
    %v1054 = vadd.f32 0.0, %v1053
    %v1055 = vpop.f32.mrb[0].mxu0
    %v1056 = vpop.f32.mrb[0].mxu0
    %v1057 = vadd.f32 0.0, %v1056
    %v1058 = vpop.f32.mrb[0].mxu0
    %1059 = vmatprep.mubr.bf16.mxu0 %v894
    %1060 = vmatmul.mubr.bf16.gmra.mrb[0].mxu0 %v893
    %v1061 = vpop.f32.mrb[0].mxu0
    %v1062 = vadd.f32 0.0, %v1061
    %v1063 = vpop.f32.mrb[0].mxu0
    %v1064 = vpop.f32.mrb[0].mxu0
    %v1065 = vadd.f32 0.0, %v1064
    %v1066 = vpop.f32.mrb[0].mxu0
    %1067 = vmatprep.mubr.bf16.mxu0 %v896
    %1068 = vmatmul.mubr.bf16.gmra.mrb[0].mxu0 %v895
    %v1069 = vpop.f32.mrb[0].mxu0
    %v1070 = vadd.f32 0.0, %v1069
    %v1071 = vpop.f32.mrb[0].mxu0
    %v1072 = vpop.f32.mrb[0].mxu0
    %v1073 = vadd.f32 0.0, %v1072
    %v1074 = vpop.f32.mrb[0].mxu0
    %1075 = vmatprep.mubr.bf16.mxu0 %v898
    %1076 = vmatmul.mubr.bf16.gmra.mrb[0].mxu0 %v897
    %v1077 = vpop.f32.mrb[0].mxu0
    %v1078 = vadd.f32 0.0, %v1077
    %v1079 = vpop.f32.mrb[0].mxu0
    %v1080 = vpop.f32.mrb[0].mxu0
    %v1081 = vadd.f32 0.0, %v1080
    %v1082 = vpop.f32.mrb[0].mxu0
    %1083 = vmatprep.mubr.bf16.mxu0 %v900
    %1084 = vmatmul.mubr.bf16.gmra.mrb[0].mxu0 %v899
    %v1085 = vpop.f32.mrb[0].mxu0
    %v1086 = vadd.f32 0.0, %v1085
    %v1087 = vpop.f32.mrb[0].mxu0
    %v1088 = vpop.f32.mrb[0].mxu0
    %v1089 = vadd.f32 0.0, %v1088
    %v1090 = vpop.f32.mrb[0].mxu0
    %1091 = vmatprep.mubr.bf16.mxu0 %v902
    %1092 = vmatmul.mubr.bf16.gmra.mrb[0].mxu0 %v901
    %v1093 = vpop.f32.mrb[0].mxu0
    %v1094 = vadd.f32 0.0, %v1093
    %v1095 = vpop.f32.mrb[0].mxu0
    %v1096 = vpop.f32.mrb[0].mxu0
    %v1097 = vadd.f32 0.0, %v1096
    %v1098 = vpop.f32.mrb[0].mxu0
    %1099 = vmatprep.mubr.bf16.mxu0 %v904
    %1100 = vmatmul.mubr.bf16.gmra.mrb[0].mxu0 %v903
    %v1101 = vpop.f32.mrb[0].mxu0
    %v1102 = vadd.f32 0.0, %v1101
    %v1103 = vpop.f32.mrb[0].mxu0
    %v1104 = vpop.f32.mrb[0].mxu0
    %v1105 = vadd.f32 0.0, %v1104
    %v1106 = vpop.f32.mrb[0].mxu0
    %1107 = vmatprep.mubr.bf16.mxu0 %v906
    %1108 = vmatmul.mubr.bf16.gmra.mrb[0].mxu0 %v905
    %v1109 = vpop.f32.mrb[0].mxu0
    %v1110 = vadd.f32 0.0, %v1109
    %v1111 = vpop.f32.mrb[0].mxu0
    %v1112 = vpop.f32.mrb[0].mxu0
    %v1113 = vadd.f32 0.0, %v1112
    %v1114 = vpop.f32.mrb[0].mxu0
    %1115 = vdwg.mxu0
    %v1116 = vadd.f32 %v733, %v1054
    %v1117 = vadd.f32 %v736, %v1057
    %v1118 = vadd.f32 %v741, %v1062
    %v1119 = vadd.f32 %v744, %v1065
    %v1120 = vadd.f32 %v749, %v1070
    %v1121 = vadd.f32 %v752, %v1073
    %v1122 = vadd.f32 %v757, %v1078
    %v1123 = vadd.f32 %v760, %v1081
    %v1124 = vadd.f32 %v765, %v1086
    %v1125 = vadd.f32 %v768, %v1089
    %v1126 = vadd.f32 %v773, %v1094
    %v1127 = vadd.f32 %v776, %v1097
    %v1128 = vadd.f32 %v781, %v1102
    %v1129 = vadd.f32 %v784, %v1105
    %v1130 = vadd.f32 %v789, %v1110
    %v1131 = vadd.f32 %v792, %v1113
    %v1132 = vld [vmem:[%s25] sm:$0x1]
    %v1134 = vlaneseq
    %v1135 = vshrl.u32 %v1134, 7
    %v1136 = vsub.s32 0, %v1135
    %v1137 = vrot.slane %v1132, %v1136
    %v1139 = vadd.f32 %v1116, %v1137
    %v1140 = vadd.f32 %v1117, %v1137
    %v1141 = vadd.f32 %v1118, %v1137
    %v1142 = vadd.f32 %v1119, %v1137
    %v1143 = vadd.f32 %v1120, %v1137
    %v1144 = vadd.f32 %v1121, %v1137
    %v1145 = vadd.f32 %v1122, %v1137
    %v1146 = vadd.f32 %v1123, %v1137
    %v1147 = vadd.f32 %v1124, %v1137
    %v1148 = vadd.f32 %v1125, %v1137
    %v1149 = vadd.f32 %v1126, %v1137
    %v1150 = vadd.f32 %v1127, %v1137
    %v1151 = vadd.f32 %v1128, %v1137
    %v1152 = vadd.f32 %v1129, %v1137
    %v1153 = vadd.f32 %v1130, %v1137
    %v1154 = vadd.f32 %v1131, %v1137
    %vm1155 = vcmp.gt.f32.partialorder %v1139, 0.0
    %vm1156 = vcmp.gt.f32.partialorder %v1140, 0.0
    %vm1157 = vcmp.gt.f32.partialorder %v1141, 0.0
    %vm1158 = vcmp.gt.f32.partialorder %v1142, 0.0
    %vm1159 = vcmp.gt.f32.partialorder %v1143, 0.0
    %vm1160 = vcmp.gt.f32.partialorder %v1144, 0.0
    %vm1161 = vcmp.gt.f32.partialorder %v1145, 0.0
    %vm1162 = vcmp.gt.f32.partialorder %v1146, 0.0
    %vm1163 = vcmp.gt.f32.partialorder %v1147, 0.0
    %vm1164 = vcmp.gt.f32.partialorder %v1148, 0.0
    %vm1165 = vcmp.gt.f32.partialorder %v1149, 0.0
    %vm1166 = vcmp.gt.f32.partialorder %v1150, 0.0
    %vm1167 = vcmp.gt.f32.partialorder %v1151, 0.0
    %vm1168 = vcmp.gt.f32.partialorder %v1152, 0.0
    %vm1169 = vcmp.gt.f32.partialorder %v1153, 0.0
    %vm1170 = vcmp.gt.f32.partialorder %v1154, 0.0
    %v1171 = vmin.f32 %v1139, 0.0
    %v1172 = vmin.f32 %v1140, 0.0
    %v1173 = vmin.f32 %v1141, 0.0
    %v1174 = vmin.f32 %v1142, 0.0
    %v1175 = vmin.f32 %v1143, 0.0
    %v1176 = vmin.f32 %v1144, 0.0
    %v1177 = vmin.f32 %v1145, 0.0
    %v1178 = vmin.f32 %v1146, 0.0
    %v1179 = vmin.f32 %v1147, 0.0
    %v1180 = vmin.f32 %v1148, 0.0
    %v1181 = vmin.f32 %v1149, 0.0
    %v1182 = vmin.f32 %v1150, 0.0
    %v1183 = vmin.f32 %v1151, 0.0
    %v1184 = vmin.f32 %v1152, 0.0
    %v1185 = vmin.f32 %v1153, 0.0
    %v1186 = vmin.f32 %v1154, 0.0
    %v1187 = vmul.f32 %v1171, 1.442695
    %v1188 = vpow.pop %v1187
    %v1189 = vmul.f32 %v1172, 1.442695
    %v1190 = vpow.pop %v1189
    %v1191 = vmul.f32 %v1173, 1.442695
    %v1192 = vpow.pop %v1191
    %v1193 = vmul.f32 %v1174, 1.442695
    %v1194 = vpow.pop %v1193
    %v1195 = vmul.f32 %v1175, 1.442695
    %v1196 = vpow.pop %v1195
    %v1197 = vmul.f32 %v1176, 1.442695
    %v1198 = vpow.pop %v1197
    %v1199 = vmul.f32 %v1177, 1.442695
    %v1200 = vpow.pop %v1199
    %v1201 = vmul.f32 %v1178, 1.442695
    %v1202 = vpow.pop %v1201
    %v1203 = vmul.f32 %v1179, 1.442695
    %v1204 = vpow.pop %v1203
    %v1205 = vmul.f32 %v1180, 1.442695
    %v1206 = vpow.pop %v1205
    %v1207 = vmul.f32 %v1181, 1.442695
    %v1208 = vpow.pop %v1207
    %v1209 = vmul.f32 %v1182, 1.442695
    %v1210 = vpow.pop %v1209
    %v1211 = vmul.f32 %v1183, 1.442695
    %v1212 = vpow.pop %v1211
    %v1213 = vmul.f32 %v1184, 1.442695
    %v1214 = vpow.pop %v1213
    %v1215 = vmul.f32 %v1185, 1.442695
    %v1216 = vpow.pop %v1215
    %v1217 = vmul.f32 %v1186, 1.442695
    %v1218 = vpow.pop %v1217
    %v1219 = vsub.f32 %v1188, 1.0
    %v1220 = vsub.f32 %v1190, 1.0
    %v1221 = vsub.f32 %v1192, 1.0
    %v1222 = vsub.f32 %v1194, 1.0
    %v1223 = vsub.f32 %v1196, 1.0
    %v1224 = vsub.f32 %v1198, 1.0
    %v1225 = vsub.f32 %v1200, 1.0
    %v1226 = vsub.f32 %v1202, 1.0
    %v1227 = vsub.f32 %v1204, 1.0
    %v1228 = vsub.f32 %v1206, 1.0
    %v1229 = vsub.f32 %v1208, 1.0
    %v1230 = vsub.f32 %v1210, 1.0
    %v1231 = vsub.f32 %v1212, 1.0
    %v1232 = vsub.f32 %v1214, 1.0
    %v1233 = vsub.f32 %v1216, 1.0
    %v1234 = vsub.f32 %v1218, 1.0
    %v1235 = vsel %vm1155, %v1139, %v1219
    %v1236 = vsel %vm1156, %v1140, %v1220
    %v1237 = vsel %vm1157, %v1141, %v1221
    %v1238 = vsel %vm1158, %v1142, %v1222
    %v1239 = vsel %vm1159, %v1143, %v1223
    %v1240 = vsel %vm1160, %v1144, %v1224
    %v1241 = vsel %vm1161, %v1145, %v1225
    %v1242 = vsel %vm1162, %v1146, %v1226
    %v1243 = vsel %vm1163, %v1147, %v1227
    %v1244 = vsel %vm1164, %v1148, %v1228
    %v1245 = vsel %vm1165, %v1149, %v1229
    %v1246 = vsel %vm1166, %v1150, %v1230
    %v1247 = vsel %vm1167, %v1151, %v1231
    %v1248 = vsel %vm1168, %v1152, %v1232
    %v1249 = vsel %vm1169, %v1153, %v1233
    %v1250 = vsel %vm1170, %v1154, %v1234
    %v1251 = vld [vmem:[%s27] sm:$0xf]
    %v1252 = vld [vmem:[%s27 + $0x4] sm:$0xf]
    %v1253 = vld [vmem:[%s27 + $0x8] sm:$0xf]
    %v1254 = vld [vmem:[%s27 + $0xc] sm:$0xf]
    %v1255 = vpack.c.bf16 %v1236, %v1235
    %v1256 = vpack.c.bf16 %v1238, %v1237
    %v1257 = vpack.c.bf16 %v1240, %v1239
    %v1258 = vpack.c.bf16 %v1242, %v1241
    %v1259 = vpack.c.bf16 %v1244, %v1243
    %v1260 = vpack.c.bf16 %v1246, %v1245
    %v1261 = vpack.c.bf16 %v1248, %v1247
    %v1262 = vpack.c.bf16 %v1250, %v1249
    %v1263 = vld [vmem:[%s29] sm:$0x1]
    %v1265 = vlaneseq
    %v1266 = vshrl.u32 %v1265, 7
    %v1267 = vsub.s32 0, %v1266
    %v1268 = vrot.slane %v1263, %v1267
    %v1274 = vunpack.c.l.b16 %v1251
    %v1275 = vunpack.c.l.b16 %v1252
    %v1276 = vunpack.c.l.b16 %v1253
    %v1277 = vunpack.c.l.b16 %v1254
    %v1278 = vpack.c.b16 %v1275, %v1274
    %v1279 = vpack.c.b16 %v1277, %v1276
    %v1283 = vsel %vm540, %v1255, 0
    %v1286 = vsel %vm540, %v1256, 0
    %v1289 = vsel %vm540, %v1257, 0
    %v1292 = vsel %vm540, %v1258, 0
    %v1295 = vsel %vm540, %v1259, 0
    %v1298 = vsel %vm540, %v1260, 0
    %v1301 = vsel %vm540, %v1261, 0
    %v1304 = vsel %vm540, %v1262, 0
    %1306 = vmatprep.subr.bf16.mxu0 0
    %1307 = vmatpush1.bf16.msra.mxu0 %v1278
    %1308 = vmatprep.subr.bf16.mxu0 0
    %1309 = vmatpush1.bf16.msra.mxu0 %v1279
    %1310 = vmatprep.subr.bf16.mxu0 0
    %1311 = vmatpush1.bf16.msra.mxu0 0
    %1312 = vmatprep.subr.bf16.mxu0 0
    %1313 = vmatpush1.bf16.msra.mxu0 0
    %1314 = vmatprep.subr.bf16.mxu0 0
    %1315 = vmatpush1.bf16.msra.mxu0 0
    %1316 = vmatprep.subr.bf16.mxu0 0
    %1317 = vmatpush1.bf16.msra.mxu0 0
    %1318 = vmatprep.subr.bf16.mxu0 0
    %1319 = vmatpush1.bf16.msra.mxu0 0
    %1320 = vmatprep.subr.bf16.mxu0 0
    %1321 = vmatpush1.bf16.msra.mxu0 0
    %1322 = vmatprep.subr.bf16.mxu0 0
    %1323 = vmatpush1.bf16.msra.mxu0 0
    %1324 = vmatprep.subr.bf16.mxu0 0
    %1325 = vmatpush1.bf16.msra.mxu0 0
    %1326 = vmatprep.subr.bf16.mxu0 0
    %1327 = vmatpush1.bf16.msra.mxu0 0
    %1328 = vmatprep.subr.bf16.mxu0 0
    %1329 = vmatpush1.bf16.msra.mxu0 0
    %1330 = vmatprep.subr.bf16.mxu0 0
    %1331 = vmatpush1.bf16.msra.mxu0 0
    %1332 = vmatprep.subr.bf16.mxu0 0
    %1333 = vmatpush1.bf16.msra.mxu0 0
    %1334 = vmatprep.subr.bf16.mxu0 0
    %1335 = vmatpush1.bf16.msra.mxu0 0
    %1336 = vmatprep.subr.bf16.mxu0 0
    %1337 = vmatpush1.bf16.msra.mxu0 0
    %1338 = vmatprep.mubr.bf16.mxu0 0
    %1339 = vmatmul.mubr.bf16.gmra.mrb[0].mxu0 %v1283
    %v1340 = vpop.f32.mrb[0].mxu0
    %v1341 = vadd.f32 %v1268, %v1340
    %v1342 = vpop.f32.mrb[0].mxu0
    %v1343 = vpop.f32.mrb[0].mxu0
    %v1344 = vadd.f32 %v1268, %v1343
    %v1345 = vpop.f32.mrb[0].mxu0
    %1346 = vmatprep.mubr.bf16.mxu0 0
    %1347 = vmatmul.mubr.bf16.gmra.mrb[0].mxu0 %v1286
    %v1348 = vpop.f32.mrb[0].mxu0
    %v1349 = vadd.f32 %v1268, %v1348
    %v1350 = vpop.f32.mrb[0].mxu0
    %v1351 = vpop.f32.mrb[0].mxu0
    %v1352 = vadd.f32 %v1268, %v1351
    %v1353 = vpop.f32.mrb[0].mxu0
    %1354 = vmatprep.mubr.bf16.mxu0 0
    %1355 = vmatmul.mubr.bf16.gmra.mrb[0].mxu0 %v1289
    %v1356 = vpop.f32.mrb[0].mxu0
    %v1357 = vadd.f32 %v1268, %v1356
    %v1358 = vpop.f32.mrb[0].mxu0
    %v1359 = vpop.f32.mrb[0].mxu0
    %v1360 = vadd.f32 %v1268, %v1359
    %v1361 = vpop.f32.mrb[0].mxu0
    %1362 = vmatprep.mubr.bf16.mxu0 0
    %1363 = vmatmul.mubr.bf16.gmra.mrb[0].mxu0 %v1292
    %v1364 = vpop.f32.mrb[0].mxu0
    %v1365 = vadd.f32 %v1268, %v1364
    %v1366 = vpop.f32.mrb[0].mxu0
    %v1367 = vpop.f32.mrb[0].mxu0
    %v1368 = vadd.f32 %v1268, %v1367
    %v1369 = vpop.f32.mrb[0].mxu0
    %1370 = vmatprep.mubr.bf16.mxu0 0
    %1371 = vmatmul.mubr.bf16.gmra.mrb[0].mxu0 %v1295
    %v1372 = vpop.f32.mrb[0].mxu0
    %v1373 = vadd.f32 %v1268, %v1372
    %v1374 = vpop.f32.mrb[0].mxu0
    %v1375 = vpop.f32.mrb[0].mxu0
    %v1376 = vadd.f32 %v1268, %v1375
    %v1377 = vpop.f32.mrb[0].mxu0
    %1378 = vmatprep.mubr.bf16.mxu0 0
    %1379 = vmatmul.mubr.bf16.gmra.mrb[0].mxu0 %v1298
    %v1380 = vpop.f32.mrb[0].mxu0
    %v1381 = vadd.f32 %v1268, %v1380
    %v1382 = vpop.f32.mrb[0].mxu0
    %v1383 = vpop.f32.mrb[0].mxu0
    %v1384 = vadd.f32 %v1268, %v1383
    %v1385 = vpop.f32.mrb[0].mxu0
    %1386 = vmatprep.mubr.bf16.mxu0 0
    %1387 = vmatmul.mubr.bf16.gmra.mrb[0].mxu0 %v1301
    %v1388 = vpop.f32.mrb[0].mxu0
    %v1389 = vadd.f32 %v1268, %v1388
    %v1390 = vpop.f32.mrb[0].mxu0
    %v1391 = vpop.f32.mrb[0].mxu0
    %v1392 = vadd.f32 %v1268, %v1391
    %v1393 = vpop.f32.mrb[0].mxu0
    %1394 = vmatprep.mubr.bf16.mxu0 0
    %1395 = vmatmul.mubr.bf16.gmra.mrb[0].mxu0 %v1304
    %v1396 = vpop.f32.mrb[0].mxu0
    %v1397 = vadd.f32 %v1268, %v1396
    %v1398 = vpop.f32.mrb[0].mxu0
    %v1399 = vpop.f32.mrb[0].mxu0
    %v1400 = vadd.f32 %v1268, %v1399
    %v1401 = vpop.f32.mrb[0].mxu0
    %1402 = vdwg.mxu0
    %v1403 = vpack.c.bf16 %v1344, %v1341
    %v1404 = vpack.c.bf16 %v1352, %v1349
    %v1405 = vpack.c.bf16 %v1360, %v1357
    %v1406 = vpack.c.bf16 %v1368, %v1365
    %v1407 = vpack.c.bf16 %v1376, %v1373
    %v1408 = vpack.c.bf16 %v1384, %v1381
    %v1409 = vpack.c.bf16 %v1392, %v1389
    %v1410 = vpack.c.bf16 %v1400, %v1397
    %v1419 = vunpack.c.l.b16 %v1403
    %v1420 = vunpack.c.h.b16 %v1403
    %v1421 = vunpack.c.l.b16 %v1404
    %v1422 = vunpack.c.h.b16 %v1404
    %v1423 = vunpack.c.l.b16 %v1405
    %v1424 = vunpack.c.h.b16 %v1405
    %v1425 = vunpack.c.l.b16 %v1406
    %v1426 = vunpack.c.h.b16 %v1406
    %v1427 = vunpack.c.l.b16 %v1407
    %v1428 = vunpack.c.h.b16 %v1407
    %v1429 = vunpack.c.l.b16 %v1408
    %v1430 = vunpack.c.h.b16 %v1408
    %v1431 = vunpack.c.l.b16 %v1409
    %v1432 = vunpack.c.h.b16 %v1409
    %v1433 = vunpack.c.l.b16 %v1410
    %v1434 = vunpack.c.h.b16 %v1410
    %v1435 = vpack.c.b16 %v1419, %v1419
    %v1436 = vpack.c.b16 %v1420, %v1420
    %v1437 = vpack.c.b16 %v1421, %v1421
    %v1438 = vpack.c.b16 %v1422, %v1422
    %v1439 = vpack.c.b16 %v1423, %v1423
    %v1440 = vpack.c.b16 %v1424, %v1424
    %v1441 = vpack.c.b16 %v1425, %v1425
    %v1442 = vpack.c.b16 %v1426, %v1426
    %v1443 = vpack.c.b16 %v1427, %v1427
    %v1444 = vpack.c.b16 %v1428, %v1428
    %v1445 = vpack.c.b16 %v1429, %v1429
    %v1446 = vpack.c.b16 %v1430, %v1430
    %v1447 = vpack.c.b16 %v1431, %v1431
    %v1448 = vpack.c.b16 %v1432, %v1432
    %v1449 = vpack.c.b16 %v1433, %v1433
    %v1450 = vpack.c.b16 %v1434, %v1434
    %vm1467 = vcmask 257024
    %1468 = vst.msk [vmem:[#allocation5] sm:$0xf] %vm1467, %v1435
    %1469 = vst.msk [vmem:[#allocation5 + $0x4] sm:$0xf] %vm1467, %v1436
    %1470 = vst.msk [vmem:[#allocation5 + $0x8] sm:$0xf] %vm1467, %v1437
    %1471 = vst.msk [vmem:[#allocation5 + $0xc] sm:$0xf] %vm1467, %v1438
    %1472 = vst.msk [vmem:[#allocation5 + $0x10] sm:$0xf] %vm1467, %v1439
    %1473 = vst.msk [vmem:[#allocation5 + $0x14] sm:$0xf] %vm1467, %v1440
    %1474 = vst.msk [vmem:[#allocation5 + $0x18] sm:$0xf] %vm1467, %v1441
    %1475 = vst.msk [vmem:[#allocation5 + $0x1c] sm:$0xf] %vm1467, %v1442
    %1476 = vst.msk [vmem:[#allocation5 + $0x20] sm:$0xf] %vm1467, %v1443
    %1477 = vst.msk [vmem:[#allocation5 + $0x24] sm:$0xf] %vm1467, %v1444
    %1478 = vst.msk [vmem:[#allocation5 + $0x28] sm:$0xf] %vm1467, %v1445
    %1479 = vst.msk [vmem:[#allocation5 + $0x2c] sm:$0xf] %vm1467, %v1446
    %1480 = vst.msk [vmem:[#allocation5 + $0x30] sm:$0xf] %vm1467, %v1447
    %1481 = vst.msk [vmem:[#allocation5 + $0x34] sm:$0xf] %vm1467, %v1448
    %1482 = vst.msk [vmem:[#allocation5 + $0x38] sm:$0xf] %vm1467, %v1449
    %1483 = vst.msk [vmem:[#allocation5 + $0x3c] sm:$0xf] %vm1467, %v1450
    %v1484 = vld [vmem:[%s31] sm:$0xf]
    %v1485 = vld [vmem:[%s31 + $0x4] sm:$0xf]
    %v1486 = vld [vmem:[%s31 + $0x8] sm:$0xf]
    %v1487 = vld [vmem:[%s31 + $0xc] sm:$0xf]
    %v1488 = vld [vmem:[%s33] sm:$0xf]
    %v1489 = vld [vmem:[%s33 + $0x4] sm:$0xf]
    %v1490 = vld [vmem:[%s33 + $0x8] sm:$0xf]
    %v1491 = vld [vmem:[%s33 + $0xc] sm:$0xf]
    %v1496 = vunpack.c.l.b16 %v1488
    %v1497 = vunpack.c.l.b16 %v1489
    %v1498 = vunpack.c.l.b16 %v1490
    %v1499 = vunpack.c.l.b16 %v1491
    %v1500 = vpack.c.b16 %v1497, %v1496
    %v1501 = vpack.c.b16 %v1499, %v1498
    %v1505 = vsel %vm540, %v1403, 0
    %v1508 = vsel %vm540, %v1404, 0
    %v1511 = vsel %vm540, %v1405, 0
    %v1514 = vsel %vm540, %v1406, 0
    %v1517 = vsel %vm540, %v1407, 0
    %v1520 = vsel %vm540, %v1408, 0
    %v1523 = vsel %vm540, %v1409, 0
    %v1526 = vsel %vm540, %v1410, 0
    %1528 = vmatprep.subr.bf16.mxu0 0
    %1529 = vmatpush1.bf16.msra.mxu0 %v1500
    %1530 = vmatprep.subr.bf16.mxu0 0
    %1531 = vmatpush1.bf16.msra.mxu0 %v1501
    %1532 = vmatprep.subr.bf16.mxu0 0
    %1533 = vmatpush1.bf16.msra.mxu0 0
    %1534 = vmatprep.subr.bf16.mxu0 0
    %1535 = vmatpush1.bf16.msra.mxu0 0
    %1536 = vmatprep.subr.bf16.mxu0 0
    %1537 = vmatpush1.bf16.msra.mxu0 0
    %1538 = vmatprep.subr.bf16.mxu0 0
    %1539 = vmatpush1.bf16.msra.mxu0 0
    %1540 = vmatprep.subr.bf16.mxu0 0
    %1541 = vmatpush1.bf16.msra.mxu0 0
    %1542 = vmatprep.subr.bf16.mxu0 0
    %1543 = vmatpush1.bf16.msra.mxu0 0
    %1544 = vmatprep.subr.bf16.mxu0 0
    %1545 = vmatpush1.bf16.msra.mxu0 0
    %1546 = vmatprep.subr.bf16.mxu0 0
    %1547 = vmatpush1.bf16.msra.mxu0 0
    %1548 = vmatprep.subr.bf16.mxu0 0
    %1549 = vmatpush1.bf16.msra.mxu0 0
    %1550 = vmatprep.subr.bf16.mxu0 0
    %1551 = vmatpush1.bf16.msra.mxu0 0
    %1552 = vmatprep.subr.bf16.mxu0 0
    %1553 = vmatpush1.bf16.msra.mxu0 0
    %1554 = vmatprep.subr.bf16.mxu0 0
    %1555 = vmatpush1.bf16.msra.mxu0 0
    %1556 = vmatprep.subr.bf16.mxu0 0
    %1557 = vmatpush1.bf16.msra.mxu0 0
    %1558 = vmatprep.subr.bf16.mxu0 0
    %1559 = vmatpush1.bf16.msra.mxu0 0
    %1560 = vmatprep.mubr.bf16.mxu0 0
    %1561 = vmatmul.mubr.bf16.gmra.mrb[0].mxu0 %v1505
    %v1562 = vpop.f32.mrb[0].mxu0
    %v1563 = vadd.f32 0.0, %v1562
    %v1564 = vpop.f32.mrb[0].mxu0
    %v1565 = vpop.f32.mrb[0].mxu0
    %v1566 = vadd.f32 0.0, %v1565
    %v1567 = vpop.f32.mrb[0].mxu0
    %1568 = vmatprep.mubr.bf16.mxu0 0
    %1569 = vmatmul.mubr.bf16.gmra.mrb[0].mxu0 %v1508
    %v1570 = vpop.f32.mrb[0].mxu0
    %v1571 = vadd.f32 0.0, %v1570
    %v1572 = vpop.f32.mrb[0].mxu0
    %v1573 = vpop.f32.mrb[0].mxu0
    %v1574 = vadd.f32 0.0, %v1573
    %v1575 = vpop.f32.mrb[0].mxu0
    %1576 = vmatprep.mubr.bf16.mxu0 0
    %1577 = vmatmul.mubr.bf16.gmra.mrb[0].mxu0 %v1511
    %v1578 = vpop.f32.mrb[0].mxu0
    %v1579 = vadd.f32 0.0, %v1578
    %v1580 = vpop.f32.mrb[0].mxu0
    %v1581 = vpop.f32.mrb[0].mxu0
    %v1582 = vadd.f32 0.0, %v1581
    %v1583 = vpop.f32.mrb[0].mxu0
    %1584 = vmatprep.mubr.bf16.mxu0 0
    %1585 = vmatmul.mubr.bf16.gmra.mrb[0].mxu0 %v1514
    %v1586 = vpop.f32.mrb[0].mxu0
    %v1587 = vadd.f32 0.0, %v1586
    %v1588 = vpop.f32.mrb[0].mxu0
    %v1589 = vpop.f32.mrb[0].mxu0
    %v1590 = vadd.f32 0.0, %v1589
    %v1591 = vpop.f32.mrb[0].mxu0
    %1592 = vmatprep.mubr.bf16.mxu0 0
    %1593 = vmatmul.mubr.bf16.gmra.mrb[0].mxu0 %v1517
    %v1594 = vpop.f32.mrb[0].mxu0
    %v1595 = vadd.f32 0.0, %v1594
    %v1596 = vpop.f32.mrb[0].mxu0
    %v1597 = vpop.f32.mrb[0].mxu0
    %v1598 = vadd.f32 0.0, %v1597
    %v1599 = vpop.f32.mrb[0].mxu0
    %1600 = vmatprep.mubr.bf16.mxu0 0
    %1601 = vmatmul.mubr.bf16.gmra.mrb[0].mxu0 %v1520
    %v1602 = vpop.f32.mrb[0].mxu0
    %v1603 = vadd.f32 0.0, %v1602
    %v1604 = vpop.f32.mrb[0].mxu0
    %v1605 = vpop.f32.mrb[0].mxu0
    %v1606 = vadd.f32 0.0, %v1605
    %v1607 = vpop.f32.mrb[0].mxu0
    %1608 = vmatprep.mubr.bf16.mxu0 0
    %1609 = vmatmul.mubr.bf16.gmra.mrb[0].mxu0 %v1523
    %v1610 = vpop.f32.mrb[0].mxu0
    %v1611 = vadd.f32 0.0, %v1610
    %v1612 = vpop.f32.mrb[0].mxu0
    %v1613 = vpop.f32.mrb[0].mxu0
    %v1614 = vadd.f32 0.0, %v1613
    %v1615 = vpop.f32.mrb[0].mxu0
    %1616 = vmatprep.mubr.bf16.mxu0 0
    %1617 = vmatmul.mubr.bf16.gmra.mrb[0].mxu0 %v1526
    %v1618 = vpop.f32.mrb[0].mxu0
    %v1619 = vadd.f32 0.0, %v1618
    %v1620 = vpop.f32.mrb[0].mxu0
    %v1621 = vpop.f32.mrb[0].mxu0
    %v1622 = vadd.f32 0.0, %v1621
    %v1623 = vpop.f32.mrb[0].mxu0
    %1624 = vdwg.mxu0
    %v1629 = vunpack.c.l.b16 %v1484
    %v1630 = vunpack.c.l.b16 %v1485
    %v1631 = vunpack.c.l.b16 %v1486
    %v1632 = vunpack.c.l.b16 %v1487
    %v1633 = vpack.c.b16 %v1630, %v1629
    %v1634 = vpack.c.b16 %v1632, %v1631
    %1637 = vmatprep.subr.bf16.mxu0 0
    %1638 = vmatpush1.bf16.msra.mxu0 %v1633
    %1639 = vmatprep.subr.bf16.mxu0 0
    %1640 = vmatpush1.bf16.msra.mxu0 %v1634
    %1641 = vmatprep.subr.bf16.mxu0 0
    %1642 = vmatpush1.bf16.msra.mxu0 0
    %1643 = vmatprep.subr.bf16.mxu0 0
    %1644 = vmatpush1.bf16.msra.mxu0 0
    %1645 = vmatprep.subr.bf16.mxu0 0
    %1646 = vmatpush1.bf16.msra.mxu0 0
    %1647 = vmatprep.subr.bf16.mxu0 0
    %1648 = vmatpush1.bf16.msra.mxu0 0
    %1649 = vmatprep.subr.bf16.mxu0 0
    %1650 = vmatpush1.bf16.msra.mxu0 0
    %1651 = vmatprep.subr.bf16.mxu0 0
    %1652 = vmatpush1.bf16.msra.mxu0 0
    %1653 = vmatprep.subr.bf16.mxu0 0
    %1654 = vmatpush1.bf16.msra.mxu0 0
    %1655 = vmatprep.subr.bf16.mxu0 0
    %1656 = vmatpush1.bf16.msra.mxu0 0
    %1657 = vmatprep.subr.bf16.mxu0 0
    %1658 = vmatpush1.bf16.msra.mxu0 0
    %1659 = vmatprep.subr.bf16.mxu0 0
    %1660 = vmatpush1.bf16.msra.mxu0 0
    %1661 = vmatprep.subr.bf16.mxu0 0
    %1662 = vmatpush1.bf16.msra.mxu0 0
    %1663 = vmatprep.subr.bf16.mxu0 0
    %1664 = vmatpush1.bf16.msra.mxu0 0
    %1665 = vmatprep.subr.bf16.mxu0 0
    %1666 = vmatpush1.bf16.msra.mxu0 0
    %1667 = vmatprep.subr.bf16.mxu0 0
    %1668 = vmatpush1.bf16.msra.mxu0 0
    %1669 = vmatprep.mubr.bf16.mxu0 0
    %1670 = vmatmul.mubr.bf16.gmra.mrb[0].mxu0 %v675
    %v1671 = vpop.f32.mrb[0].mxu0
    %v1672 = vadd.f32 %v1563, %v1671
    %v1673 = vpop.f32.mrb[0].mxu0
    %v1674 = vpop.f32.mrb[0].mxu0
    %v1675 = vadd.f32 %v1566, %v1674
    %v1676 = vpop.f32.mrb[0].mxu0
    %1677 = vmatprep.mubr.bf16.mxu0 0
    %1678 = vmatmul.mubr.bf16.gmra.mrb[0].mxu0 %v678
    %v1679 = vpop.f32.mrb[0].mxu0
    %v1680 = vadd.f32 %v1571, %v1679
    %v1681 = vpop.f32.mrb[0].mxu0
    %v1682 = vpop.f32.mrb[0].mxu0
    %v1683 = vadd.f32 %v1574, %v1682
    %v1684 = vpop.f32.mrb[0].mxu0
    %1685 = vmatprep.mubr.bf16.mxu0 0
    %1686 = vmatmul.mubr.bf16.gmra.mrb[0].mxu0 %v681
    %v1687 = vpop.f32.mrb[0].mxu0
    %v1688 = vadd.f32 %v1579, %v1687
    %v1689 = vpop.f32.mrb[0].mxu0
    %v1690 = vpop.f32.mrb[0].mxu0
    %v1691 = vadd.f32 %v1582, %v1690
    %v1692 = vpop.f32.mrb[0].mxu0
    %1693 = vmatprep.mubr.bf16.mxu0 0
    %1694 = vmatmul.mubr.bf16.gmra.mrb[0].mxu0 %v684
    %v1695 = vpop.f32.mrb[0].mxu0
    %v1696 = vadd.f32 %v1587, %v1695
    %v1697 = vpop.f32.mrb[0].mxu0
    %v1698 = vpop.f32.mrb[0].mxu0
    %v1699 = vadd.f32 %v1590, %v1698
    %v1700 = vpop.f32.mrb[0].mxu0
    %1701 = vmatprep.mubr.bf16.mxu0 0
    %1702 = vmatmul.mubr.bf16.gmra.mrb[0].mxu0 %v687
    %v1703 = vpop.f32.mrb[0].mxu0
    %v1704 = vadd.f32 %v1595, %v1703
    %v1705 = vpop.f32.mrb[0].mxu0
    %v1706 = vpop.f32.mrb[0].mxu0
    %v1707 = vadd.f32 %v1598, %v1706
    %v1708 = vpop.f32.mrb[0].mxu0
    %1709 = vmatprep.mubr.bf16.mxu0 0
    %1710 = vmatmul.mubr.bf16.gmra.mrb[0].mxu0 %v690
    %v1711 = vpop.f32.mrb[0].mxu0
    %v1712 = vadd.f32 %v1603, %v1711
    %v1713 = vpop.f32.mrb[0].mxu0
    %v1714 = vpop.f32.mrb[0].mxu0
    %v1715 = vadd.f32 %v1606, %v1714
    %v1716 = vpop.f32.mrb[0].mxu0
    %1717 = vmatprep.mubr.bf16.mxu0 0
    %1718 = vmatmul.mubr.bf16.gmra.mrb[0].mxu0 %v693
    %v1719 = vpop.f32.mrb[0].mxu0
    %v1720 = vadd.f32 %v1611, %v1719
    %v1721 = vpop.f32.mrb[0].mxu0
    %v1722 = vpop.f32.mrb[0].mxu0
    %v1723 = vadd.f32 %v1614, %v1722
    %v1724 = vpop.f32.mrb[0].mxu0
    %1725 = vmatprep.mubr.bf16.mxu0 0
    %1726 = vmatmul.mubr.bf16.gmra.mrb[0].mxu0 %v696
    %v1727 = vpop.f32.mrb[0].mxu0
    %v1728 = vadd.f32 %v1619, %v1727
    %v1729 = vpop.f32.mrb[0].mxu0
    %v1730 = vpop.f32.mrb[0].mxu0
    %v1731 = vadd.f32 %v1622, %v1730
    %v1732 = vpop.f32.mrb[0].mxu0
    %1733 = vdwg.mxu0
    %v1734 = vld [vmem:[%s35] sm:$0x1]
    %v1736 = vlaneseq
    %v1737 = vshrl.u32 %v1736, 7
    %v1738 = vsub.s32 0, %v1737
    %v1739 = vrot.slane %v1734, %v1738
    %v1741 = vadd.f32 %v1672, %v1739
    %v1742 = vadd.f32 %v1675, %v1739
    %v1743 = vadd.f32 %v1680, %v1739
    %v1744 = vadd.f32 %v1683, %v1739
    %v1745 = vadd.f32 %v1688, %v1739
    %v1746 = vadd.f32 %v1691, %v1739
    %v1747 = vadd.f32 %v1696, %v1739
    %v1748 = vadd.f32 %v1699, %v1739
    %v1749 = vadd.f32 %v1704, %v1739
    %v1750 = vadd.f32 %v1707, %v1739
    %v1751 = vadd.f32 %v1712, %v1739
    %v1752 = vadd.f32 %v1715, %v1739
    %v1753 = vadd.f32 %v1720, %v1739
    %v1754 = vadd.f32 %v1723, %v1739
    %v1755 = vadd.f32 %v1728, %v1739
    %v1756 = vadd.f32 %v1731, %v1739
    %vm1757 = vcmp.gt.f32.partialorder %v1741, 0.0
    %vm1758 = vcmp.gt.f32.partialorder %v1742, 0.0
    %vm1759 = vcmp.gt.f32.partialorder %v1743, 0.0
    %vm1760 = vcmp.gt.f32.partialorder %v1744, 0.0
    %vm1761 = vcmp.gt.f32.partialorder %v1745, 0.0
    %vm1762 = vcmp.gt.f32.partialorder %v1746, 0.0
    %vm1763 = vcmp.gt.f32.partialorder %v1747, 0.0
    %vm1764 = vcmp.gt.f32.partialorder %v1748, 0.0
    %vm1765 = vcmp.gt.f32.partialorder %v1749, 0.0
    %vm1766 = vcmp.gt.f32.partialorder %v1750, 0.0
    %vm1767 = vcmp.gt.f32.partialorder %v1751, 0.0
    %vm1768 = vcmp.gt.f32.partialorder %v1752, 0.0
    %vm1769 = vcmp.gt.f32.partialorder %v1753, 0.0
    %vm1770 = vcmp.gt.f32.partialorder %v1754, 0.0
    %vm1771 = vcmp.gt.f32.partialorder %v1755, 0.0
    %vm1772 = vcmp.gt.f32.partialorder %v1756, 0.0
    %v1773 = vmin.f32 %v1741, 0.0
    %v1774 = vmin.f32 %v1742, 0.0
    %v1775 = vmin.f32 %v1743, 0.0
    %v1776 = vmin.f32 %v1744, 0.0
    %v1777 = vmin.f32 %v1745, 0.0
    %v1778 = vmin.f32 %v1746, 0.0
    %v1779 = vmin.f32 %v1747, 0.0
    %v1780 = vmin.f32 %v1748, 0.0
    %v1781 = vmin.f32 %v1749, 0.0
    %v1782 = vmin.f32 %v1750, 0.0
    %v1783 = vmin.f32 %v1751, 0.0
    %v1784 = vmin.f32 %v1752, 0.0
    %v1785 = vmin.f32 %v1753, 0.0
    %v1786 = vmin.f32 %v1754, 0.0
    %v1787 = vmin.f32 %v1755, 0.0
    %v1788 = vmin.f32 %v1756, 0.0
    %v1789 = vmul.f32 %v1773, 1.442695
    %v1790 = vpow.pop %v1789
    %v1791 = vmul.f32 %v1774, 1.442695
    %v1792 = vpow.pop %v1791
    %v1793 = vmul.f32 %v1775, 1.442695
    %v1794 = vpow.pop %v1793
    %v1795 = vmul.f32 %v1776, 1.442695
    %v1796 = vpow.pop %v1795
    %v1797 = vmul.f32 %v1777, 1.442695
    %v1798 = vpow.pop %v1797
    %v1799 = vmul.f32 %v1778, 1.442695
    %v1800 = vpow.pop %v1799
    %v1801 = vmul.f32 %v1779, 1.442695
    %v1802 = vpow.pop %v1801
    %v1803 = vmul.f32 %v1780, 1.442695
    %v1804 = vpow.pop %v1803
    %v1805 = vmul.f32 %v1781, 1.442695
    %v1806 = vpow.pop %v1805
    %v1807 = vmul.f32 %v1782, 1.442695
    %v1808 = vpow.pop %v1807
    %v1809 = vmul.f32 %v1783, 1.442695
    %v1810 = vpow.pop %v1809
    %v1811 = vmul.f32 %v1784, 1.442695
    %v1812 = vpow.pop %v1811
    %v1813 = vmul.f32 %v1785, 1.442695
    %v1814 = vpow.pop %v1813
    %v1815 = vmul.f32 %v1786, 1.442695
    %v1816 = vpow.pop %v1815
    %v1817 = vmul.f32 %v1787, 1.442695
    %v1818 = vpow.pop %v1817
    %v1819 = vmul.f32 %v1788, 1.442695
    %v1820 = vpow.pop %v1819
    %v1821 = vsub.f32 %v1790, 1.0
    %v1822 = vsub.f32 %v1792, 1.0
    %v1823 = vsub.f32 %v1794, 1.0
    %v1824 = vsub.f32 %v1796, 1.0
    %v1825 = vsub.f32 %v1798, 1.0
    %v1826 = vsub.f32 %v1800, 1.0
    %v1827 = vsub.f32 %v1802, 1.0
    %v1828 = vsub.f32 %v1804, 1.0
    %v1829 = vsub.f32 %v1806, 1.0
    %v1830 = vsub.f32 %v1808, 1.0
    %v1831 = vsub.f32 %v1810, 1.0
    %v1832 = vsub.f32 %v1812, 1.0
    %v1833 = vsub.f32 %v1814, 1.0
    %v1834 = vsub.f32 %v1816, 1.0
    %v1835 = vsub.f32 %v1818, 1.0
    %v1836 = vsub.f32 %v1820, 1.0
    %v1837 = vsel %vm1757, %v1741, %v1821
    %v1838 = vsel %vm1758, %v1742, %v1822
    %v1839 = vsel %vm1759, %v1743, %v1823
    %v1840 = vsel %vm1760, %v1744, %v1824
    %v1841 = vsel %vm1761, %v1745, %v1825
    %v1842 = vsel %vm1762, %v1746, %v1826
    %v1843 = vsel %vm1763, %v1747, %v1827
    %v1844 = vsel %vm1764, %v1748, %v1828
    %v1845 = vsel %vm1765, %v1749, %v1829
    %v1846 = vsel %vm1766, %v1750, %v1830
    %v1847 = vsel %vm1767, %v1751, %v1831
    %v1848 = vsel %vm1768, %v1752, %v1832
    %v1849 = vsel %vm1769, %v1753, %v1833
    %v1850 = vsel %vm1770, %v1754, %v1834
    %v1851 = vsel %vm1771, %v1755, %v1835
    %v1852 = vsel %vm1772, %v1756, %v1836
    %v1853 = vld [vmem:[%s37] sm:$0xf]
    %v1854 = vld [vmem:[%s37 + $0x4] sm:$0xf]
    %v1855 = vld [vmem:[%s37 + $0x8] sm:$0xf]
    %v1856 = vld [vmem:[%s37 + $0xc] sm:$0xf]
    %v1857 = vld [vmem:[%s37 + $0x10] sm:$0xf]
    %v1858 = vld [vmem:[%s37 + $0x14] sm:$0xf]
    %v1859 = vld [vmem:[%s37 + $0x18] sm:$0xf]
    %v1860 = vld [vmem:[%s37 + $0x1c] sm:$0xf]
    %v1861 = vpack.c.bf16 %v1838, %v1837
    %v1862 = vpack.c.bf16 %v1840, %v1839
    %v1863 = vpack.c.bf16 %v1842, %v1841
    %v1864 = vpack.c.bf16 %v1844, %v1843
    %v1865 = vpack.c.bf16 %v1846, %v1845
    %v1866 = vpack.c.bf16 %v1848, %v1847
    %v1867 = vpack.c.bf16 %v1850, %v1849
    %v1868 = vpack.c.bf16 %v1852, %v1851
    %v1869 = vld [vmem:[%s39] sm:$0x1]
    %v1871 = vlaneseq
    %v1872 = vshrl.u32 %v1871, 7
    %v1873 = vsub.s32 0, %v1872
    %v1874 = vrot.slane %v1869, %v1873
    %v1884 = vunpack.c.l.b16 %v1853
    %v1885 = vunpack.c.l.b16 %v1854
    %v1886 = vunpack.c.l.b16 %v1855
    %v1887 = vunpack.c.l.b16 %v1856
    %v1888 = vunpack.c.l.b16 %v1857
    %v1889 = vunpack.c.l.b16 %v1858
    %v1890 = vunpack.c.l.b16 %v1859
    %v1891 = vunpack.c.l.b16 %v1860
    %v1892 = vpack.c.b16 %v1885, %v1884
    %v1893 = vpack.c.b16 %v1887, %v1886
    %v1894 = vpack.c.b16 %v1889, %v1888
    %v1895 = vpack.c.b16 %v1891, %v1890
    %vm1900 = vcmask 523264
    %v1902 = vsel %vm1900, %v1861, 0
    %v1905 = vsel %vm1900, %v1862, 0
    %v1908 = vsel %vm1900, %v1863, 0
    %v1911 = vsel %vm1900, %v1864, 0
    %v1914 = vsel %vm1900, %v1865, 0
    %v1917 = vsel %vm1900, %v1866, 0
    %v1920 = vsel %vm1900, %v1867, 0
    %v1923 = vsel %vm1900, %v1868, 0
    %1925 = vmatprep.subr.bf16.mxu0 0
    %1926 = vmatpush1.bf16.msra.mxu0 %v1892
    %1927 = vmatprep.subr.bf16.mxu0 0
    %1928 = vmatpush1.bf16.msra.mxu0 %v1893
    %1929 = vmatprep.subr.bf16.mxu0 0
    %1930 = vmatpush1.bf16.msra.mxu0 %v1894
    %1931 = vmatprep.subr.bf16.mxu0 0
    %1932 = vmatpush1.bf16.msra.mxu0 %v1895
    %1933 = vmatprep.subr.bf16.mxu0 0
    %1934 = vmatpush1.bf16.msra.mxu0 0
    %1935 = vmatprep.subr.bf16.mxu0 0
    %1936 = vmatpush1.bf16.msra.mxu0 0
    %1937 = vmatprep.subr.bf16.mxu0 0
    %1938 = vmatpush1.bf16.msra.mxu0 0
    %1939 = vmatprep.subr.bf16.mxu0 0
    %1940 = vmatpush1.bf16.msra.mxu0 0
    %1941 = vmatprep.subr.bf16.mxu0 0
    %1942 = vmatpush1.bf16.msra.mxu0 0
    %1943 = vmatprep.subr.bf16.mxu0 0
    %1944 = vmatpush1.bf16.msra.mxu0 0
    %1945 = vmatprep.subr.bf16.mxu0 0
    %1946 = vmatpush1.bf16.msra.mxu0 0
    %1947 = vmatprep.subr.bf16.mxu0 0
    %1948 = vmatpush1.bf16.msra.mxu0 0
    %1949 = vmatprep.subr.bf16.mxu0 0
    %1950 = vmatpush1.bf16.msra.mxu0 0
    %1951 = vmatprep.subr.bf16.mxu0 0
    %1952 = vmatpush1.bf16.msra.mxu0 0
    %1953 = vmatprep.subr.bf16.mxu0 0
    %1954 = vmatpush1.bf16.msra.mxu0 0
    %1955 = vmatprep.subr.bf16.mxu0 0
    %1956 = vmatpush1.bf16.msra.mxu0 0
    %1957 = vmatprep.mubr.bf16.mxu0 0
    %1958 = vmatmul.mubr.bf16.gmra.mrb[0].mxu0 %v1902
    %v1959 = vpop.f32.mrb[0].mxu0
    %v1960 = vadd.f32 %v1874, %v1959
    %v1961 = vpop.f32.mrb[0].mxu0
    %v1962 = vpop.f32.mrb[0].mxu0
    %v1963 = vadd.f32 %v1874, %v1962
    %v1964 = vpop.f32.mrb[0].mxu0
    %1965 = vmatprep.mubr.bf16.mxu0 0
    %1966 = vmatmul.mubr.bf16.gmra.mrb[0].mxu0 %v1905
    %v1967 = vpop.f32.mrb[0].mxu0
    %v1968 = vadd.f32 %v1874, %v1967
    %v1969 = vpop.f32.mrb[0].mxu0
    %v1970 = vpop.f32.mrb[0].mxu0
    %v1971 = vadd.f32 %v1874, %v1970
    %v1972 = vpop.f32.mrb[0].mxu0
    %1973 = vmatprep.mubr.bf16.mxu0 0
    %1974 = vmatmul.mubr.bf16.gmra.mrb[0].mxu0 %v1908
    %v1975 = vpop.f32.mrb[0].mxu0
    %v1976 = vadd.f32 %v1874, %v1975
    %v1977 = vpop.f32.mrb[0].mxu0
    %v1978 = vpop.f32.mrb[0].mxu0
    %v1979 = vadd.f32 %v1874, %v1978
    %v1980 = vpop.f32.mrb[0].mxu0
    %1981 = vmatprep.mubr.bf16.mxu0 0
    %1982 = vmatmul.mubr.bf16.gmra.mrb[0].mxu0 %v1911
    %v1983 = vpop.f32.mrb[0].mxu0
    %v1984 = vadd.f32 %v1874, %v1983
    %v1985 = vpop.f32.mrb[0].mxu0
    %v1986 = vpop.f32.mrb[0].mxu0
    %v1987 = vadd.f32 %v1874, %v1986
    %v1988 = vpop.f32.mrb[0].mxu0
    %1989 = vmatprep.mubr.bf16.mxu0 0
    %1990 = vmatmul.mubr.bf16.gmra.mrb[0].mxu0 %v1914
    %v1991 = vpop.f32.mrb[0].mxu0
    %v1992 = vadd.f32 %v1874, %v1991
    %v1993 = vpop.f32.mrb[0].mxu0
    %v1994 = vpop.f32.mrb[0].mxu0
    %v1995 = vadd.f32 %v1874, %v1994
    %v1996 = vpop.f32.mrb[0].mxu0
    %1997 = vmatprep.mubr.bf16.mxu0 0
    %1998 = vmatmul.mubr.bf16.gmra.mrb[0].mxu0 %v1917
    %v1999 = vpop.f32.mrb[0].mxu0
    %v2000 = vadd.f32 %v1874, %v1999
    %v2001 = vpop.f32.mrb[0].mxu0
    %v2002 = vpop.f32.mrb[0].mxu0
    %v2003 = vadd.f32 %v1874, %v2002
    %v2004 = vpop.f32.mrb[0].mxu0
    %2005 = vmatprep.mubr.bf16.mxu0 0
    %2006 = vmatmul.mubr.bf16.gmra.mrb[0].mxu0 %v1920
    %v2007 = vpop.f32.mrb[0].mxu0
    %v2008 = vadd.f32 %v1874, %v2007
    %v2009 = vpop.f32.mrb[0].mxu0
    %v2010 = vpop.f32.mrb[0].mxu0
    %v2011 = vadd.f32 %v1874, %v2010
    %v2012 = vpop.f32.mrb[0].mxu0
    %2013 = vmatprep.mubr.bf16.mxu0 0
    %2014 = vmatmul.mubr.bf16.gmra.mrb[0].mxu0 %v1923
    %v2015 = vpop.f32.mrb[0].mxu0
    %v2016 = vadd.f32 %v1874, %v2015
    %v2017 = vpop.f32.mrb[0].mxu0
    %v2018 = vpop.f32.mrb[0].mxu0
    %v2019 = vadd.f32 %v1874, %v2018
    %v2020 = vpop.f32.mrb[0].mxu0
    %2021 = vdwg.mxu0
    %v2022 = vld [vmem:[#allocation2] sm:$0xff]
    %v2023 = vld [vmem:[#allocation2 + $0x8] sm:$0xf]
    %v2024 = vld [vmem:[%s7] sm:$0xf]
    %v2025 = vld [vmem:[%s7 + $0x4] sm:$0x3]
    %v2026 = vpack.c.bf16 %v1963, %v1960
    %v2027 = vpack.c.bf16 %v1971, %v1968
    %v2028 = vpack.c.bf16 %v1979, %v1976
    %v2029 = vpack.c.bf16 %v1987, %v1984
    %v2030 = vpack.c.bf16 %v1995, %v1992
    %v2031 = vpack.c.bf16 %v2003, %v2000
    %v2032 = vpack.c.bf16 %v2011, %v2008
    %v2033 = vpack.c.bf16 %v2019, %v2016
    %v2036 = vunpack.c.l.b16 %v2024
    %v2037 = vunpack.c.l.b16 %v2025
    %v2038 = vpack.c.b16 %v2037, %v2036
    %2040 = vmatprep.subr.bf16.mxu0 0
    %2041 = vmatpush1.bf16.msra.mxu0 %v2026
    %2042 = vmatprep.subr.bf16.mxu0 0
    %2043 = vmatpush1.bf16.msra.mxu0 %v2027
    %2044 = vmatprep.subr.bf16.mxu0 0
    %2045 = vmatpush1.bf16.msra.mxu0 %v2028
    %2046 = vmatprep.subr.bf16.mxu0 0
    %2047 = vmatpush1.bf16.msra.mxu0 %v2029
    %2048 = vmatprep.subr.bf16.mxu0 0
    %2049 = vmatpush1.bf16.msra.mxu0 %v2030
    %2050 = vmatprep.subr.bf16.mxu0 0
    %2051 = vmatpush1.bf16.msra.mxu0 %v2031
    %2052 = vmatprep.subr.bf16.mxu0 0
    %2053 = vmatpush1.bf16.msra.mxu0 %v2032
    %2054 = vmatprep.subr.bf16.mxu0 0
    %2055 = vmatpush1.bf16.msra.mxu0 %v2033
    %2056 = vmatprep.subr.bf16.mxu0 0
    %2057 = vmatpush1.bf16.msra.mxu0 0
    %2058 = vmatprep.subr.bf16.mxu0 0
    %2059 = vmatpush1.bf16.msra.mxu0 0
    %2060 = vmatprep.subr.bf16.mxu0 0
    %2061 = vmatpush1.bf16.msra.mxu0 0
    %2062 = vmatprep.subr.bf16.mxu0 0
    %2063 = vmatpush1.bf16.msra.mxu0 0
    %2064 = vmatprep.subr.bf16.mxu0 0
    %2065 = vmatpush1.bf16.msra.mxu0 0
    %2066 = vmatprep.subr.bf16.mxu0 0
    %2067 = vmatpush1.bf16.msra.mxu0 0
    %2068 = vmatprep.subr.bf16.mxu0 0
    %2069 = vmatpush1.bf16.msra.mxu0 0
    %2070 = vmatprep.subr.bf16.mxu0 0
    %2071 = vmatpush1.bf16.msra.mxu0 0
    %2072 = vmatprep.mubr.bf16.mxu0 0
    %2073 = vmatmul.mubr.bf16.gmra.mrb[0].mxu0 %v2038
    %v2074 = vpop.f32.mrb[0].mxu0
    %v2075 = vadd.f32 0.0, %v2074
    %v2076 = vpop.f32.mrb[0].mxu0
    %v2077 = vpop.f32.mrb[0].mxu0
    %v2078 = vadd.f32 0.0, %v2077
    %v2079 = vpop.f32.mrb[0].mxu0
    %2080 = vdwg.mxu0
    %v2081 = vadd.f32 %v2022, %v2075
    %v2082 = vadd.f32 %v2023, %v2078
    %2083 = vst.msk [vmem:[#allocation2] sm:$0xff] %vm1900, %v2081
    %vm2084 = vcmask 519168
    %2085 = vst.msk [vmem:[#allocation2 + $0x8] sm:$0xf] %vm2084, %v2082
    // Predicated region
    $region126: #{net_forward.22} parent=1 // pred_check
      %p2086 = pneg %p134
    $region127: #{net_forward.22} parent=1 // pred_check_branch
      %2088 = sbr.rel (%p2086) target = $region129
    $region128: #{net_forward.22} parent=1 // pred_region
      %v2089 = vld [vmem:[#allocation2] sm:$0xff]
      %v2090 = vld [vmem:[#allocation2 + $0x8] sm:$0xf]
      %v2091 = vld [vmem:[%s15] sm:$0xff]
      %v2092 = vld [vmem:[%s15 + $0x8] sm:$0xf]
      %2094 = vset.pattern.permute.xlu0 0
      %2095 = vperm.xlu0 %2094, %v2091
      %v2096 = vpop.permute.xlu0 %2095
      %2099 = vset.pattern.permute.xlu0 0
      %2100 = vperm.xlu0 %2099, %v2092
      %v2101 = vpop.permute.xlu0 %2100
      %v2103 = vmul.f32 %v2089, %v2096
      %v2104 = vmul.f32 %v2090, %v2101
      %v2105 = vld [vmem:[%s41] sm:$0xf]
      %v2106 = vld [vmem:[%s41 + $0x4] sm:$0xf]
      %v2107 = vld [vmem:[%s41 + $0x8] sm:$0xf]
      %v2108 = vld [vmem:[%s41 + $0xc] sm:$0xf]
      %v2109 = vld [vmem:[%s43] sm:$0xf]
      %v2110 = vld [vmem:[%s43 + $0x4] sm:$0xf]
      %v2111 = vld [vmem:[%s43 + $0x8] sm:$0xf]
      %v2112 = vld [vmem:[%s43 + $0xc] sm:$0xf]
      %v2113 = vld [vmem:[%s43 + $0x10] sm:$0xf]
      %v2114 = vld [vmem:[%s43 + $0x14] sm:$0xf]
      %v2115 = vld [vmem:[%s43 + $0x18] sm:$0xf]
      %v2116 = vld [vmem:[%s43 + $0x1c] sm:$0xf]
      %v2117 = vpack.c.bf16 %v2104, %v2103
      %v2126 = vunpack.c.l.b16 %v2109
      %v2127 = vunpack.c.l.b16 %v2110
      %v2128 = vunpack.c.l.b16 %v2111
      %v2129 = vunpack.c.l.b16 %v2112
      %v2130 = vunpack.c.l.b16 %v2113
      %v2131 = vunpack.c.l.b16 %v2114
      %v2132 = vunpack.c.l.b16 %v2115
      %v2133 = vunpack.c.l.b16 %v2116
      %v2134 = vpack.c.b16 %v2127, %v2126
      %v2135 = vpack.c.b16 %v2129, %v2128
      %v2136 = vpack.c.b16 %v2131, %v2130
      %v2137 = vpack.c.b16 %v2133, %v2132
      %v2143 = vsel %vm1900, %v2117, 0
      %2145 = vmatprep.subr.bf16.mxu0 0
      %2146 = vmatpush1.bf16.msra.mxu0 %v2134
      %2147 = vmatprep.subr.bf16.mxu0 0
      %2148 = vmatpush1.bf16.msra.mxu0 %v2135
      %2149 = vmatprep.subr.bf16.mxu0 0
      %2150 = vmatpush1.bf16.msra.mxu0 %v2136
      %2151 = vmatprep.subr.bf16.mxu0 0
      %2152 = vmatpush1.bf16.msra.mxu0 %v2137
      %2153 = vmatprep.subr.bf16.mxu0 0
      %2154 = vmatpush1.bf16.msra.mxu0 0
      %2155 = vmatprep.subr.bf16.mxu0 0
      %2156 = vmatpush1.bf16.msra.mxu0 0
      %2157 = vmatprep.subr.bf16.mxu0 0
      %2158 = vmatpush1.bf16.msra.mxu0 0
      %2159 = vmatprep.subr.bf16.mxu0 0
      %2160 = vmatpush1.bf16.msra.mxu0 0
      %2161 = vmatprep.subr.bf16.mxu0 0
      %2162 = vmatpush1.bf16.msra.mxu0 0
      %2163 = vmatprep.subr.bf16.mxu0 0
      %2164 = vmatpush1.bf16.msra.mxu0 0
      %2165 = vmatprep.subr.bf16.mxu0 0
      %2166 = vmatpush1.bf16.msra.mxu0 0
      %2167 = vmatprep.subr.bf16.mxu0 0
      %2168 = vmatpush1.bf16.msra.mxu0 0
      %2169 = vmatprep.subr.bf16.mxu0 0
      %2170 = vmatpush1.bf16.msra.mxu0 0
      %2171 = vmatprep.subr.bf16.mxu0 0
      %2172 = vmatpush1.bf16.msra.mxu0 0
      %2173 = vmatprep.subr.bf16.mxu0 0
      %2174 = vmatpush1.bf16.msra.mxu0 0
      %2175 = vmatprep.subr.bf16.mxu0 0
      %2176 = vmatpush1.bf16.msra.mxu0 0
      %2177 = vmatprep.mubr.bf16.mxu0 0
      %2178 = vmatmul.mubr.bf16.gmra.mrb[0].mxu0 %v2143
      %v2179 = vpop.f32.mrb[0].mxu0
      %v2180 = vadd.f32 0.0, %v2179
      %v2181 = vpop.f32.mrb[0].mxu0
      %v2182 = vpop.f32.mrb[0].mxu0
      %v2183 = vadd.f32 0.0, %v2182
      %v2184 = vpop.f32.mrb[0].mxu0
      %2185 = vdwg.mxu0
      %v2190 = vunpack.c.l.b16 %v2105
      %v2191 = vunpack.c.l.b16 %v2106
      %v2192 = vunpack.c.l.b16 %v2107
      %v2193 = vunpack.c.l.b16 %v2108
      %v2194 = vpack.c.b16 %v2191, %v2190
      %v2195 = vpack.c.b16 %v2193, %v2192
      %v2198 = vsel %vm540, %v160, 0
      %2200 = vmatprep.subr.bf16.mxu0 0
      %2201 = vmatpush1.bf16.msra.mxu0 %v2194
      %2202 = vmatprep.subr.bf16.mxu0 0
      %2203 = vmatpush1.bf16.msra.mxu0 %v2195
      %2204 = vmatprep.subr.bf16.mxu0 0
      %2205 = vmatpush1.bf16.msra.mxu0 0
      %2206 = vmatprep.subr.bf16.mxu0 0
      %2207 = vmatpush1.bf16.msra.mxu0 0
      %2208 = vmatprep.subr.bf16.mxu0 0
      %2209 = vmatpush1.bf16.msra.mxu0 0
      %2210 = vmatprep.subr.bf16.mxu0 0
      %2211 = vmatpush1.bf16.msra.mxu0 0
      %2212 = vmatprep.subr.bf16.mxu0 0
      %2213 = vmatpush1.bf16.msra.mxu0 0
      %2214 = vmatprep.subr.bf16.mxu0 0
      %2215 = vmatpush1.bf16.msra.mxu0 0
      %2216 = vmatprep.subr.bf16.mxu0 0
      %2217 = vmatpush1.bf16.msra.mxu0 0
      %2218 = vmatprep.subr.bf16.mxu0 0
      %2219 = vmatpush1.bf16.msra.mxu0 0
      %2220 = vmatprep.subr.bf16.mxu0 0
      %2221 = vmatpush1.bf16.msra.mxu0 0
      %2222 = vmatprep.subr.bf16.mxu0 0
      %2223 = vmatpush1.bf16.msra.mxu0 0
      %2224 = vmatprep.subr.bf16.mxu0 0
      %2225 = vmatpush1.bf16.msra.mxu0 0
      %2226 = vmatprep.subr.bf16.mxu0 0
      %2227 = vmatpush1.bf16.msra.mxu0 0
      %2228 = vmatprep.subr.bf16.mxu0 0
      %2229 = vmatpush1.bf16.msra.mxu0 0
      %2230 = vmatprep.subr.bf16.mxu0 0
      %2231 = vmatpush1.bf16.msra.mxu0 0
      %2232 = vmatprep.mubr.bf16.mxu0 0
      %2233 = vmatmul.mubr.bf16.gmra.mrb[0].mxu0 %v2198
      %v2234 = vpop.f32.mrb[0].mxu0
      %v2235 = vadd.f32 %v2180, %v2234
      %v2236 = vpop.f32.mrb[0].mxu0
      %v2237 = vpop.f32.mrb[0].mxu0
      %v2238 = vadd.f32 %v2183, %v2237
      %v2239 = vpop.f32.mrb[0].mxu0
      %2240 = vdwg.mxu0
      %v2241 = vld [vmem:[%s45] sm:$0x1]
      %v2243 = vlaneseq
      %v2244 = vshrl.u32 %v2243, 7
      %v2245 = vsub.s32 0, %v2244
      %v2246 = vrot.slane %v2241, %v2245
      %v2248 = vadd.f32 %v2235, %v2246
      %v2249 = vadd.f32 %v2238, %v2246
      %vm2250 = vcmp.gt.f32.partialorder %v2248, 0.0
      %vm2251 = vcmp.gt.f32.partialorder %v2249, 0.0
      %v2252 = vmin.f32 %v2248, 0.0
      %v2253 = vmin.f32 %v2249, 0.0
      %v2254 = vmul.f32 %v2252, 1.442695
      %v2255 = vpow.pop %v2254
      %v2256 = vmul.f32 %v2253, 1.442695
      %v2257 = vpow.pop %v2256
      %v2258 = vsub.f32 %v2255, 1.0
      %v2259 = vsub.f32 %v2257, 1.0
      %v2260 = vsel %vm2250, %v2248, %v2258
      %v2261 = vsel %vm2251, %v2249, %v2259
      %v2262 = vld [vmem:[%s47] sm:$0xf]
      %v2263 = vld [vmem:[%s47 + $0x4] sm:$0xf]
      %v2264 = vld [vmem:[%s47 + $0x8] sm:$0xf]
      %v2265 = vld [vmem:[%s47 + $0xc] sm:$0xf]
      %v2266 = vld [vmem:[%s47 + $0x10] sm:$0xf]
      %v2267 = vld [vmem:[%s47 + $0x14] sm:$0xf]
      %v2268 = vld [vmem:[%s47 + $0x18] sm:$0xf]
      %v2269 = vld [vmem:[%s47 + $0x1c] sm:$0xf]
      %v2270 = vpack.c.bf16 %v2261, %v2260
      %v2271 = vld [vmem:[%s49] sm:$0x1]
      %v2273 = vlaneseq
      %v2274 = vshrl.u32 %v2273, 7
      %v2275 = vsub.s32 0, %v2274
      %v2276 = vrot.slane %v2271, %v2275
      %v2286 = vunpack.c.l.b16 %v2262
      %v2287 = vunpack.c.l.b16 %v2263
      %v2288 = vunpack.c.l.b16 %v2264
      %v2289 = vunpack.c.l.b16 %v2265
      %v2290 = vunpack.c.l.b16 %v2266
      %v2291 = vunpack.c.l.b16 %v2267
      %v2292 = vunpack.c.l.b16 %v2268
      %v2293 = vunpack.c.l.b16 %v2269
      %v2294 = vpack.c.b16 %v2287, %v2286
      %v2295 = vpack.c.b16 %v2289, %v2288
      %v2296 = vpack.c.b16 %v2291, %v2290
      %v2297 = vpack.c.b16 %v2293, %v2292
      %v2303 = vsel %vm1900, %v2270, 0
      %2305 = vmatprep.subr.bf16.mxu0 0
      %2306 = vmatpush1.bf16.msra.mxu0 %v2294
      %2307 = vmatprep.subr.bf16.mxu0 0
      %2308 = vmatpush1.bf16.msra.mxu0 %v2295
      %2309 = vmatprep.subr.bf16.mxu0 0
      %2310 = vmatpush1.bf16.msra.mxu0 %v2296
      %2311 = vmatprep.subr.bf16.mxu0 0
      %2312 = vmatpush1.bf16.msra.mxu0 %v2297
      %2313 = vmatprep.subr.bf16.mxu0 0
      %2314 = vmatpush1.bf16.msra.mxu0 0
      %2315 = vmatprep.subr.bf16.mxu0 0
      %2316 = vmatpush1.bf16.msra.mxu0 0
      %2317 = vmatprep.subr.bf16.mxu0 0
      %2318 = vmatpush1.bf16.msra.mxu0 0
      %2319 = vmatprep.subr.bf16.mxu0 0
      %2320 = vmatpush1.bf16.msra.mxu0 0
      %2321 = vmatprep.subr.bf16.mxu0 0
      %2322 = vmatpush1.bf16.msra.mxu0 0
      %2323 = vmatprep.subr.bf16.mxu0 0
      %2324 = vmatpush1.bf16.msra.mxu0 0
      %2325 = vmatprep.subr.bf16.mxu0 0
      %2326 = vmatpush1.bf16.msra.mxu0 0
      %2327 = vmatprep.subr.bf16.mxu0 0
      %2328 = vmatpush1.bf16.msra.mxu0 0
      %2329 = vmatprep.subr.bf16.mxu0 0
      %2330 = vmatpush1.bf16.msra.mxu0 0
      %2331 = vmatprep.subr.bf16.mxu0 0
      %2332 = vmatpush1.bf16.msra.mxu0 0
      %2333 = vmatprep.subr.bf16.mxu0 0
      %2334 = vmatpush1.bf16.msra.mxu0 0
      %2335 = vmatprep.subr.bf16.mxu0 0
      %2336 = vmatpush1.bf16.msra.mxu0 0
      %2337 = vmatprep.mubr.bf16.mxu0 0
      %2338 = vmatmul.mubr.bf16.gmra.mrb[0].mxu0 %v2303
      %v2339 = vpop.f32.mrb[0].mxu0
      %v2340 = vadd.f32 %v2276, %v2339
      %v2341 = vpop.f32.mrb[0].mxu0
      %v2342 = vpop.f32.mrb[0].mxu0
      %v2343 = vadd.f32 %v2276, %v2342
      %v2344 = vpop.f32.mrb[0].mxu0
      %2345 = vdwg.mxu0
      %2346 = vst.msk [vmem:[#allocation3] sm:$0xff] %vm540, %v2340
      %2347 = vst.msk [vmem:[#allocation3 + $0x8] sm:$0xf] %vm1467, %v2343
      %v2348 = vld [vmem:[%s13] sm:$0x1]
      %v2349 = vpack.c.bf16 %v2343, %v2340
      %v2351 = vsel %vm201, %v2348, 0
      %v2354 = vsel %vm226, %v2349, 0
      %2356 = vmatprep.subr.bf16.mxu0 0
      %2357 = vmatpush1.bf16.msra.mxu0 %v2354
      %2358 = vmatprep.subr.bf16.mxu0 0
      %2359 = vmatpush1.bf16.msra.mxu0 0
      %2360 = vmatprep.subr.bf16.mxu0 0
      %2361 = vmatpush1.bf16.msra.mxu0 0
      %2362 = vmatprep.subr.bf16.mxu0 0
      %2363 = vmatpush1.bf16.msra.mxu0 0
      %2364 = vmatprep.subr.bf16.mxu0 0
      %2365 = vmatpush1.bf16.msra.mxu0 0
      %2366 = vmatprep.subr.bf16.mxu0 0
      %2367 = vmatpush1.bf16.msra.mxu0 0
      %2368 = vmatprep.subr.bf16.mxu0 0
      %2369 = vmatpush1.bf16.msra.mxu0 0
      %2370 = vmatprep.subr.bf16.mxu0 0
      %2371 = vmatpush1.bf16.msra.mxu0 0
      %2372 = vmatprep.subr.bf16.mxu0 0
      %2373 = vmatpush1.bf16.msra.mxu0 0
      %2374 = vmatprep.subr.bf16.mxu0 0
      %2375 = vmatpush1.bf16.msra.mxu0 0
      %2376 = vmatprep.subr.bf16.mxu0 0
      %2377 = vmatpush1.bf16.msra.mxu0 0
      %2378 = vmatprep.subr.bf16.mxu0 0
      %2379 = vmatpush1.bf16.msra.mxu0 0
      %2380 = vmatprep.subr.bf16.mxu0 0
      %2381 = vmatpush1.bf16.msra.mxu0 0
      %2382 = vmatprep.subr.bf16.mxu0 0
      %2383 = vmatpush1.bf16.msra.mxu0 0
      %2384 = vmatprep.subr.bf16.mxu0 0
      %2385 = vmatpush1.bf16.msra.mxu0 0
      %2386 = vmatprep.subr.bf16.mxu0 0
      %2387 = vmatpush1.bf16.msra.mxu0 0
      %2388 = vmatprep.mubr.bf16.mxu0 0
      %2389 = vmatmul.mubr.bf16.gmra.mrb[0].mxu0 %v2351
      %v2390 = vpop.f32.mrb[0].mxu0
      %v2391 = vadd.f32 0.0, %v2390
      %v2392 = vpop.f32.mrb[0].mxu0
      %v2393 = vpop.f32.mrb[0].mxu0
      %v2394 = vpop.f32.mrb[0].mxu0
      %2395 = vdwg.mxu0
      %v2396 = vld [vmem:[%s17] sm:$0x3]
      %2398 = vset.pattern.permute.xlu0 0
      %2399 = vperm.xlu0 %2398, %v2396
      %v2400 = vpop.permute.xlu0 %2399
      %v2402 = vmul.f32 %v2391, %v2400
      %v2403 = vld [vmem:[%s11] sm:$0x3]
      %v2404 = vld [vmem:[%s51] sm:$0xf]
      %v2405 = vld [vmem:[%s51 + $0x4] sm:$0xf]
      %v2406 = vld [vmem:[%s51 + $0x8] sm:$0xf]
      %v2407 = vld [vmem:[%s51 + $0xc] sm:$0xf]
      %v2408 = vpack.c.bf16 %v2403, %v2403
      %v2409 = vld [vmem:[%s53] sm:$0xf]
      %v2410 = vld [vmem:[%s53 + $0x4] sm:$0xf]
      %v2411 = vld [vmem:[%s53 + $0x8] sm:$0xf]
      %v2412 = vld [vmem:[%s53 + $0xc] sm:$0xf]
      %v2413 = vpack.c.bf16 %v2402, %v2402
      %v2418 = vunpack.c.l.b16 %v2409
      %v2419 = vunpack.c.l.b16 %v2410
      %v2420 = vunpack.c.l.b16 %v2411
      %v2421 = vunpack.c.l.b16 %v2412
      %v2422 = vpack.c.b16 %v2419, %v2418
      %v2423 = vpack.c.b16 %v2421, %v2420
      %v2427 = vsel %vm540, %v2413, 0
      %2429 = vmatprep.subr.bf16.mxu0 0
      %2430 = vmatpush1.bf16.msra.mxu0 %v2422
      %2431 = vmatprep.subr.bf16.mxu0 0
      %2432 = vmatpush1.bf16.msra.mxu0 %v2423
      %2433 = vmatprep.subr.bf16.mxu0 0
      %2434 = vmatpush1.bf16.msra.mxu0 0
      %2435 = vmatprep.subr.bf16.mxu0 0
      %2436 = vmatpush1.bf16.msra.mxu0 0
      %2437 = vmatprep.subr.bf16.mxu0 0
      %2438 = vmatpush1.bf16.msra.mxu0 0
      %2439 = vmatprep.subr.bf16.mxu0 0
      %2440 = vmatpush1.bf16.msra.mxu0 0
      %2441 = vmatprep.subr.bf16.mxu0 0
      %2442 = vmatpush1.bf16.msra.mxu0 0
      %2443 = vmatprep.subr.bf16.mxu0 0
      %2444 = vmatpush1.bf16.msra.mxu0 0
      %2445 = vmatprep.subr.bf16.mxu0 0
      %2446 = vmatpush1.bf16.msra.mxu0 0
      %2447 = vmatprep.subr.bf16.mxu0 0
      %2448 = vmatpush1.bf16.msra.mxu0 0
      %2449 = vmatprep.subr.bf16.mxu0 0
      %2450 = vmatpush1.bf16.msra.mxu0 0
      %2451 = vmatprep.subr.bf16.mxu0 0
      %2452 = vmatpush1.bf16.msra.mxu0 0
      %2453 = vmatprep.subr.bf16.mxu0 0
      %2454 = vmatpush1.bf16.msra.mxu0 0
      %2455 = vmatprep.subr.bf16.mxu0 0
      %2456 = vmatpush1.bf16.msra.mxu0 0
      %2457 = vmatprep.subr.bf16.mxu0 0
      %2458 = vmatpush1.bf16.msra.mxu0 0
      %2459 = vmatprep.subr.bf16.mxu0 0
      %2460 = vmatpush1.bf16.msra.mxu0 0
      %2461 = vmatprep.mubr.bf16.mxu0 0
      %2462 = vmatmul.mubr.bf16.gmra.mrb[0].mxu0 %v2427
      %v2463 = vpop.f32.mrb[0].mxu0
      %v2464 = vadd.f32 0.0, %v2463
      %v2465 = vpop.f32.mrb[0].mxu0
      %v2466 = vpop.f32.mrb[0].mxu0
      %v2467 = vpop.f32.mrb[0].mxu0
      %2468 = vdwg.mxu0
      %v2473 = vunpack.c.l.b16 %v2404
      %v2474 = vunpack.c.l.b16 %v2405
      %v2475 = vunpack.c.l.b16 %v2406
      %v2476 = vunpack.c.l.b16 %v2407
      %v2477 = vpack.c.b16 %v2474, %v2473
      %v2478 = vpack.c.b16 %v2476, %v2475
      %v2482 = vsel %vm540, %v2408, 0
      %2484 = vmatprep.subr.bf16.mxu0 0
      %2485 = vmatpush1.bf16.msra.mxu0 %v2477
      %2486 = vmatprep.subr.bf16.mxu0 0
      %2487 = vmatpush1.bf16.msra.mxu0 %v2478
      %2488 = vmatprep.subr.bf16.mxu0 0
      %2489 = vmatpush1.bf16.msra.mxu0 0
      %2490 = vmatprep.subr.bf16.mxu0 0
      %2491 = vmatpush1.bf16.msra.mxu0 0
      %2492 = vmatprep.subr.bf16.mxu0 0
      %2493 = vmatpush1.bf16.msra.mxu0 0
      %2494 = vmatprep.subr.bf16.mxu0 0
      %2495 = vmatpush1.bf16.msra.mxu0 0
      %2496 = vmatprep.subr.bf16.mxu0 0
      %2497 = vmatpush1.bf16.msra.mxu0 0
      %2498 = vmatprep.subr.bf16.mxu0 0
      %2499 = vmatpush1.bf16.msra.mxu0 0
      %2500 = vmatprep.subr.bf16.mxu0 0
      %2501 = vmatpush1.bf16.msra.mxu0 0
      %2502 = vmatprep.subr.bf16.mxu0 0
      %2503 = vmatpush1.bf16.msra.mxu0 0
      %2504 = vmatprep.subr.bf16.mxu0 0
      %2505 = vmatpush1.bf16.msra.mxu0 0
      %2506 = vmatprep.subr.bf16.mxu0 0
      %2507 = vmatpush1.bf16.msra.mxu0 0
      %2508 = vmatprep.subr.bf16.mxu0 0
      %2509 = vmatpush1.bf16.msra.mxu0 0
      %2510 = vmatprep.subr.bf16.mxu0 0
      %2511 = vmatpush1.bf16.msra.mxu0 0
      %2512 = vmatprep.subr.bf16.mxu0 0
      %2513 = vmatpush1.bf16.msra.mxu0 0
      %2514 = vmatprep.subr.bf16.mxu0 0
      %2515 = vmatpush1.bf16.msra.mxu0 0
      %2516 = vmatprep.mubr.bf16.mxu0 0
      %2517 = vmatmul.mubr.bf16.gmra.mrb[0].mxu0 %v2482
      %v2518 = vpop.f32.mrb[0].mxu0
      %v2519 = vadd.f32 %v2464, %v2518
      %v2520 = vpop.f32.mrb[0].mxu0
      %v2521 = vpop.f32.mrb[0].mxu0
      %v2522 = vpop.f32.mrb[0].mxu0
      %2523 = vdwg.mxu0
      %v2524 = vld [vmem:[%s55] sm:$0x1]
      %v2526 = vlaneseq
      %v2527 = vshrl.u32 %v2526, 7
      %v2528 = vsub.s32 0, %v2527
      %v2529 = vrot.slane %v2524, %v2528
      %v2531 = vadd.f32 %v2519, %v2529
      %vm2532 = vcmp.gt.f32.partialorder %v2531, 0.0
      %v2533 = vmin.f32 %v2531, 0.0
      %v2534 = vmul.f32 %v2533, 1.442695
      %v2535 = vpow.pop %v2534
      %v2536 = vsub.f32 %v2535, 1.0
      %v2537 = vsel %vm2532, %v2531, %v2536
      %v2538 = vld [vmem:[%s57] sm:$0xf]
      %v2539 = vld [vmem:[%s57 + $0x4] sm:$0xf]
      %v2540 = vld [vmem:[%s57 + $0x8] sm:$0xf]
      %v2541 = vld [vmem:[%s57 + $0xc] sm:$0xf]
      %v2542 = vld [vmem:[%s57 + $0x10] sm:$0xf]
      %v2543 = vld [vmem:[%s57 + $0x14] sm:$0xf]
      %v2544 = vld [vmem:[%s57 + $0x18] sm:$0xf]
      %v2545 = vld [vmem:[%s57 + $0x1c] sm:$0xf]
      %v2546 = vpack.c.bf16 %v2537, %v2537
      %v2547 = vld [vmem:[%s59] sm:$0x1]
      %v2549 = vlaneseq
      %v2550 = vshrl.u32 %v2549, 7
      %v2551 = vsub.s32 0, %v2550
      %v2552 = vrot.slane %v2547, %v2551
      %v2562 = vunpack.c.l.b16 %v2538
      %v2563 = vunpack.c.l.b16 %v2539
      %v2564 = vunpack.c.l.b16 %v2540
      %v2565 = vunpack.c.l.b16 %v2541
      %v2566 = vunpack.c.l.b16 %v2542
      %v2567 = vunpack.c.l.b16 %v2543
      %v2568 = vunpack.c.l.b16 %v2544
      %v2569 = vunpack.c.l.b16 %v2545
      %v2570 = vpack.c.b16 %v2563, %v2562
      %v2571 = vpack.c.b16 %v2565, %v2564
      %v2572 = vpack.c.b16 %v2567, %v2566
      %v2573 = vpack.c.b16 %v2569, %v2568
      %v2579 = vsel %vm1900, %v2546, 0
      %2581 = vmatprep.subr.bf16.mxu0 0
      %2582 = vmatpush1.bf16.msra.mxu0 %v2570
      %2583 = vmatprep.subr.bf16.mxu0 0
      %2584 = vmatpush1.bf16.msra.mxu0 %v2571
      %2585 = vmatprep.subr.bf16.mxu0 0
      %2586 = vmatpush1.bf16.msra.mxu0 %v2572
      %2587 = vmatprep.subr.bf16.mxu0 0
      %2588 = vmatpush1.bf16.msra.mxu0 %v2573
      %2589 = vmatprep.subr.bf16.mxu0 0
      %2590 = vmatpush1.bf16.msra.mxu0 0
      %2591 = vmatprep.subr.bf16.mxu0 0
      %2592 = vmatpush1.bf16.msra.mxu0 0
      %2593 = vmatprep.subr.bf16.mxu0 0
      %2594 = vmatpush1.bf16.msra.mxu0 0
      %2595 = vmatprep.subr.bf16.mxu0 0
      %2596 = vmatpush1.bf16.msra.mxu0 0
      %2597 = vmatprep.subr.bf16.mxu0 0
      %2598 = vmatpush1.bf16.msra.mxu0 0
      %2599 = vmatprep.subr.bf16.mxu0 0
      %2600 = vmatpush1.bf16.msra.mxu0 0
      %2601 = vmatprep.subr.bf16.mxu0 0
      %2602 = vmatpush1.bf16.msra.mxu0 0
      %2603 = vmatprep.subr.bf16.mxu0 0
      %2604 = vmatpush1.bf16.msra.mxu0 0
      %2605 = vmatprep.subr.bf16.mxu0 0
      %2606 = vmatpush1.bf16.msra.mxu0 0
      %2607 = vmatprep.subr.bf16.mxu0 0
      %2608 = vmatpush1.bf16.msra.mxu0 0
      %2609 = vmatprep.subr.bf16.mxu0 0
      %2610 = vmatpush1.bf16.msra.mxu0 0
      %2611 = vmatprep.subr.bf16.mxu0 0
      %2612 = vmatpush1.bf16.msra.mxu0 0
      %2613 = vmatprep.mubr.bf16.mxu0 0
      %2614 = vmatmul.mubr.bf16.gmra.mrb[0].mxu0 %v2579
      %v2615 = vpop.f32.mrb[0].mxu0
      %v2616 = vadd.f32 %v2552, %v2615
      %v2617 = vpop.f32.mrb[0].mxu0
      %v2618 = vpop.f32.mrb[0].mxu0
      %v2619 = vpop.f32.mrb[0].mxu0
      %2620 = vdwg.mxu0
      %vm2621 = vcmask 517120
      %2622 = vst.msk [vmem:[%s65] sm:$0x3] %vm2621, %v2616
    $region129: #{net_forward.22} parent=1 // pred_fallthru
      _
    // Predicated region
    $region130: #{net_forward.22} parent=1 // pred_check
      _
    $region131: #{net_forward.22} parent=1 // pred_check_branch
      %2624 = sbr.rel (0) target = $region133
    $region132: #{net_forward.22} parent=1 // pred_region
      %s2626 = ssub.s32 256, 256
      %2627 = vsyncadd [#allocation4], %s2626
      %s2628 = sshll.u32 [#allocation3], 4
      %s2629 = int_to_ptr.vmem [resolvable:$true] %s2628
      %2634 = dma.vmem_to_hbm [thread:$0]  %s2629, 256, %s61, [#allocation4], 128, 128, 8
    $region133: #{net_forward.22} parent=1 // pred_fallthru
      _
    // Predicated region
    $region134: #{net_forward.22} parent=1 // pred_check
      _
    $region135: #{net_forward.22} parent=1 // pred_check_branch
      %2636 = sbr.rel (0) target = $region137
    $region136: #{net_forward.22} parent=1 // pred_region
      %s2638 = ssub.s32 1024, 1024
      %2639 = vsyncadd [#allocation6], %s2638
      %s2640 = sshll.u32 [#allocation5], 4
      %s2641 = int_to_ptr.vmem [resolvable:$true] %s2640
      %2646 = dma.vmem_to_hbm [thread:$0]  %s2641, 1024, %s63, [#allocation6], 64, 64, 4
    $region137: #{net_forward.22} parent=1 // pred_fallthru
      _
    // Predicated region
    $region138: #{net_forward.22} parent=1 // pred_check
      _
    $region139: #{net_forward.22} parent=1 // pred_check_branch
      %2648 = sbr.rel (0) target = $region141
    $region140: #{net_forward.22} parent=1 // pred_region
      _
    $region141: #{net_forward.22} parent=1 // pred_fallthru
      _
    // Predicated region
    $region142: #{net_forward.22} parent=1 // pred_check
      _
    $region143: #{net_forward.22} parent=1 // pred_check_branch
      %2650 = sbr.rel (0) target = $region145
    $region144: #{net_forward.22} parent=1 // pred_region
      %2651 = dma.done [#allocation4], 256
    $region145: #{net_forward.22} parent=1 // pred_fallthru
      _
    // Predicated region
    $region146: #{net_forward.22} parent=1 // pred_check
      _
    $region147: #{net_forward.22} parent=1 // pred_check_branch
      %2653 = sbr.rel (0) target = $region149
    $region148: #{net_forward.22} parent=1 // pred_region
      %2654 = dma.done [#allocation6], 1024
    $region149: #{net_forward.22} parent=1 // pred_fallthru
      _
    // Predicated region
    $region150: #{net_forward.22} parent=1 // pred_check
      _
    $region151: #{net_forward.22} parent=1 // pred_check_branch
      %2656 = sbr.rel (0) target = $region153
    $region152: #{net_forward.22} parent=1 // pred_region
      _
    $region153: #{net_forward.22} parent=1 // pred_fallthru
      _
    %2657 = vsyncpa [#allocation4], 1
    %2658 = vsyncpa [#allocation6], 1

</llo_original>
